<compile_context>
chip_gen: v7x
topology: tpu7x:2x2x1
jax: 0.10.0
libtpu: 0.0.40
codegen_flags: <defaults>
</compile_context>

<pallas_src>
import functools
import math

import jax
import jax.numpy as jnp
from jax.experimental import pallas as pl
from jax.experimental.pallas import tpu as pltpu

_VMEM_LIMIT = 48 * 1024 * 1024  # <= physical VMEM on v5e/v6e (128 MiB) and v7x (64 MiB)


def _pick_tile(dim, desired, align):
    """Largest aligned divisor of `dim` that is <= desired, else the full dim."""
    if dim <= desired:
        return dim
    t = (desired // align) * align
    while t >= align:
        if dim % t == 0:
            return t
        t -= align
    return dim


# ---------------------------------------------------------------------------
# Fused (LayerNorm?) -> matmul -> bias -> (QuickGELU?) -> (+residual?) kernel
# ---------------------------------------------------------------------------

def _fused_linear_kernel(*refs, has_ln, activation, has_residual, n_k):
    idx = 0
    x_ref = refs[idx]; idx += 1
    if has_ln:
        g_ref = refs[idx]; idx += 1
        beta_ref = refs[idx]; idx += 1
    w_ref = refs[idx]; idx += 1
    b_ref = refs[idx]; idx += 1
    if has_residual:
        r_ref = refs[idx]; idx += 1
    o_ref = refs[idx]; idx += 1
    acc_ref = refs[idx]; idx += 1
    xn_ref = refs[idx] if has_ln else None

    j = pl.program_id(1)
    k = pl.program_id(2)

    @pl.when(k == 0)
    def _init():
        acc_ref[...] = jnp.zeros_like(acc_ref)

    if has_ln:
        # LayerNorm prologue (tk == K enforced by the wrapper).  The normalized
        # row block is cached in VMEM and reused for every output (j) tile.
        @pl.when(j == 0)
        def _ln():
            x = x_ref[...].astype(jnp.float32)
            mu = jnp.mean(x, axis=-1, keepdims=True)
            xc = x - mu
            var = jnp.mean(xc * xc, axis=-1, keepdims=True)
            xn = xc * jax.lax.rsqrt(var + 1e-5) * g_ref[...] + beta_ref[...]
            xn_ref[...] = xn.astype(xn_ref.dtype)

        xmat = xn_ref[...]                       # bf16 cache
    else:
        xmat = x_ref[...].astype(jnp.bfloat16)

    acc_ref[...] += jnp.dot(xmat, w_ref[...], preferred_element_type=jnp.float32)

    @pl.when(k == n_k - 1)
    def _store():
        y = acc_ref[...] + b_ref[...]
        if activation == "quick_gelu":
            y = y * jax.nn.sigmoid(1.702 * y)    # QuickGELU
        if has_residual:
            y = y + r_ref[...].astype(jnp.float32)
        o_ref[...] = y.astype(o_ref.dtype)


def linear(x, w, b, *, ln=None, activation=None, residual=None,
           out_dtype=jnp.float32, tm=512, tn=256, tk=512):
    """y = [ +residual ] act( LN?(x) @ w + b );  w is (Din, Dout) bf16."""
    M, K = x.shape
    K2, N = w.shape
    assert K == K2
    w = w.astype(jnp.bfloat16)                   # no-op: weights are stored bf16
    if ln is not None:
        tk = K                                   # LN prologue needs the whole row
    tm = _pick_tile(M, tm, 8)
    tn = _pick_tile(N, tn, 128)
    tk = _pick_tile(K, tk, 128)
    n_k = K // tk

    in_specs = [pl.BlockSpec((tm, tk), lambda i, j, k: (i, k))]
    args = [x]
    if ln is not None:
        g, beta = ln
        in_specs += [pl.BlockSpec((1, tk), lambda i, j, k: (0, k)),
                     pl.BlockSpec((1, tk), lambda i, j, k: (0, k))]
        args += [g.reshape(1, K), beta.reshape(1, K)]
    in_specs += [pl.BlockSpec((tk, tn), lambda i, j, k: (k, j)),
                 pl.BlockSpec((1, tn), lambda i, j, k: (0, j))]
    args += [w, b.reshape(1, N)]
    if residual is not None:
        in_specs.append(pl.BlockSpec((tm, tn), lambda i, j, k: (i, j)))
        args.append(residual)

    scratch = [pltpu.VMEM((tm, tn), jnp.float32)]
    if ln is not None:
        scratch.append(pltpu.VMEM((tm, tk), jnp.bfloat16))   # LN row cache

    # With the LN cache the j axis must stay on one core (j == 0 runs first for
    # every i tile); without LN both i and j can be megacore-parallel.
    semantics = (("parallel", "arbitrary", "arbitrary") if ln is not None
                 else ("parallel", "parallel", "arbitrary"))

    kernel = functools.partial(_fused_linear_kernel,
                               has_ln=ln is not None,
                               activation=activation,
                               has_residual=residual is not None,
                               n_k=n_k)
    return pl.pallas_call(
        kernel,
        out_shape=jax.ShapeDtypeStruct((M, N), out_dtype),
        grid=(M // tm, N // tn, n_k),
        in_specs=in_specs,
        out_specs=pl.BlockSpec((tm, tn), lambda i, j, k: (i, j)),
        scratch_shapes=scratch,
        compiler_params=pltpu.CompilerParams(
            dimension_semantics=semantics,
            vmem_limit_bytes=_VMEM_LIMIT),
    )(*args)


# ---------------------------------------------------------------------------
# Attention core: grid over batch, static loop over heads, optional single
# extra key/value token combined with a flash-style two-chunk softmax.
# ---------------------------------------------------------------------------

def _attn_kernel(*refs, n_head, has_extra, has_mask):
    idx = 0
    qkv_ref = refs[idx]; idx += 1
    ex_ref = None
    if has_extra:
        ex_ref = refs[idx]; idx += 1
    m_ref = None
    if has_mask:
        m_ref = refs[idx]; idx += 1
    o_ref = refs[idx]

    S = qkv_ref.shape[0]
    mval = m_ref[...] if has_mask else None      # (S, Sk) f32

    for h in range(n_head):                      # static unroll; all 2-D ops
        q = qkv_ref[:, 0, 0, h, :]               # (S, dh) bf16 (1/sqrt(dh) folded)
        kk = qkv_ref[:, 0, 1, h, :]
        vv = qkv_ref[:, 0, 2, h, :]
        s = jax.lax.dot_general(q, kk, (((1,), (1,)), ((), ())),
                                preferred_element_type=jnp.float32)       # (S, S)
        if has_mask:
            s = s + mval[:, :S]
        if has_extra:
            # Single message token contributes keys/values only.
            ke = ex_ref[:, 0, 1, h, :].astype(jnp.float32)                # (1, dh)
            ve = ex_ref[:, 0, 2, h, :].astype(jnp.float32)                # (1, dh)
            s2 = jnp.sum(q.astype(jnp.float32) * ke, axis=-1, keepdims=True)  # (S,1)
            if has_mask:
                s2 = s2 + mval[:, S:]
            mx = jnp.maximum(jnp.max(s, axis=-1, keepdims=True),
                             jnp.max(s2, axis=-1, keepdims=True))
            p = jnp.exp(s - mx)
            p2 = jnp.exp(s2 - mx)
            denom = (jnp.sum(p, axis=-1, keepdims=True)
                     + jnp.sum(p2, axis=-1, keepdims=True))
            o = jax.lax.dot_general(p.astype(vv.dtype), vv,
                                    (((1,), (0,)), ((), ())),
                                    preferred_element_type=jnp.float32)   # (S, dh)
            o = o + p2 * ve                      # (S,1)*(1,dh) outer product
        else:
            mx = jnp.max(s, axis=-1, keepdims=True)
            p = jnp.exp(s - mx)
            denom = jnp.sum(p, axis=-1, keepdims=True)
            o = jax.lax.dot_general(p.astype(vv.dtype), vv,
                                    (((1,), (0,)), ((), ())),
                                    preferred_element_type=jnp.float32)
        o = o * pl.reciprocal(denom, approx=True)
        o_ref[:, 0, h, :] = o.astype(o_ref.dtype)


def attn_core(qkv, qkv_extra=None, mask=None):
    # qkv: (S, N, 3, H, dh) bf16; qkv_extra: (1, N, 3, H, dh) bf16 (K/V only).
    # Returns (S, N, H, dh) bf16 whose reshape to (S*N, D) is free.
    S, N, three, H, dh = qkv.shape
    assert three == 3
    in_specs = [pl.BlockSpec((S, 1, 3, H, dh), lambda n: (0, n, 0, 0, 0))]
    args = [qkv]
    if qkv_extra is not None:
        Se = qkv_extra.shape[0]
        assert Se == 1 and qkv_extra.shape[1:] == (N, 3, H, dh)
        in_specs.append(pl.BlockSpec((Se, 1, 3, H, dh), lambda n: (0, n, 0, 0, 0)))
        args.append(qkv_extra)
    if mask is not None:
        Sk = S + (qkv_extra.shape[0] if qkv_extra is not None else 0)
        assert mask.shape == (S, Sk)
        in_specs.append(pl.BlockSpec((S, Sk), lambda n: (0, 0)))
        args.append(mask.astype(jnp.float32))

    # TODO(synk): for long sequences, tile the KV axis flash-style (and per head
    # on v7x) instead of materializing the full (S, S) scores per head per batch.
    kernel = functools.partial(_attn_kernel, n_head=H,
                               has_extra=qkv_extra is not None,
                               has_mask=mask is not None)
    return pl.pallas_call(
        kernel,
        out_shape=jax.ShapeDtypeStruct((S, N, H, dh), jnp.bfloat16),
        grid=(N,),
        in_specs=in_specs,
        out_specs=pl.BlockSpec((S, 1, H, dh), lambda n: (0, n, 0, 0)),
        compiler_params=pltpu.CompilerParams(
            dimension_semantics=("parallel",),
            vmem_limit_bytes=_VMEM_LIMIT),
    )(*args)


# ---------------------------------------------------------------------------
# Module forward (glue in JAX, compute in kernels above)
# ---------------------------------------------------------------------------

def multi_head_attention(x, ln_g, ln_b, p, n_head, mask=None, extra_kv=None):
    # Returns x + out_proj(self_attn(LN(x) [, LN(extra_kv) as extra K/V rows])).
    # x: (S, N, D) f32; extra_kv: (1, N, D) f32 (keys/values only).
    S, N, D = x.shape
    H = n_head
    dh = D // H
    x2 = x.reshape(S * N, D)
    qkv = linear(x2, p["in_w"], p["in_b"], ln=(ln_g, ln_b),
                 out_dtype=jnp.bfloat16)                       # (S*N, 3D) bf16
    qkv = qkv.reshape(S, N, 3, H, dh)                          # free reshape
    qkv_e = None
    if extra_kv is not None:
        Se = extra_kv.shape[0]
        qkv_e = linear(extra_kv.reshape(Se * N, D), p["in_w"], p["in_b"],
                       ln=(ln_g, ln_b), out_dtype=jnp.bfloat16,
                       tm=1024, tn=4096, tk=4096)              # tiny: collapse grid
        qkv_e = qkv_e.reshape(Se, N, 3, H, dh)
    o = attn_core(qkv, qkv_e, mask)                            # (S, N, H, dh) bf16
    o = o.reshape(S * N, D)                                    # free reshape
    out = linear(o, p["out_w"], p["out_b"], residual=x2)       # (S*N, D) f32
    return out.reshape(S, N, D)


def block_forward(x, p, n_head, T, attn_mask=None):
    # TemporalFusionAttentionBlock.forward; droppath = 0.0 -> identity.
    l, bt, d = x.shape
    b = bt // T
    x4 = x.reshape(l, b, T, d)

    # Message-token path (tiny: b*T rows).
    msg = linear(x4[0].reshape(b * T, d), p["msg_fc_w"], p["msg_fc_b"],
                 tm=1024, tn=4096, tk=4096)
    msg = msg.reshape(b, T, d).transpose(1, 0, 2)              # (T, b, d)
    msg = multi_head_attention(msg, p["msg_ln_g"], p["msg_ln_b"],
                               p["msg_attn"], n_head)          # msg + attn(ln(msg))
    msg = msg.transpose(1, 0, 2).reshape(1, bt, d)             # (1, b*T, d)

    # Main attention: queries are the original L rows; the message row only
    # contributes keys/values (its attention output is discarded by x[:l] in
    # the reference), so no concat / slice of the activation is needed.
    mask = attn_mask[:l, :] if attn_mask is not None else None
    xa = multi_head_attention(x, p["ln1_g"], p["ln1_b"], p["attn"], n_head,
                              mask=mask, extra_kv=msg)         # (l, bt, d)

    # MLP: x + c_proj(QuickGELU(c_fc(ln_2(x)))) — ln_2 and GELU fused into c_fc,
    # residual fused into c_proj; the hidden stays bf16 between the two kernels.
    x2 = xa.reshape(l * bt, d)
    h = linear(x2, p["fc_w"], p["fc_b"], ln=(p["ln2_g"], p["ln2_b"]),
               activation="quick_gelu", out_dtype=jnp.bfloat16)
    out = linear(h, p["proj_w"], p["proj_b"], residual=x2)
    return out.reshape(l, bt, d)


def transformer_forward(x, params_list, n_head, T, attn_mask=None):
    # TODO(synk): checkpoint_sequential (use_checkpoint=True) is a training-time
    # rematerialization detail; the use_checkpoint=False forward path is implemented.
    for p in params_list:
        x = block_forward(x, p, n_head, T, attn_mask)
    return x


# ---------------------------------------------------------------------------
# Deterministic parameter init. Weights are stored pre-transposed to (Din, Dout)
# and pre-cast to bf16; 1/sqrt(dh) is folded into the Q part of the in-proj.
# Biases and LayerNorm params stay f32.
# ---------------------------------------------------------------------------

def init_mha_params(key, d, n_head):
    k1, k2 = jax.random.split(key)
    scale = 1.0 / math.sqrt(d // n_head)
    in_w = 0.02 * jax.random.normal(k1, (d, 3 * d), jnp.float32)
    in_b = jnp.zeros((3 * d,), jnp.float32)
    in_w = in_w.at[:, :d].multiply(scale)        # fold attention scale into Q
    in_b = in_b.at[:d].multiply(scale)
    return {
        "in_w": in_w.astype(jnp.bfloat16), "in_b": in_b,
        "out_w": (0.02 * jax.random.normal(k2, (d, d), jnp.float32)
                  ).astype(jnp.bfloat16),
        "out_b": jnp.zeros((d,), jnp.float32),
    }


def init_block_params(key, d, n_head):
    ks = jax.random.split(key, 5)
    return {
        "msg_fc_w": (0.02 * jax.random.normal(ks[0], (d, d), jnp.float32)
                     ).astype(jnp.bfloat16),
        "msg_fc_b": jnp.zeros((d,), jnp.float32),
        "msg_ln_g": jnp.ones((d,), jnp.float32),
        "msg_ln_b": jnp.zeros((d,), jnp.float32),
        "msg_attn": init_mha_params(ks[1], d, n_head),
        "attn": init_mha_params(ks[2], d, n_head),
        "ln1_g": jnp.ones((d,), jnp.float32),
        "ln1_b": jnp.zeros((d,), jnp.float32),
        "fc_w": (0.02 * jax.random.normal(ks[3], (d, 4 * d), jnp.float32)
                 ).astype(jnp.bfloat16),
        "fc_b": jnp.zeros((4 * d,), jnp.float32),
        "proj_w": (0.02 * jax.random.normal(ks[4], (4 * d, d), jnp.float32)
                   ).astype(jnp.bfloat16),
        "proj_b": jnp.zeros((d,), jnp.float32),
        "ln2_g": jnp.ones((d,), jnp.float32),
        "ln2_b": jnp.zeros((d,), jnp.float32),
    }


# ---------------------------------------------------------------------------

if __name__ == "__main__":
    width, layers, heads, T = 32, 2, 4, 4
    b, l = 2, 8                                  # batch (videos), seq length
    key = jax.random.PRNGKey(0)
    kx, kp = jax.random.split(key)

    params_list = [init_block_params(k, width, heads)
                   for k in jax.random.split(kp, layers)]

    x = jax.random.normal(kx, (l, b * T, width), jnp.float32)   # (L, B*T, D)

    @jax.jit
    def run(inp):
        return transformer_forward(inp, params_list, n_head=heads, T=T)

    out = run(x)
    jax.block_until_ready(out)
    assert out.shape == (l, b * T, width)
    assert bool(jnp.all(jnp.isfinite(out)))
    print("KERNEL_OK")
</pallas_src>

<mosaic_0001>
module attributes {stable_mosaic.version = 11 : i64} {
  func.func @_fused_linear_kernel(%arg0: i32, %arg1: i32, %arg2: i32, %arg3: memref<8x32xf32, #tpu.memory_space<vmem>>, %arg4: memref<32x32xbf16, #tpu.memory_space<vmem>>, %arg5: memref<1x32xf32, #tpu.memory_space<vmem>>, %arg6: memref<8x32xf32, #tpu.memory_space<vmem>>, %arg7: memref<8x32xf32, #tpu.memory_space<vmem>>) attributes {dimension_semantics = [#tpu.dimension_semantics<parallel>, #tpu.dimension_semantics<parallel>, #tpu.dimension_semantics<arbitrary>], iteration_bounds = array<i64: 1, 1, 1>, scalar_prefetch = 0 : i64, scratch_operands = 1 : i64, tpu.core_type = #tpu.core_type<tc>, window_params = [{transform_indices = @transform_0, window_bounds = array<i64: 8, 32>}, {transform_indices = @transform_1, window_bounds = array<i64: 32, 32>}, {transform_indices = @transform_2, window_bounds = array<i64: 1, 32>}, {transform_indices = @transform_3, window_bounds = array<i64: 8, 32>}]} {
    %c0_i32 = arith.constant 0 : i32
    %0 = arith.cmpi eq, %arg2, %c0_i32 : i32
    %1 = arith.extui %0 : i1 to i32
    %c0_i32_0 = arith.constant 0 : i32
    %2 = arith.cmpi ne, %1, %c0_i32_0 : i32
    scf.if %2 {
      %cst_10 = arith.constant 0.000000e+00 : f32
      %13 = vector.broadcast %cst_10 : f32 to vector<8x32xf32>
      %c0_11 = arith.constant 0 : index
      %c0_12 = arith.constant 0 : index
      %14 = vector.load %arg7[%c0_11, %c0_12] : memref<8x32xf32, #tpu.memory_space<vmem>>, vector<8x32xf32>
      tpu.vector_store %arg7[%c0_11, %c0_12], %13 {strides = array<i32>} : memref<8x32xf32, #tpu.memory_space<vmem>>, vector<8x32xf32>,
    } else {
    }
    %c0 = arith.constant 0 : index
    %c0_1 = arith.constant 0 : index
    %3 = vector.load %arg3[%c0, %c0_1] : memref<8x32xf32, #tpu.memory_space<vmem>>, vector<8x32xf32>
    %4 = arith.truncf %3 : vector<8x32xf32> to vector<8x32xbf16>
    %c0_2 = arith.constant 0 : index
    %c0_3 = arith.constant 0 : index
    %5 = vector.load %arg7[%c0_2, %c0_3] : memref<8x32xf32, #tpu.memory_space<vmem>>, vector<8x32xf32>
    %c0_4 = arith.constant 0 : index
    %c0_5 = arith.constant 0 : index
    %6 = vector.load %arg4[%c0_4, %c0_5] : memref<32x32xbf16, #tpu.memory_space<vmem>>, vector<32x32xbf16>
    %cst = arith.constant dense<0.000000e+00> : vector<8x32xf32>
    %7 = tpu.matmul %4, %6, %cst {dimension_numbers = #tpu.dot_dimension_numbers<[1], [0], [0], [1], [0, 0, 1, 1], [], []>} : vector<8x32xbf16>, vector<32x32xbf16>, vector<8x32xf32> -> vector<8x32xf32>
    %8 = arith.addf %5, %7 : vector<8x32xf32>
    %c0_6 = arith.constant 0 : index
    %c0_7 = arith.constant 0 : index
    %9 = vector.load %arg7[%c0_6, %c0_7] : memref<8x32xf32, #tpu.memory_space<vmem>>, vector<8x32xf32>
    tpu.vector_store %arg7[%c0_6, %c0_7], %8 {strides = array<i32>} : memref<8x32xf32, #tpu.memory_space<vmem>>, vector<8x32xf32>,
    %c0_i32_8 = arith.constant 0 : i32
    %10 = arith.cmpi eq, %arg2, %c0_i32_8 : i32
    %11 = arith.extui %10 : i1 to i32
    %c0_i32_9 = arith.constant 0 : i32
    %12 = arith.cmpi ne, %11, %c0_i32_9 : i32
    scf.if %12 {
      %c0_10 = arith.constant 0 : index
      %c0_11 = arith.constant 0 : index
      %13 = vector.load %arg7[%c0_10, %c0_11] : memref<8x32xf32, #tpu.memory_space<vmem>>, vector<8x32xf32>
      %c0_12 = arith.constant 0 : index
      %c0_13 = arith.constant 0 : index
      %14 = vector.load %arg5[%c0_12, %c0_13] : memref<1x32xf32, #tpu.memory_space<vmem>>, vector<1x32xf32>
      %15 = vector.broadcast %14 : vector<1x32xf32> to vector<8x32xf32>
      %16 = arith.addf %13, %15 : vector<8x32xf32>
      %c0_14 = arith.constant 0 : index
      %c0_15 = arith.constant 0 : index
      %17 = vector.load %arg6[%c0_14, %c0_15] : memref<8x32xf32, #tpu.memory_space<vmem>>, vector<8x32xf32>
      tpu.vector_store %arg6[%c0_14, %c0_15], %16 {strides = array<i32>} : memref<8x32xf32, #tpu.memory_space<vmem>>, vector<8x32xf32>,
    } else {
    }
    return
  }
  func.func @transform_0(%arg0: i32, %arg1: i32, %arg2: i32) -> (i32, i32) {
    %c0_i32 = arith.constant 0 : i32
    return %arg0, %arg2 : i32, i32
  }
  func.func @transform_1(%arg0: i32, %arg1: i32, %arg2: i32) -> (i32, i32) {
    %c0_i32 = arith.constant 0 : i32
    return %arg2, %arg1 : i32, i32
  }
  func.func @transform_2(%arg0: i32, %arg1: i32, %arg2: i32) -> (i32, i32) {
    %c0_i32 = arith.constant 0 : i32
    %c0_i32_0 = arith.constant 0 : i32
    return %c0_i32, %arg1 : i32, i32
  }
  func.func @transform_3(%arg0: i32, %arg1: i32, %arg2: i32) -> (i32, i32) {
    %c0_i32 = arith.constant 0 : i32
    return %arg0, %arg1 : i32, i32
  }
}

module attributes {stable_mosaic.version = 11 : i64} {
  func.func @_fused_linear_kernel(%arg0: i32, %arg1: i32, %arg2: i32, %arg3: memref<64x32xf32, #tpu.memory_space<vmem>>, %arg4: memref<1x32xf32, #tpu.memory_space<vmem>>, %arg5: memref<1x32xf32, #tpu.memory_space<vmem>>, %arg6: memref<32x96xbf16, #tpu.memory_space<vmem>>, %arg7: memref<1x96xf32, #tpu.memory_space<vmem>>, %arg8: memref<64x96xbf16, #tpu.memory_space<vmem>>, %arg9: memref<64x96xf32, #tpu.memory_space<vmem>>, %arg10: memref<64x32xbf16, #tpu.memory_space<vmem>>) attributes {dimension_semantics = [#tpu.dimension_semantics<parallel>, #tpu.dimension_semantics<arbitrary>, #tpu.dimension_semantics<arbitrary>], iteration_bounds = array<i64: 1, 1, 1>, scalar_prefetch = 0 : i64, scratch_operands = 2 : i64, tpu.core_type = #tpu.core_type<tc>, window_params = [{transform_indices = @transform_0, window_bounds = array<i64: 64, 32>}, {transform_indices = @transform_1, window_bounds = array<i64: 1, 32>}, {transform_indices = @transform_2, window_bounds = array<i64: 1, 32>}, {transform_indices = @transform_3, window_bounds = array<i64: 32, 96>}, {transform_indices = @transform_4, window_bounds = array<i64: 1, 96>}, {transform_indices = @transform_5, window_bounds = array<i64: 64, 96>}]} {
    %c0_i32 = arith.constant 0 : i32
    %0 = arith.cmpi eq, %arg2, %c0_i32 : i32
    %1 = arith.extui %0 : i1 to i32
    %c0_i32_0 = arith.constant 0 : i32
    %2 = arith.cmpi ne, %1, %c0_i32_0 : i32
    scf.if %2 {
      %cst_12 = arith.constant 0.000000e+00 : f32
      %15 = vector.broadcast %cst_12 : f32 to vector<64x96xf32>
      %c0_13 = arith.constant 0 : index
      %c0_14 = arith.constant 0 : index
      %16 = vector.load %arg9[%c0_13, %c0_14] : memref<64x96xf32, #tpu.memory_space<vmem>>, vector<64x96xf32>
      tpu.vector_store %arg9[%c0_13, %c0_14], %15 {strides = array<i32>} : memref<64x96xf32, #tpu.memory_space<vmem>>, vector<64x96xf32>,
    } else {
    }
    %c0_i32_1 = arith.constant 0 : i32
    %3 = arith.cmpi eq, %arg1, %c0_i32_1 : i32
    %4 = arith.extui %3 : i1 to i32
    %c0_i32_2 = arith.constant 0 : i32
    %5 = arith.cmpi ne, %4, %c0_i32_2 : i32
    scf.if %5 {
      %c0_12 = arith.constant 0 : index
      %c0_13 = arith.constant 0 : index
      %15 = vector.load %arg3[%c0_12, %c0_13] : memref<64x32xf32, #tpu.memory_space<vmem>>, vector<64x32xf32>
      %cst_14 = arith.constant dense<0.000000e+00> : vector<64xf32>
      %16 = vector.multi_reduction <add>, %15, %cst_14 [1] : vector<64x32xf32> to vector<64xf32>
      %17 = vector.shape_cast %16 : vector<64xf32> to vector<64x1xf32>
      %cst_15 = arith.constant 3.200000e+01 : f32
      %18 = vector.broadcast %cst_15 : f32 to vector<64x1xf32>
      %19 = arith.divf %17, %18 : vector<64x1xf32>
      %20 = vector.broadcast %19 : vector<64x1xf32> to vector<64x32xf32>
      %21 = arith.subf %15, %20 : vector<64x32xf32>
      %22 = arith.mulf %21, %21 : vector<64x32xf32>
      %cst_16 = arith.constant dense<0.000000e+00> : vector<64xf32>
      %23 = vector.multi_reduction <add>, %22, %cst_16 [1] : vector<64x32xf32> to vector<64xf32>
      %24 = vector.shape_cast %23 : vector<64xf32> to vector<64x1xf32>
      %cst_17 = arith.constant 3.200000e+01 : f32
      %25 = vector.broadcast %cst_17 : f32 to vector<64x1xf32>
      %26 = arith.divf %24, %25 : vector<64x1xf32>
      %cst_18 = arith.constant 9.99999974E-6 : f32
      %27 = vector.broadcast %cst_18 : f32 to vector<64x1xf32>
      %28 = arith.addf %26, %27 : vector<64x1xf32>
      %29 = math.rsqrt %28 : vector<64x1xf32>
      %30 = vector.broadcast %29 : vector<64x1xf32> to vector<64x32xf32>
      %31 = arith.mulf %21, %30 : vector<64x32xf32>
      %c0_19 = arith.constant 0 : index
      %c0_20 = arith.constant 0 : index
      %32 = vector.load %arg4[%c0_19, %c0_20] : memref<1x32xf32, #tpu.memory_space<vmem>>, vector<1x32xf32>
      %33 = vector.broadcast %32 : vector<1x32xf32> to vector<64x32xf32>
      %34 = arith.mulf %31, %33 : vector<64x32xf32>
      %c0_21 = arith.constant 0 : index
      %c0_22 = arith.constant 0 : index
      %35 = vector.load %arg5[%c0_21, %c0_22] : memref<1x32xf32, #tpu.memory_space<vmem>>, vector<1x32xf32>
      %36 = vector.broadcast %35 : vector<1x32xf32> to vector<64x32xf32>
      %37 = arith.addf %34, %36 : vector<64x32xf32>
      %38 = arith.truncf %37 : vector<64x32xf32> to vector<64x32xbf16>
      %c0_23 = arith.constant 0 : index
      %c0_24 = arith.constant 0 : index
      %39 = vector.load %arg10[%c0_23, %c0_24] : memref<64x32xbf16, #tpu.memory_space<vmem>>, vector<64x32xbf16>
      tpu.vector_store %arg10[%c0_23, %c0_24], %38 {strides = array<i32>} : memref<64x32xbf16, #tpu.memory_space<vmem>>, vector<64x32xbf16>,
    } else {
    }
    %c0 = arith.constant 0 : index
    %c0_3 = arith.constant 0 : index
    %6 = vector.load %arg10[%c0, %c0_3] : memref<64x32xbf16, #tpu.memory_space<vmem>>, vector<64x32xbf16>
    %c0_4 = arith.constant 0 : index
    %c0_5 = arith.constant 0 : index
    %7 = vector.load %arg9[%c0_4, %c0_5] : memref<64x96xf32, #tpu.memory_space<vmem>>, vector<64x96xf32>
    %c0_6 = arith.constant 0 : index
    %c0_7 = arith.constant 0 : index
    %8 = vector.load %arg6[%c0_6, %c0_7] : memref<32x96xbf16, #tpu.memory_space<vmem>>, vector<32x96xbf16>
    %cst = arith.constant dense<0.000000e+00> : vector<64x96xf32>
    %9 = tpu.matmul %6, %8, %cst {dimension_numbers = #tpu.dot_dimension_numbers<[1], [0], [0], [1], [0, 0, 1, 1], [], []>} : vector<64x32xbf16>, vector<32x96xbf16>, vector<64x96xf32> -> vector<64x96xf32>
    %10 = arith.addf %7, %9 : vector<64x96xf32>
    %c0_8 = arith.constant 0 : index
    %c0_9 = arith.constant 0 : index
    %11 = vector.load %arg9[%c0_8, %c0_9] : memref<64x96xf32, #tpu.memory_space<vmem>>, vector<64x96xf32>
    tpu.vector_store %arg9[%c0_8, %c0_9], %10 {strides = array<i32>} : memref<64x96xf32, #tpu.memory_space<vmem>>, vector<64x96xf32>,
    %c0_i32_10 = arith.constant 0 : i32
    %12 = arith.cmpi eq, %arg2, %c0_i32_10 : i32
    %13 = arith.extui %12 : i1 to i32
    %c0_i32_11 = arith.constant 0 : i32
    %14 = arith.cmpi ne, %13, %c0_i32_11 : i32
    scf.if %14 {
      %c0_12 = arith.constant 0 : index
      %c0_13 = arith.constant 0 : index
      %15 = vector.load %arg9[%c0_12, %c0_13] : memref<64x96xf32, #tpu.memory_space<vmem>>, vector<64x96xf32>
      %c0_14 = arith.constant 0 : index
      %c0_15 = arith.constant 0 : index
      %16 = vector.load %arg7[%c0_14, %c0_15] : memref<1x96xf32, #tpu.memory_space<vmem>>, vector<1x96xf32>
      %17 = vector.broadcast %16 : vector<1x96xf32> to vector<64x96xf32>
      %18 = arith.addf %15, %17 : vector<64x96xf32>
      %19 = arith.truncf %18 : vector<64x96xf32> to vector<64x96xbf16>
      %c0_16 = arith.constant 0 : index
      %c0_17 = arith.constant 0 : index
      %20 = vector.load %arg8[%c0_16, %c0_17] : memref<64x96xbf16, #tpu.memory_space<vmem>>, vector<64x96xbf16>
      tpu.vector_store %arg8[%c0_16, %c0_17], %19 {strides = array<i32>} : memref<64x96xbf16, #tpu.memory_space<vmem>>, vector<64x96xbf16>,
    } else {
    }
    return
  }
  func.func @transform_0(%arg0: i32, %arg1: i32, %arg2: i32) -> (i32, i32) {
    %c0_i32 = arith.constant 0 : i32
    return %arg0, %arg2 : i32, i32
  }
  func.func @transform_1(%arg0: i32, %arg1: i32, %arg2: i32) -> (i32, i32) {
    %c0_i32 = arith.constant 0 : i32
    %c0_i32_0 = arith.constant 0 : i32
    return %c0_i32, %arg2 : i32, i32
  }
  func.func @transform_2(%arg0: i32, %arg1: i32, %arg2: i32) -> (i32, i32) {
    %c0_i32 = arith.constant 0 : i32
    %c0_i32_0 = arith.constant 0 : i32
    return %c0_i32, %arg2 : i32, i32
  }
  func.func @transform_3(%arg0: i32, %arg1: i32, %arg2: i32) -> (i32, i32) {
    %c0_i32 = arith.constant 0 : i32
    return %arg2, %arg1 : i32, i32
  }
  func.func @transform_4(%arg0: i32, %arg1: i32, %arg2: i32) -> (i32, i32) {
    %c0_i32 = arith.constant 0 : i32
    %c0_i32_0 = arith.constant 0 : i32
    return %c0_i32, %arg1 : i32, i32
  }
  func.func @transform_5(%arg0: i32, %arg1: i32, %arg2: i32) -> (i32, i32) {
    %c0_i32 = arith.constant 0 : i32
    return %arg0, %arg1 : i32, i32
  }
}

module attributes {stable_mosaic.version = 11 : i64} {
  func.func @_fused_linear_kernel(%arg0: i32, %arg1: i32, %arg2: i32, %arg3: memref<8x32xf32, #tpu.memory_space<vmem>>, %arg4: memref<1x32xf32, #tpu.memory_space<vmem>>, %arg5: memref<1x32xf32, #tpu.memory_space<vmem>>, %arg6: memref<32x96xbf16, #tpu.memory_space<vmem>>, %arg7: memref<1x96xf32, #tpu.memory_space<vmem>>, %arg8: memref<8x96xbf16, #tpu.memory_space<vmem>>, %arg9: memref<8x96xf32, #tpu.memory_space<vmem>>, %arg10: memref<8x32xbf16, #tpu.memory_space<vmem>>) attributes {dimension_semantics = [#tpu.dimension_semantics<parallel>, #tpu.dimension_semantics<arbitrary>, #tpu.dimension_semantics<arbitrary>], iteration_bounds = array<i64: 1, 1, 1>, scalar_prefetch = 0 : i64, scratch_operands = 2 : i64, tpu.core_type = #tpu.core_type<tc>, window_params = [{transform_indices = @transform_0, window_bounds = array<i64: 8, 32>}, {transform_indices = @transform_1, window_bounds = array<i64: 1, 32>}, {transform_indices = @transform_2, window_bounds = array<i64: 1, 32>}, {transform_indices = @transform_3, window_bounds = array<i64: 32, 96>}, {transform_indices = @transform_4, window_bounds = array<i64: 1, 96>}, {transform_indices = @transform_5, window_bounds = array<i64: 8, 96>}]} {
    %c0_i32 = arith.constant 0 : i32
    %0 = arith.cmpi eq, %arg2, %c0_i32 : i32
    %1 = arith.extui %0 : i1 to i32
    %c0_i32_0 = arith.constant 0 : i32
    %2 = arith.cmpi ne, %1, %c0_i32_0 : i32
    scf.if %2 {
      %cst_12 = arith.constant 0.000000e+00 : f32
      %15 = vector.broadcast %cst_12 : f32 to vector<8x96xf32>
      %c0_13 = arith.constant 0 : index
      %c0_14 = arith.constant 0 : index
      %16 = vector.load %arg9[%c0_13, %c0_14] : memref<8x96xf32, #tpu.memory_space<vmem>>, vector<8x96xf32>
      tpu.vector_store %arg9[%c0_13, %c0_14], %15 {strides = array<i32>} : memref<8x96xf32, #tpu.memory_space<vmem>>, vector<8x96xf32>,
    } else {
    }
    %c0_i32_1 = arith.constant 0 : i32
    %3 = arith.cmpi eq, %arg1, %c0_i32_1 : i32
    %4 = arith.extui %3 : i1 to i32
    %c0_i32_2 = arith.constant 0 : i32
    %5 = arith.cmpi ne, %4, %c0_i32_2 : i32
    scf.if %5 {
      %c0_12 = arith.constant 0 : index
      %c0_13 = arith.constant 0 : index
      %15 = vector.load %arg3[%c0_12, %c0_13] : memref<8x32xf32, #tpu.memory_space<vmem>>, vector<8x32xf32>
      %cst_14 = arith.constant dense<0.000000e+00> : vector<8xf32>
      %16 = vector.multi_reduction <add>, %15, %cst_14 [1] : vector<8x32xf32> to vector<8xf32>
      %17 = vector.shape_cast %16 : vector<8xf32> to vector<8x1xf32>
      %cst_15 = arith.constant 3.200000e+01 : f32
      %18 = vector.broadcast %cst_15 : f32 to vector<8x1xf32>
      %19 = arith.divf %17, %18 : vector<8x1xf32>
      %20 = vector.broadcast %19 : vector<8x1xf32> to vector<8x32xf32>
      %21 = arith.subf %15, %20 : vector<8x32xf32>
      %22 = arith.mulf %21, %21 : vector<8x32xf32>
      %cst_16 = arith.constant dense<0.000000e+00> : vector<8xf32>
      %23 = vector.multi_reduction <add>, %22, %cst_16 [1] : vector<8x32xf32> to vector<8xf32>
      %24 = vector.shape_cast %23 : vector<8xf32> to vector<8x1xf32>
      %cst_17 = arith.constant 3.200000e+01 : f32
      %25 = vector.broadcast %cst_17 : f32 to vector<8x1xf32>
      %26 = arith.divf %24, %25 : vector<8x1xf32>
      %cst_18 = arith.constant 9.99999974E-6 : f32
      %27 = vector.broadcast %cst_18 : f32 to vector<8x1xf32>
      %28 = arith.addf %26, %27 : vector<8x1xf32>
      %29 = math.rsqrt %28 : vector<8x1xf32>
      %30 = vector.broadcast %29 : vector<8x1xf32> to vector<8x32xf32>
      %31 = arith.mulf %21, %30 : vector<8x32xf32>
      %c0_19 = arith.constant 0 : index
      %c0_20 = arith.constant 0 : index
      %32 = vector.load %arg4[%c0_19, %c0_20] : memref<1x32xf32, #tpu.memory_space<vmem>>, vector<1x32xf32>
      %33 = vector.broadcast %32 : vector<1x32xf32> to vector<8x32xf32>
      %34 = arith.mulf %31, %33 : vector<8x32xf32>
      %c0_21 = arith.constant 0 : index
      %c0_22 = arith.constant 0 : index
      %35 = vector.load %arg5[%c0_21, %c0_22] : memref<1x32xf32, #tpu.memory_space<vmem>>, vector<1x32xf32>
      %36 = vector.broadcast %35 : vector<1x32xf32> to vector<8x32xf32>
      %37 = arith.addf %34, %36 : vector<8x32xf32>
      %38 = arith.truncf %37 : vector<8x32xf32> to vector<8x32xbf16>
      %c0_23 = arith.constant 0 : index
      %c0_24 = arith.constant 0 : index
      %39 = vector.load %arg10[%c0_23, %c0_24] : memref<8x32xbf16, #tpu.memory_space<vmem>>, vector<8x32xbf16>
      tpu.vector_store %arg10[%c0_23, %c0_24], %38 {strides = array<i32>} : memref<8x32xbf16, #tpu.memory_space<vmem>>, vector<8x32xbf16>,
    } else {
    }
    %c0 = arith.constant 0 : index
    %c0_3 = arith.constant 0 : index
    %6 = vector.load %arg10[%c0, %c0_3] : memref<8x32xbf16, #tpu.memory_space<vmem>>, vector<8x32xbf16>
    %c0_4 = arith.constant 0 : index
    %c0_5 = arith.constant 0 : index
    %7 = vector.load %arg9[%c0_4, %c0_5] : memref<8x96xf32, #tpu.memory_space<vmem>>, vector<8x96xf32>
    %c0_6 = arith.constant 0 : index
    %c0_7 = arith.constant 0 : index
    %8 = vector.load %arg6[%c0_6, %c0_7] : memref<32x96xbf16, #tpu.memory_space<vmem>>, vector<32x96xbf16>
    %cst = arith.constant dense<0.000000e+00> : vector<8x96xf32>
    %9 = tpu.matmul %6, %8, %cst {dimension_numbers = #tpu.dot_dimension_numbers<[1], [0], [0], [1], [0, 0, 1, 1], [], []>} : vector<8x32xbf16>, vector<32x96xbf16>, vector<8x96xf32> -> vector<8x96xf32>
    %10 = arith.addf %7, %9 : vector<8x96xf32>
    %c0_8 = arith.constant 0 : index
    %c0_9 = arith.constant 0 : index
    %11 = vector.load %arg9[%c0_8, %c0_9] : memref<8x96xf32, #tpu.memory_space<vmem>>, vector<8x96xf32>
    tpu.vector_store %arg9[%c0_8, %c0_9], %10 {strides = array<i32>} : memref<8x96xf32, #tpu.memory_space<vmem>>, vector<8x96xf32>,
    %c0_i32_10 = arith.constant 0 : i32
    %12 = arith.cmpi eq, %arg2, %c0_i32_10 : i32
    %13 = arith.extui %12 : i1 to i32
    %c0_i32_11 = arith.constant 0 : i32
    %14 = arith.cmpi ne, %13, %c0_i32_11 : i32
    scf.if %14 {
      %c0_12 = arith.constant 0 : index
      %c0_13 = arith.constant 0 : index
      %15 = vector.load %arg9[%c0_12, %c0_13] : memref<8x96xf32, #tpu.memory_space<vmem>>, vector<8x96xf32>
      %c0_14 = arith.constant 0 : index
      %c0_15 = arith.constant 0 : index
      %16 = vector.load %arg7[%c0_14, %c0_15] : memref<1x96xf32, #tpu.memory_space<vmem>>, vector<1x96xf32>
      %17 = vector.broadcast %16 : vector<1x96xf32> to vector<8x96xf32>
      %18 = arith.addf %15, %17 : vector<8x96xf32>
      %19 = arith.truncf %18 : vector<8x96xf32> to vector<8x96xbf16>
      %c0_16 = arith.constant 0 : index
      %c0_17 = arith.constant 0 : index
      %20 = vector.load %arg8[%c0_16, %c0_17] : memref<8x96xbf16, #tpu.memory_space<vmem>>, vector<8x96xbf16>
      tpu.vector_store %arg8[%c0_16, %c0_17], %19 {strides = array<i32>} : memref<8x96xbf16, #tpu.memory_space<vmem>>, vector<8x96xbf16>,
    } else {
    }
    return
  }
  func.func @transform_0(%arg0: i32, %arg1: i32, %arg2: i32) -> (i32, i32) {
    %c0_i32 = arith.constant 0 : i32
    return %arg0, %arg2 : i32, i32
  }
  func.func @transform_1(%arg0: i32, %arg1: i32, %arg2: i32) -> (i32, i32) {
    %c0_i32 = arith.constant 0 : i32
    %c0_i32_0 = arith.constant 0 : i32
    return %c0_i32, %arg2 : i32, i32
  }
  func.func @transform_2(%arg0: i32, %arg1: i32, %arg2: i32) -> (i32, i32) {
    %c0_i32 = arith.constant 0 : i32
    %c0_i32_0 = arith.constant 0 : i32
    return %c0_i32, %arg2 : i32, i32
  }
  func.func @transform_3(%arg0: i32, %arg1: i32, %arg2: i32) -> (i32, i32) {
    %c0_i32 = arith.constant 0 : i32
    return %arg2, %arg1 : i32, i32
  }
  func.func @transform_4(%arg0: i32, %arg1: i32, %arg2: i32) -> (i32, i32) {
    %c0_i32 = arith.constant 0 : i32
    %c0_i32_0 = arith.constant 0 : i32
    return %c0_i32, %arg1 : i32, i32
  }
  func.func @transform_5(%arg0: i32, %arg1: i32, %arg2: i32) -> (i32, i32) {
    %c0_i32 = arith.constant 0 : i32
    return %arg0, %arg1 : i32, i32
  }
}

module attributes {stable_mosaic.version = 11 : i64} {
  func.func @_attn_kernel(%arg0: i32, %arg1: memref<4x1x3x4x8xbf16, #tpu.memory_space<vmem>>, %arg2: memref<4x1x4x8xbf16, #tpu.memory_space<vmem>>) attributes {dimension_semantics = [#tpu.dimension_semantics<parallel>], iteration_bounds = array<i64: 2>, scalar_prefetch = 0 : i64, scratch_operands = 0 : i64, tpu.core_type = #tpu.core_type<tc>, window_params = [{transform_indices = @transform_0, window_bounds = array<i64: 4, 1, 3, 4, 8>}, {transform_indices = @transform_1, window_bounds = array<i64: 4, 1, 4, 8>}]} {
    %c0 = arith.constant 0 : index
    %c0_0 = arith.constant 0 : index
    %c0_1 = arith.constant 0 : index
    %c0_2 = arith.constant 0 : index
    %c0_3 = arith.constant 0 : index
    %0 = vector.load %arg1[%c0, %c0_0, %c0_1, %c0_2, %c0_3] : memref<4x1x3x4x8xbf16, #tpu.memory_space<vmem>>, vector<4x1x1x1x8xbf16>
    %1 = vector.shape_cast %0 : vector<4x1x1x1x8xbf16> to vector<4x8xbf16>
    %c0_4 = arith.constant 0 : index
    %c0_5 = arith.constant 0 : index
    %c1 = arith.constant 1 : index
    %c0_6 = arith.constant 0 : index
    %c0_7 = arith.constant 0 : index
    %2 = vector.load %arg1[%c0_4, %c0_5, %c1, %c0_6, %c0_7] : memref<4x1x3x4x8xbf16, #tpu.memory_space<vmem>>, vector<4x1x1x1x8xbf16>
    %3 = vector.shape_cast %2 : vector<4x1x1x1x8xbf16> to vector<4x8xbf16>
    %c0_8 = arith.constant 0 : index
    %c0_9 = arith.constant 0 : index
    %c2 = arith.constant 2 : index
    %c0_10 = arith.constant 0 : index
    %c0_11 = arith.constant 0 : index
    %4 = vector.load %arg1[%c0_8, %c0_9, %c2, %c0_10, %c0_11] : memref<4x1x3x4x8xbf16, #tpu.memory_space<vmem>>, vector<4x1x1x1x8xbf16>
    %5 = vector.shape_cast %4 : vector<4x1x1x1x8xbf16> to vector<4x8xbf16>
    %cst = arith.constant dense<0.000000e+00> : vector<4x4xf32>
    %6 = tpu.matmul %1, %3, %cst {dimension_numbers = #tpu.dot_dimension_numbers<[1], [1], [0], [0], [0, 0, 1, 0], [], []>} : vector<4x8xbf16>, vector<4x8xbf16>, vector<4x4xf32> -> vector<4x4xf32>
    %cst_12 = arith.constant dense<0xFF800000> : vector<4xf32>
    %7 = vector.multi_reduction <maximumf>, %6, %cst_12 [1] : vector<4x4xf32> to vector<4xf32>
    %8 = vector.shape_cast %7 : vector<4xf32> to vector<4x1xf32>
    %9 = vector.broadcast %8 : vector<4x1xf32> to vector<4x4xf32>
    %10 = arith.subf %6, %9 : vector<4x4xf32>
    %11 = math.exp %10 : vector<4x4xf32>
    %cst_13 = arith.constant dense<0.000000e+00> : vector<4xf32>
    %12 = vector.multi_reduction <add>, %11, %cst_13 [1] : vector<4x4xf32> to vector<4xf32>
    %13 = vector.shape_cast %12 : vector<4xf32> to vector<4x1xf32>
    %14 = arith.truncf %11 : vector<4x4xf32> to vector<4x4xbf16>
    %cst_14 = arith.constant dense<0.000000e+00> : vector<4x8xf32>
    %15 = tpu.matmul %14, %5, %cst_14 {dimension_numbers = #tpu.dot_dimension_numbers<[1], [0], [0], [1], [0, 0, 1, 1], [], []>} : vector<4x4xbf16>, vector<4x8xbf16>, vector<4x8xf32> -> vector<4x8xf32>
    %16 = tpu.reciprocal %13 {approx = true} : vector<4x1xf32> -> vector<4x1xf32>
    %17 = vector.broadcast %16 : vector<4x1xf32> to vector<4x8xf32>
    %18 = arith.mulf %15, %17 : vector<4x8xf32>
    %19 = arith.truncf %18 : vector<4x8xf32> to vector<4x8xbf16>
    %c0_15 = arith.constant 0 : index
    %c0_16 = arith.constant 0 : index
    %c0_17 = arith.constant 0 : index
    %c0_18 = arith.constant 0 : index
    %20 = vector.load %arg2[%c0_15, %c0_16, %c0_17, %c0_18] : memref<4x1x4x8xbf16, #tpu.memory_space<vmem>>, vector<4x1x1x8xbf16>
    %21 = vector.shape_cast %20 : vector<4x1x1x8xbf16> to vector<4x8xbf16>
    %22 = vector.shape_cast %19 : vector<4x8xbf16> to vector<4x1x1x8xbf16>
    tpu.vector_store %arg2[%c0_15, %c0_16, %c0_17, %c0_18], %22 {strides = array<i32>} : memref<4x1x4x8xbf16, #tpu.memory_space<vmem>>, vector<4x1x1x8xbf16>,
    %c0_19 = arith.constant 0 : index
    %c0_20 = arith.constant 0 : index
    %c0_21 = arith.constant 0 : index
    %c1_22 = arith.constant 1 : index
    %c0_23 = arith.constant 0 : index
    %23 = vector.load %arg1[%c0_19, %c0_20, %c0_21, %c1_22, %c0_23] : memref<4x1x3x4x8xbf16, #tpu.memory_space<vmem>>, vector<4x1x1x1x8xbf16>
    %24 = vector.shape_cast %23 : vector<4x1x1x1x8xbf16> to vector<4x8xbf16>
    %c0_24 = arith.constant 0 : index
    %c0_25 = arith.constant 0 : index
    %c1_26 = arith.constant 1 : index
    %c1_27 = arith.constant 1 : index
    %c0_28 = arith.constant 0 : index
    %25 = vector.load %arg1[%c0_24, %c0_25, %c1_26, %c1_27, %c0_28] : memref<4x1x3x4x8xbf16, #tpu.memory_space<vmem>>, vector<4x1x1x1x8xbf16>
    %26 = vector.shape_cast %25 : vector<4x1x1x1x8xbf16> to vector<4x8xbf16>
    %c0_29 = arith.constant 0 : index
    %c0_30 = arith.constant 0 : index
    %c2_31 = arith.constant 2 : index
    %c1_32 = arith.constant 1 : index
    %c0_33 = arith.constant 0 : index
    %27 = vector.load %arg1[%c0_29, %c0_30, %c2_31, %c1_32, %c0_33] : memref<4x1x3x4x8xbf16, #tpu.memory_space<vmem>>, vector<4x1x1x1x8xbf16>
    %28 = vector.shape_cast %27 : vector<4x1x1x1x8xbf16> to vector<4x8xbf16>
    %cst_34 = arith.constant dense<0.000000e+00> : vector<4x4xf32>
    %29 = tpu.matmul %24, %26, %cst_34 {dimension_numbers = #tpu.dot_dimension_numbers<[1], [1], [0], [0], [0, 0, 1, 0], [], []>} : vector<4x8xbf16>, vector<4x8xbf16>, vector<4x4xf32> -> vector<4x4xf32>
    %cst_35 = arith.constant dense<0xFF800000> : vector<4xf32>
    %30 = vector.multi_reduction <maximumf>, %29, %cst_35 [1] : vector<4x4xf32> to vector<4xf32>
    %31 = vector.shape_cast %30 : vector<4xf32> to vector<4x1xf32>
    %32 = vector.broadcast %31 : vector<4x1xf32> to vector<4x4xf32>
    %33 = arith.subf %29, %32 : vector<4x4xf32>
    %34 = math.exp %33 : vector<4x4xf32>
    %cst_36 = arith.constant dense<0.000000e+00> : vector<4xf32>
    %35 = vector.multi_reduction <add>, %34, %cst_36 [1] : vector<4x4xf32> to vector<4xf32>
    %36 = vector.shape_cast %35 : vector<4xf32> to vector<4x1xf32>
    %37 = arith.truncf %34 : vector<4x4xf32> to vector<4x4xbf16>
    %cst_37 = arith.constant dense<0.000000e+00> : vector<4x8xf32>
    %38 = tpu.matmul %37, %28, %cst_37 {dimension_numbers = #tpu.dot_dimension_numbers<[1], [0], [0], [1], [0, 0, 1, 1], [], []>} : vector<4x4xbf16>, vector<4x8xbf16>, vector<4x8xf32> -> vector<4x8xf32>
    %39 = tpu.reciprocal %36 {approx = true} : vector<4x1xf32> -> vector<4x1xf32>
    %40 = vector.broadcast %39 : vector<4x1xf32> to vector<4x8xf32>
    %41 = arith.mulf %38, %40 : vector<4x8xf32>
    %42 = arith.truncf %41 : vector<4x8xf32> to vector<4x8xbf16>
    %c0_38 = arith.constant 0 : index
    %c0_39 = arith.constant 0 : index
    %c1_40 = arith.constant 1 : index
    %c0_41 = arith.constant 0 : index
    %43 = vector.load %arg2[%c0_38, %c0_39, %c1_40, %c0_41] : memref<4x1x4x8xbf16, #tpu.memory_space<vmem>>, vector<4x1x1x8xbf16>
    %44 = vector.shape_cast %43 : vector<4x1x1x8xbf16> to vector<4x8xbf16>
    %45 = vector.shape_cast %42 : vector<4x8xbf16> to vector<4x1x1x8xbf16>
    tpu.vector_store %arg2[%c0_38, %c0_39, %c1_40, %c0_41], %45 {strides = array<i32>} : memref<4x1x4x8xbf16, #tpu.memory_space<vmem>>, vector<4x1x1x8xbf16>,
    %c0_42 = arith.constant 0 : index
    %c0_43 = arith.constant 0 : index
    %c0_44 = arith.constant 0 : index
    %c2_45 = arith.constant 2 : index
    %c0_46 = arith.constant 0 : index
    %46 = vector.load %arg1[%c0_42, %c0_43, %c0_44, %c2_45, %c0_46] : memref<4x1x3x4x8xbf16, #tpu.memory_space<vmem>>, vector<4x1x1x1x8xbf16>
    %47 = vector.shape_cast %46 : vector<4x1x1x1x8xbf16> to vector<4x8xbf16>
    %c0_47 = arith.constant 0 : index
    %c0_48 = arith.constant 0 : index
    %c1_49 = arith.constant 1 : index
    %c2_50 = arith.constant 2 : index
    %c0_51 = arith.constant 0 : index
    %48 = vector.load %arg1[%c0_47, %c0_48, %c1_49, %c2_50, %c0_51] : memref<4x1x3x4x8xbf16, #tpu.memory_space<vmem>>, vector<4x1x1x1x8xbf16>
    %49 = vector.shape_cast %48 : vector<4x1x1x1x8xbf16> to vector<4x8xbf16>
    %c0_52 = arith.constant 0 : index
    %c0_53 = arith.constant 0 : index
    %c2_54 = arith.constant 2 : index
    %c2_55 = arith.constant 2 : index
    %c0_56 = arith.constant 0 : index
    %50 = vector.load %arg1[%c0_52, %c0_53, %c2_54, %c2_55, %c0_56] : memref<4x1x3x4x8xbf16, #tpu.memory_space<vmem>>, vector<4x1x1x1x8xbf16>
    %51 = vector.shape_cast %50 : vector<4x1x1x1x8xbf16> to vector<4x8xbf16>
    %cst_57 = arith.constant dense<0.000000e+00> : vector<4x4xf32>
    %52 = tpu.matmul %47, %49, %cst_57 {dimension_numbers = #tpu.dot_dimension_numbers<[1], [1], [0], [0], [0, 0, 1, 0], [], []>} : vector<4x8xbf16>, vector<4x8xbf16>, vector<4x4xf32> -> vector<4x4xf32>
    %cst_58 = arith.constant dense<0xFF800000> : vector<4xf32>
    %53 = vector.multi_reduction <maximumf>, %52, %cst_58 [1] : vector<4x4xf32> to vector<4xf32>
    %54 = vector.shape_cast %53 : vector<4xf32> to vector<4x1xf32>
    %55 = vector.broadcast %54 : vector<4x1xf32> to vector<4x4xf32>
    %56 = arith.subf %52, %55 : vector<4x4xf32>
    %57 = math.exp %56 : vector<4x4xf32>
    %cst_59 = arith.constant dense<0.000000e+00> : vector<4xf32>
    %58 = vector.multi_reduction <add>, %57, %cst_59 [1] : vector<4x4xf32> to vector<4xf32>
    %59 = vector.shape_cast %58 : vector<4xf32> to vector<4x1xf32>
    %60 = arith.truncf %57 : vector<4x4xf32> to vector<4x4xbf16>
    %cst_60 = arith.constant dense<0.000000e+00> : vector<4x8xf32>
    %61 = tpu.matmul %60, %51, %cst_60 {dimension_numbers = #tpu.dot_dimension_numbers<[1], [0], [0], [1], [0, 0, 1, 1], [], []>} : vector<4x4xbf16>, vector<4x8xbf16>, vector<4x8xf32> -> vector<4x8xf32>
    %62 = tpu.reciprocal %59 {approx = true} : vector<4x1xf32> -> vector<4x1xf32>
    %63 = vector.broadcast %62 : vector<4x1xf32> to vector<4x8xf32>
    %64 = arith.mulf %61, %63 : vector<4x8xf32>
    %65 = arith.truncf %64 : vector<4x8xf32> to vector<4x8xbf16>
    %c0_61 = arith.constant 0 : index
    %c0_62 = arith.constant 0 : index
    %c2_63 = arith.constant 2 : index
    %c0_64 = arith.constant 0 : index
    %66 = vector.load %arg2[%c0_61, %c0_62, %c2_63, %c0_64] : memref<4x1x4x8xbf16, #tpu.memory_space<vmem>>, vector<4x1x1x8xbf16>
    %67 = vector.shape_cast %66 : vector<4x1x1x8xbf16> to vector<4x8xbf16>
    %68 = vector.shape_cast %65 : vector<4x8xbf16> to vector<4x1x1x8xbf16>
    tpu.vector_store %arg2[%c0_61, %c0_62, %c2_63, %c0_64], %68 {strides = array<i32>} : memref<4x1x4x8xbf16, #tpu.memory_space<vmem>>, vector<4x1x1x8xbf16>,
    %c0_65 = arith.constant 0 : index
    %c0_66 = arith.constant 0 : index
    %c0_67 = arith.constant 0 : index
    %c3 = arith.constant 3 : index
    %c0_68 = arith.constant 0 : index
    %69 = vector.load %arg1[%c0_65, %c0_66, %c0_67, %c3, %c0_68] : memref<4x1x3x4x8xbf16, #tpu.memory_space<vmem>>, vector<4x1x1x1x8xbf16>
    %70 = vector.shape_cast %69 : vector<4x1x1x1x8xbf16> to vector<4x8xbf16>
    %c0_69 = arith.constant 0 : index
    %c0_70 = arith.constant 0 : index
    %c1_71 = arith.constant 1 : index
    %c3_72 = arith.constant 3 : index
    %c0_73 = arith.constant 0 : index
    %71 = vector.load %arg1[%c0_69, %c0_70, %c1_71, %c3_72, %c0_73] : memref<4x1x3x4x8xbf16, #tpu.memory_space<vmem>>, vector<4x1x1x1x8xbf16>
    %72 = vector.shape_cast %71 : vector<4x1x1x1x8xbf16> to vector<4x8xbf16>
    %c0_74 = arith.constant 0 : index
    %c0_75 = arith.constant 0 : index
    %c2_76 = arith.constant 2 : index
    %c3_77 = arith.constant 3 : index
    %c0_78 = arith.constant 0 : index
    %73 = vector.load %arg1[%c0_74, %c0_75, %c2_76, %c3_77, %c0_78] : memref<4x1x3x4x8xbf16, #tpu.memory_space<vmem>>, vector<4x1x1x1x8xbf16>
    %74 = vector.shape_cast %73 : vector<4x1x1x1x8xbf16> to vector<4x8xbf16>
    %cst_79 = arith.constant dense<0.000000e+00> : vector<4x4xf32>
    %75 = tpu.matmul %70, %72, %cst_79 {dimension_numbers = #tpu.dot_dimension_numbers<[1], [1], [0], [0], [0, 0, 1, 0], [], []>} : vector<4x8xbf16>, vector<4x8xbf16>, vector<4x4xf32> -> vector<4x4xf32>
    %cst_80 = arith.constant dense<0xFF800000> : vector<4xf32>
    %76 = vector.multi_reduction <maximumf>, %75, %cst_80 [1] : vector<4x4xf32> to vector<4xf32>
    %77 = vector.shape_cast %76 : vector<4xf32> to vector<4x1xf32>
    %78 = vector.broadcast %77 : vector<4x1xf32> to vector<4x4xf32>
    %79 = arith.subf %75, %78 : vector<4x4xf32>
    %80 = math.exp %79 : vector<4x4xf32>
    %cst_81 = arith.constant dense<0.000000e+00> : vector<4xf32>
    %81 = vector.multi_reduction <add>, %80, %cst_81 [1] : vector<4x4xf32> to vector<4xf32>
    %82 = vector.shape_cast %81 : vector<4xf32> to vector<4x1xf32>
    %83 = arith.truncf %80 : vector<4x4xf32> to vector<4x4xbf16>
    %cst_82 = arith.constant dense<0.000000e+00> : vector<4x8xf32>
    %84 = tpu.matmul %83, %74, %cst_82 {dimension_numbers = #tpu.dot_dimension_numbers<[1], [0], [0], [1], [0, 0, 1, 1], [], []>} : vector<4x4xbf16>, vector<4x8xbf16>, vector<4x8xf32> -> vector<4x8xf32>
    %85 = tpu.reciprocal %82 {approx = true} : vector<4x1xf32> -> vector<4x1xf32>
    %86 = vector.broadcast %85 : vector<4x1xf32> to vector<4x8xf32>
    %87 = arith.mulf %84, %86 : vector<4x8xf32>
    %88 = arith.truncf %87 : vector<4x8xf32> to vector<4x8xbf16>
    %c0_83 = arith.constant 0 : index
    %c0_84 = arith.constant 0 : index
    %c3_85 = arith.constant 3 : index
    %c0_86 = arith.constant 0 : index
    %89 = vector.load %arg2[%c0_83, %c0_84, %c3_85, %c0_86] : memref<4x1x4x8xbf16, #tpu.memory_space<vmem>>, vector<4x1x1x8xbf16>
    %90 = vector.shape_cast %89 : vector<4x1x1x8xbf16> to vector<4x8xbf16>
    %91 = vector.shape_cast %88 : vector<4x8xbf16> to vector<4x1x1x8xbf16>
    tpu.vector_store %arg2[%c0_83, %c0_84, %c3_85, %c0_86], %91 {strides = array<i32>} : memref<4x1x4x8xbf16, #tpu.memory_space<vmem>>, vector<4x1x1x8xbf16>,
    return
  }
  func.func @transform_0(%arg0: i32) -> (i32, i32, i32, i32, i32) {
    %c0_i32 = arith.constant 0 : i32
    %c0_i32_0 = arith.constant 0 : i32
    %c0_i32_1 = arith.constant 0 : i32
    %c0_i32_2 = arith.constant 0 : i32
    %c0_i32_3 = arith.constant 0 : i32
    return %c0_i32, %arg0, %c0_i32_0, %c0_i32_1, %c0_i32_2 : i32, i32, i32, i32, i32
  }
  func.func @transform_1(%arg0: i32) -> (i32, i32, i32, i32) {
    %c0_i32 = arith.constant 0 : i32
    %c0_i32_0 = arith.constant 0 : i32
    %c0_i32_1 = arith.constant 0 : i32
    %c0_i32_2 = arith.constant 0 : i32
    return %c0_i32, %arg0, %c0_i32_0, %c0_i32_1 : i32, i32, i32, i32
  }
}

module attributes {stable_mosaic.version = 11 : i64} {
  func.func @_fused_linear_kernel(%arg0: i32, %arg1: i32, %arg2: i32, %arg3: memref<8x32xbf16, #tpu.memory_space<vmem>>, %arg4: memref<32x32xbf16, #tpu.memory_space<vmem>>, %arg5: memref<1x32xf32, #tpu.memory_space<vmem>>, %arg6: memref<8x32xf32, #tpu.memory_space<vmem>>, %arg7: memref<8x32xf32, #tpu.memory_space<vmem>>, %arg8: memref<8x32xf32, #tpu.memory_space<vmem>>) attributes {dimension_semantics = [#tpu.dimension_semantics<parallel>, #tpu.dimension_semantics<parallel>, #tpu.dimension_semantics<arbitrary>], iteration_bounds = array<i64: 1, 1, 1>, scalar_prefetch = 0 : i64, scratch_operands = 1 : i64, tpu.core_type = #tpu.core_type<tc>, window_params = [{transform_indices = @transform_0, window_bounds = array<i64: 8, 32>}, {transform_indices = @transform_1, window_bounds = array<i64: 32, 32>}, {transform_indices = @transform_2, window_bounds = array<i64: 1, 32>}, {transform_indices = @transform_3, window_bounds = array<i64: 8, 32>}, {transform_indices = @transform_4, window_bounds = array<i64: 8, 32>}]} {
    %c0_i32 = arith.constant 0 : i32
    %0 = arith.cmpi eq, %arg2, %c0_i32 : i32
    %1 = arith.extui %0 : i1 to i32
    %c0_i32_0 = arith.constant 0 : i32
    %2 = arith.cmpi ne, %1, %c0_i32_0 : i32
    scf.if %2 {
      %cst_10 = arith.constant 0.000000e+00 : f32
      %12 = vector.broadcast %cst_10 : f32 to vector<8x32xf32>
      %c0_11 = arith.constant 0 : index
      %c0_12 = arith.constant 0 : index
      %13 = vector.load %arg8[%c0_11, %c0_12] : memref<8x32xf32, #tpu.memory_space<vmem>>, vector<8x32xf32>
      tpu.vector_store %arg8[%c0_11, %c0_12], %12 {strides = array<i32>} : memref<8x32xf32, #tpu.memory_space<vmem>>, vector<8x32xf32>,
    } else {
    }
    %c0 = arith.constant 0 : index
    %c0_1 = arith.constant 0 : index
    %3 = vector.load %arg3[%c0, %c0_1] : memref<8x32xbf16, #tpu.memory_space<vmem>>, vector<8x32xbf16>
    %c0_2 = arith.constant 0 : index
    %c0_3 = arith.constant 0 : index
    %4 = vector.load %arg8[%c0_2, %c0_3] : memref<8x32xf32, #tpu.memory_space<vmem>>, vector<8x32xf32>
    %c0_4 = arith.constant 0 : index
    %c0_5 = arith.constant 0 : index
    %5 = vector.load %arg4[%c0_4, %c0_5] : memref<32x32xbf16, #tpu.memory_space<vmem>>, vector<32x32xbf16>
    %cst = arith.constant dense<0.000000e+00> : vector<8x32xf32>
    %6 = tpu.matmul %3, %5, %cst {dimension_numbers = #tpu.dot_dimension_numbers<[1], [0], [0], [1], [0, 0, 1, 1], [], []>} : vector<8x32xbf16>, vector<32x32xbf16>, vector<8x32xf32> -> vector<8x32xf32>
    %7 = arith.addf %4, %6 : vector<8x32xf32>
    %c0_6 = arith.constant 0 : index
    %c0_7 = arith.constant 0 : index
    %8 = vector.load %arg8[%c0_6, %c0_7] : memref<8x32xf32, #tpu.memory_space<vmem>>, vector<8x32xf32>
    tpu.vector_store %arg8[%c0_6, %c0_7], %7 {strides = array<i32>} : memref<8x32xf32, #tpu.memory_space<vmem>>, vector<8x32xf32>,
    %c0_i32_8 = arith.constant 0 : i32
    %9 = arith.cmpi eq, %arg2, %c0_i32_8 : i32
    %10 = arith.extui %9 : i1 to i32
    %c0_i32_9 = arith.constant 0 : i32
    %11 = arith.cmpi ne, %10, %c0_i32_9 : i32
    scf.if %11 {
      %c0_10 = arith.constant 0 : index
      %c0_11 = arith.constant 0 : index
      %12 = vector.load %arg8[%c0_10, %c0_11] : memref<8x32xf32, #tpu.memory_space<vmem>>, vector<8x32xf32>
      %c0_12 = arith.constant 0 : index
      %c0_13 = arith.constant 0 : index
      %13 = vector.load %arg5[%c0_12, %c0_13] : memref<1x32xf32, #tpu.memory_space<vmem>>, vector<1x32xf32>
      %14 = vector.broadcast %13 : vector<1x32xf32> to vector<8x32xf32>
      %15 = arith.addf %12, %14 : vector<8x32xf32>
      %c0_14 = arith.constant 0 : index
      %c0_15 = arith.constant 0 : index
      %16 = vector.load %arg6[%c0_14, %c0_15] : memref<8x32xf32, #tpu.memory_space<vmem>>, vector<8x32xf32>
      %17 = arith.addf %15, %16 : vector<8x32xf32>
      %c0_16 = arith.constant 0 : index
      %c0_17 = arith.constant 0 : index
      %18 = vector.load %arg7[%c0_16, %c0_17] : memref<8x32xf32, #tpu.memory_space<vmem>>, vector<8x32xf32>
      tpu.vector_store %arg7[%c0_16, %c0_17], %17 {strides = array<i32>} : memref<8x32xf32, #tpu.memory_space<vmem>>, vector<8x32xf32>,
    } else {
    }
    return
  }
  func.func @transform_0(%arg0: i32, %arg1: i32, %arg2: i32) -> (i32, i32) {
    %c0_i32 = arith.constant 0 : i32
    return %arg0, %arg2 : i32, i32
  }
  func.func @transform_1(%arg0: i32, %arg1: i32, %arg2: i32) -> (i32, i32) {
    %c0_i32 = arith.constant 0 : i32
    return %arg2, %arg1 : i32, i32
  }
  func.func @transform_2(%arg0: i32, %arg1: i32, %arg2: i32) -> (i32, i32) {
    %c0_i32 = arith.constant 0 : i32
    %c0_i32_0 = arith.constant 0 : i32
    return %c0_i32, %arg1 : i32, i32
  }
  func.func @transform_3(%arg0: i32, %arg1: i32, %arg2: i32) -> (i32, i32) {
    %c0_i32 = arith.constant 0 : i32
    return %arg0, %arg1 : i32, i32
  }
  func.func @transform_4(%arg0: i32, %arg1: i32, %arg2: i32) -> (i32, i32) {
    %c0_i32 = arith.constant 0 : i32
    return %arg0, %arg1 : i32, i32
  }
}

module attributes {stable_mosaic.version = 11 : i64} {
  func.func @_attn_kernel(%arg0: i32, %arg1: memref<8x1x3x4x8xbf16, #tpu.memory_space<vmem>>, %arg2: memref<1x1x3x4x8xbf16, #tpu.memory_space<vmem>>, %arg3: memref<8x1x4x8xbf16, #tpu.memory_space<vmem>>) attributes {dimension_semantics = [#tpu.dimension_semantics<parallel>], iteration_bounds = array<i64: 8>, scalar_prefetch = 0 : i64, scratch_operands = 0 : i64, tpu.core_type = #tpu.core_type<tc>, window_params = [{transform_indices = @transform_0, window_bounds = array<i64: 8, 1, 3, 4, 8>}, {transform_indices = @transform_1, window_bounds = array<i64: 1, 1, 3, 4, 8>}, {transform_indices = @transform_2, window_bounds = array<i64: 8, 1, 4, 8>}]} {
    %c0 = arith.constant 0 : index
    %c0_0 = arith.constant 0 : index
    %c0_1 = arith.constant 0 : index
    %c0_2 = arith.constant 0 : index
    %c0_3 = arith.constant 0 : index
    %0 = vector.load %arg1[%c0, %c0_0, %c0_1, %c0_2, %c0_3] : memref<8x1x3x4x8xbf16, #tpu.memory_space<vmem>>, vector<8x1x1x1x8xbf16>
    %1 = vector.shape_cast %0 : vector<8x1x1x1x8xbf16> to vector<8x8xbf16>
    %c0_4 = arith.constant 0 : index
    %c0_5 = arith.constant 0 : index
    %c1 = arith.constant 1 : index
    %c0_6 = arith.constant 0 : index
    %c0_7 = arith.constant 0 : index
    %2 = vector.load %arg1[%c0_4, %c0_5, %c1, %c0_6, %c0_7] : memref<8x1x3x4x8xbf16, #tpu.memory_space<vmem>>, vector<8x1x1x1x8xbf16>
    %3 = vector.shape_cast %2 : vector<8x1x1x1x8xbf16> to vector<8x8xbf16>
    %c0_8 = arith.constant 0 : index
    %c0_9 = arith.constant 0 : index
    %c2 = arith.constant 2 : index
    %c0_10 = arith.constant 0 : index
    %c0_11 = arith.constant 0 : index
    %4 = vector.load %arg1[%c0_8, %c0_9, %c2, %c0_10, %c0_11] : memref<8x1x3x4x8xbf16, #tpu.memory_space<vmem>>, vector<8x1x1x1x8xbf16>
    %5 = vector.shape_cast %4 : vector<8x1x1x1x8xbf16> to vector<8x8xbf16>
    %cst = arith.constant dense<0.000000e+00> : vector<8x8xf32>
    %6 = tpu.matmul %1, %3, %cst {dimension_numbers = #tpu.dot_dimension_numbers<[1], [1], [0], [0], [0, 0, 1, 0], [], []>} : vector<8x8xbf16>, vector<8x8xbf16>, vector<8x8xf32> -> vector<8x8xf32>
    %c0_12 = arith.constant 0 : index
    %c0_13 = arith.constant 0 : index
    %c1_14 = arith.constant 1 : index
    %c0_15 = arith.constant 0 : index
    %c0_16 = arith.constant 0 : index
    %7 = vector.load %arg2[%c0_12, %c0_13, %c1_14, %c0_15, %c0_16] : memref<1x1x3x4x8xbf16, #tpu.memory_space<vmem>>, vector<1x1x1x1x8xbf16>
    %8 = vector.shape_cast %7 : vector<1x1x1x1x8xbf16> to vector<1x8xbf16>
    %9 = arith.extf %8 : vector<1x8xbf16> to vector<1x8xf32>
    %c0_17 = arith.constant 0 : index
    %c0_18 = arith.constant 0 : index
    %c2_19 = arith.constant 2 : index
    %c0_20 = arith.constant 0 : index
    %c0_21 = arith.constant 0 : index
    %10 = vector.load %arg2[%c0_17, %c0_18, %c2_19, %c0_20, %c0_21] : memref<1x1x3x4x8xbf16, #tpu.memory_space<vmem>>, vector<1x1x1x1x8xbf16>
    %11 = vector.shape_cast %10 : vector<1x1x1x1x8xbf16> to vector<1x8xbf16>
    %12 = arith.extf %11 : vector<1x8xbf16> to vector<1x8xf32>
    %13 = arith.extf %1 : vector<8x8xbf16> to vector<8x8xf32>
    %14 = vector.broadcast %9 : vector<1x8xf32> to vector<8x8xf32>
    %15 = arith.mulf %13, %14 : vector<8x8xf32>
    %cst_22 = arith.constant dense<0.000000e+00> : vector<8xf32>
    %16 = vector.multi_reduction <add>, %15, %cst_22 [1] : vector<8x8xf32> to vector<8xf32>
    %17 = vector.shape_cast %16 : vector<8xf32> to vector<8x1xf32>
    %cst_23 = arith.constant dense<0xFF800000> : vector<8xf32>
    %18 = vector.multi_reduction <maximumf>, %6, %cst_23 [1] : vector<8x8xf32> to vector<8xf32>
    %19 = vector.shape_cast %18 : vector<8xf32> to vector<8x1xf32>
    %cst_24 = arith.constant dense<0xFF800000> : vector<8xf32>
    %20 = vector.multi_reduction <maximumf>, %17, %cst_24 [1] : vector<8x1xf32> to vector<8xf32>
    %21 = vector.shape_cast %20 : vector<8xf32> to vector<8x1xf32>
    %22 = arith.maximumf %19, %21 : vector<8x1xf32>
    %23 = vector.broadcast %22 : vector<8x1xf32> to vector<8x8xf32>
    %24 = arith.subf %6, %23 : vector<8x8xf32>
    %25 = math.exp %24 : vector<8x8xf32>
    %26 = arith.subf %17, %22 : vector<8x1xf32>
    %27 = math.exp %26 : vector<8x1xf32>
    %cst_25 = arith.constant dense<0.000000e+00> : vector<8xf32>
    %28 = vector.multi_reduction <add>, %25, %cst_25 [1] : vector<8x8xf32> to vector<8xf32>
    %29 = vector.shape_cast %28 : vector<8xf32> to vector<8x1xf32>
    %cst_26 = arith.constant dense<0.000000e+00> : vector<8xf32>
    %30 = vector.multi_reduction <add>, %27, %cst_26 [1] : vector<8x1xf32> to vector<8xf32>
    %31 = vector.shape_cast %30 : vector<8xf32> to vector<8x1xf32>
    %32 = arith.addf %29, %31 : vector<8x1xf32>
    %33 = arith.truncf %25 : vector<8x8xf32> to vector<8x8xbf16>
    %cst_27 = arith.constant dense<0.000000e+00> : vector<8x8xf32>
    %34 = tpu.matmul %33, %5, %cst_27 {dimension_numbers = #tpu.dot_dimension_numbers<[1], [0], [0], [1], [0, 0, 1, 1], [], []>} : vector<8x8xbf16>, vector<8x8xbf16>, vector<8x8xf32> -> vector<8x8xf32>
    %35 = vector.broadcast %27 : vector<8x1xf32> to vector<8x8xf32>
    %36 = vector.broadcast %12 : vector<1x8xf32> to vector<8x8xf32>
    %37 = arith.mulf %35, %36 : vector<8x8xf32>
    %38 = arith.addf %34, %37 : vector<8x8xf32>
    %39 = tpu.reciprocal %32 {approx = true} : vector<8x1xf32> -> vector<8x1xf32>
    %40 = vector.broadcast %39 : vector<8x1xf32> to vector<8x8xf32>
    %41 = arith.mulf %38, %40 : vector<8x8xf32>
    %42 = arith.truncf %41 : vector<8x8xf32> to vector<8x8xbf16>
    %c0_28 = arith.constant 0 : index
    %c0_29 = arith.constant 0 : index
    %c0_30 = arith.constant 0 : index
    %c0_31 = arith.constant 0 : index
    %43 = vector.load %arg3[%c0_28, %c0_29, %c0_30, %c0_31] : memref<8x1x4x8xbf16, #tpu.memory_space<vmem>>, vector<8x1x1x8xbf16>
    %44 = vector.shape_cast %43 : vector<8x1x1x8xbf16> to vector<8x8xbf16>
    %45 = vector.shape_cast %42 : vector<8x8xbf16> to vector<8x1x1x8xbf16>
    tpu.vector_store %arg3[%c0_28, %c0_29, %c0_30, %c0_31], %45 {strides = array<i32>} : memref<8x1x4x8xbf16, #tpu.memory_space<vmem>>, vector<8x1x1x8xbf16>,
    %c0_32 = arith.constant 0 : index
    %c0_33 = arith.constant 0 : index
    %c0_34 = arith.constant 0 : index
    %c1_35 = arith.constant 1 : index
    %c0_36 = arith.constant 0 : index
    %46 = vector.load %arg1[%c0_32, %c0_33, %c0_34, %c1_35, %c0_36] : memref<8x1x3x4x8xbf16, #tpu.memory_space<vmem>>, vector<8x1x1x1x8xbf16>
    %47 = vector.shape_cast %46 : vector<8x1x1x1x8xbf16> to vector<8x8xbf16>
    %c0_37 = arith.constant 0 : index
    %c0_38 = arith.constant 0 : index
    %c1_39 = arith.constant 1 : index
    %c1_40 = arith.constant 1 : index
    %c0_41 = arith.constant 0 : index
    %48 = vector.load %arg1[%c0_37, %c0_38, %c1_39, %c1_40, %c0_41] : memref<8x1x3x4x8xbf16, #tpu.memory_space<vmem>>, vector<8x1x1x1x8xbf16>
    %49 = vector.shape_cast %48 : vector<8x1x1x1x8xbf16> to vector<8x8xbf16>
    %c0_42 = arith.constant 0 : index
    %c0_43 = arith.constant 0 : index
    %c2_44 = arith.constant 2 : index
    %c1_45 = arith.constant 1 : index
    %c0_46 = arith.constant 0 : index
    %50 = vector.load %arg1[%c0_42, %c0_43, %c2_44, %c1_45, %c0_46] : memref<8x1x3x4x8xbf16, #tpu.memory_space<vmem>>, vector<8x1x1x1x8xbf16>
    %51 = vector.shape_cast %50 : vector<8x1x1x1x8xbf16> to vector<8x8xbf16>
    %cst_47 = arith.constant dense<0.000000e+00> : vector<8x8xf32>
    %52 = tpu.matmul %47, %49, %cst_47 {dimension_numbers = #tpu.dot_dimension_numbers<[1], [1], [0], [0], [0, 0, 1, 0], [], []>} : vector<8x8xbf16>, vector<8x8xbf16>, vector<8x8xf32> -> vector<8x8xf32>
    %c0_48 = arith.constant 0 : index
    %c0_49 = arith.constant 0 : index
    %c1_50 = arith.constant 1 : index
    %c1_51 = arith.constant 1 : index
    %c0_52 = arith.constant 0 : index
    %53 = vector.load %arg2[%c0_48, %c0_49, %c1_50, %c1_51, %c0_52] : memref<1x1x3x4x8xbf16, #tpu.memory_space<vmem>>, vector<1x1x1x1x8xbf16>
    %54 = vector.shape_cast %53 : vector<1x1x1x1x8xbf16> to vector<1x8xbf16>
    %55 = arith.extf %54 : vector<1x8xbf16> to vector<1x8xf32>
    %c0_53 = arith.constant 0 : index
    %c0_54 = arith.constant 0 : index
    %c2_55 = arith.constant 2 : index
    %c1_56 = arith.constant 1 : index
    %c0_57 = arith.constant 0 : index
    %56 = vector.load %arg2[%c0_53, %c0_54, %c2_55, %c1_56, %c0_57] : memref<1x1x3x4x8xbf16, #tpu.memory_space<vmem>>, vector<1x1x1x1x8xbf16>
    %57 = vector.shape_cast %56 : vector<1x1x1x1x8xbf16> to vector<1x8xbf16>
    %58 = arith.extf %57 : vector<1x8xbf16> to vector<1x8xf32>
    %59 = arith.extf %47 : vector<8x8xbf16> to vector<8x8xf32>
    %60 = vector.broadcast %55 : vector<1x8xf32> to vector<8x8xf32>
    %61 = arith.mulf %59, %60 : vector<8x8xf32>
    %cst_58 = arith.constant dense<0.000000e+00> : vector<8xf32>
    %62 = vector.multi_reduction <add>, %61, %cst_58 [1] : vector<8x8xf32> to vector<8xf32>
    %63 = vector.shape_cast %62 : vector<8xf32> to vector<8x1xf32>
    %cst_59 = arith.constant dense<0xFF800000> : vector<8xf32>
    %64 = vector.multi_reduction <maximumf>, %52, %cst_59 [1] : vector<8x8xf32> to vector<8xf32>
    %65 = vector.shape_cast %64 : vector<8xf32> to vector<8x1xf32>
    %cst_60 = arith.constant dense<0xFF800000> : vector<8xf32>
    %66 = vector.multi_reduction <maximumf>, %63, %cst_60 [1] : vector<8x1xf32> to vector<8xf32>
    %67 = vector.shape_cast %66 : vector<8xf32> to vector<8x1xf32>
    %68 = arith.maximumf %65, %67 : vector<8x1xf32>
    %69 = vector.broadcast %68 : vector<8x1xf32> to vector<8x8xf32>
    %70 = arith.subf %52, %69 : vector<8x8xf32>
    %71 = math.exp %70 : vector<8x8xf32>
    %72 = arith.subf %63, %68 : vector<8x1xf32>
    %73 = math.exp %72 : vector<8x1xf32>
    %cst_61 = arith.constant dense<0.000000e+00> : vector<8xf32>
    %74 = vector.multi_reduction <add>, %71, %cst_61 [1] : vector<8x8xf32> to vector<8xf32>
    %75 = vector.shape_cast %74 : vector<8xf32> to vector<8x1xf32>
    %cst_62 = arith.constant dense<0.000000e+00> : vector<8xf32>
    %76 = vector.multi_reduction <add>, %73, %cst_62 [1] : vector<8x1xf32> to vector<8xf32>
    %77 = vector.shape_cast %76 : vector<8xf32> to vector<8x1xf32>
    %78 = arith.addf %75, %77 : vector<8x1xf32>
    %79 = arith.truncf %71 : vector<8x8xf32> to vector<8x8xbf16>
    %cst_63 = arith.constant dense<0.000000e+00> : vector<8x8xf32>
    %80 = tpu.matmul %79, %51, %cst_63 {dimension_numbers = #tpu.dot_dimension_numbers<[1], [0], [0], [1], [0, 0, 1, 1], [], []>} : vector<8x8xbf16>, vector<8x8xbf16>, vector<8x8xf32> -> vector<8x8xf32>
    %81 = vector.broadcast %73 : vector<8x1xf32> to vector<8x8xf32>
    %82 = vector.broadcast %58 : vector<1x8xf32> to vector<8x8xf32>
    %83 = arith.mulf %81, %82 : vector<8x8xf32>
    %84 = arith.addf %80, %83 : vector<8x8xf32>
    %85 = tpu.reciprocal %78 {approx = true} : vector<8x1xf32> -> vector<8x1xf32>
    %86 = vector.broadcast %85 : vector<8x1xf32> to vector<8x8xf32>
    %87 = arith.mulf %84, %86 : vector<8x8xf32>
    %88 = arith.truncf %87 : vector<8x8xf32> to vector<8x8xbf16>
    %c0_64 = arith.constant 0 : index
    %c0_65 = arith.constant 0 : index
    %c1_66 = arith.constant 1 : index
    %c0_67 = arith.constant 0 : index
    %89 = vector.load %arg3[%c0_64, %c0_65, %c1_66, %c0_67] : memref<8x1x4x8xbf16, #tpu.memory_space<vmem>>, vector<8x1x1x8xbf16>
    %90 = vector.shape_cast %89 : vector<8x1x1x8xbf16> to vector<8x8xbf16>
    %91 = vector.shape_cast %88 : vector<8x8xbf16> to vector<8x1x1x8xbf16>
    tpu.vector_store %arg3[%c0_64, %c0_65, %c1_66, %c0_67], %91 {strides = array<i32>} : memref<8x1x4x8xbf16, #tpu.memory_space<vmem>>, vector<8x1x1x8xbf16>,
    %c0_68 = arith.constant 0 : index
    %c0_69 = arith.constant 0 : index
    %c0_70 = arith.constant 0 : index
    %c2_71 = arith.constant 2 : index
    %c0_72 = arith.constant 0 : index
    %92 = vector.load %arg1[%c0_68, %c0_69, %c0_70, %c2_71, %c0_72] : memref<8x1x3x4x8xbf16, #tpu.memory_space<vmem>>, vector<8x1x1x1x8xbf16>
    %93 = vector.shape_cast %92 : vector<8x1x1x1x8xbf16> to vector<8x8xbf16>
    %c0_73 = arith.constant 0 : index
    %c0_74 = arith.constant 0 : index
    %c1_75 = arith.constant 1 : index
    %c2_76 = arith.constant 2 : index
    %c0_77 = arith.constant 0 : index
    %94 = vector.load %arg1[%c0_73, %c0_74, %c1_75, %c2_76, %c0_77] : memref<8x1x3x4x8xbf16, #tpu.memory_space<vmem>>, vector<8x1x1x1x8xbf16>
    %95 = vector.shape_cast %94 : vector<8x1x1x1x8xbf16> to vector<8x8xbf16>
    %c0_78 = arith.constant 0 : index
    %c0_79 = arith.constant 0 : index
    %c2_80 = arith.constant 2 : index
    %c2_81 = arith.constant 2 : index
    %c0_82 = arith.constant 0 : index
    %96 = vector.load %arg1[%c0_78, %c0_79, %c2_80, %c2_81, %c0_82] : memref<8x1x3x4x8xbf16, #tpu.memory_space<vmem>>, vector<8x1x1x1x8xbf16>
    %97 = vector.shape_cast %96 : vector<8x1x1x1x8xbf16> to vector<8x8xbf16>
    %cst_83 = arith.constant dense<0.000000e+00> : vector<8x8xf32>
    %98 = tpu.matmul %93, %95, %cst_83 {dimension_numbers = #tpu.dot_dimension_numbers<[1], [1], [0], [0], [0, 0, 1, 0], [], []>} : vector<8x8xbf16>, vector<8x8xbf16>, vector<8x8xf32> -> vector<8x8xf32>
    %c0_84 = arith.constant 0 : index
    %c0_85 = arith.constant 0 : index
    %c1_86 = arith.constant 1 : index
    %c2_87 = arith.constant 2 : index
    %c0_88 = arith.constant 0 : index
    %99 = vector.load %arg2[%c0_84, %c0_85, %c1_86, %c2_87, %c0_88] : memref<1x1x3x4x8xbf16, #tpu.memory_space<vmem>>, vector<1x1x1x1x8xbf16>
    %100 = vector.shape_cast %99 : vector<1x1x1x1x8xbf16> to vector<1x8xbf16>
    %101 = arith.extf %100 : vector<1x8xbf16> to vector<1x8xf32>
    %c0_89 = arith.constant 0 : index
    %c0_90 = arith.constant 0 : index
    %c2_91 = arith.constant 2 : index
    %c2_92 = arith.constant 2 : index
    %c0_93 = arith.constant 0 : index
    %102 = vector.load %arg2[%c0_89, %c0_90, %c2_91, %c2_92, %c0_93] : memref<1x1x3x4x8xbf16, #tpu.memory_space<vmem>>, vector<1x1x1x1x8xbf16>
    %103 = vector.shape_cast %102 : vector<1x1x1x1x8xbf16> to vector<1x8xbf16>
    %104 = arith.extf %103 : vector<1x8xbf16> to vector<1x8xf32>
    %105 = arith.extf %93 : vector<8x8xbf16> to vector<8x8xf32>
    %106 = vector.broadcast %101 : vector<1x8xf32> to vector<8x8xf32>
    %107 = arith.mulf %105, %106 : vector<8x8xf32>
    %cst_94 = arith.constant dense<0.000000e+00> : vector<8xf32>
    %108 = vector.multi_reduction <add>, %107, %cst_94 [1] : vector<8x8xf32> to vector<8xf32>
    %109 = vector.shape_cast %108 : vector<8xf32> to vector<8x1xf32>
    %cst_95 = arith.constant dense<0xFF800000> : vector<8xf32>
    %110 = vector.multi_reduction <maximumf>, %98, %cst_95 [1] : vector<8x8xf32> to vector<8xf32>
    %111 = vector.shape_cast %110 : vector<8xf32> to vector<8x1xf32>
    %cst_96 = arith.constant dense<0xFF800000> : vector<8xf32>
    %112 = vector.multi_reduction <maximumf>, %109, %cst_96 [1] : vector<8x1xf32> to vector<8xf32>
    %113 = vector.shape_cast %112 : vector<8xf32> to vector<8x1xf32>
    %114 = arith.maximumf %111, %113 : vector<8x1xf32>
    %115 = vector.broadcast %114 : vector<8x1xf32> to vector<8x8xf32>
    %116 = arith.subf %98, %115 : vector<8x8xf32>
    %117 = math.exp %116 : vector<8x8xf32>
    %118 = arith.subf %109, %114 : vector<8x1xf32>
    %119 = math.exp %118 : vector<8x1xf32>
    %cst_97 = arith.constant dense<0.000000e+00> : vector<8xf32>
    %120 = vector.multi_reduction <add>, %117, %cst_97 [1] : vector<8x8xf32> to vector<8xf32>
    %121 = vector.shape_cast %120 : vector<8xf32> to vector<8x1xf32>
    %cst_98 = arith.constant dense<0.000000e+00> : vector<8xf32>
    %122 = vector.multi_reduction <add>, %119, %cst_98 [1] : vector<8x1xf32> to vector<8xf32>
    %123 = vector.shape_cast %122 : vector<8xf32> to vector<8x1xf32>
    %124 = arith.addf %121, %123 : vector<8x1xf32>
    %125 = arith.truncf %117 : vector<8x8xf32> to vector<8x8xbf16>
    %cst_99 = arith.constant dense<0.000000e+00> : vector<8x8xf32>
    %126 = tpu.matmul %125, %97, %cst_99 {dimension_numbers = #tpu.dot_dimension_numbers<[1], [0], [0], [1], [0, 0, 1, 1], [], []>} : vector<8x8xbf16>, vector<8x8xbf16>, vector<8x8xf32> -> vector<8x8xf32>
    %127 = vector.broadcast %119 : vector<8x1xf32> to vector<8x8xf32>
    %128 = vector.broadcast %104 : vector<1x8xf32> to vector<8x8xf32>
    %129 = arith.mulf %127, %128 : vector<8x8xf32>
    %130 = arith.addf %126, %129 : vector<8x8xf32>
    %131 = tpu.reciprocal %124 {approx = true} : vector<8x1xf32> -> vector<8x1xf32>
    %132 = vector.broadcast %131 : vector<8x1xf32> to vector<8x8xf32>
    %133 = arith.mulf %130, %132 : vector<8x8xf32>
    %134 = arith.truncf %133 : vector<8x8xf32> to vector<8x8xbf16>
    %c0_100 = arith.constant 0 : index
    %c0_101 = arith.constant 0 : index
    %c2_102 = arith.constant 2 : index
    %c0_103 = arith.constant 0 : index
    %135 = vector.load %arg3[%c0_100, %c0_101, %c2_102, %c0_103] : memref<8x1x4x8xbf16, #tpu.memory_space<vmem>>, vector<8x1x1x8xbf16>
    %136 = vector.shape_cast %135 : vector<8x1x1x8xbf16> to vector<8x8xbf16>
    %137 = vector.shape_cast %134 : vector<8x8xbf16> to vector<8x1x1x8xbf16>
    tpu.vector_store %arg3[%c0_100, %c0_101, %c2_102, %c0_103], %137 {strides = array<i32>} : memref<8x1x4x8xbf16, #tpu.memory_space<vmem>>, vector<8x1x1x8xbf16>,
    %c0_104 = arith.constant 0 : index
    %c0_105 = arith.constant 0 : index
    %c0_106 = arith.constant 0 : index
    %c3 = arith.constant 3 : index
    %c0_107 = arith.constant 0 : index
    %138 = vector.load %arg1[%c0_104, %c0_105, %c0_106, %c3, %c0_107] : memref<8x1x3x4x8xbf16, #tpu.memory_space<vmem>>, vector<8x1x1x1x8xbf16>
    %139 = vector.shape_cast %138 : vector<8x1x1x1x8xbf16> to vector<8x8xbf16>
    %c0_108 = arith.constant 0 : index
    %c0_109 = arith.constant 0 : index
    %c1_110 = arith.constant 1 : index
    %c3_111 = arith.constant 3 : index
    %c0_112 = arith.constant 0 : index
    %140 = vector.load %arg1[%c0_108, %c0_109, %c1_110, %c3_111, %c0_112] : memref<8x1x3x4x8xbf16, #tpu.memory_space<vmem>>, vector<8x1x1x1x8xbf16>
    %141 = vector.shape_cast %140 : vector<8x1x1x1x8xbf16> to vector<8x8xbf16>
    %c0_113 = arith.constant 0 : index
    %c0_114 = arith.constant 0 : index
    %c2_115 = arith.constant 2 : index
    %c3_116 = arith.constant 3 : index
    %c0_117 = arith.constant 0 : index
    %142 = vector.load %arg1[%c0_113, %c0_114, %c2_115, %c3_116, %c0_117] : memref<8x1x3x4x8xbf16, #tpu.memory_space<vmem>>, vector<8x1x1x1x8xbf16>
    %143 = vector.shape_cast %142 : vector<8x1x1x1x8xbf16> to vector<8x8xbf16>
    %cst_118 = arith.constant dense<0.000000e+00> : vector<8x8xf32>
    %144 = tpu.matmul %139, %141, %cst_118 {dimension_numbers = #tpu.dot_dimension_numbers<[1], [1], [0], [0], [0, 0, 1, 0], [], []>} : vector<8x8xbf16>, vector<8x8xbf16>, vector<8x8xf32> -> vector<8x8xf32>
    %c0_119 = arith.constant 0 : index
    %c0_120 = arith.constant 0 : index
    %c1_121 = arith.constant 1 : index
    %c3_122 = arith.constant 3 : index
    %c0_123 = arith.constant 0 : index
    %145 = vector.load %arg2[%c0_119, %c0_120, %c1_121, %c3_122, %c0_123] : memref<1x1x3x4x8xbf16, #tpu.memory_space<vmem>>, vector<1x1x1x1x8xbf16>
    %146 = vector.shape_cast %145 : vector<1x1x1x1x8xbf16> to vector<1x8xbf16>
    %147 = arith.extf %146 : vector<1x8xbf16> to vector<1x8xf32>
    %c0_124 = arith.constant 0 : index
    %c0_125 = arith.constant 0 : index
    %c2_126 = arith.constant 2 : index
    %c3_127 = arith.constant 3 : index
    %c0_128 = arith.constant 0 : index
    %148 = vector.load %arg2[%c0_124, %c0_125, %c2_126, %c3_127, %c0_128] : memref<1x1x3x4x8xbf16, #tpu.memory_space<vmem>>, vector<1x1x1x1x8xbf16>
    %149 = vector.shape_cast %148 : vector<1x1x1x1x8xbf16> to vector<1x8xbf16>
    %150 = arith.extf %149 : vector<1x8xbf16> to vector<1x8xf32>
    %151 = arith.extf %139 : vector<8x8xbf16> to vector<8x8xf32>
    %152 = vector.broadcast %147 : vector<1x8xf32> to vector<8x8xf32>
    %153 = arith.mulf %151, %152 : vector<8x8xf32>
    %cst_129 = arith.constant dense<0.000000e+00> : vector<8xf32>
    %154 = vector.multi_reduction <add>, %153, %cst_129 [1] : vector<8x8xf32> to vector<8xf32>
    %155 = vector.shape_cast %154 : vector<8xf32> to vector<8x1xf32>
    %cst_130 = arith.constant dense<0xFF800000> : vector<8xf32>
    %156 = vector.multi_reduction <maximumf>, %144, %cst_130 [1] : vector<8x8xf32> to vector<8xf32>
    %157 = vector.shape_cast %156 : vector<8xf32> to vector<8x1xf32>
    %cst_131 = arith.constant dense<0xFF800000> : vector<8xf32>
    %158 = vector.multi_reduction <maximumf>, %155, %cst_131 [1] : vector<8x1xf32> to vector<8xf32>
    %159 = vector.shape_cast %158 : vector<8xf32> to vector<8x1xf32>
    %160 = arith.maximumf %157, %159 : vector<8x1xf32>
    %161 = vector.broadcast %160 : vector<8x1xf32> to vector<8x8xf32>
    %162 = arith.subf %144, %161 : vector<8x8xf32>
    %163 = math.exp %162 : vector<8x8xf32>
    %164 = arith.subf %155, %160 : vector<8x1xf32>
    %165 = math.exp %164 : vector<8x1xf32>
    %cst_132 = arith.constant dense<0.000000e+00> : vector<8xf32>
    %166 = vector.multi_reduction <add>, %163, %cst_132 [1] : vector<8x8xf32> to vector<8xf32>
    %167 = vector.shape_cast %166 : vector<8xf32> to vector<8x1xf32>
    %cst_133 = arith.constant dense<0.000000e+00> : vector<8xf32>
    %168 = vector.multi_reduction <add>, %165, %cst_133 [1] : vector<8x1xf32> to vector<8xf32>
    %169 = vector.shape_cast %168 : vector<8xf32> to vector<8x1xf32>
    %170 = arith.addf %167, %169 : vector<8x1xf32>
    %171 = arith.truncf %163 : vector<8x8xf32> to vector<8x8xbf16>
    %cst_134 = arith.constant dense<0.000000e+00> : vector<8x8xf32>
    %172 = tpu.matmul %171, %143, %cst_134 {dimension_numbers = #tpu.dot_dimension_numbers<[1], [0], [0], [1], [0, 0, 1, 1], [], []>} : vector<8x8xbf16>, vector<8x8xbf16>, vector<8x8xf32> -> vector<8x8xf32>
    %173 = vector.broadcast %165 : vector<8x1xf32> to vector<8x8xf32>
    %174 = vector.broadcast %150 : vector<1x8xf32> to vector<8x8xf32>
    %175 = arith.mulf %173, %174 : vector<8x8xf32>
    %176 = arith.addf %172, %175 : vector<8x8xf32>
    %177 = tpu.reciprocal %170 {approx = true} : vector<8x1xf32> -> vector<8x1xf32>
    %178 = vector.broadcast %177 : vector<8x1xf32> to vector<8x8xf32>
    %179 = arith.mulf %176, %178 : vector<8x8xf32>
    %180 = arith.truncf %179 : vector<8x8xf32> to vector<8x8xbf16>
    %c0_135 = arith.constant 0 : index
    %c0_136 = arith.constant 0 : index
    %c3_137 = arith.constant 3 : index
    %c0_138 = arith.constant 0 : index
    %181 = vector.load %arg3[%c0_135, %c0_136, %c3_137, %c0_138] : memref<8x1x4x8xbf16, #tpu.memory_space<vmem>>, vector<8x1x1x8xbf16>
    %182 = vector.shape_cast %181 : vector<8x1x1x8xbf16> to vector<8x8xbf16>
    %183 = vector.shape_cast %180 : vector<8x8xbf16> to vector<8x1x1x8xbf16>
    tpu.vector_store %arg3[%c0_135, %c0_136, %c3_137, %c0_138], %183 {strides = array<i32>} : memref<8x1x4x8xbf16, #tpu.memory_space<vmem>>, vector<8x1x1x8xbf16>,
    return
  }
  func.func @transform_0(%arg0: i32) -> (i32, i32, i32, i32, i32) {
    %c0_i32 = arith.constant 0 : i32
    %c0_i32_0 = arith.constant 0 : i32
    %c0_i32_1 = arith.constant 0 : i32
    %c0_i32_2 = arith.constant 0 : i32
    %c0_i32_3 = arith.constant 0 : i32
    return %c0_i32, %arg0, %c0_i32_0, %c0_i32_1, %c0_i32_2 : i32, i32, i32, i32, i32
  }
  func.func @transform_1(%arg0: i32) -> (i32, i32, i32, i32, i32) {
    %c0_i32 = arith.constant 0 : i32
    %c0_i32_0 = arith.constant 0 : i32
    %c0_i32_1 = arith.constant 0 : i32
    %c0_i32_2 = arith.constant 0 : i32
    %c0_i32_3 = arith.constant 0 : i32
    return %c0_i32, %arg0, %c0_i32_0, %c0_i32_1, %c0_i32_2 : i32, i32, i32, i32, i32
  }
  func.func @transform_2(%arg0: i32) -> (i32, i32, i32, i32) {
    %c0_i32 = arith.constant 0 : i32
    %c0_i32_0 = arith.constant 0 : i32
    %c0_i32_1 = arith.constant 0 : i32
    %c0_i32_2 = arith.constant 0 : i32
    return %c0_i32, %arg0, %c0_i32_0, %c0_i32_1 : i32, i32, i32, i32
  }
}

module attributes {stable_mosaic.version = 11 : i64} {
  func.func @_fused_linear_kernel(%arg0: i32, %arg1: i32, %arg2: i32, %arg3: memref<64x32xbf16, #tpu.memory_space<vmem>>, %arg4: memref<32x32xbf16, #tpu.memory_space<vmem>>, %arg5: memref<1x32xf32, #tpu.memory_space<vmem>>, %arg6: memref<64x32xf32, #tpu.memory_space<vmem>>, %arg7: memref<64x32xf32, #tpu.memory_space<vmem>>, %arg8: memref<64x32xf32, #tpu.memory_space<vmem>>) attributes {dimension_semantics = [#tpu.dimension_semantics<parallel>, #tpu.dimension_semantics<parallel>, #tpu.dimension_semantics<arbitrary>], iteration_bounds = array<i64: 1, 1, 1>, scalar_prefetch = 0 : i64, scratch_operands = 1 : i64, tpu.core_type = #tpu.core_type<tc>, window_params = [{transform_indices = @transform_0, window_bounds = array<i64: 64, 32>}, {transform_indices = @transform_1, window_bounds = array<i64: 32, 32>}, {transform_indices = @transform_2, window_bounds = array<i64: 1, 32>}, {transform_indices = @transform_3, window_bounds = array<i64: 64, 32>}, {transform_indices = @transform_4, window_bounds = array<i64: 64, 32>}]} {
    %c0_i32 = arith.constant 0 : i32
    %0 = arith.cmpi eq, %arg2, %c0_i32 : i32
    %1 = arith.extui %0 : i1 to i32
    %c0_i32_0 = arith.constant 0 : i32
    %2 = arith.cmpi ne, %1, %c0_i32_0 : i32
    scf.if %2 {
      %cst_10 = arith.constant 0.000000e+00 : f32
      %12 = vector.broadcast %cst_10 : f32 to vector<64x32xf32>
      %c0_11 = arith.constant 0 : index
      %c0_12 = arith.constant 0 : index
      %13 = vector.load %arg8[%c0_11, %c0_12] : memref<64x32xf32, #tpu.memory_space<vmem>>, vector<64x32xf32>
      tpu.vector_store %arg8[%c0_11, %c0_12], %12 {strides = array<i32>} : memref<64x32xf32, #tpu.memory_space<vmem>>, vector<64x32xf32>,
    } else {
    }
    %c0 = arith.constant 0 : index
    %c0_1 = arith.constant 0 : index
    %3 = vector.load %arg3[%c0, %c0_1] : memref<64x32xbf16, #tpu.memory_space<vmem>>, vector<64x32xbf16>
    %c0_2 = arith.constant 0 : index
    %c0_3 = arith.constant 0 : index
    %4 = vector.load %arg8[%c0_2, %c0_3] : memref<64x32xf32, #tpu.memory_space<vmem>>, vector<64x32xf32>
    %c0_4 = arith.constant 0 : index
    %c0_5 = arith.constant 0 : index
    %5 = vector.load %arg4[%c0_4, %c0_5] : memref<32x32xbf16, #tpu.memory_space<vmem>>, vector<32x32xbf16>
    %cst = arith.constant dense<0.000000e+00> : vector<64x32xf32>
    %6 = tpu.matmul %3, %5, %cst {dimension_numbers = #tpu.dot_dimension_numbers<[1], [0], [0], [1], [0, 0, 1, 1], [], []>} : vector<64x32xbf16>, vector<32x32xbf16>, vector<64x32xf32> -> vector<64x32xf32>
    %7 = arith.addf %4, %6 : vector<64x32xf32>
    %c0_6 = arith.constant 0 : index
    %c0_7 = arith.constant 0 : index
    %8 = vector.load %arg8[%c0_6, %c0_7] : memref<64x32xf32, #tpu.memory_space<vmem>>, vector<64x32xf32>
    tpu.vector_store %arg8[%c0_6, %c0_7], %7 {strides = array<i32>} : memref<64x32xf32, #tpu.memory_space<vmem>>, vector<64x32xf32>,
    %c0_i32_8 = arith.constant 0 : i32
    %9 = arith.cmpi eq, %arg2, %c0_i32_8 : i32
    %10 = arith.extui %9 : i1 to i32
    %c0_i32_9 = arith.constant 0 : i32
    %11 = arith.cmpi ne, %10, %c0_i32_9 : i32
    scf.if %11 {
      %c0_10 = arith.constant 0 : index
      %c0_11 = arith.constant 0 : index
      %12 = vector.load %arg8[%c0_10, %c0_11] : memref<64x32xf32, #tpu.memory_space<vmem>>, vector<64x32xf32>
      %c0_12 = arith.constant 0 : index
      %c0_13 = arith.constant 0 : index
      %13 = vector.load %arg5[%c0_12, %c0_13] : memref<1x32xf32, #tpu.memory_space<vmem>>, vector<1x32xf32>
      %14 = vector.broadcast %13 : vector<1x32xf32> to vector<64x32xf32>
      %15 = arith.addf %12, %14 : vector<64x32xf32>
      %c0_14 = arith.constant 0 : index
      %c0_15 = arith.constant 0 : index
      %16 = vector.load %arg6[%c0_14, %c0_15] : memref<64x32xf32, #tpu.memory_space<vmem>>, vector<64x32xf32>
      %17 = arith.addf %15, %16 : vector<64x32xf32>
      %c0_16 = arith.constant 0 : index
      %c0_17 = arith.constant 0 : index
      %18 = vector.load %arg7[%c0_16, %c0_17] : memref<64x32xf32, #tpu.memory_space<vmem>>, vector<64x32xf32>
      tpu.vector_store %arg7[%c0_16, %c0_17], %17 {strides = array<i32>} : memref<64x32xf32, #tpu.memory_space<vmem>>, vector<64x32xf32>,
    } else {
    }
    return
  }
  func.func @transform_0(%arg0: i32, %arg1: i32, %arg2: i32) -> (i32, i32) {
    %c0_i32 = arith.constant 0 : i32
    return %arg0, %arg2 : i32, i32
  }
  func.func @transform_1(%arg0: i32, %arg1: i32, %arg2: i32) -> (i32, i32) {
    %c0_i32 = arith.constant 0 : i32
    return %arg2, %arg1 : i32, i32
  }
  func.func @transform_2(%arg0: i32, %arg1: i32, %arg2: i32) -> (i32, i32) {
    %c0_i32 = arith.constant 0 : i32
    %c0_i32_0 = arith.constant 0 : i32
    return %c0_i32, %arg1 : i32, i32
  }
  func.func @transform_3(%arg0: i32, %arg1: i32, %arg2: i32) -> (i32, i32) {
    %c0_i32 = arith.constant 0 : i32
    return %arg0, %arg1 : i32, i32
  }
  func.func @transform_4(%arg0: i32, %arg1: i32, %arg2: i32) -> (i32, i32) {
    %c0_i32 = arith.constant 0 : i32
    return %arg0, %arg1 : i32, i32
  }
}

module attributes {stable_mosaic.version = 11 : i64} {
  func.func @_fused_linear_kernel(%arg0: i32, %arg1: i32, %arg2: i32, %arg3: memref<64x32xf32, #tpu.memory_space<vmem>>, %arg4: memref<1x32xf32, #tpu.memory_space<vmem>>, %arg5: memref<1x32xf32, #tpu.memory_space<vmem>>, %arg6: memref<32x128xbf16, #tpu.memory_space<vmem>>, %arg7: memref<1x128xf32, #tpu.memory_space<vmem>>, %arg8: memref<64x128xbf16, #tpu.memory_space<vmem>>, %arg9: memref<64x128xf32, #tpu.memory_space<vmem>>, %arg10: memref<64x32xbf16, #tpu.memory_space<vmem>>) attributes {dimension_semantics = [#tpu.dimension_semantics<parallel>, #tpu.dimension_semantics<arbitrary>, #tpu.dimension_semantics<arbitrary>], iteration_bounds = array<i64: 1, 1, 1>, scalar_prefetch = 0 : i64, scratch_operands = 2 : i64, tpu.core_type = #tpu.core_type<tc>, window_params = [{transform_indices = @transform_0, window_bounds = array<i64: 64, 32>}, {transform_indices = @transform_1, window_bounds = array<i64: 1, 32>}, {transform_indices = @transform_2, window_bounds = array<i64: 1, 32>}, {transform_indices = @transform_3, window_bounds = array<i64: 32, 128>}, {transform_indices = @transform_4, window_bounds = array<i64: 1, 128>}, {transform_indices = @transform_5, window_bounds = array<i64: 64, 128>}]} {
    %c0_i32 = arith.constant 0 : i32
    %0 = arith.cmpi eq, %arg2, %c0_i32 : i32
    %1 = arith.extui %0 : i1 to i32
    %c0_i32_0 = arith.constant 0 : i32
    %2 = arith.cmpi ne, %1, %c0_i32_0 : i32
    scf.if %2 {
      %cst_12 = arith.constant 0.000000e+00 : f32
      %15 = vector.broadcast %cst_12 : f32 to vector<64x128xf32>
      %c0_13 = arith.constant 0 : index
      %c0_14 = arith.constant 0 : index
      %16 = vector.load %arg9[%c0_13, %c0_14] : memref<64x128xf32, #tpu.memory_space<vmem>>, vector<64x128xf32>
      tpu.vector_store %arg9[%c0_13, %c0_14], %15 {strides = array<i32>} : memref<64x128xf32, #tpu.memory_space<vmem>>, vector<64x128xf32>,
    } else {
    }
    %c0_i32_1 = arith.constant 0 : i32
    %3 = arith.cmpi eq, %arg1, %c0_i32_1 : i32
    %4 = arith.extui %3 : i1 to i32
    %c0_i32_2 = arith.constant 0 : i32
    %5 = arith.cmpi ne, %4, %c0_i32_2 : i32
    scf.if %5 {
      %c0_12 = arith.constant 0 : index
      %c0_13 = arith.constant 0 : index
      %15 = vector.load %arg3[%c0_12, %c0_13] : memref<64x32xf32, #tpu.memory_space<vmem>>, vector<64x32xf32>
      %cst_14 = arith.constant dense<0.000000e+00> : vector<64xf32>
      %16 = vector.multi_reduction <add>, %15, %cst_14 [1] : vector<64x32xf32> to vector<64xf32>
      %17 = vector.shape_cast %16 : vector<64xf32> to vector<64x1xf32>
      %cst_15 = arith.constant 3.200000e+01 : f32
      %18 = vector.broadcast %cst_15 : f32 to vector<64x1xf32>
      %19 = arith.divf %17, %18 : vector<64x1xf32>
      %20 = vector.broadcast %19 : vector<64x1xf32> to vector<64x32xf32>
      %21 = arith.subf %15, %20 : vector<64x32xf32>
      %22 = arith.mulf %21, %21 : vector<64x32xf32>
      %cst_16 = arith.constant dense<0.000000e+00> : vector<64xf32>
      %23 = vector.multi_reduction <add>, %22, %cst_16 [1] : vector<64x32xf32> to vector<64xf32>
      %24 = vector.shape_cast %23 : vector<64xf32> to vector<64x1xf32>
      %cst_17 = arith.constant 3.200000e+01 : f32
      %25 = vector.broadcast %cst_17 : f32 to vector<64x1xf32>
      %26 = arith.divf %24, %25 : vector<64x1xf32>
      %cst_18 = arith.constant 9.99999974E-6 : f32
      %27 = vector.broadcast %cst_18 : f32 to vector<64x1xf32>
      %28 = arith.addf %26, %27 : vector<64x1xf32>
      %29 = math.rsqrt %28 : vector<64x1xf32>
      %30 = vector.broadcast %29 : vector<64x1xf32> to vector<64x32xf32>
      %31 = arith.mulf %21, %30 : vector<64x32xf32>
      %c0_19 = arith.constant 0 : index
      %c0_20 = arith.constant 0 : index
      %32 = vector.load %arg4[%c0_19, %c0_20] : memref<1x32xf32, #tpu.memory_space<vmem>>, vector<1x32xf32>
      %33 = vector.broadcast %32 : vector<1x32xf32> to vector<64x32xf32>
      %34 = arith.mulf %31, %33 : vector<64x32xf32>
      %c0_21 = arith.constant 0 : index
      %c0_22 = arith.constant 0 : index
      %35 = vector.load %arg5[%c0_21, %c0_22] : memref<1x32xf32, #tpu.memory_space<vmem>>, vector<1x32xf32>
      %36 = vector.broadcast %35 : vector<1x32xf32> to vector<64x32xf32>
      %37 = arith.addf %34, %36 : vector<64x32xf32>
      %38 = arith.truncf %37 : vector<64x32xf32> to vector<64x32xbf16>
      %c0_23 = arith.constant 0 : index
      %c0_24 = arith.constant 0 : index
      %39 = vector.load %arg10[%c0_23, %c0_24] : memref<64x32xbf16, #tpu.memory_space<vmem>>, vector<64x32xbf16>
      tpu.vector_store %arg10[%c0_23, %c0_24], %38 {strides = array<i32>} : memref<64x32xbf16, #tpu.memory_space<vmem>>, vector<64x32xbf16>,
    } else {
    }
    %c0 = arith.constant 0 : index
    %c0_3 = arith.constant 0 : index
    %6 = vector.load %arg10[%c0, %c0_3] : memref<64x32xbf16, #tpu.memory_space<vmem>>, vector<64x32xbf16>
    %c0_4 = arith.constant 0 : index
    %c0_5 = arith.constant 0 : index
    %7 = vector.load %arg9[%c0_4, %c0_5] : memref<64x128xf32, #tpu.memory_space<vmem>>, vector<64x128xf32>
    %c0_6 = arith.constant 0 : index
    %c0_7 = arith.constant 0 : index
    %8 = vector.load %arg6[%c0_6, %c0_7] : memref<32x128xbf16, #tpu.memory_space<vmem>>, vector<32x128xbf16>
    %cst = arith.constant dense<0.000000e+00> : vector<64x128xf32>
    %9 = tpu.matmul %6, %8, %cst {dimension_numbers = #tpu.dot_dimension_numbers<[1], [0], [0], [1], [0, 0, 1, 1], [], []>} : vector<64x32xbf16>, vector<32x128xbf16>, vector<64x128xf32> -> vector<64x128xf32>
    %10 = arith.addf %7, %9 : vector<64x128xf32>
    %c0_8 = arith.constant 0 : index
    %c0_9 = arith.constant 0 : index
    %11 = vector.load %arg9[%c0_8, %c0_9] : memref<64x128xf32, #tpu.memory_space<vmem>>, vector<64x128xf32>
    tpu.vector_store %arg9[%c0_8, %c0_9], %10 {strides = array<i32>} : memref<64x128xf32, #tpu.memory_space<vmem>>, vector<64x128xf32>,
    %c0_i32_10 = arith.constant 0 : i32
    %12 = arith.cmpi eq, %arg2, %c0_i32_10 : i32
    %13 = arith.extui %12 : i1 to i32
    %c0_i32_11 = arith.constant 0 : i32
    %14 = arith.cmpi ne, %13, %c0_i32_11 : i32
    scf.if %14 {
      %c0_12 = arith.constant 0 : index
      %c0_13 = arith.constant 0 : index
      %15 = vector.load %arg9[%c0_12, %c0_13] : memref<64x128xf32, #tpu.memory_space<vmem>>, vector<64x128xf32>
      %c0_14 = arith.constant 0 : index
      %c0_15 = arith.constant 0 : index
      %16 = vector.load %arg7[%c0_14, %c0_15] : memref<1x128xf32, #tpu.memory_space<vmem>>, vector<1x128xf32>
      %17 = vector.broadcast %16 : vector<1x128xf32> to vector<64x128xf32>
      %18 = arith.addf %15, %17 : vector<64x128xf32>
      %cst_16 = arith.constant 1.702000e+00 : f32
      %19 = vector.broadcast %cst_16 : f32 to vector<64x128xf32>
      %20 = arith.mulf %19, %18 : vector<64x128xf32>
      %21 = arith.negf %20 : vector<64x128xf32>
      %22 = math.exp %21 : vector<64x128xf32>
      %cst_17 = arith.constant 1.000000e+00 : f32
      %23 = vector.broadcast %cst_17 : f32 to vector<64x128xf32>
      %24 = arith.addf %23, %22 : vector<64x128xf32>
      %25 = arith.divf %23, %24 : vector<64x128xf32>
      %26 = arith.mulf %18, %25 : vector<64x128xf32>
      %27 = arith.truncf %26 : vector<64x128xf32> to vector<64x128xbf16>
      %c0_18 = arith.constant 0 : index
      %c0_19 = arith.constant 0 : index
      %28 = vector.load %arg8[%c0_18, %c0_19] : memref<64x128xbf16, #tpu.memory_space<vmem>>, vector<64x128xbf16>
      tpu.vector_store %arg8[%c0_18, %c0_19], %27 {strides = array<i32>} : memref<64x128xbf16, #tpu.memory_space<vmem>>, vector<64x128xbf16>,
    } else {
    }
    return
  }
  func.func @transform_0(%arg0: i32, %arg1: i32, %arg2: i32) -> (i32, i32) {
    %c0_i32 = arith.constant 0 : i32
    return %arg0, %arg2 : i32, i32
  }
  func.func @transform_1(%arg0: i32, %arg1: i32, %arg2: i32) -> (i32, i32) {
    %c0_i32 = arith.constant 0 : i32
    %c0_i32_0 = arith.constant 0 : i32
    return %c0_i32, %arg2 : i32, i32
  }
  func.func @transform_2(%arg0: i32, %arg1: i32, %arg2: i32) -> (i32, i32) {
    %c0_i32 = arith.constant 0 : i32
    %c0_i32_0 = arith.constant 0 : i32
    return %c0_i32, %arg2 : i32, i32
  }
  func.func @transform_3(%arg0: i32, %arg1: i32, %arg2: i32) -> (i32, i32) {
    %c0_i32 = arith.constant 0 : i32
    return %arg2, %arg1 : i32, i32
  }
  func.func @transform_4(%arg0: i32, %arg1: i32, %arg2: i32) -> (i32, i32) {
    %c0_i32 = arith.constant 0 : i32
    %c0_i32_0 = arith.constant 0 : i32
    return %c0_i32, %arg1 : i32, i32
  }
  func.func @transform_5(%arg0: i32, %arg1: i32, %arg2: i32) -> (i32, i32) {
    %c0_i32 = arith.constant 0 : i32
    return %arg0, %arg1 : i32, i32
  }
}

module attributes {stable_mosaic.version = 11 : i64} {
  func.func @_fused_linear_kernel(%arg0: i32, %arg1: i32, %arg2: i32, %arg3: memref<64x128xbf16, #tpu.memory_space<vmem>>, %arg4: memref<128x32xbf16, #tpu.memory_space<vmem>>, %arg5: memref<1x32xf32, #tpu.memory_space<vmem>>, %arg6: memref<64x32xf32, #tpu.memory_space<vmem>>, %arg7: memref<64x32xf32, #tpu.memory_space<vmem>>, %arg8: memref<64x32xf32, #tpu.memory_space<vmem>>) attributes {dimension_semantics = [#tpu.dimension_semantics<parallel>, #tpu.dimension_semantics<parallel>, #tpu.dimension_semantics<arbitrary>], iteration_bounds = array<i64: 1, 1, 1>, scalar_prefetch = 0 : i64, scratch_operands = 1 : i64, tpu.core_type = #tpu.core_type<tc>, window_params = [{transform_indices = @transform_0, window_bounds = array<i64: 64, 128>}, {transform_indices = @transform_1, window_bounds = array<i64: 128, 32>}, {transform_indices = @transform_2, window_bounds = array<i64: 1, 32>}, {transform_indices = @transform_3, window_bounds = array<i64: 64, 32>}, {transform_indices = @transform_4, window_bounds = array<i64: 64, 32>}]} {
    %c0_i32 = arith.constant 0 : i32
    %0 = arith.cmpi eq, %arg2, %c0_i32 : i32
    %1 = arith.extui %0 : i1 to i32
    %c0_i32_0 = arith.constant 0 : i32
    %2 = arith.cmpi ne, %1, %c0_i32_0 : i32
    scf.if %2 {
      %cst_10 = arith.constant 0.000000e+00 : f32
      %12 = vector.broadcast %cst_10 : f32 to vector<64x32xf32>
      %c0_11 = arith.constant 0 : index
      %c0_12 = arith.constant 0 : index
      %13 = vector.load %arg8[%c0_11, %c0_12] : memref<64x32xf32, #tpu.memory_space<vmem>>, vector<64x32xf32>
      tpu.vector_store %arg8[%c0_11, %c0_12], %12 {strides = array<i32>} : memref<64x32xf32, #tpu.memory_space<vmem>>, vector<64x32xf32>,
    } else {
    }
    %c0 = arith.constant 0 : index
    %c0_1 = arith.constant 0 : index
    %3 = vector.load %arg3[%c0, %c0_1] : memref<64x128xbf16, #tpu.memory_space<vmem>>, vector<64x128xbf16>
    %c0_2 = arith.constant 0 : index
    %c0_3 = arith.constant 0 : index
    %4 = vector.load %arg8[%c0_2, %c0_3] : memref<64x32xf32, #tpu.memory_space<vmem>>, vector<64x32xf32>
    %c0_4 = arith.constant 0 : index
    %c0_5 = arith.constant 0 : index
    %5 = vector.load %arg4[%c0_4, %c0_5] : memref<128x32xbf16, #tpu.memory_space<vmem>>, vector<128x32xbf16>
    %cst = arith.constant dense<0.000000e+00> : vector<64x32xf32>
    %6 = tpu.matmul %3, %5, %cst {dimension_numbers = #tpu.dot_dimension_numbers<[1], [0], [0], [1], [0, 0, 1, 1], [], []>} : vector<64x128xbf16>, vector<128x32xbf16>, vector<64x32xf32> -> vector<64x32xf32>
    %7 = arith.addf %4, %6 : vector<64x32xf32>
    %c0_6 = arith.constant 0 : index
    %c0_7 = arith.constant 0 : index
    %8 = vector.load %arg8[%c0_6, %c0_7] : memref<64x32xf32, #tpu.memory_space<vmem>>, vector<64x32xf32>
    tpu.vector_store %arg8[%c0_6, %c0_7], %7 {strides = array<i32>} : memref<64x32xf32, #tpu.memory_space<vmem>>, vector<64x32xf32>,
    %c0_i32_8 = arith.constant 0 : i32
    %9 = arith.cmpi eq, %arg2, %c0_i32_8 : i32
    %10 = arith.extui %9 : i1 to i32
    %c0_i32_9 = arith.constant 0 : i32
    %11 = arith.cmpi ne, %10, %c0_i32_9 : i32
    scf.if %11 {
      %c0_10 = arith.constant 0 : index
      %c0_11 = arith.constant 0 : index
      %12 = vector.load %arg8[%c0_10, %c0_11] : memref<64x32xf32, #tpu.memory_space<vmem>>, vector<64x32xf32>
      %c0_12 = arith.constant 0 : index
      %c0_13 = arith.constant 0 : index
      %13 = vector.load %arg5[%c0_12, %c0_13] : memref<1x32xf32, #tpu.memory_space<vmem>>, vector<1x32xf32>
      %14 = vector.broadcast %13 : vector<1x32xf32> to vector<64x32xf32>
      %15 = arith.addf %12, %14 : vector<64x32xf32>
      %c0_14 = arith.constant 0 : index
      %c0_15 = arith.constant 0 : index
      %16 = vector.load %arg6[%c0_14, %c0_15] : memref<64x32xf32, #tpu.memory_space<vmem>>, vector<64x32xf32>
      %17 = arith.addf %15, %16 : vector<64x32xf32>
      %c0_16 = arith.constant 0 : index
      %c0_17 = arith.constant 0 : index
      %18 = vector.load %arg7[%c0_16, %c0_17] : memref<64x32xf32, #tpu.memory_space<vmem>>, vector<64x32xf32>
      tpu.vector_store %arg7[%c0_16, %c0_17], %17 {strides = array<i32>} : memref<64x32xf32, #tpu.memory_space<vmem>>, vector<64x32xf32>,
    } else {
    }
    return
  }
  func.func @transform_0(%arg0: i32, %arg1: i32, %arg2: i32) -> (i32, i32) {
    %c0_i32 = arith.constant 0 : i32
    return %arg0, %arg2 : i32, i32
  }
  func.func @transform_1(%arg0: i32, %arg1: i32, %arg2: i32) -> (i32, i32) {
    %c0_i32 = arith.constant 0 : i32
    return %arg2, %arg1 : i32, i32
  }
  func.func @transform_2(%arg0: i32, %arg1: i32, %arg2: i32) -> (i32, i32) {
    %c0_i32 = arith.constant 0 : i32
    %c0_i32_0 = arith.constant 0 : i32
    return %c0_i32, %arg1 : i32, i32
  }
  func.func @transform_3(%arg0: i32, %arg1: i32, %arg2: i32) -> (i32, i32) {
    %c0_i32 = arith.constant 0 : i32
    return %arg0, %arg1 : i32, i32
  }
  func.func @transform_4(%arg0: i32, %arg1: i32, %arg2: i32) -> (i32, i32) {
    %c0_i32 = arith.constant 0 : i32
    return %arg0, %arg1 : i32, i32
  }
}

module attributes {stable_mosaic.version = 11 : i64} {
  func.func @_fused_linear_kernel(%arg0: i32, %arg1: i32, %arg2: i32, %arg3: memref<64x128xbf16, #tpu.memory_space<vmem>>, %arg4: memref<128x32xbf16, #tpu.memory_space<vmem>>, %arg5: memref<1x32xf32, #tpu.memory_space<vmem>>, %arg6: memref<64x32xf32, #tpu.memory_space<vmem>>, %arg7: memref<64x32xf32, #tpu.memory_space<vmem>>, %arg8: memref<64x32xf32, #tpu.memory_space<vmem>>) attributes {dimension_semantics = [#tpu.dimension_semantics<parallel>, #tpu.dimension_semantics<parallel>, #tpu.dimension_semantics<arbitrary>], iteration_bounds = array<i64: 1, 1, 1>, scalar_prefetch = 0 : i64, scratch_operands = 1 : i64, tpu.core_type = #tpu.core_type<tc>, window_params = [{transform_indices = @transform_0, window_bounds = array<i64: 64, 128>}, {transform_indices = @transform_1, window_bounds = array<i64: 128, 32>}, {transform_indices = @transform_2, window_bounds = array<i64: 1, 32>}, {transform_indices = @transform_3, window_bounds = array<i64: 64, 32>}, {transform_indices = @transform_4, window_bounds = array<i64: 64, 32>}]} {
    %c0_i32 = arith.constant 0 : i32
    %0 = arith.cmpi eq, %arg2, %c0_i32 : i32
    %1 = arith.extui %0 : i1 to i32
    %c0_i32_0 = arith.constant 0 : i32
    %2 = arith.cmpi ne, %1, %c0_i32_0 : i32
    scf.if %2 {
      %cst_10 = arith.constant 0.000000e+00 : f32
      %12 = vector.broadcast %cst_10 : f32 to vector<64x32xf32>
      %c0_11 = arith.constant 0 : index
      %c0_12 = arith.constant 0 : index
      %13 = vector.load %arg8[%c0_11, %c0_12] : memref<64x32xf32, #tpu.memory_space<vmem>>, vector<64x32xf32>
      tpu.vector_store %arg8[%c0_11, %c0_12], %12 {strides = array<i32>} : memref<64x32xf32, #tpu.memory_space<vmem>>, vector<64x32xf32>,
    } else {
    }
    %c0 = arith.constant 0 : index
    %c0_1 = arith.constant 0 : index
    %3 = vector.load %arg3[%c0, %c0_1] : memref<64x128xbf16, #tpu.memory_space<vmem>>, vector<64x128xbf16>
    %c0_2 = arith.constant 0 : index
    %c0_3 = arith.constant 0 : index
    %4 = vector.load %arg8[%c0_2, %c0_3] : memref<64x32xf32, #tpu.memory_space<vmem>>, vector<64x32xf32>
    %c0_4 = arith.constant 0 : index
    %c0_5 = arith.constant 0 : index
    %5 = vector.load %arg4[%c0_4, %c0_5] : memref<128x32xbf16, #tpu.memory_space<vmem>>, vector<128x32xbf16>
    %cst = arith.constant dense<0.000000e+00> : vector<64x32xf32>
    %6 = tpu.matmul %3, %5, %cst {dimension_numbers = #tpu.dot_dimension_numbers<[1], [0], [0], [1], [0, 0, 1, 1], [], []>} : vector<64x128xbf16>, vector<128x32xbf16>, vector<64x32xf32> -> vector<64x32xf32>
    %7 = arith.addf %4, %6 : vector<64x32xf32>
    %c0_6 = arith.constant 0 : index
    %c0_7 = arith.constant 0 : index
    %8 = vector.load %arg8[%c0_6, %c0_7] : memref<64x32xf32, #tpu.memory_space<vmem>>, vector<64x32xf32>
    tpu.vector_store %arg8[%c0_6, %c0_7], %7 {strides = array<i32>} : memref<64x32xf32, #tpu.memory_space<vmem>>, vector<64x32xf32>,
    %c0_i32_8 = arith.constant 0 : i32
    %9 = arith.cmpi eq, %arg2, %c0_i32_8 : i32
    %10 = arith.extui %9 : i1 to i32
    %c0_i32_9 = arith.constant 0 : i32
    %11 = arith.cmpi ne, %10, %c0_i32_9 : i32
    scf.if %11 {
      %c0_10 = arith.constant 0 : index
      %c0_11 = arith.constant 0 : index
      %12 = vector.load %arg8[%c0_10, %c0_11] : memref<64x32xf32, #tpu.memory_space<vmem>>, vector<64x32xf32>
      %c0_12 = arith.constant 0 : index
      %c0_13 = arith.constant 0 : index
      %13 = vector.load %arg5[%c0_12, %c0_13] : memref<1x32xf32, #tpu.memory_space<vmem>>, vector<1x32xf32>
      %14 = vector.broadcast %13 : vector<1x32xf32> to vector<64x32xf32>
      %15 = arith.addf %12, %14 : vector<64x32xf32>
      %c0_14 = arith.constant 0 : index
      %c0_15 = arith.constant 0 : index
      %16 = vector.load %arg6[%c0_14, %c0_15] : memref<64x32xf32, #tpu.memory_space<vmem>>, vector<64x32xf32>
      %17 = arith.addf %15, %16 : vector<64x32xf32>
      %c0_16 = arith.constant 0 : index
      %c0_17 = arith.constant 0 : index
      %18 = vector.load %arg7[%c0_16, %c0_17] : memref<64x32xf32, #tpu.memory_space<vmem>>, vector<64x32xf32>
      tpu.vector_store %arg7[%c0_16, %c0_17], %17 {strides = array<i32>} : memref<64x32xf32, #tpu.memory_space<vmem>>, vector<64x32xf32>,
    } else {
    }
    return
  }
  func.func @transform_0(%arg0: i32, %arg1: i32, %arg2: i32) -> (i32, i32) {
    %c0_i32 = arith.constant 0 : i32
    return %arg0, %arg2 : i32, i32
  }
  func.func @transform_1(%arg0: i32, %arg1: i32, %arg2: i32) -> (i32, i32) {
    %c0_i32 = arith.constant 0 : i32
    return %arg2, %arg1 : i32, i32
  }
  func.func @transform_2(%arg0: i32, %arg1: i32, %arg2: i32) -> (i32, i32) {
    %c0_i32 = arith.constant 0 : i32
    %c0_i32_0 = arith.constant 0 : i32
    return %c0_i32, %arg1 : i32, i32
  }
  func.func @transform_3(%arg0: i32, %arg1: i32, %arg2: i32) -> (i32, i32) {
    %c0_i32 = arith.constant 0 : i32
    return %arg0, %arg1 : i32, i32
  }
  func.func @transform_4(%arg0: i32, %arg1: i32, %arg2: i32) -> (i32, i32) {
    %c0_i32 = arith.constant 0 : i32
    return %arg0, %arg1 : i32, i32
  }
}

</mosaic_0001>

<llo_original>
// kernel: run.20
$region0: #{run.20}
  #allocation0 [shape = 'u32[]', space=smem, size = 0x4, offset = 0x4, fixed_abs, tag = 'smem constant byte address 0x4 - core index']
  #allocation1 [shape = 'u32[144,128]{1,0:T(1,128)}', space=vmem, size = 0x12000, scoped, tag = 'internal scratch']
  #allocation2 [shape = 'f32[8,32]{1,0:T(8,128)}', space=vmem, size = 0x1000, scoped, tag = 'scratch operand']
  %s0 = inlined_call_operand.vmem [shape: f32[8,32], index: 0, kind: input, shape index: {}]
  %s1 = inlined_call_operand.vmem [shape: bf16[32,32], index: 1, kind: input, shape index: {}]
  %s2 = inlined_call_operand.vmem [shape: f32[1,32], index: 2, kind: input, shape index: {}]
  %s3 = inlined_call_operand.vmem [shape: f32[8,32], index: 3, kind: output, shape index: {}]
  %s4 = sld [smem:[#allocation0]]
  $region30: #{run.20} parent=0
    _
  %s6 = ssub.s32 1, %s4
  %s7 = scalar_select 0, %s6, %s4
  // Predicated region
  $region2: #{run.20} parent=0 // pred_check
    _
  $region3: #{run.20} parent=0 // pred_check_branch
    %9 = sbr.rel (0) target = $region5
  $region4: #{run.20} parent=0 // pred_region
    _
  $region5: #{run.20} parent=0 // pred_fallthru
    _
  // Predicated region
  $region6: #{run.20} parent=0 // pred_check
    _
  $region7: #{run.20} parent=0 // pred_check_branch
    %11 = sbr.rel (0) target = $region9
  $region8: #{run.20} parent=0 // pred_region
    _
  $region9: #{run.20} parent=0 // pred_fallthru
    _
  // Predicated region
  $region10: #{run.20} parent=0 // pred_check
    _
  $region11: #{run.20} parent=0 // pred_check_branch
    %13 = sbr.rel (0) target = $region13
  $region12: #{run.20} parent=0 // pred_region
    _
  $region13: #{run.20} parent=0 // pred_fallthru
    _
  %p15 = scmp.eq.s32.totalorder 0, 0
  // Predicated region
  $region14: #{run.20} parent=0 // pred_check
    %p16 = pneg %p15
  $region15: #{run.20} parent=0 // pred_check_branch
    %18 = sbr.rel (%p16) target = $region17
  $region16: #{run.20} parent=0 // pred_region
    %vm19 = vcmask 261120
    %20 = vst.msk [vmem:[#allocation2] sm:$0xff] %vm19, 0.0
  $region17: #{run.20} parent=0 // pred_fallthru
    _
  %v21 = vld [vmem:[%s0] sm:$0xff]
  %v22 = vpack.c.bf16 %v21, %v21
  %v23 = vld [vmem:[#allocation2] sm:$0xff]
  %v24 = vld [vmem:[%s1] sm:$0xf]
  %v25 = vld [vmem:[%s1 + $0x4] sm:$0xf]
  %v26 = vld [vmem:[%s1 + $0x8] sm:$0xf]
  %v27 = vld [vmem:[%s1 + $0xc] sm:$0xf]
  %v32 = vunpack.c.l.b16 %v24
  %v33 = vunpack.c.l.b16 %v25
  %v34 = vunpack.c.l.b16 %v26
  %v35 = vunpack.c.l.b16 %v27
  %v36 = vpack.c.b16 %v33, %v32
  %v37 = vpack.c.b16 %v35, %v34
  %vm40 = vcmask 261120
  %v42 = vsel %vm40, %v22, 0
  %44 = vmatprep.subr.bf16.mxu0 0
  %45 = vmatpush1.bf16.msra.mxu0 %v36
  %46 = vmatprep.subr.bf16.mxu0 0
  %47 = vmatpush1.bf16.msra.mxu0 %v37
  %48 = vmatprep.subr.bf16.mxu0 0
  %49 = vmatpush1.bf16.msra.mxu0 0
  %50 = vmatprep.subr.bf16.mxu0 0
  %51 = vmatpush1.bf16.msra.mxu0 0
  %52 = vmatprep.subr.bf16.mxu0 0
  %53 = vmatpush1.bf16.msra.mxu0 0
  %54 = vmatprep.subr.bf16.mxu0 0
  %55 = vmatpush1.bf16.msra.mxu0 0
  %56 = vmatprep.subr.bf16.mxu0 0
  %57 = vmatpush1.bf16.msra.mxu0 0
  %58 = vmatprep.subr.bf16.mxu0 0
  %59 = vmatpush1.bf16.msra.mxu0 0
  %60 = vmatprep.subr.bf16.mxu0 0
  %61 = vmatpush1.bf16.msra.mxu0 0
  %62 = vmatprep.subr.bf16.mxu0 0
  %63 = vmatpush1.bf16.msra.mxu0 0
  %64 = vmatprep.subr.bf16.mxu0 0
  %65 = vmatpush1.bf16.msra.mxu0 0
  %66 = vmatprep.subr.bf16.mxu0 0
  %67 = vmatpush1.bf16.msra.mxu0 0
  %68 = vmatprep.subr.bf16.mxu0 0
  %69 = vmatpush1.bf16.msra.mxu0 0
  %70 = vmatprep.subr.bf16.mxu0 0
  %71 = vmatpush1.bf16.msra.mxu0 0
  %72 = vmatprep.subr.bf16.mxu0 0
  %73 = vmatpush1.bf16.msra.mxu0 0
  %74 = vmatprep.subr.bf16.mxu0 0
  %75 = vmatpush1.bf16.msra.mxu0 0
  %76 = vmatprep.mubr.bf16.mxu0 0
  %77 = vmatmul.mubr.bf16.gmra.mrb[0].mxu0 %v42
  %v78 = vpop.f32.mrb[0].mxu0
  %v79 = vadd.f32 0.0, %v78
  %v80 = vpop.f32.mrb[0].mxu0
  %v81 = vpop.f32.mrb[0].mxu0
  %v82 = vpop.f32.mrb[0].mxu0
  %83 = vdwg.mxu0
  %v84 = vadd.f32 %v23, %v79
  %85 = vst.msk [vmem:[#allocation2] sm:$0xff] %vm40, %v84
  // Predicated region
  $region18: #{run.20} parent=0 // pred_check
    %p86 = pneg %p15
  $region19: #{run.20} parent=0 // pred_check_branch
    %88 = sbr.rel (%p86) target = $region21
  $region20: #{run.20} parent=0 // pred_region
    %v89 = vld [vmem:[#allocation2] sm:$0xff]
    %v90 = vld [vmem:[%s2] sm:$0x1]
    %v92 = vlaneseq
    %v93 = vshrl.u32 %v92, 7
    %v94 = vsub.s32 0, %v93
    %v95 = vrot.slane %v90, %v94
    %v97 = vadd.f32 %v89, %v95
    %98 = vst.msk [vmem:[%s3] sm:$0xff] %vm40, %v97
  $region21: #{run.20} parent=0 // pred_fallthru
    _
  // Predicated region
  $region22: #{run.20} parent=0 // pred_check
    _
  $region23: #{run.20} parent=0 // pred_check_branch
    %100 = sbr.rel (0) target = $region25
  $region24: #{run.20} parent=0 // pred_region
    _
  $region25: #{run.20} parent=0 // pred_fallthru
    _
  // Predicated region
  $region26: #{run.20} parent=0 // pred_check
    _
  $region27: #{run.20} parent=0 // pred_check_branch
    %102 = sbr.rel (0) target = $region29
  $region28: #{run.20} parent=0 // pred_region
    _
  $region29: #{run.20} parent=0 // pred_fallthru
    _

// kernel: run.24
$region0: #{run.24}
  #allocation0 [shape = 'u32[]', space=smem, size = 0x4, offset = 0x4, fixed_abs, tag = 'smem constant byte address 0x4 - core index']
  #allocation1 [shape = 'u32[144,128]{1,0:T(1,128)}', space=vmem, size = 0x12000, scoped, tag = 'internal scratch']
  #allocation2 [shape = 'f32[64,96]{1,0:T(8,128)}', space=vmem, size = 0x8000, scoped, tag = 'scratch operand']
  #allocation3 [shape = 'bf16[64,32]{1,0:T(16,128)(2,1)}', space=vmem, size = 0x4000, scoped, tag = 'scratch operand']
  %s0 = inlined_call_operand.vmem [shape: f32[64,32], index: 0, kind: input, shape index: {}]
  %s1 = inlined_call_operand.vmem [shape: f32[1,32], index: 1, kind: input, shape index: {}]
  %s2 = inlined_call_operand.vmem [shape: f32[1,32], index: 2, kind: input, shape index: {}]
  %s3 = inlined_call_operand.vmem [shape: bf16[32,96], index: 3, kind: input, shape index: {}]
  %s4 = inlined_call_operand.vmem [shape: f32[1,96], index: 4, kind: input, shape index: {}]
  %s5 = inlined_call_operand.vmem [shape: bf16[64,96], index: 5, kind: output, shape index: {}]
  %s6 = sld [smem:[#allocation0]]
  $region42: #{run.24} parent=0
    _
  %s8 = ssub.s32 1, %s6
  %s9 = scalar_select 0, %s8, %s6
  // Predicated region
  $region2: #{run.24} parent=0 // pred_check
    _
  $region3: #{run.24} parent=0 // pred_check_branch
    %11 = sbr.rel (0) target = $region5
  $region4: #{run.24} parent=0 // pred_region
    _
  $region5: #{run.24} parent=0 // pred_fallthru
    _
  // Predicated region
  $region6: #{run.24} parent=0 // pred_check
    _
  $region7: #{run.24} parent=0 // pred_check_branch
    %13 = sbr.rel (0) target = $region9
  $region8: #{run.24} parent=0 // pred_region
    _
  $region9: #{run.24} parent=0 // pred_fallthru
    _
  // Predicated region
  $region10: #{run.24} parent=0 // pred_check
    _
  $region11: #{run.24} parent=0 // pred_check_branch
    %15 = sbr.rel (0) target = $region13
  $region12: #{run.24} parent=0 // pred_region
    _
  $region13: #{run.24} parent=0 // pred_fallthru
    _
  // Predicated region
  $region14: #{run.24} parent=0 // pred_check
    _
  $region15: #{run.24} parent=0 // pred_check_branch
    %17 = sbr.rel (0) target = $region17
  $region16: #{run.24} parent=0 // pred_region
    _
  $region17: #{run.24} parent=0 // pred_fallthru
    _
  // Predicated region
  $region18: #{run.24} parent=0 // pred_check
    _
  $region19: #{run.24} parent=0 // pred_check_branch
    %19 = sbr.rel (0) target = $region21
  $region20: #{run.24} parent=0 // pred_region
    _
  $region21: #{run.24} parent=0 // pred_fallthru
    _
  %p21 = scmp.eq.s32.totalorder 0, 0
  // Predicated region
  $region22: #{run.24} parent=0 // pred_check
    %p22 = pneg %p21
  $region23: #{run.24} parent=0 // pred_check_branch
    %24 = sbr.rel (%p22) target = $region25
  $region24: #{run.24} parent=0 // pred_region
    %vm25 = vcmask 785408
    %26 = vst.msk [vmem:[#allocation2] sm:$0xff] %vm25, 0.0
    %27 = vst.msk [vmem:[#allocation2 + $0x8] sm:$0xff] %vm25, 0.0
    %28 = vst.msk [vmem:[#allocation2 + $0x10] sm:$0xff] %vm25, 0.0
    %29 = vst.msk [vmem:[#allocation2 + $0x18] sm:$0xff] %vm25, 0.0
    %30 = vst.msk [vmem:[#allocation2 + $0x20] sm:$0xff] %vm25, 0.0
    %31 = vst.msk [vmem:[#allocation2 + $0x28] sm:$0xff] %vm25, 0.0
    %32 = vst.msk [vmem:[#allocation2 + $0x30] sm:$0xff] %vm25, 0.0
    %33 = vst.msk [vmem:[#allocation2 + $0x38] sm:$0xff] %vm25, 0.0
  $region25: #{run.24} parent=0 // pred_fallthru
    _
  %p34 = scmp.eq.s32.totalorder 0, 0
  // Predicated region
  $region26: #{run.24} parent=0 // pred_check
    %p35 = pneg %p34
  $region27: #{run.24} parent=0 // pred_check_branch
    %37 = sbr.rel (%p35) target = $region29
  $region28: #{run.24} parent=0 // pred_region
    %v38 = vld [vmem:[%s0] sm:$0xff]
    %v39 = vld [vmem:[%s0 + $0x8] sm:$0xff]
    %v40 = vld [vmem:[%s0 + $0x10] sm:$0xff]
    %v41 = vld [vmem:[%s0 + $0x18] sm:$0xff]
    %v42 = vld [vmem:[%s0 + $0x20] sm:$0xff]
    %v43 = vld [vmem:[%s0 + $0x28] sm:$0xff]
    %v44 = vld [vmem:[%s0 + $0x30] sm:$0xff]
    %v45 = vld [vmem:[%s0 + $0x38] sm:$0xff]
    %vm46 = vcmask 261120
    %v47 = vsel %vm46, %v38, 0.0
    %48 = vadd.xlane.f32.xlu0 %v47
    %v49 = vpop.xlane.xlu0 %48
    %v50 = vsel %vm46, %v39, 0.0
    %51 = vadd.xlane.f32.xlu0 %v50
    %v52 = vpop.xlane.xlu0 %51
    %v53 = vsel %vm46, %v40, 0.0
    %54 = vadd.xlane.f32.xlu0 %v53
    %v55 = vpop.xlane.xlu0 %54
    %v56 = vsel %vm46, %v41, 0.0
    %57 = vadd.xlane.f32.xlu0 %v56
    %v58 = vpop.xlane.xlu0 %57
    %v59 = vsel %vm46, %v42, 0.0
    %60 = vadd.xlane.f32.xlu0 %v59
    %v61 = vpop.xlane.xlu0 %60
    %v62 = vsel %vm46, %v43, 0.0
    %63 = vadd.xlane.f32.xlu0 %v62
    %v64 = vpop.xlane.xlu0 %63
    %v65 = vsel %vm46, %v44, 0.0
    %66 = vadd.xlane.f32.xlu0 %v65
    %v67 = vpop.xlane.xlu0 %66
    %v68 = vsel %vm46, %v45, 0.0
    %69 = vadd.xlane.f32.xlu0 %v68
    %v70 = vpop.xlane.xlu0 %69
    %v71 = vrcp.pop 32.0
    %v72 = vmul.f32 %v49, %v71
    %v73 = vmul.f32 %v52, %v71
    %v74 = vmul.f32 %v55, %v71
    %v75 = vmul.f32 %v58, %v71
    %v76 = vmul.f32 %v61, %v71
    %v77 = vmul.f32 %v64, %v71
    %v78 = vmul.f32 %v67, %v71
    %v79 = vmul.f32 %v70, %v71
    %v80 = vsub.f32 %v38, %v72
    %v81 = vsub.f32 %v39, %v73
    %v82 = vsub.f32 %v40, %v74
    %v83 = vsub.f32 %v41, %v75
    %v84 = vsub.f32 %v42, %v76
    %v85 = vsub.f32 %v43, %v77
    %v86 = vsub.f32 %v44, %v78
    %v87 = vsub.f32 %v45, %v79
    %v88 = vmul.f32 %v80, %v80
    %v89 = vmul.f32 %v81, %v81
    %v90 = vmul.f32 %v82, %v82
    %v91 = vmul.f32 %v83, %v83
    %v92 = vmul.f32 %v84, %v84
    %v93 = vmul.f32 %v85, %v85
    %v94 = vmul.f32 %v86, %v86
    %v95 = vmul.f32 %v87, %v87
    %v96 = vsel %vm46, %v88, 0.0
    %97 = vadd.xlane.f32.xlu0 %v96
    %v98 = vpop.xlane.xlu0 %97
    %v99 = vsel %vm46, %v89, 0.0
    %100 = vadd.xlane.f32.xlu0 %v99
    %v101 = vpop.xlane.xlu0 %100
    %v102 = vsel %vm46, %v90, 0.0
    %103 = vadd.xlane.f32.xlu0 %v102
    %v104 = vpop.xlane.xlu0 %103
    %v105 = vsel %vm46, %v91, 0.0
    %106 = vadd.xlane.f32.xlu0 %v105
    %v107 = vpop.xlane.xlu0 %106
    %v108 = vsel %vm46, %v92, 0.0
    %109 = vadd.xlane.f32.xlu0 %v108
    %v110 = vpop.xlane.xlu0 %109
    %v111 = vsel %vm46, %v93, 0.0
    %112 = vadd.xlane.f32.xlu0 %v111
    %v113 = vpop.xlane.xlu0 %112
    %v114 = vsel %vm46, %v94, 0.0
    %115 = vadd.xlane.f32.xlu0 %v114
    %v116 = vpop.xlane.xlu0 %115
    %v117 = vsel %vm46, %v95, 0.0
    %118 = vadd.xlane.f32.xlu0 %v117
    %v119 = vpop.xlane.xlu0 %118
    %v120 = vmul.f32 %v98, %v71
    %v121 = vmul.f32 %v101, %v71
    %v122 = vmul.f32 %v104, %v71
    %v123 = vmul.f32 %v107, %v71
    %v124 = vmul.f32 %v110, %v71
    %v125 = vmul.f32 %v113, %v71
    %v126 = vmul.f32 %v116, %v71
    %v127 = vmul.f32 %v119, %v71
    %v128 = vadd.f32 %v120, 1e-05
    %v129 = vadd.f32 %v121, 1e-05
    %v130 = vadd.f32 %v122, 1e-05
    %v131 = vadd.f32 %v123, 1e-05
    %v132 = vadd.f32 %v124, 1e-05
    %v133 = vadd.f32 %v125, 1e-05
    %v134 = vadd.f32 %v126, 1e-05
    %v135 = vadd.f32 %v127, 1e-05
    %v136 = vrsqrt.pop %v128
    %v137 = vrsqrt.pop %v129
    %v138 = vrsqrt.pop %v130
    %v139 = vrsqrt.pop %v131
    %v140 = vrsqrt.pop %v132
    %v141 = vrsqrt.pop %v133
    %v142 = vrsqrt.pop %v134
    %v143 = vrsqrt.pop %v135
    %v144 = vmul.f32 %v80, %v136
    %v145 = vmul.f32 %v81, %v137
    %v146 = vmul.f32 %v82, %v138
    %v147 = vmul.f32 %v83, %v139
    %v148 = vmul.f32 %v84, %v140
    %v149 = vmul.f32 %v85, %v141
    %v150 = vmul.f32 %v86, %v142
    %v151 = vmul.f32 %v87, %v143
    %v152 = vld [vmem:[%s1] sm:$0x1]
    %v154 = vlaneseq
    %v155 = vshrl.u32 %v154, 7
    %v156 = vsub.s32 0, %v155
    %v157 = vrot.slane %v152, %v156
    %v159 = vmul.f32 %v144, %v157
    %v160 = vmul.f32 %v145, %v157
    %v161 = vmul.f32 %v146, %v157
    %v162 = vmul.f32 %v147, %v157
    %v163 = vmul.f32 %v148, %v157
    %v164 = vmul.f32 %v149, %v157
    %v165 = vmul.f32 %v150, %v157
    %v166 = vmul.f32 %v151, %v157
    %v167 = vld [vmem:[%s2] sm:$0x1]
    %v169 = vlaneseq
    %v170 = vshrl.u32 %v169, 7
    %v171 = vsub.s32 0, %v170
    %v172 = vrot.slane %v167, %v171
    %v174 = vadd.f32 %v159, %v172
    %v175 = vadd.f32 %v160, %v172
    %v176 = vadd.f32 %v161, %v172
    %v177 = vadd.f32 %v162, %v172
    %v178 = vadd.f32 %v163, %v172
    %v179 = vadd.f32 %v164, %v172
    %v180 = vadd.f32 %v165, %v172
    %v181 = vadd.f32 %v166, %v172
    %v182 = vpack.c.bf16 %v175, %v174
    %v183 = vpack.c.bf16 %v177, %v176
    %v184 = vpack.c.bf16 %v179, %v178
    %v185 = vpack.c.bf16 %v181, %v180
    %186 = vst.msk [vmem:[#allocation3] sm:$0xff] %vm46, %v182
    %187 = vst.msk [vmem:[#allocation3 + $0x8] sm:$0xff] %vm46, %v183
    %188 = vst.msk [vmem:[#allocation3 + $0x10] sm:$0xff] %vm46, %v184
    %189 = vst.msk [vmem:[#allocation3 + $0x18] sm:$0xff] %vm46, %v185
  $region29: #{run.24} parent=0 // pred_fallthru
    _
  %v190 = vld [vmem:[#allocation3] sm:$0xff]
  %v191 = vld [vmem:[#allocation3 + $0x8] sm:$0xff]
  %v192 = vld [vmem:[#allocation3 + $0x10] sm:$0xff]
  %v193 = vld [vmem:[#allocation3 + $0x18] sm:$0xff]
  %v194 = vld [vmem:[#allocation2] sm:$0xff]
  %v195 = vld [vmem:[#allocation2 + $0x8] sm:$0xff]
  %v196 = vld [vmem:[#allocation2 + $0x10] sm:$0xff]
  %v197 = vld [vmem:[#allocation2 + $0x18] sm:$0xff]
  %v198 = vld [vmem:[#allocation2 + $0x20] sm:$0xff]
  %v199 = vld [vmem:[#allocation2 + $0x28] sm:$0xff]
  %v200 = vld [vmem:[#allocation2 + $0x30] sm:$0xff]
  %v201 = vld [vmem:[#allocation2 + $0x38] sm:$0xff]
  %v202 = vld [vmem:[%s3] sm:$0xf]
  %v203 = vld [vmem:[%s3 + $0x4] sm:$0xf]
  %v204 = vld [vmem:[%s3 + $0x8] sm:$0xf]
  %v205 = vld [vmem:[%s3 + $0xc] sm:$0xf]
  %v210 = vunpack.c.l.b16 %v202
  %v211 = vunpack.c.l.b16 %v203
  %v212 = vunpack.c.l.b16 %v204
  %v213 = vunpack.c.l.b16 %v205
  %v214 = vpack.c.b16 %v211, %v210
  %v215 = vpack.c.b16 %v213, %v212
  %vm218 = vcmask 261120
  %v220 = vsel %vm218, %v190, 0
  %v223 = vsel %vm218, %v191, 0
  %v226 = vsel %vm218, %v192, 0
  %v229 = vsel %vm218, %v193, 0
  %231 = vmatprep.subr.bf16.mxu0 0
  %232 = vmatpush1.bf16.msra.mxu0 %v214
  %233 = vmatprep.subr.bf16.mxu0 0
  %234 = vmatpush1.bf16.msra.mxu0 %v215
  %235 = vmatprep.subr.bf16.mxu0 0
  %236 = vmatpush1.bf16.msra.mxu0 0
  %237 = vmatprep.subr.bf16.mxu0 0
  %238 = vmatpush1.bf16.msra.mxu0 0
  %239 = vmatprep.subr.bf16.mxu0 0
  %240 = vmatpush1.bf16.msra.mxu0 0
  %241 = vmatprep.subr.bf16.mxu0 0
  %242 = vmatpush1.bf16.msra.mxu0 0
  %243 = vmatprep.subr.bf16.mxu0 0
  %244 = vmatpush1.bf16.msra.mxu0 0
  %245 = vmatprep.subr.bf16.mxu0 0
  %246 = vmatpush1.bf16.msra.mxu0 0
  %247 = vmatprep.subr.bf16.mxu0 0
  %248 = vmatpush1.bf16.msra.mxu0 0
  %249 = vmatprep.subr.bf16.mxu0 0
  %250 = vmatpush1.bf16.msra.mxu0 0
  %251 = vmatprep.subr.bf16.mxu0 0
  %252 = vmatpush1.bf16.msra.mxu0 0
  %253 = vmatprep.subr.bf16.mxu0 0
  %254 = vmatpush1.bf16.msra.mxu0 0
  %255 = vmatprep.subr.bf16.mxu0 0
  %256 = vmatpush1.bf16.msra.mxu0 0
  %257 = vmatprep.subr.bf16.mxu0 0
  %258 = vmatpush1.bf16.msra.mxu0 0
  %259 = vmatprep.subr.bf16.mxu0 0
  %260 = vmatpush1.bf16.msra.mxu0 0
  %261 = vmatprep.subr.bf16.mxu0 0
  %262 = vmatpush1.bf16.msra.mxu0 0
  %263 = vmatprep.mubr.bf16.mxu0 0
  %264 = vmatmul.mubr.bf16.gmra.mrb[0].mxu0 %v220
  %v265 = vpop.f32.mrb[0].mxu0
  %v266 = vadd.f32 0.0, %v265
  %v267 = vpop.f32.mrb[0].mxu0
  %v268 = vpop.f32.mrb[0].mxu0
  %v269 = vadd.f32 0.0, %v268
  %v270 = vpop.f32.mrb[0].mxu0
  %271 = vmatprep.mubr.bf16.mxu0 0
  %272 = vmatmul.mubr.bf16.gmra.mrb[0].mxu0 %v223
  %v273 = vpop.f32.mrb[0].mxu0
  %v274 = vadd.f32 0.0, %v273
  %v275 = vpop.f32.mrb[0].mxu0
  %v276 = vpop.f32.mrb[0].mxu0
  %v277 = vadd.f32 0.0, %v276
  %v278 = vpop.f32.mrb[0].mxu0
  %279 = vmatprep.mubr.bf16.mxu0 0
  %280 = vmatmul.mubr.bf16.gmra.mrb[0].mxu0 %v226
  %v281 = vpop.f32.mrb[0].mxu0
  %v282 = vadd.f32 0.0, %v281
  %v283 = vpop.f32.mrb[0].mxu0
  %v284 = vpop.f32.mrb[0].mxu0
  %v285 = vadd.f32 0.0, %v284
  %v286 = vpop.f32.mrb[0].mxu0
  %287 = vmatprep.mubr.bf16.mxu0 0
  %288 = vmatmul.mubr.bf16.gmra.mrb[0].mxu0 %v229
  %v289 = vpop.f32.mrb[0].mxu0
  %v290 = vadd.f32 0.0, %v289
  %v291 = vpop.f32.mrb[0].mxu0
  %v292 = vpop.f32.mrb[0].mxu0
  %v293 = vadd.f32 0.0, %v292
  %v294 = vpop.f32.mrb[0].mxu0
  %295 = vdwg.mxu0
  %v296 = vadd.f32 %v194, %v266
  %v297 = vadd.f32 %v195, %v269
  %v298 = vadd.f32 %v196, %v274
  %v299 = vadd.f32 %v197, %v277
  %v300 = vadd.f32 %v198, %v282
  %v301 = vadd.f32 %v199, %v285
  %v302 = vadd.f32 %v200, %v290
  %v303 = vadd.f32 %v201, %v293
  %vm304 = vcmask 785408
  %305 = vst.msk [vmem:[#allocation2] sm:$0xff] %vm304, %v296
  %306 = vst.msk [vmem:[#allocation2 + $0x8] sm:$0xff] %vm304, %v297
  %307 = vst.msk [vmem:[#allocation2 + $0x10] sm:$0xff] %vm304, %v298
  %308 = vst.msk [vmem:[#allocation2 + $0x18] sm:$0xff] %vm304, %v299
  %309 = vst.msk [vmem:[#allocation2 + $0x20] sm:$0xff] %vm304, %v300
  %310 = vst.msk [vmem:[#allocation2 + $0x28] sm:$0xff] %vm304, %v301
  %311 = vst.msk [vmem:[#allocation2 + $0x30] sm:$0xff] %vm304, %v302
  %312 = vst.msk [vmem:[#allocation2 + $0x38] sm:$0xff] %vm304, %v303
  // Predicated region
  $region30: #{run.24} parent=0 // pred_check
    %p313 = pneg %p21
  $region31: #{run.24} parent=0 // pred_check_branch
    %315 = sbr.rel (%p313) target = $region33
  $region32: #{run.24} parent=0 // pred_region
    %v316 = vld [vmem:[#allocation2] sm:$0xff]
    %v317 = vld [vmem:[#allocation2 + $0x8] sm:$0xff]
    %v318 = vld [vmem:[#allocation2 + $0x10] sm:$0xff]
    %v319 = vld [vmem:[#allocation2 + $0x18] sm:$0xff]
    %v320 = vld [vmem:[#allocation2 + $0x20] sm:$0xff]
    %v321 = vld [vmem:[#allocation2 + $0x28] sm:$0xff]
    %v322 = vld [vmem:[#allocation2 + $0x30] sm:$0xff]
    %v323 = vld [vmem:[#allocation2 + $0x38] sm:$0xff]
    %v324 = vld [vmem:[%s4] sm:$0x1]
    %v326 = vlaneseq
    %v327 = vshrl.u32 %v326, 7
    %v328 = vsub.s32 0, %v327
    %v329 = vrot.slane %v324, %v328
    %v331 = vadd.f32 %v316, %v329
    %v332 = vadd.f32 %v317, %v329
    %v333 = vadd.f32 %v318, %v329
    %v334 = vadd.f32 %v319, %v329
    %v335 = vadd.f32 %v320, %v329
    %v336 = vadd.f32 %v321, %v329
    %v337 = vadd.f32 %v322, %v329
    %v338 = vadd.f32 %v323, %v329
    %v339 = vpack.c.bf16 %v332, %v331
    %v340 = vpack.c.bf16 %v334, %v333
    %v341 = vpack.c.bf16 %v336, %v335
    %v342 = vpack.c.bf16 %v338, %v337
    %v347 = vunpack.c.l.b16 %v339
    %v348 = vunpack.c.h.b16 %v339
    %v349 = vunpack.c.l.b16 %v340
    %v350 = vunpack.c.h.b16 %v340
    %v351 = vunpack.c.l.b16 %v341
    %v352 = vunpack.c.h.b16 %v341
    %v353 = vunpack.c.l.b16 %v342
    %v354 = vunpack.c.h.b16 %v342
    %v355 = vpack.c.b16 %v347, %v347
    %v356 = vpack.c.b16 %v348, %v348
    %v357 = vpack.c.b16 %v349, %v349
    %v358 = vpack.c.b16 %v350, %v350
    %v359 = vpack.c.b16 %v351, %v351
    %v360 = vpack.c.b16 %v352, %v352
    %v361 = vpack.c.b16 %v353, %v353
    %v362 = vpack.c.b16 %v354, %v354
    %vm371 = vcmask 781312
    %372 = vst.msk [vmem:[%s5] sm:$0xf] %vm371, %v355
    %373 = vst.msk [vmem:[%s5 + $0x4] sm:$0xf] %vm371, %v356
    %374 = vst.msk [vmem:[%s5 + $0x8] sm:$0xf] %vm371, %v357
    %375 = vst.msk [vmem:[%s5 + $0xc] sm:$0xf] %vm371, %v358
    %376 = vst.msk [vmem:[%s5 + $0x10] sm:$0xf] %vm371, %v359
    %377 = vst.msk [vmem:[%s5 + $0x14] sm:$0xf] %vm371, %v360
    %378 = vst.msk [vmem:[%s5 + $0x18] sm:$0xf] %vm371, %v361
    %379 = vst.msk [vmem:[%s5 + $0x1c] sm:$0xf] %vm371, %v362
  $region33: #{run.24} parent=0 // pred_fallthru
    _
  // Predicated region
  $region34: #{run.24} parent=0 // pred_check
    _
  $region35: #{run.24} parent=0 // pred_check_branch
    %381 = sbr.rel (0) target = $region37
  $region36: #{run.24} parent=0 // pred_region
    _
  $region37: #{run.24} parent=0 // pred_fallthru
    _
  // Predicated region
  $region38: #{run.24} parent=0 // pred_check
    _
  $region39: #{run.24} parent=0 // pred_check_branch
    %383 = sbr.rel (0) target = $region41
  $region40: #{run.24} parent=0 // pred_region
    _
  $region41: #{run.24} parent=0 // pred_fallthru
    _

// kernel: run.21
$region0: #{run.21}
  #allocation0 [shape = 'u32[]', space=smem, size = 0x4, offset = 0x4, fixed_abs, tag = 'smem constant byte address 0x4 - core index']
  #allocation1 [shape = 'u32[144,128]{1,0:T(1,128)}', space=vmem, size = 0x12000, scoped, tag = 'internal scratch']
  #allocation2 [shape = 'f32[8,96]{1,0:T(8,128)}', space=vmem, size = 0x1000, scoped, tag = 'scratch operand']
  #allocation3 [shape = 'bf16[8,32]{1,0:T(8,128)(2,1)}', space=vmem, size = 0x800, scoped, tag = 'scratch operand']
  %s0 = inlined_call_operand.vmem [shape: f32[8,32], index: 0, kind: input, shape index: {}]
  %s1 = inlined_call_operand.vmem [shape: f32[1,32], index: 1, kind: input, shape index: {}]
  %s2 = inlined_call_operand.vmem [shape: f32[1,32], index: 2, kind: input, shape index: {}]
  %s3 = inlined_call_operand.vmem [shape: bf16[32,96], index: 3, kind: input, shape index: {}]
  %s4 = inlined_call_operand.vmem [shape: f32[1,96], index: 4, kind: input, shape index: {}]
  %s5 = inlined_call_operand.vmem [shape: bf16[8,96], index: 5, kind: output, shape index: {}]
  %s6 = sld [smem:[#allocation0]]
  $region42: #{run.21} parent=0
    _
  %s8 = ssub.s32 1, %s6
  %s9 = scalar_select 0, %s8, %s6
  // Predicated region
  $region2: #{run.21} parent=0 // pred_check
    _
  $region3: #{run.21} parent=0 // pred_check_branch
    %11 = sbr.rel (0) target = $region5
  $region4: #{run.21} parent=0 // pred_region
    _
  $region5: #{run.21} parent=0 // pred_fallthru
    _
  // Predicated region
  $region6: #{run.21} parent=0 // pred_check
    _
  $region7: #{run.21} parent=0 // pred_check_branch
    %13 = sbr.rel (0) target = $region9
  $region8: #{run.21} parent=0 // pred_region
    _
  $region9: #{run.21} parent=0 // pred_fallthru
    _
  // Predicated region
  $region10: #{run.21} parent=0 // pred_check
    _
  $region11: #{run.21} parent=0 // pred_check_branch
    %15 = sbr.rel (0) target = $region13
  $region12: #{run.21} parent=0 // pred_region
    _
  $region13: #{run.21} parent=0 // pred_fallthru
    _
  // Predicated region
  $region14: #{run.21} parent=0 // pred_check
    _
  $region15: #{run.21} parent=0 // pred_check_branch
    %17 = sbr.rel (0) target = $region17
  $region16: #{run.21} parent=0 // pred_region
    _
  $region17: #{run.21} parent=0 // pred_fallthru
    _
  // Predicated region
  $region18: #{run.21} parent=0 // pred_check
    _
  $region19: #{run.21} parent=0 // pred_check_branch
    %19 = sbr.rel (0) target = $region21
  $region20: #{run.21} parent=0 // pred_region
    _
  $region21: #{run.21} parent=0 // pred_fallthru
    _
  %p21 = scmp.eq.s32.totalorder 0, 0
  // Predicated region
  $region22: #{run.21} parent=0 // pred_check
    %p22 = pneg %p21
  $region23: #{run.21} parent=0 // pred_check_branch
    %24 = sbr.rel (%p22) target = $region25
  $region24: #{run.21} parent=0 // pred_region
    %vm25 = vcmask 785408
    %26 = vst.msk [vmem:[#allocation2] sm:$0xff] %vm25, 0.0
  $region25: #{run.21} parent=0 // pred_fallthru
    _
  %p27 = scmp.eq.s32.totalorder 0, 0
  // Predicated region
  $region26: #{run.21} parent=0 // pred_check
    %p28 = pneg %p27
  $region27: #{run.21} parent=0 // pred_check_branch
    %30 = sbr.rel (%p28) target = $region29
  $region28: #{run.21} parent=0 // pred_region
    %v31 = vld [vmem:[%s0] sm:$0xff]
    %vm32 = vcmask 261120
    %v33 = vsel %vm32, %v31, 0.0
    %34 = vadd.xlane.f32.xlu0 %v33
    %v35 = vpop.xlane.xlu0 %34
    %v36 = vrcp.pop 32.0
    %v37 = vmul.f32 %v35, %v36
    %v38 = vsub.f32 %v31, %v37
    %v39 = vmul.f32 %v38, %v38
    %v40 = vsel %vm32, %v39, 0.0
    %41 = vadd.xlane.f32.xlu0 %v40
    %v42 = vpop.xlane.xlu0 %41
    %v43 = vmul.f32 %v42, %v36
    %v44 = vadd.f32 %v43, 1e-05
    %v45 = vrsqrt.pop %v44
    %v46 = vmul.f32 %v38, %v45
    %v47 = vld [vmem:[%s1] sm:$0x1]
    %v49 = vlaneseq
    %v50 = vshrl.u32 %v49, 7
    %v51 = vsub.s32 0, %v50
    %v52 = vrot.slane %v47, %v51
    %v54 = vmul.f32 %v46, %v52
    %v55 = vld [vmem:[%s2] sm:$0x1]
    %v57 = vlaneseq
    %v58 = vshrl.u32 %v57, 7
    %v59 = vsub.s32 0, %v58
    %v60 = vrot.slane %v55, %v59
    %v62 = vadd.f32 %v54, %v60
    %v63 = vpack.c.bf16 %v62, %v62
    %vm64 = vcmask 257024
    %65 = vst.msk [vmem:[#allocation3] sm:$0xf] %vm64, %v63
  $region29: #{run.21} parent=0 // pred_fallthru
    _
  %v66 = vld [vmem:[#allocation3] sm:$0xf]
  %v67 = vld [vmem:[#allocation2] sm:$0xff]
  %v68 = vld [vmem:[%s3] sm:$0xf]
  %v69 = vld [vmem:[%s3 + $0x4] sm:$0xf]
  %v70 = vld [vmem:[%s3 + $0x8] sm:$0xf]
  %v71 = vld [vmem:[%s3 + $0xc] sm:$0xf]
  %v76 = vunpack.c.l.b16 %v68
  %v77 = vunpack.c.l.b16 %v69
  %v78 = vunpack.c.l.b16 %v70
  %v79 = vunpack.c.l.b16 %v71
  %v80 = vpack.c.b16 %v77, %v76
  %v81 = vpack.c.b16 %v79, %v78
  %vm84 = vcmask 261120
  %v86 = vsel %vm84, %v66, 0
  %88 = vmatprep.subr.bf16.mxu0 0
  %89 = vmatpush1.bf16.msra.mxu0 %v80
  %90 = vmatprep.subr.bf16.mxu0 0
  %91 = vmatpush1.bf16.msra.mxu0 %v81
  %92 = vmatprep.subr.bf16.mxu0 0
  %93 = vmatpush1.bf16.msra.mxu0 0
  %94 = vmatprep.subr.bf16.mxu0 0
  %95 = vmatpush1.bf16.msra.mxu0 0
  %96 = vmatprep.subr.bf16.mxu0 0
  %97 = vmatpush1.bf16.msra.mxu0 0
  %98 = vmatprep.subr.bf16.mxu0 0
  %99 = vmatpush1.bf16.msra.mxu0 0
  %100 = vmatprep.subr.bf16.mxu0 0
  %101 = vmatpush1.bf16.msra.mxu0 0
  %102 = vmatprep.subr.bf16.mxu0 0
  %103 = vmatpush1.bf16.msra.mxu0 0
  %104 = vmatprep.subr.bf16.mxu0 0
  %105 = vmatpush1.bf16.msra.mxu0 0
  %106 = vmatprep.subr.bf16.mxu0 0
  %107 = vmatpush1.bf16.msra.mxu0 0
  %108 = vmatprep.subr.bf16.mxu0 0
  %109 = vmatpush1.bf16.msra.mxu0 0
  %110 = vmatprep.subr.bf16.mxu0 0
  %111 = vmatpush1.bf16.msra.mxu0 0
  %112 = vmatprep.subr.bf16.mxu0 0
  %113 = vmatpush1.bf16.msra.mxu0 0
  %114 = vmatprep.subr.bf16.mxu0 0
  %115 = vmatpush1.bf16.msra.mxu0 0
  %116 = vmatprep.subr.bf16.mxu0 0
  %117 = vmatpush1.bf16.msra.mxu0 0
  %118 = vmatprep.subr.bf16.mxu0 0
  %119 = vmatpush1.bf16.msra.mxu0 0
  %120 = vmatprep.mubr.bf16.mxu0 0
  %121 = vmatmul.mubr.bf16.gmra.mrb[0].mxu0 %v86
  %v122 = vpop.f32.mrb[0].mxu0
  %v123 = vadd.f32 0.0, %v122
  %v124 = vpop.f32.mrb[0].mxu0
  %v125 = vpop.f32.mrb[0].mxu0
  %v126 = vpop.f32.mrb[0].mxu0
  %127 = vdwg.mxu0
  %v128 = vadd.f32 %v67, %v123
  %vm129 = vcmask 785408
  %130 = vst.msk [vmem:[#allocation2] sm:$0xff] %vm129, %v128
  // Predicated region
  $region30: #{run.21} parent=0 // pred_check
    %p131 = pneg %p21
  $region31: #{run.21} parent=0 // pred_check_branch
    %133 = sbr.rel (%p131) target = $region33
  $region32: #{run.21} parent=0 // pred_region
    %v134 = vld [vmem:[#allocation2] sm:$0xff]
    %v135 = vld [vmem:[%s4] sm:$0x1]
    %v137 = vlaneseq
    %v138 = vshrl.u32 %v137, 7
    %v139 = vsub.s32 0, %v138
    %v140 = vrot.slane %v135, %v139
    %v142 = vadd.f32 %v134, %v140
    %v143 = vpack.c.bf16 %v142, %v142
    %vm144 = vcmask 781312
    %145 = vst.msk [vmem:[%s5] sm:$0xf] %vm144, %v143
  $region33: #{run.21} parent=0 // pred_fallthru
    _
  // Predicated region
  $region34: #{run.21} parent=0 // pred_check
    _
  $region35: #{run.21} parent=0 // pred_check_branch
    %147 = sbr.rel (0) target = $region37
  $region36: #{run.21} parent=0 // pred_region
    _
  $region37: #{run.21} parent=0 // pred_fallthru
    _
  // Predicated region
  $region38: #{run.21} parent=0 // pred_check
    _
  $region39: #{run.21} parent=0 // pred_check_branch
    %149 = sbr.rel (0) target = $region41
  $region40: #{run.21} parent=0 // pred_region
    _
  $region41: #{run.21} parent=0 // pred_fallthru
    _

// kernel: run.23
$region0: #{run.23}
  #allocation0 [shape = 'u32[]', space=smem, size = 0x4, offset = 0x4, fixed_abs, tag = 'smem constant byte address 0x4 - core index']
  #allocation1 [shape = 'u32[144,128]{1,0:T(1,128)}', space=vmem, size = 0x12000, scoped, tag = 'internal scratch']
  #allocation2 [shape = 'f32[8,32]{1,0:T(8,128)}', space=vmem, size = 0x1000, scoped, tag = 'scratch operand']
  %s0 = inlined_call_operand.vmem [shape: bf16[8,32], index: 0, kind: input, shape index: {}]
  %s1 = inlined_call_operand.vmem [shape: bf16[32,32], index: 1, kind: input, shape index: {}]
  %s2 = inlined_call_operand.vmem [shape: f32[1,32], index: 2, kind: input, shape index: {}]
  %s3 = inlined_call_operand.vmem [shape: f32[8,32], index: 3, kind: input, shape index: {}]
  %s4 = inlined_call_operand.vmem [shape: f32[8,32], index: 4, kind: output, shape index: {}]
  %s5 = sld [smem:[#allocation0]]
  $region34: #{run.23} parent=0
    _
  %s7 = ssub.s32 1, %s5
  %s8 = scalar_select 0, %s7, %s5
  // Predicated region
  $region2: #{run.23} parent=0 // pred_check
    _
  $region3: #{run.23} parent=0 // pred_check_branch
    %10 = sbr.rel (0) target = $region5
  $region4: #{run.23} parent=0 // pred_region
    _
  $region5: #{run.23} parent=0 // pred_fallthru
    _
  // Predicated region
  $region6: #{run.23} parent=0 // pred_check
    _
  $region7: #{run.23} parent=0 // pred_check_branch
    %12 = sbr.rel (0) target = $region9
  $region8: #{run.23} parent=0 // pred_region
    _
  $region9: #{run.23} parent=0 // pred_fallthru
    _
  // Predicated region
  $region10: #{run.23} parent=0 // pred_check
    _
  $region11: #{run.23} parent=0 // pred_check_branch
    %14 = sbr.rel (0) target = $region13
  $region12: #{run.23} parent=0 // pred_region
    _
  $region13: #{run.23} parent=0 // pred_fallthru
    _
  // Predicated region
  $region14: #{run.23} parent=0 // pred_check
    _
  $region15: #{run.23} parent=0 // pred_check_branch
    %16 = sbr.rel (0) target = $region17
  $region16: #{run.23} parent=0 // pred_region
    _
  $region17: #{run.23} parent=0 // pred_fallthru
    _
  %p18 = scmp.eq.s32.totalorder 0, 0
  // Predicated region
  $region18: #{run.23} parent=0 // pred_check
    %p19 = pneg %p18
  $region19: #{run.23} parent=0 // pred_check_branch
    %21 = sbr.rel (%p19) target = $region21
  $region20: #{run.23} parent=0 // pred_region
    %vm22 = vcmask 261120
    %23 = vst.msk [vmem:[#allocation2] sm:$0xff] %vm22, 0.0
  $region21: #{run.23} parent=0 // pred_fallthru
    _
  %v24 = vld [vmem:[%s0] sm:$0xf]
  %v25 = vld [vmem:[#allocation2] sm:$0xff]
  %v26 = vld [vmem:[%s1] sm:$0xf]
  %v27 = vld [vmem:[%s1 + $0x4] sm:$0xf]
  %v28 = vld [vmem:[%s1 + $0x8] sm:$0xf]
  %v29 = vld [vmem:[%s1 + $0xc] sm:$0xf]
  %v34 = vunpack.c.l.b16 %v26
  %v35 = vunpack.c.l.b16 %v27
  %v36 = vunpack.c.l.b16 %v28
  %v37 = vunpack.c.l.b16 %v29
  %v38 = vpack.c.b16 %v35, %v34
  %v39 = vpack.c.b16 %v37, %v36
  %vm42 = vcmask 261120
  %v44 = vsel %vm42, %v24, 0
  %46 = vmatprep.subr.bf16.mxu0 0
  %47 = vmatpush1.bf16.msra.mxu0 %v38
  %48 = vmatprep.subr.bf16.mxu0 0
  %49 = vmatpush1.bf16.msra.mxu0 %v39
  %50 = vmatprep.subr.bf16.mxu0 0
  %51 = vmatpush1.bf16.msra.mxu0 0
  %52 = vmatprep.subr.bf16.mxu0 0
  %53 = vmatpush1.bf16.msra.mxu0 0
  %54 = vmatprep.subr.bf16.mxu0 0
  %55 = vmatpush1.bf16.msra.mxu0 0
  %56 = vmatprep.subr.bf16.mxu0 0
  %57 = vmatpush1.bf16.msra.mxu0 0
  %58 = vmatprep.subr.bf16.mxu0 0
  %59 = vmatpush1.bf16.msra.mxu0 0
  %60 = vmatprep.subr.bf16.mxu0 0
  %61 = vmatpush1.bf16.msra.mxu0 0
  %62 = vmatprep.subr.bf16.mxu0 0
  %63 = vmatpush1.bf16.msra.mxu0 0
  %64 = vmatprep.subr.bf16.mxu0 0
  %65 = vmatpush1.bf16.msra.mxu0 0
  %66 = vmatprep.subr.bf16.mxu0 0
  %67 = vmatpush1.bf16.msra.mxu0 0
  %68 = vmatprep.subr.bf16.mxu0 0
  %69 = vmatpush1.bf16.msra.mxu0 0
  %70 = vmatprep.subr.bf16.mxu0 0
  %71 = vmatpush1.bf16.msra.mxu0 0
  %72 = vmatprep.subr.bf16.mxu0 0
  %73 = vmatpush1.bf16.msra.mxu0 0
  %74 = vmatprep.subr.bf16.mxu0 0
  %75 = vmatpush1.bf16.msra.mxu0 0
  %76 = vmatprep.subr.bf16.mxu0 0
  %77 = vmatpush1.bf16.msra.mxu0 0
  %78 = vmatprep.mubr.bf16.mxu0 0
  %79 = vmatmul.mubr.bf16.gmra.mrb[0].mxu0 %v44
  %v80 = vpop.f32.mrb[0].mxu0
  %v81 = vadd.f32 0.0, %v80
  %v82 = vpop.f32.mrb[0].mxu0
  %v83 = vpop.f32.mrb[0].mxu0
  %v84 = vpop.f32.mrb[0].mxu0
  %85 = vdwg.mxu0
  %v86 = vadd.f32 %v25, %v81
  %87 = vst.msk [vmem:[#allocation2] sm:$0xff] %vm42, %v86
  // Predicated region
  $region22: #{run.23} parent=0 // pred_check
    %p88 = pneg %p18
  $region23: #{run.23} parent=0 // pred_check_branch
    %90 = sbr.rel (%p88) target = $region25
  $region24: #{run.23} parent=0 // pred_region
    %v91 = vld [vmem:[#allocation2] sm:$0xff]
    %v92 = vld [vmem:[%s2] sm:$0x1]
    %v94 = vlaneseq
    %v95 = vshrl.u32 %v94, 7
    %v96 = vsub.s32 0, %v95
    %v97 = vrot.slane %v92, %v96
    %v99 = vadd.f32 %v91, %v97
    %v100 = vld [vmem:[%s3] sm:$0xff]
    %v101 = vadd.f32 %v99, %v100
    %102 = vst.msk [vmem:[%s4] sm:$0xff] %vm42, %v101
  $region25: #{run.23} parent=0 // pred_fallthru
    _
  // Predicated region
  $region26: #{run.23} parent=0 // pred_check
    _
  $region27: #{run.23} parent=0 // pred_check_branch
    %104 = sbr.rel (0) target = $region29
  $region28: #{run.23} parent=0 // pred_region
    _
  $region29: #{run.23} parent=0 // pred_fallthru
    _
  // Predicated region
  $region30: #{run.23} parent=0 // pred_check
    _
  $region31: #{run.23} parent=0 // pred_check_branch
    %106 = sbr.rel (0) target = $region33
  $region32: #{run.23} parent=0 // pred_region
    _
  $region33: #{run.23} parent=0 // pred_fallthru
    _

// kernel: run.22
$region0: #{run.22}
  #allocation0 [shape = 'u32[]', space=smem, size = 0x4, offset = 0x4, fixed_abs, tag = 'smem constant byte address 0x4 - core index']
  #allocation1 [shape = 'u32[144,128]{1,0:T(1,128)}', space=vmem, size = 0x12000, scoped, tag = 'internal scratch']
  %s0 = inlined_call_operand.vmem [shape: bf16[4,2,3,4,8], index: 0, kind: input, shape index: {}]
  %s1 = inlined_call_operand.vmem [shape: bf16[4,2,4,8], index: 1, kind: output, shape index: {}]
  %s2 = sld [smem:[#allocation0]]
  $region115: #{run.22} parent=0
    _
  %s4 = ssub.s32 1, %s2
  %s5 = scalar_select 0, %s4, %s2
  $region1: #{run.22} parent=0
    #allocation2 [shape = 'u8[24576]{0}', space=vmem, size = 0x6000, scoped, tag = 'input window, operand 0']
    #allocation3 [shape = 'u8[8192]{0}', space=vmem, size = 0x2000, scoped, tag = 'output window, operand 0']
    loop: start=0, step=1, limit=4
    $region2: #{run.22} parent=1 // loop_pre_header
      _
    $region3: #{run.22} parent=1 // loop_header
      %s7 = sphi 0, %s11
      %p8 = scmp.ge.s32.totalorder %s7, 4
      %s17 = sphi 0, %s19
      %s20 = sphi 0, %s17
      %s21 = sphi 0, %s20
      %s37 = sphi 0, %s21
      %s43 = sphi 0, %s45
      %s46 = sphi 0, %s43
      %s47 = sphi 0, %s46
      %s63 = sphi 0, %s47
    $region4: #{run.22} parent=1 // loop_header_branch
      %10 = sbr.rel (%p8) target = $region8
    $region5: #{run.22} parent=1 // loop_body
      %s12 = ssub.s32 %s7, 1
      %s13 = ssub.s32 %s7, 2
      %s14 = sadd.s32 %s7, 1
      %s15 = ssub.s32 %s7, %s14
      %p16 = scmp.eq.s32.totalorder %s15, 0
      %s18 = sadd.s32 %s17, 1
      %s19 = scalar_select %p16, %s17, %s18
      %p22 = pneg %p16
      %p23 = scmp.eq.s32.totalorder %s7, 1
      %p24 = por %p22, %p23
      %p25 = scmp.ne.s32.totalorder %s17, %s20
      %p26 = scmp.eq.s32.totalorder %s7, 0
      %p27 = por %p25, %p26
      %p28 = scmp.ne.s32.totalorder %s17, %s20
      %p29 = scmp.eq.s32.totalorder %s12, 1
      %p30 = por %p28, %p29
      %p31 = scmp.ne.s32.totalorder %s20, %s21
      %p32 = scmp.eq.s32.totalorder %s12, 0
      %p33 = por %p31, %p32
      %p34 = scmp.ne.s32.totalorder %s20, %s21
      %p35 = scmp.eq.s32.totalorder %s13, 1
      %p36 = por %p34, %p35
      %p38 = scmp.ne.s32.totalorder %s21, %s37
      %p39 = scmp.eq.s32.totalorder %s13, 0
      %p40 = por %p38, %p39
      %s41 = ssub.s32 %s7, %s14
      %p42 = scmp.eq.s32.totalorder %s41, 0
      %s44 = sadd.s32 %s43, 1
      %s45 = scalar_select %p42, %s43, %s44
      %p48 = pneg %p42
      %p49 = scmp.eq.s32.totalorder %s7, 1
      %p50 = por %p48, %p49
      %p51 = scmp.ne.s32.totalorder %s43, %s46
      %p52 = scmp.eq.s32.totalorder %s7, 0
      %p53 = por %p51, %p52
      %p54 = scmp.ne.s32.totalorder %s43, %s46
      %p55 = scmp.eq.s32.totalorder %s12, 1
      %p56 = por %p54, %p55
      %p57 = scmp.ne.s32.totalorder %s46, %s47
      %p58 = scmp.eq.s32.totalorder %s12, 0
      %p59 = por %p57, %p58
      %p60 = scmp.ne.s32.totalorder %s46, %s47
      %p61 = scmp.eq.s32.totalorder %s13, 1
      %p62 = por %p60, %p61
      %p64 = scmp.ne.s32.totalorder %s47, %s63
      %p65 = scmp.eq.s32.totalorder %s13, 0
      %p66 = por %p64, %p65
      %p67 = scmp.le.s32.totalorder 1, %s7
      %p68 = scmp.lt.s32.totalorder %s7, 3
      %p69 = pnand %p67, %p68
      %p70 = pneg %p69
      // Predicated region
      $region9: #{run.22} parent=5 // pred_check
        _
      $region10: #{run.22} parent=5 // pred_check_branch
        %72 = sbr.rel (%p69) target = $region12
      $region11: #{run.22} parent=5 // pred_region
        %s73 = ssub.s32 %s7, 1
      $region12: #{run.22} parent=5 // pred_fallthru
        _
      %p74 = scmp.lt.s32.totalorder %s7, 2
      // Predicated region
      $region13: #{run.22} parent=5 // pred_check
        %p75 = pneg %p74
      $region14: #{run.22} parent=5 // pred_check_branch
        %77 = sbr.rel (%p75) target = $region16
      $region15: #{run.22} parent=5 // pred_region
        // Predicated region
        $region17: #{run.22} parent=15 // pred_check
          %p78 = pneg %p27
        $region18: #{run.22} parent=15 // pred_check_branch
          %80 = sbr.rel (%p78) target = $region20
        $region19: #{run.22} parent=15 // pred_region
          %s81 = sand.u32 %s17, 1
          %s82 = sand.u32 %s17, 1
          %s83 = smul.addr %s82, 24
          %s84 = scalar_lea.vmem [#allocation2], %s83
          %s85 = smul.addr %s7, 3
          %s86 = smul.addr %s85, 2
          %s87 = scalar_lea.vmem %s0, %s86
          // Predicated region
          $region21: #{run.22} parent=19 // pred_check
            _
          $region22: #{run.22} parent=19 // pred_check_branch
            %89 = sbr.rel (0) target = $region24
          $region23: #{run.22} parent=19 // pred_region
            // Predicated region
            $region25: #{run.22} parent=23 // pred_check
              _
            $region26: #{run.22} parent=23 // pred_check_branch
              %91 = sbr.rel target = $region28
            $region27: #{run.22} parent=23 // pred_region
              // Predicated region
              $region40: #{run.22} parent=27 // pred_check
                _
              $region41: #{run.22} parent=27 // pred_check_branch
                %128 = sbr.rel (0) target = $region43
              $region42: #{run.22} parent=27 // pred_region
                loop: start=0, step=1, limit=1
                $region44: #{run.22} parent=42 // loop_pre_header
                  _
                $region45: #{run.22} parent=42 // loop_header
                  %s130 = sphi 0, %s134
                  %p131 = scmp.ge.s32.totalorder %s130, 1
                  %s135 = sphi %s87, %s87
                  %s136 = sphi %s84, %s84
                $region46: #{run.22} parent=42 // loop_header_branch
                  %133 = sbr.rel (%p131) target = $region50
                $region47: #{run.22} parent=42 // loop_body
                  _
                $region48: #{run.22} parent=42 // loop_footer
                  %s134 = sadd.s32 1, %s130
                $region49: #{run.22} parent=42 // loop_footer_branch
                  %129 = sbr.rel target = $region45
                $region50: #{run.22} parent=42 // loop_exit
                  _
                loop: start=0, step=1, limit=1
                $region51: #{run.22} parent=42 // loop_pre_header
                  _
                $region52: #{run.22} parent=42 // loop_header
                  %s139 = sphi 0, %s143
                  %p140 = scmp.ge.s32.totalorder %s139, 1
                  %s144 = sphi %s87, %s87
                  %s145 = sphi %s84, %s84
                $region53: #{run.22} parent=42 // loop_header_branch
                  %142 = sbr.rel (%p140) target = $region57
                $region54: #{run.22} parent=42 // loop_body
                  %v146 = vld [vmem:[%s144] sm:$0x3]
                  %147 = vst [vmem:[%s145] sm:$0x3] %v146
                  %v148 = vld [vmem:[%s144 + $0x2] sm:$0x3]
                  %149 = vst [vmem:[%s145 + $0x2] sm:$0x3] %v148
                  %v150 = vld [vmem:[%s144 + $0x4] sm:$0x3]
                  %151 = vst [vmem:[%s145 + $0x4] sm:$0x3] %v150
                  %v152 = vld [vmem:[%s144 + $0xc] sm:$0x3]
                  %153 = vst [vmem:[%s145 + $0x6] sm:$0x3] %v152
                  %v154 = vld [vmem:[%s144 + $0xe] sm:$0x3]
                  %155 = vst [vmem:[%s145 + $0x8] sm:$0x3] %v154
                  %v156 = vld [vmem:[%s144 + $0x10] sm:$0x3]
                  %157 = vst [vmem:[%s145 + $0xa] sm:$0x3] %v156
                  %v158 = vld [vmem:[%s144 + $0x18] sm:$0x3]
                  %159 = vst [vmem:[%s145 + $0xc] sm:$0x3] %v158
                  %v160 = vld [vmem:[%s144 + $0x1a] sm:$0x3]
                  %161 = vst [vmem:[%s145 + $0xe] sm:$0x3] %v160
                  %v162 = vld [vmem:[%s144 + $0x1c] sm:$0x3]
                  %163 = vst [vmem:[%s145 + $0x10] sm:$0x3] %v162
                  %v164 = vld [vmem:[%s144 + $0x24] sm:$0x3]
                  %165 = vst [vmem:[%s145 + $0x12] sm:$0x3] %v164
                  %v166 = vld [vmem:[%s144 + $0x26] sm:$0x3]
                  %167 = vst [vmem:[%s145 + $0x14] sm:$0x3] %v166
                  %v168 = vld [vmem:[%s144 + $0x28] sm:$0x3]
                  %169 = vst [vmem:[%s145 + $0x16] sm:$0x3] %v168
                $region55: #{run.22} parent=42 // loop_footer
                  %s143 = sadd.s32 1, %s139
                $region56: #{run.22} parent=42 // loop_footer_branch
                  %138 = sbr.rel target = $region52
                $region57: #{run.22} parent=42 // loop_exit
                  _
              $region43: #{run.22} parent=27 // pred_fallthru
                _
            $region28: #{run.22} parent=23 // pred_fallthru
              _
            // Predicated region
            $region29: #{run.22} parent=23 // pred_check
              _
            $region30: #{run.22} parent=23 // pred_check_branch
              %93 = sbr.rel (0) target = $region32
            $region31: #{run.22} parent=23 // pred_region
              loop: start=0, step=1, limit=1
              $region33: #{run.22} parent=31 // loop_pre_header
                _
              $region34: #{run.22} parent=31 // loop_header
                %s96 = sphi 0, %s100
                %p97 = scmp.ge.s32.totalorder %s96, 1
                %s101 = sphi %s87, %s87
                %s102 = sphi %s84, %s84
              $region35: #{run.22} parent=31 // loop_header_branch
                %99 = sbr.rel (%p97) target = $region39
              $region36: #{run.22} parent=31 // loop_body
                %v103 = vld [vmem:[%s101] sm:$0x3]
                %104 = vst [vmem:[%s102] sm:$0x3] %v103
                %v105 = vld [vmem:[%s101 + $0x2] sm:$0x3]
                %106 = vst [vmem:[%s102 + $0x2] sm:$0x3] %v105
                %v107 = vld [vmem:[%s101 + $0x4] sm:$0x3]
                %108 = vst [vmem:[%s102 + $0x4] sm:$0x3] %v107
                %v109 = vld [vmem:[%s101 + $0xc] sm:$0x3]
                %110 = vst [vmem:[%s102 + $0x6] sm:$0x3] %v109
                %v111 = vld [vmem:[%s101 + $0xe] sm:$0x3]
                %112 = vst [vmem:[%s102 + $0x8] sm:$0x3] %v111
                %v113 = vld [vmem:[%s101 + $0x10] sm:$0x3]
                %114 = vst [vmem:[%s102 + $0xa] sm:$0x3] %v113
                %v115 = vld [vmem:[%s101 + $0x18] sm:$0x3]
                %116 = vst [vmem:[%s102 + $0xc] sm:$0x3] %v115
                %v117 = vld [vmem:[%s101 + $0x1a] sm:$0x3]
                %118 = vst [vmem:[%s102 + $0xe] sm:$0x3] %v117
                %v119 = vld [vmem:[%s101 + $0x1c] sm:$0x3]
                %120 = vst [vmem:[%s102 + $0x10] sm:$0x3] %v119
                %v121 = vld [vmem:[%s101 + $0x24] sm:$0x3]
                %122 = vst [vmem:[%s102 + $0x12] sm:$0x3] %v121
                %v123 = vld [vmem:[%s101 + $0x26] sm:$0x3]
                %124 = vst [vmem:[%s102 + $0x14] sm:$0x3] %v123
                %v125 = vld [vmem:[%s101 + $0x28] sm:$0x3]
                %126 = vst [vmem:[%s102 + $0x16] sm:$0x3] %v125
              $region37: #{run.22} parent=31 // loop_footer
                %s100 = sadd.s32 1, %s96
              $region38: #{run.22} parent=31 // loop_footer_branch
                %95 = sbr.rel target = $region34
              $region39: #{run.22} parent=31 // loop_exit
                _
            $region32: #{run.22} parent=23 // pred_fallthru
              _
          $region24: #{run.22} parent=19 // pred_fallthru
            _
          %170 = vnop
        $region20: #{run.22} parent=15 // pred_fallthru
          _
      $region16: #{run.22} parent=5 // pred_fallthru
        _
      %p171 = scmp.le.s32.totalorder 1, %s7
      %p172 = scmp.lt.s32.totalorder %s7, 3
      %p173 = pnand %p171, %p172
      %p174 = pneg %p173
      // Predicated region
      $region58: #{run.22} parent=5 // pred_check
        _
      $region59: #{run.22} parent=5 // pred_check_branch
        %176 = sbr.rel (%p173) target = $region61
      $region60: #{run.22} parent=5 // pred_region
        %s177 = ssub.s32 %s7, 1
        %s178 = sand.u32 %s20, 1
        %s179 = sand.u32 %s20, 1
        %s180 = smul.addr %s179, 24
        %s181 = scalar_lea.vmem [#allocation2], %s180
        // Predicated region
        $region62: #{run.22} parent=60 // pred_check
          %p182 = pneg %p33
        $region63: #{run.22} parent=60 // pred_check_branch
          %184 = sbr.rel (%p182) target = $region65
        $region64: #{run.22} parent=60 // pred_region
          _
        $region65: #{run.22} parent=60 // pred_fallthru
          _
        %s185 = sand.u32 %s20, 1
        %s186 = sand.u32 %s20, 1
        %s187 = smul.addr %s186, 24
        %s188 = scalar_lea.vmem [#allocation2], %s187
        %p189 = pneg %p33
        %p190 = pneg %p30
        %p191 = pneg %p59
        %p192 = pneg %p56
        %s193 = sand.u32 %s46, 1
        %s194 = sand.u32 %s46, 1
        %s195 = smul.addr %s194, 8
        %s196 = scalar_lea.vmem [#allocation3], %s195
        %v198 = vld [vmem:[%s181] sm:$0x1]
        %v199 = vld [vmem:[%s181 + $0x6] sm:$0x1]
        %v200 = vld [vmem:[%s181 + $0xc] sm:$0x1]
        %v201 = vld [vmem:[%s181 + $0x12] sm:$0x1]
        %s202 = scalar_lea.vmem %s181, 2 [#allocation2]
        %v203 = vld [vmem:[%s202] sm:$0x1]
        %v204 = vld [vmem:[%s202 + $0x6] sm:$0x1]
        %v205 = vld [vmem:[%s202 + $0xc] sm:$0x1]
        %v206 = vld [vmem:[%s202 + $0x12] sm:$0x1]
        %s207 = scalar_lea.vmem %s181, 4 [#allocation2]
        %v208 = vld [vmem:[%s207] sm:$0x1]
        %v209 = vld [vmem:[%s207 + $0x6] sm:$0x1]
        %v210 = vld [vmem:[%s207 + $0xc] sm:$0x1]
        %v211 = vld [vmem:[%s207 + $0x12] sm:$0x1]
        %v217 = vunpack.c.l.s4 1983009808
        %v218 = vunpack.c.0.s8 %v217
        %v219 = vlaneseq
        %v220 = vshrl.u32 %v219, 7
        %v221 = vsub.s32 %v218, %v220
        %v222 = vrot.slane %v198, %v221
        %v224 = vunpack.c.l.s4 1983009808
        %v225 = vunpack.c.0.s8 %v224
        %v226 = vlaneseq
        %v227 = vshrl.u32 %v226, 7
        %v228 = vsub.s32 %v225, %v227
        %v229 = vrot.slane %v199, %v228
        %v231 = vunpack.c.l.s4 1983009808
        %v232 = vunpack.c.0.s8 %v231
        %v233 = vlaneseq
        %v234 = vshrl.u32 %v233, 7
        %v235 = vsub.s32 %v232, %v234
        %v236 = vrot.slane %v200, %v235
        %v238 = vunpack.c.l.s4 1983009808
        %v239 = vunpack.c.0.s8 %v238
        %v240 = vlaneseq
        %v241 = vshrl.u32 %v240, 7
        %v242 = vsub.s32 %v239, %v241
        %v243 = vrot.slane %v201, %v242
        %v244 = vunpack.c.l.b16 %v222
        %v245 = vunpack.c.l.b16 %v229
        %v246 = vunpack.c.l.b16 %v236
        %v247 = vunpack.c.l.b16 %v243
        %v248 = vrot.slane %v245, 7
        %vm249 = vcmask 1041409
        %v250 = vsel %vm249, %v248, %v244
        %v251 = vrot.slane %v246, 6
        %vm252 = vcmask 1042434
        %v253 = vsel %vm252, %v251, %v250
        %v254 = vrot.slane %v247, 5
        %vm255 = vcmask 1043459
        %v256 = vsel %vm255, %v254, %v253
        %v257 = vpack.c.b16 %v256, %v256
        %v263 = vunpack.c.l.s4 1983009808
        %v264 = vunpack.c.0.s8 %v263
        %v265 = vlaneseq
        %v266 = vshrl.u32 %v265, 7
        %v267 = vsub.s32 %v264, %v266
        %v268 = vrot.slane %v203, %v267
        %v270 = vunpack.c.l.s4 1983009808
        %v271 = vunpack.c.0.s8 %v270
        %v272 = vlaneseq
        %v273 = vshrl.u32 %v272, 7
        %v274 = vsub.s32 %v271, %v273
        %v275 = vrot.slane %v204, %v274
        %v277 = vunpack.c.l.s4 1983009808
        %v278 = vunpack.c.0.s8 %v277
        %v279 = vlaneseq
        %v280 = vshrl.u32 %v279, 7
        %v281 = vsub.s32 %v278, %v280
        %v282 = vrot.slane %v205, %v281
        %v284 = vunpack.c.l.s4 1983009808
        %v285 = vunpack.c.0.s8 %v284
        %v286 = vlaneseq
        %v287 = vshrl.u32 %v286, 7
        %v288 = vsub.s32 %v285, %v287
        %v289 = vrot.slane %v206, %v288
        %v290 = vunpack.c.l.b16 %v268
        %v291 = vunpack.c.l.b16 %v275
        %v292 = vunpack.c.l.b16 %v282
        %v293 = vunpack.c.l.b16 %v289
        %v294 = vrot.slane %v291, 7
        %v295 = vsel %vm249, %v294, %v290
        %v296 = vrot.slane %v292, 6
        %v297 = vsel %vm252, %v296, %v295
        %v298 = vrot.slane %v293, 5
        %v299 = vsel %vm255, %v298, %v297
        %v300 = vpack.c.b16 %v299, %v299
        %vm301 = vcmask 64512
        %v303 = vsel %vm301, %v257, 0
        %v306 = vsel %vm301, %v300, 0
        %308 = vmatprep.subr.bf16.mxu0 0
        %309 = vmatpush1.bf16.xpose.msra.mxu0 %v306
        %310 = vmatprep.subr.bf16.mxu0 0
        %311 = vmatpush1.bf16.xpose.msra.mxu0 0
        %312 = vmatprep.subr.bf16.mxu0 0
        %313 = vmatpush1.bf16.xpose.msra.mxu0 0
        %314 = vmatprep.subr.bf16.mxu0 0
        %315 = vmatpush1.bf16.xpose.msra.mxu0 0
        %316 = vmatprep.subr.bf16.mxu0 0
        %317 = vmatpush1.bf16.xpose.msra.mxu0 0
        %318 = vmatprep.subr.bf16.mxu0 0
        %319 = vmatpush1.bf16.xpose.msra.mxu0 0
        %320 = vmatprep.subr.bf16.mxu0 0
        %321 = vmatpush1.bf16.xpose.msra.mxu0 0
        %322 = vmatprep.subr.bf16.mxu0 0
        %323 = vmatpush1.bf16.xpose.msra.mxu0 0
        %324 = vmatprep.subr.bf16.mxu0 0
        %325 = vmatpush1.bf16.xpose.msra.mxu0 0
        %326 = vmatprep.subr.bf16.mxu0 0
        %327 = vmatpush1.bf16.xpose.msra.mxu0 0
        %328 = vmatprep.subr.bf16.mxu0 0
        %329 = vmatpush1.bf16.xpose.msra.mxu0 0
        %330 = vmatprep.subr.bf16.mxu0 0
        %331 = vmatpush1.bf16.xpose.msra.mxu0 0
        %332 = vmatprep.subr.bf16.mxu0 0
        %333 = vmatpush1.bf16.xpose.msra.mxu0 0
        %334 = vmatprep.subr.bf16.mxu0 0
        %335 = vmatpush1.bf16.xpose.msra.mxu0 0
        %336 = vmatprep.subr.bf16.mxu0 0
        %337 = vmatpush1.bf16.xpose.msra.mxu0 0
        %338 = vmatprep.subr.bf16.mxu0 0
        %339 = vmatpush1.bf16.xpose.msra.mxu0 0
        %340 = vmatprep.mubr.bf16.mxu0 0
        %341 = vmatmul.mubr.bf16.gmra.mrb[0].mxu0 %v303
        %v342 = vpop.f32.mrb[0].mxu0
        %v343 = vadd.f32 0.0, %v342
        %v344 = vpop.f32.mrb[0].mxu0
        %v345 = vpop.f32.mrb[0].mxu0
        %v346 = vpop.f32.mrb[0].mxu0
        %347 = vdwg.mxu0
        %vm348 = vcmask 27648
        %v349 = vsel %vm348, %v343, -inf
        %350 = vmax.xlane.f32.xlu0 %v349
        %v351 = vpop.xlane.xlu0 %350
        %v352 = vsub.f32 %v343, %v351
        %v353 = vmul.f32 %v352, 1.442695
        %v354 = vpow.pop %v353
        %v355 = vsel %vm348, %v354, 0.0
        %356 = vadd.xlane.f32.xlu0 %v355
        %v357 = vpop.xlane.xlu0 %356
        %v358 = vpack.c.bf16 %v354, %v354
        %v364 = vunpack.c.l.s4 1983009808
        %v365 = vunpack.c.0.s8 %v364
        %v366 = vlaneseq
        %v367 = vshrl.u32 %v366, 7
        %v368 = vsub.s32 %v365, %v367
        %v369 = vrot.slane %v208, %v368
        %v371 = vunpack.c.l.s4 1983009808
        %v372 = vunpack.c.0.s8 %v371
        %v373 = vlaneseq
        %v374 = vshrl.u32 %v373, 7
        %v375 = vsub.s32 %v372, %v374
        %v376 = vrot.slane %v209, %v375
        %v378 = vunpack.c.l.s4 1983009808
        %v379 = vunpack.c.0.s8 %v378
        %v380 = vlaneseq
        %v381 = vshrl.u32 %v380, 7
        %v382 = vsub.s32 %v379, %v381
        %v383 = vrot.slane %v210, %v382
        %v385 = vunpack.c.l.s4 1983009808
        %v386 = vunpack.c.0.s8 %v385
        %v387 = vlaneseq
        %v388 = vshrl.u32 %v387, 7
        %v389 = vsub.s32 %v386, %v388
        %v390 = vrot.slane %v211, %v389
        %v391 = vunpack.c.l.b16 %v369
        %v392 = vunpack.c.l.b16 %v376
        %v393 = vunpack.c.l.b16 %v383
        %v394 = vunpack.c.l.b16 %v390
        %v395 = vrot.slane %v392, 7
        %v396 = vsel %vm249, %v395, %v391
        %v397 = vrot.slane %v393, 6
        %v398 = vsel %vm252, %v397, %v396
        %v399 = vrot.slane %v394, 5
        %v400 = vsel %vm255, %v399, %v398
        %v401 = vpack.c.b16 %v400, %v400
        %vm402 = vcmask 31744
        %v404 = vsel %vm402, %v358, 0
        %vm406 = vcmask 1041408
        %v408 = vsel %vm406, %v401, 0
        %410 = vmatprep.subr.bf16.mxu0 0
        %411 = vmatpush1.bf16.msra.mxu0 %v408
        %412 = vmatprep.subr.bf16.mxu0 0
        %413 = vmatpush1.bf16.msra.mxu0 0
        %414 = vmatprep.subr.bf16.mxu0 0
        %415 = vmatpush1.bf16.msra.mxu0 0
        %416 = vmatprep.subr.bf16.mxu0 0
        %417 = vmatpush1.bf16.msra.mxu0 0
        %418 = vmatprep.subr.bf16.mxu0 0
        %419 = vmatpush1.bf16.msra.mxu0 0
        %420 = vmatprep.subr.bf16.mxu0 0
        %421 = vmatpush1.bf16.msra.mxu0 0
        %422 = vmatprep.subr.bf16.mxu0 0
        %423 = vmatpush1.bf16.msra.mxu0 0
        %424 = vmatprep.subr.bf16.mxu0 0
        %425 = vmatpush1.bf16.msra.mxu0 0
        %426 = vmatprep.subr.bf16.mxu0 0
        %427 = vmatpush1.bf16.msra.mxu0 0
        %428 = vmatprep.subr.bf16.mxu0 0
        %429 = vmatpush1.bf16.msra.mxu0 0
        %430 = vmatprep.subr.bf16.mxu0 0
        %431 = vmatpush1.bf16.msra.mxu0 0
        %432 = vmatprep.subr.bf16.mxu0 0
        %433 = vmatpush1.bf16.msra.mxu0 0
        %434 = vmatprep.subr.bf16.mxu0 0
        %435 = vmatpush1.bf16.msra.mxu0 0
        %436 = vmatprep.subr.bf16.mxu0 0
        %437 = vmatpush1.bf16.msra.mxu0 0
        %438 = vmatprep.subr.bf16.mxu0 0
        %439 = vmatpush1.bf16.msra.mxu0 0
        %440 = vmatprep.subr.bf16.mxu0 0
        %441 = vmatpush1.bf16.msra.mxu0 0
        %442 = vmatprep.mubr.bf16.mxu0 0
        %443 = vmatmul.mubr.bf16.gmra.mrb[0].mxu0 %v404
        %v444 = vpop.f32.mrb[0].mxu0
        %v445 = vadd.f32 0.0, %v444
        %v446 = vpop.f32.mrb[0].mxu0
        %v447 = vpop.f32.mrb[0].mxu0
        %v448 = vpop.f32.mrb[0].mxu0
        %449 = vdwg.mxu0
        %v450 = vrcp.pop %v357
        %v451 = vmul.f32 %v445, %v450
        %v452 = vpack.c.bf16 %v451, %v451
        %v455 = vunpack.c.l.s4 1966171168
        %v456 = vunpack.c.0.s8 %v455
        %v457 = vlaneseq
        %v458 = vshrl.u32 %v457, 7
        %v459 = vsub.s32 %v456, %v458
        %v460 = vrot.slane %v452, %v459
        %v461 = vcombine.high %v460, %v460
        %v463 = vunpack.c.l.s4 1966171168
        %v464 = vunpack.c.0.s8 %v463
        %v465 = vlaneseq
        %v466 = vshrl.u32 %v465, 7
        %v467 = vsub.s32 %v464, %v466
        %v468 = vrot.slane %v460, %v467
        %v470 = vunpack.c.l.s4 1966171168
        %v471 = vunpack.c.0.s8 %v470
        %v472 = vlaneseq
        %v473 = vshrl.u32 %v472, 7
        %v474 = vsub.s32 %v471, %v473
        %v475 = vrot.slane %v461, %v474
        %v476 = vunpack.i.l.s16 %v468
        %v477 = vunpack.i.h.s16 %v468
        %v478 = vunpack.i.l.s16 %v475
        %v479 = vunpack.i.h.s16 %v475
        %v480 = vpack.i.b16 %v476, %v476
        %v481 = vpack.i.b16 %v477, %v477
        %v482 = vpack.i.b16 %v478, %v478
        %v483 = vpack.i.b16 %v479, %v479
        %v485 = vunpack.c.l.s4 857870592
        %v486 = vunpack.c.0.s8 %v485
        %v487 = vlaneseq
        %v488 = vshrl.u32 %v487, 7
        %v489 = vsub.s32 %v486, %v488
        %v490 = vrot.slane %v480, %v489
        %v492 = vunpack.c.l.s4 857870592
        %v493 = vunpack.c.0.s8 %v492
        %v494 = vlaneseq
        %v495 = vshrl.u32 %v494, 7
        %v496 = vsub.s32 %v493, %v495
        %v497 = vrot.slane %v481, %v496
        %v499 = vunpack.c.l.s4 857870592
        %v500 = vunpack.c.0.s8 %v499
        %v501 = vlaneseq
        %v502 = vshrl.u32 %v501, 7
        %v503 = vsub.s32 %v500, %v502
        %v504 = vrot.slane %v482, %v503
        %v506 = vunpack.c.l.s4 857870592
        %v507 = vunpack.c.0.s8 %v506
        %v508 = vlaneseq
        %v509 = vshrl.u32 %v508, 7
        %v510 = vsub.s32 %v507, %v509
        %v511 = vrot.slane %v483, %v510
        %vm516 = vcmask 57344
        %vm517 = vsmask.f32 256
        %vm518 = vmand %vm516, %vm517
        %v519 = vld [vmem:[%s196] sm:$0x1]
        %v520 = vsel %vm518, %v490, %v519
        %521 = vst [vmem:[%s196] sm:$0x1] %v520
        %v522 = vld [vmem:[%s196 + $0x2] sm:$0x1]
        %v523 = vsel %vm518, %v497, %v522
        %524 = vst [vmem:[%s196 + $0x2] sm:$0x1] %v523
        %v525 = vld [vmem:[%s196 + $0x4] sm:$0x1]
        %v526 = vsel %vm518, %v504, %v525
        %527 = vst [vmem:[%s196 + $0x4] sm:$0x1] %v526
        %v528 = vld [vmem:[%s196 + $0x6] sm:$0x1]
        %v529 = vsel %vm518, %v511, %v528
        %530 = vst [vmem:[%s196 + $0x6] sm:$0x1] %v529
        %v531 = vld [vmem:[%s181] sm:$0x1]
        %v532 = vld [vmem:[%s181 + $0x6] sm:$0x1]
        %v533 = vld [vmem:[%s181 + $0xc] sm:$0x1]
        %v534 = vld [vmem:[%s181 + $0x12] sm:$0x1]
        %v535 = vld [vmem:[%s202] sm:$0x1]
        %v536 = vld [vmem:[%s202 + $0x6] sm:$0x1]
        %v537 = vld [vmem:[%s202 + $0xc] sm:$0x1]
        %v538 = vld [vmem:[%s202 + $0x12] sm:$0x1]
        %v539 = vld [vmem:[%s207] sm:$0x1]
        %v540 = vld [vmem:[%s207 + $0x6] sm:$0x1]
        %v541 = vld [vmem:[%s207 + $0xc] sm:$0x1]
        %v542 = vld [vmem:[%s207 + $0x12] sm:$0x1]
        %v548 = vunpack.c.l.s4 1983009808
        %v549 = vunpack.c.0.s8 %v548
        %v550 = vlaneseq
        %v551 = vshrl.u32 %v550, 7
        %v552 = vsub.s32 %v549, %v551
        %v553 = vrot.slane %v531, %v552
        %v555 = vunpack.c.l.s4 1983009808
        %v556 = vunpack.c.0.s8 %v555
        %v557 = vlaneseq
        %v558 = vshrl.u32 %v557, 7
        %v559 = vsub.s32 %v556, %v558
        %v560 = vrot.slane %v532, %v559
        %v562 = vunpack.c.l.s4 1983009808
        %v563 = vunpack.c.0.s8 %v562
        %v564 = vlaneseq
        %v565 = vshrl.u32 %v564, 7
        %v566 = vsub.s32 %v563, %v565
        %v567 = vrot.slane %v533, %v566
        %v569 = vunpack.c.l.s4 1983009808
        %v570 = vunpack.c.0.s8 %v569
        %v571 = vlaneseq
        %v572 = vshrl.u32 %v571, 7
        %v573 = vsub.s32 %v570, %v572
        %v574 = vrot.slane %v534, %v573
        %v575 = vunpack.c.l.b16 %v553
        %v576 = vunpack.c.l.b16 %v560
        %v577 = vunpack.c.l.b16 %v567
        %v578 = vunpack.c.l.b16 %v574
        %v579 = vrot.slane %v575, 1
        %v580 = vsel %vm249, %v576, %v579
        %v581 = vrot.slane %v577, 7
        %v582 = vsel %vm252, %v581, %v580
        %v583 = vrot.slane %v578, 6
        %v584 = vsel %vm255, %v583, %v582
        %v585 = vpack.c.b16 %v584, %v584
        %v591 = vunpack.c.l.s4 1983009808
        %v592 = vunpack.c.0.s8 %v591
        %v593 = vlaneseq
        %v594 = vshrl.u32 %v593, 7
        %v595 = vsub.s32 %v592, %v594
        %v596 = vrot.slane %v535, %v595
        %v598 = vunpack.c.l.s4 1983009808
        %v599 = vunpack.c.0.s8 %v598
        %v600 = vlaneseq
        %v601 = vshrl.u32 %v600, 7
        %v602 = vsub.s32 %v599, %v601
        %v603 = vrot.slane %v536, %v602
        %v605 = vunpack.c.l.s4 1983009808
        %v606 = vunpack.c.0.s8 %v605
        %v607 = vlaneseq
        %v608 = vshrl.u32 %v607, 7
        %v609 = vsub.s32 %v606, %v608
        %v610 = vrot.slane %v537, %v609
        %v612 = vunpack.c.l.s4 1983009808
        %v613 = vunpack.c.0.s8 %v612
        %v614 = vlaneseq
        %v615 = vshrl.u32 %v614, 7
        %v616 = vsub.s32 %v613, %v615
        %v617 = vrot.slane %v538, %v616
        %v618 = vunpack.c.l.b16 %v596
        %v619 = vunpack.c.l.b16 %v603
        %v620 = vunpack.c.l.b16 %v610
        %v621 = vunpack.c.l.b16 %v617
        %v622 = vrot.slane %v618, 1
        %v623 = vsel %vm249, %v619, %v622
        %v624 = vrot.slane %v620, 7
        %v625 = vsel %vm252, %v624, %v623
        %v626 = vrot.slane %v621, 6
        %v627 = vsel %vm255, %v626, %v625
        %v628 = vpack.c.b16 %v627, %v627
        %v630 = vsel %vm301, %v585, 0
        %v633 = vsel %vm301, %v628, 0
        %635 = vmatprep.subr.bf16.mxu0 0
        %636 = vmatpush1.bf16.xpose.msra.mxu0 %v633
        %637 = vmatprep.subr.bf16.mxu0 0
        %638 = vmatpush1.bf16.xpose.msra.mxu0 0
        %639 = vmatprep.subr.bf16.mxu0 0
        %640 = vmatpush1.bf16.xpose.msra.mxu0 0
        %641 = vmatprep.subr.bf16.mxu0 0
        %642 = vmatpush1.bf16.xpose.msra.mxu0 0
        %643 = vmatprep.subr.bf16.mxu0 0
        %644 = vmatpush1.bf16.xpose.msra.mxu0 0
        %645 = vmatprep.subr.bf16.mxu0 0
        %646 = vmatpush1.bf16.xpose.msra.mxu0 0
        %647 = vmatprep.subr.bf16.mxu0 0
        %648 = vmatpush1.bf16.xpose.msra.mxu0 0
        %649 = vmatprep.subr.bf16.mxu0 0
        %650 = vmatpush1.bf16.xpose.msra.mxu0 0
        %651 = vmatprep.subr.bf16.mxu0 0
        %652 = vmatpush1.bf16.xpose.msra.mxu0 0
        %653 = vmatprep.subr.bf16.mxu0 0
        %654 = vmatpush1.bf16.xpose.msra.mxu0 0
        %655 = vmatprep.subr.bf16.mxu0 0
        %656 = vmatpush1.bf16.xpose.msra.mxu0 0
        %657 = vmatprep.subr.bf16.mxu0 0
        %658 = vmatpush1.bf16.xpose.msra.mxu0 0
        %659 = vmatprep.subr.bf16.mxu0 0
        %660 = vmatpush1.bf16.xpose.msra.mxu0 0
        %661 = vmatprep.subr.bf16.mxu0 0
        %662 = vmatpush1.bf16.xpose.msra.mxu0 0
        %663 = vmatprep.subr.bf16.mxu0 0
        %664 = vmatpush1.bf16.xpose.msra.mxu0 0
        %665 = vmatprep.subr.bf16.mxu0 0
        %666 = vmatpush1.bf16.xpose.msra.mxu0 0
        %667 = vmatprep.mubr.bf16.mxu0 0
        %668 = vmatmul.mubr.bf16.gmra.mrb[0].mxu0 %v630
        %v669 = vpop.f32.mrb[0].mxu0
        %v670 = vadd.f32 0.0, %v669
        %v671 = vpop.f32.mrb[0].mxu0
        %v672 = vpop.f32.mrb[0].mxu0
        %v673 = vpop.f32.mrb[0].mxu0
        %674 = vdwg.mxu0
        %v675 = vsel %vm348, %v670, -inf
        %676 = vmax.xlane.f32.xlu0 %v675
        %v677 = vpop.xlane.xlu0 %676
        %v678 = vsub.f32 %v670, %v677
        %v679 = vmul.f32 %v678, 1.442695
        %v680 = vpow.pop %v679
        %v681 = vsel %vm348, %v680, 0.0
        %682 = vadd.xlane.f32.xlu0 %v681
        %v683 = vpop.xlane.xlu0 %682
        %v684 = vpack.c.bf16 %v680, %v680
        %v690 = vunpack.c.l.s4 1983009808
        %v691 = vunpack.c.0.s8 %v690
        %v692 = vlaneseq
        %v693 = vshrl.u32 %v692, 7
        %v694 = vsub.s32 %v691, %v693
        %v695 = vrot.slane %v539, %v694
        %v697 = vunpack.c.l.s4 1983009808
        %v698 = vunpack.c.0.s8 %v697
        %v699 = vlaneseq
        %v700 = vshrl.u32 %v699, 7
        %v701 = vsub.s32 %v698, %v700
        %v702 = vrot.slane %v540, %v701
        %v704 = vunpack.c.l.s4 1983009808
        %v705 = vunpack.c.0.s8 %v704
        %v706 = vlaneseq
        %v707 = vshrl.u32 %v706, 7
        %v708 = vsub.s32 %v705, %v707
        %v709 = vrot.slane %v541, %v708
        %v711 = vunpack.c.l.s4 1983009808
        %v712 = vunpack.c.0.s8 %v711
        %v713 = vlaneseq
        %v714 = vshrl.u32 %v713, 7
        %v715 = vsub.s32 %v712, %v714
        %v716 = vrot.slane %v542, %v715
        %v717 = vunpack.c.l.b16 %v695
        %v718 = vunpack.c.l.b16 %v702
        %v719 = vunpack.c.l.b16 %v709
        %v720 = vunpack.c.l.b16 %v716
        %v721 = vrot.slane %v717, 1
        %v722 = vsel %vm249, %v718, %v721
        %v723 = vrot.slane %v719, 7
        %v724 = vsel %vm252, %v723, %v722
        %v725 = vrot.slane %v720, 6
        %v726 = vsel %vm255, %v725, %v724
        %v727 = vpack.c.b16 %v726, %v726
        %v729 = vsel %vm402, %v684, 0
        %v732 = vsel %vm406, %v727, 0
        %734 = vmatprep.subr.bf16.mxu0 0
        %735 = vmatpush1.bf16.msra.mxu0 %v732
        %736 = vmatprep.subr.bf16.mxu0 0
        %737 = vmatpush1.bf16.msra.mxu0 0
        %738 = vmatprep.subr.bf16.mxu0 0
        %739 = vmatpush1.bf16.msra.mxu0 0
        %740 = vmatprep.subr.bf16.mxu0 0
        %741 = vmatpush1.bf16.msra.mxu0 0
        %742 = vmatprep.subr.bf16.mxu0 0
        %743 = vmatpush1.bf16.msra.mxu0 0
        %744 = vmatprep.subr.bf16.mxu0 0
        %745 = vmatpush1.bf16.msra.mxu0 0
        %746 = vmatprep.subr.bf16.mxu0 0
        %747 = vmatpush1.bf16.msra.mxu0 0
        %748 = vmatprep.subr.bf16.mxu0 0
        %749 = vmatpush1.bf16.msra.mxu0 0
        %750 = vmatprep.subr.bf16.mxu0 0
        %751 = vmatpush1.bf16.msra.mxu0 0
        %752 = vmatprep.subr.bf16.mxu0 0
        %753 = vmatpush1.bf16.msra.mxu0 0
        %754 = vmatprep.subr.bf16.mxu0 0
        %755 = vmatpush1.bf16.msra.mxu0 0
        %756 = vmatprep.subr.bf16.mxu0 0
        %757 = vmatpush1.bf16.msra.mxu0 0
        %758 = vmatprep.subr.bf16.mxu0 0
        %759 = vmatpush1.bf16.msra.mxu0 0
        %760 = vmatprep.subr.bf16.mxu0 0
        %761 = vmatpush1.bf16.msra.mxu0 0
        %762 = vmatprep.subr.bf16.mxu0 0
        %763 = vmatpush1.bf16.msra.mxu0 0
        %764 = vmatprep.subr.bf16.mxu0 0
        %765 = vmatpush1.bf16.msra.mxu0 0
        %766 = vmatprep.mubr.bf16.mxu0 0
        %767 = vmatmul.mubr.bf16.gmra.mrb[0].mxu0 %v729
        %v768 = vpop.f32.mrb[0].mxu0
        %v769 = vadd.f32 0.0, %v768
        %v770 = vpop.f32.mrb[0].mxu0
        %v771 = vpop.f32.mrb[0].mxu0
        %v772 = vpop.f32.mrb[0].mxu0
        %773 = vdwg.mxu0
        %v774 = vrcp.pop %v683
        %v775 = vmul.f32 %v769, %v774
        %v776 = vpack.c.bf16 %v775, %v775
        %v779 = vunpack.c.l.s4 1966171168
        %v780 = vunpack.c.0.s8 %v779
        %v781 = vlaneseq
        %v782 = vshrl.u32 %v781, 7
        %v783 = vsub.s32 %v780, %v782
        %v784 = vrot.slane %v776, %v783
        %v785 = vcombine.high %v784, %v784
        %v787 = vunpack.c.l.s4 1966171168
        %v788 = vunpack.c.0.s8 %v787
        %v789 = vlaneseq
        %v790 = vshrl.u32 %v789, 7
        %v791 = vsub.s32 %v788, %v790
        %v792 = vrot.slane %v784, %v791
        %v794 = vunpack.c.l.s4 1966171168
        %v795 = vunpack.c.0.s8 %v794
        %v796 = vlaneseq
        %v797 = vshrl.u32 %v796, 7
        %v798 = vsub.s32 %v795, %v797
        %v799 = vrot.slane %v785, %v798
        %v800 = vunpack.i.l.s16 %v792
        %v801 = vunpack.i.h.s16 %v792
        %v802 = vunpack.i.l.s16 %v799
        %v803 = vunpack.i.h.s16 %v799
        %v804 = vpack.i.b16 %v800, %v800
        %v805 = vpack.i.b16 %v801, %v801
        %v806 = vpack.i.b16 %v802, %v802
        %v807 = vpack.i.b16 %v803, %v803
        %v809 = vunpack.c.l.s4 857870592
        %v810 = vunpack.c.0.s8 %v809
        %v811 = vlaneseq
        %v812 = vshrl.u32 %v811, 7
        %v813 = vsub.s32 %v810, %v812
        %v814 = vrot.slane %v804, %v813
        %v816 = vunpack.c.l.s4 857870592
        %v817 = vunpack.c.0.s8 %v816
        %v818 = vlaneseq
        %v819 = vshrl.u32 %v818, 7
        %v820 = vsub.s32 %v817, %v819
        %v821 = vrot.slane %v805, %v820
        %v823 = vunpack.c.l.s4 857870592
        %v824 = vunpack.c.0.s8 %v823
        %v825 = vlaneseq
        %v826 = vshrl.u32 %v825, 7
        %v827 = vsub.s32 %v824, %v826
        %v828 = vrot.slane %v806, %v827
        %v830 = vunpack.c.l.s4 857870592
        %v831 = vunpack.c.0.s8 %v830
        %v832 = vlaneseq
        %v833 = vshrl.u32 %v832, 7
        %v834 = vsub.s32 %v831, %v833
        %v835 = vrot.slane %v807, %v834
        %vm840 = vsmask.f32 7938
        %vm841 = vmand %vm516, %vm840
        %v842 = vld [vmem:[%s196] sm:$0x1]
        %v843 = vsel %vm841, %v814, %v842
        %844 = vst [vmem:[%s196] sm:$0x1] %v843
        %v845 = vld [vmem:[%s196 + $0x2] sm:$0x1]
        %v846 = vsel %vm841, %v821, %v845
        %847 = vst [vmem:[%s196 + $0x2] sm:$0x1] %v846
        %v848 = vld [vmem:[%s196 + $0x4] sm:$0x1]
        %v849 = vsel %vm841, %v828, %v848
        %850 = vst [vmem:[%s196 + $0x4] sm:$0x1] %v849
        %v851 = vld [vmem:[%s196 + $0x6] sm:$0x1]
        %v852 = vsel %vm841, %v835, %v851
        %853 = vst [vmem:[%s196 + $0x6] sm:$0x1] %v852
        %v854 = vld [vmem:[%s181] sm:$0x2]
        %v855 = vld [vmem:[%s181 + $0x6] sm:$0x2]
        %v856 = vld [vmem:[%s181 + $0xc] sm:$0x2]
        %v857 = vld [vmem:[%s181 + $0x12] sm:$0x2]
        %v858 = vld [vmem:[%s202] sm:$0x2]
        %v859 = vld [vmem:[%s202 + $0x6] sm:$0x2]
        %v860 = vld [vmem:[%s202 + $0xc] sm:$0x2]
        %v861 = vld [vmem:[%s202 + $0x12] sm:$0x2]
        %v862 = vld [vmem:[%s207] sm:$0x2]
        %v863 = vld [vmem:[%s207 + $0x6] sm:$0x2]
        %v864 = vld [vmem:[%s207 + $0xc] sm:$0x2]
        %v865 = vld [vmem:[%s207 + $0x12] sm:$0x2]
        %v871 = vunpack.c.l.s4 1983009808
        %v872 = vunpack.c.0.s8 %v871
        %v873 = vlaneseq
        %v874 = vshrl.u32 %v873, 7
        %v875 = vsub.s32 %v872, %v874
        %v876 = vrot.slane %v854, %v875
        %v878 = vunpack.c.l.s4 1983009808
        %v879 = vunpack.c.0.s8 %v878
        %v880 = vlaneseq
        %v881 = vshrl.u32 %v880, 7
        %v882 = vsub.s32 %v879, %v881
        %v883 = vrot.slane %v855, %v882
        %v885 = vunpack.c.l.s4 1983009808
        %v886 = vunpack.c.0.s8 %v885
        %v887 = vlaneseq
        %v888 = vshrl.u32 %v887, 7
        %v889 = vsub.s32 %v886, %v888
        %v890 = vrot.slane %v856, %v889
        %v892 = vunpack.c.l.s4 1983009808
        %v893 = vunpack.c.0.s8 %v892
        %v894 = vlaneseq
        %v895 = vshrl.u32 %v894, 7
        %v896 = vsub.s32 %v893, %v895
        %v897 = vrot.slane %v857, %v896
        %v898 = vunpack.c.l.b16 %v876
        %v899 = vunpack.c.l.b16 %v883
        %v900 = vunpack.c.l.b16 %v890
        %v901 = vunpack.c.l.b16 %v897
        %v902 = vrot.slane %v898, 2
        %v903 = vrot.slane %v899, 1
        %v904 = vsel %vm249, %v903, %v902
        %v905 = vsel %vm252, %v900, %v904
        %v906 = vrot.slane %v901, 7
        %v907 = vsel %vm255, %v906, %v905
        %v908 = vpack.c.b16 %v907, %v907
        %v914 = vunpack.c.l.s4 1983009808
        %v915 = vunpack.c.0.s8 %v914
        %v916 = vlaneseq
        %v917 = vshrl.u32 %v916, 7
        %v918 = vsub.s32 %v915, %v917
        %v919 = vrot.slane %v858, %v918
        %v921 = vunpack.c.l.s4 1983009808
        %v922 = vunpack.c.0.s8 %v921
        %v923 = vlaneseq
        %v924 = vshrl.u32 %v923, 7
        %v925 = vsub.s32 %v922, %v924
        %v926 = vrot.slane %v859, %v925
        %v928 = vunpack.c.l.s4 1983009808
        %v929 = vunpack.c.0.s8 %v928
        %v930 = vlaneseq
        %v931 = vshrl.u32 %v930, 7
        %v932 = vsub.s32 %v929, %v931
        %v933 = vrot.slane %v860, %v932
        %v935 = vunpack.c.l.s4 1983009808
        %v936 = vunpack.c.0.s8 %v935
        %v937 = vlaneseq
        %v938 = vshrl.u32 %v937, 7
        %v939 = vsub.s32 %v936, %v938
        %v940 = vrot.slane %v861, %v939
        %v941 = vunpack.c.l.b16 %v919
        %v942 = vunpack.c.l.b16 %v926
        %v943 = vunpack.c.l.b16 %v933
        %v944 = vunpack.c.l.b16 %v940
        %v945 = vrot.slane %v941, 2
        %v946 = vrot.slane %v942, 1
        %v947 = vsel %vm249, %v946, %v945
        %v948 = vsel %vm252, %v943, %v947
        %v949 = vrot.slane %v944, 7
        %v950 = vsel %vm255, %v949, %v948
        %v951 = vpack.c.b16 %v950, %v950
        %v953 = vsel %vm301, %v908, 0
        %v956 = vsel %vm301, %v951, 0
        %958 = vmatprep.subr.bf16.mxu0 0
        %959 = vmatpush1.bf16.xpose.msra.mxu0 %v956
        %960 = vmatprep.subr.bf16.mxu0 0
        %961 = vmatpush1.bf16.xpose.msra.mxu0 0
        %962 = vmatprep.subr.bf16.mxu0 0
        %963 = vmatpush1.bf16.xpose.msra.mxu0 0
        %964 = vmatprep.subr.bf16.mxu0 0
        %965 = vmatpush1.bf16.xpose.msra.mxu0 0
        %966 = vmatprep.subr.bf16.mxu0 0
        %967 = vmatpush1.bf16.xpose.msra.mxu0 0
        %968 = vmatprep.subr.bf16.mxu0 0
        %969 = vmatpush1.bf16.xpose.msra.mxu0 0
        %970 = vmatprep.subr.bf16.mxu0 0
        %971 = vmatpush1.bf16.xpose.msra.mxu0 0
        %972 = vmatprep.subr.bf16.mxu0 0
        %973 = vmatpush1.bf16.xpose.msra.mxu0 0
        %974 = vmatprep.subr.bf16.mxu0 0
        %975 = vmatpush1.bf16.xpose.msra.mxu0 0
        %976 = vmatprep.subr.bf16.mxu0 0
        %977 = vmatpush1.bf16.xpose.msra.mxu0 0
        %978 = vmatprep.subr.bf16.mxu0 0
        %979 = vmatpush1.bf16.xpose.msra.mxu0 0
        %980 = vmatprep.subr.bf16.mxu0 0
        %981 = vmatpush1.bf16.xpose.msra.mxu0 0
        %982 = vmatprep.subr.bf16.mxu0 0
        %983 = vmatpush1.bf16.xpose.msra.mxu0 0
        %984 = vmatprep.subr.bf16.mxu0 0
        %985 = vmatpush1.bf16.xpose.msra.mxu0 0
        %986 = vmatprep.subr.bf16.mxu0 0
        %987 = vmatpush1.bf16.xpose.msra.mxu0 0
        %988 = vmatprep.subr.bf16.mxu0 0
        %989 = vmatpush1.bf16.xpose.msra.mxu0 0
        %990 = vmatprep.mubr.bf16.mxu0 0
        %991 = vmatmul.mubr.bf16.gmra.mrb[0].mxu0 %v953
        %v992 = vpop.f32.mrb[0].mxu0
        %v993 = vadd.f32 0.0, %v992
        %v994 = vpop.f32.mrb[0].mxu0
        %v995 = vpop.f32.mrb[0].mxu0
        %v996 = vpop.f32.mrb[0].mxu0
        %997 = vdwg.mxu0
        %v998 = vsel %vm348, %v993, -inf
        %999 = vmax.xlane.f32.xlu0 %v998
        %v1000 = vpop.xlane.xlu0 %999
        %v1001 = vsub.f32 %v993, %v1000
        %v1002 = vmul.f32 %v1001, 1.442695
        %v1003 = vpow.pop %v1002
        %v1004 = vsel %vm348, %v1003, 0.0
        %1005 = vadd.xlane.f32.xlu0 %v1004
        %v1006 = vpop.xlane.xlu0 %1005
        %v1007 = vpack.c.bf16 %v1003, %v1003
        %v1013 = vunpack.c.l.s4 1983009808
        %v1014 = vunpack.c.0.s8 %v1013
        %v1015 = vlaneseq
        %v1016 = vshrl.u32 %v1015, 7
        %v1017 = vsub.s32 %v1014, %v1016
        %v1018 = vrot.slane %v862, %v1017
        %v1020 = vunpack.c.l.s4 1983009808
        %v1021 = vunpack.c.0.s8 %v1020
        %v1022 = vlaneseq
        %v1023 = vshrl.u32 %v1022, 7
        %v1024 = vsub.s32 %v1021, %v1023
        %v1025 = vrot.slane %v863, %v1024
        %v1027 = vunpack.c.l.s4 1983009808
        %v1028 = vunpack.c.0.s8 %v1027
        %v1029 = vlaneseq
        %v1030 = vshrl.u32 %v1029, 7
        %v1031 = vsub.s32 %v1028, %v1030
        %v1032 = vrot.slane %v864, %v1031
        %v1034 = vunpack.c.l.s4 1983009808
        %v1035 = vunpack.c.0.s8 %v1034
        %v1036 = vlaneseq
        %v1037 = vshrl.u32 %v1036, 7
        %v1038 = vsub.s32 %v1035, %v1037
        %v1039 = vrot.slane %v865, %v1038
        %v1040 = vunpack.c.l.b16 %v1018
        %v1041 = vunpack.c.l.b16 %v1025
        %v1042 = vunpack.c.l.b16 %v1032
        %v1043 = vunpack.c.l.b16 %v1039
        %v1044 = vrot.slane %v1040, 2
        %v1045 = vrot.slane %v1041, 1
        %v1046 = vsel %vm249, %v1045, %v1044
        %v1047 = vsel %vm252, %v1042, %v1046
        %v1048 = vrot.slane %v1043, 7
        %v1049 = vsel %vm255, %v1048, %v1047
        %v1050 = vpack.c.b16 %v1049, %v1049
        %v1052 = vsel %vm402, %v1007, 0
        %v1055 = vsel %vm406, %v1050, 0
        %1057 = vmatprep.subr.bf16.mxu0 0
        %1058 = vmatpush1.bf16.msra.mxu0 %v1055
        %1059 = vmatprep.subr.bf16.mxu0 0
        %1060 = vmatpush1.bf16.msra.mxu0 0
        %1061 = vmatprep.subr.bf16.mxu0 0
        %1062 = vmatpush1.bf16.msra.mxu0 0
        %1063 = vmatprep.subr.bf16.mxu0 0
        %1064 = vmatpush1.bf16.msra.mxu0 0
        %1065 = vmatprep.subr.bf16.mxu0 0
        %1066 = vmatpush1.bf16.msra.mxu0 0
        %1067 = vmatprep.subr.bf16.mxu0 0
        %1068 = vmatpush1.bf16.msra.mxu0 0
        %1069 = vmatprep.subr.bf16.mxu0 0
        %1070 = vmatpush1.bf16.msra.mxu0 0
        %1071 = vmatprep.subr.bf16.mxu0 0
        %1072 = vmatpush1.bf16.msra.mxu0 0
        %1073 = vmatprep.subr.bf16.mxu0 0
        %1074 = vmatpush1.bf16.msra.mxu0 0
        %1075 = vmatprep.subr.bf16.mxu0 0
        %1076 = vmatpush1.bf16.msra.mxu0 0
        %1077 = vmatprep.subr.bf16.mxu0 0
        %1078 = vmatpush1.bf16.msra.mxu0 0
        %1079 = vmatprep.subr.bf16.mxu0 0
        %1080 = vmatpush1.bf16.msra.mxu0 0
        %1081 = vmatprep.subr.bf16.mxu0 0
        %1082 = vmatpush1.bf16.msra.mxu0 0
        %1083 = vmatprep.subr.bf16.mxu0 0
        %1084 = vmatpush1.bf16.msra.mxu0 0
        %1085 = vmatprep.subr.bf16.mxu0 0
        %1086 = vmatpush1.bf16.msra.mxu0 0
        %1087 = vmatprep.subr.bf16.mxu0 0
        %1088 = vmatpush1.bf16.msra.mxu0 0
        %1089 = vmatprep.mubr.bf16.mxu0 0
        %1090 = vmatmul.mubr.bf16.gmra.mrb[0].mxu0 %v1052
        %v1091 = vpop.f32.mrb[0].mxu0
        %v1092 = vadd.f32 0.0, %v1091
        %v1093 = vpop.f32.mrb[0].mxu0
        %v1094 = vpop.f32.mrb[0].mxu0
        %v1095 = vpop.f32.mrb[0].mxu0
        %1096 = vdwg.mxu0
        %v1097 = vrcp.pop %v1006
        %v1098 = vmul.f32 %v1092, %v1097
        %v1099 = vpack.c.bf16 %v1098, %v1098
        %v1102 = vunpack.c.l.s4 1966171168
        %v1103 = vunpack.c.0.s8 %v1102
        %v1104 = vlaneseq
        %v1105 = vshrl.u32 %v1104, 7
        %v1106 = vsub.s32 %v1103, %v1105
        %v1107 = vrot.slane %v1099, %v1106
        %v1108 = vcombine.high %v1107, %v1107
        %v1110 = vunpack.c.l.s4 1966171168
        %v1111 = vunpack.c.0.s8 %v1110
        %v1112 = vlaneseq
        %v1113 = vshrl.u32 %v1112, 7
        %v1114 = vsub.s32 %v1111, %v1113
        %v1115 = vrot.slane %v1107, %v1114
        %v1117 = vunpack.c.l.s4 1966171168
        %v1118 = vunpack.c.0.s8 %v1117
        %v1119 = vlaneseq
        %v1120 = vshrl.u32 %v1119, 7
        %v1121 = vsub.s32 %v1118, %v1120
        %v1122 = vrot.slane %v1108, %v1121
        %v1123 = vunpack.i.l.s16 %v1115
        %v1124 = vunpack.i.h.s16 %v1115
        %v1125 = vunpack.i.l.s16 %v1122
        %v1126 = vunpack.i.h.s16 %v1122
        %v1127 = vpack.i.b16 %v1123, %v1123
        %v1128 = vpack.i.b16 %v1124, %v1124
        %v1129 = vpack.i.b16 %v1125, %v1125
        %v1130 = vpack.i.b16 %v1126, %v1126
        %v1132 = vunpack.c.l.s4 857870592
        %v1133 = vunpack.c.0.s8 %v1132
        %v1134 = vlaneseq
        %v1135 = vshrl.u32 %v1134, 7
        %v1136 = vsub.s32 %v1133, %v1135
        %v1137 = vrot.slane %v1127, %v1136
        %v1139 = vunpack.c.l.s4 857870592
        %v1140 = vunpack.c.0.s8 %v1139
        %v1141 = vlaneseq
        %v1142 = vshrl.u32 %v1141, 7
        %v1143 = vsub.s32 %v1140, %v1142
        %v1144 = vrot.slane %v1128, %v1143
        %v1146 = vunpack.c.l.s4 857870592
        %v1147 = vunpack.c.0.s8 %v1146
        %v1148 = vlaneseq
        %v1149 = vshrl.u32 %v1148, 7
        %v1150 = vsub.s32 %v1147, %v1149
        %v1151 = vrot.slane %v1129, %v1150
        %v1153 = vunpack.c.l.s4 857870592
        %v1154 = vunpack.c.0.s8 %v1153
        %v1155 = vlaneseq
        %v1156 = vshrl.u32 %v1155, 7
        %v1157 = vsub.s32 %v1154, %v1156
        %v1158 = vrot.slane %v1130, %v1157
        %vm1163 = vcmask 58369
        %vm1164 = vsmask.f32 1280
        %vm1165 = vmand %vm1163, %vm1164
        %v1166 = vld [vmem:[%s196] sm:$0x2]
        %v1167 = vsel %vm1165, %v1137, %v1166
        %1168 = vst [vmem:[%s196] sm:$0x2] %v1167
        %v1169 = vld [vmem:[%s196 + $0x2] sm:$0x2]
        %v1170 = vsel %vm1165, %v1144, %v1169
        %1171 = vst [vmem:[%s196 + $0x2] sm:$0x2] %v1170
        %v1172 = vld [vmem:[%s196 + $0x4] sm:$0x2]
        %v1173 = vsel %vm1165, %v1151, %v1172
        %1174 = vst [vmem:[%s196 + $0x4] sm:$0x2] %v1173
        %v1175 = vld [vmem:[%s196 + $0x6] sm:$0x2]
        %v1176 = vsel %vm1165, %v1158, %v1175
        %1177 = vst [vmem:[%s196 + $0x6] sm:$0x2] %v1176
        %v1178 = vld [vmem:[%s181] sm:$0x2]
        %v1179 = vld [vmem:[%s181 + $0x6] sm:$0x2]
        %v1180 = vld [vmem:[%s181 + $0xc] sm:$0x2]
        %v1181 = vld [vmem:[%s181 + $0x12] sm:$0x2]
        %v1182 = vld [vmem:[%s202] sm:$0x2]
        %v1183 = vld [vmem:[%s202 + $0x6] sm:$0x2]
        %v1184 = vld [vmem:[%s202 + $0xc] sm:$0x2]
        %v1185 = vld [vmem:[%s202 + $0x12] sm:$0x2]
        %v1186 = vld [vmem:[%s207] sm:$0x2]
        %v1187 = vld [vmem:[%s207 + $0x6] sm:$0x2]
        %v1188 = vld [vmem:[%s207 + $0xc] sm:$0x2]
        %v1189 = vld [vmem:[%s207 + $0x12] sm:$0x2]
        %v1195 = vunpack.c.l.s4 1983009808
        %v1196 = vunpack.c.0.s8 %v1195
        %v1197 = vlaneseq
        %v1198 = vshrl.u32 %v1197, 7
        %v1199 = vsub.s32 %v1196, %v1198
        %v1200 = vrot.slane %v1178, %v1199
        %v1202 = vunpack.c.l.s4 1983009808
        %v1203 = vunpack.c.0.s8 %v1202
        %v1204 = vlaneseq
        %v1205 = vshrl.u32 %v1204, 7
        %v1206 = vsub.s32 %v1203, %v1205
        %v1207 = vrot.slane %v1179, %v1206
        %v1209 = vunpack.c.l.s4 1983009808
        %v1210 = vunpack.c.0.s8 %v1209
        %v1211 = vlaneseq
        %v1212 = vshrl.u32 %v1211, 7
        %v1213 = vsub.s32 %v1210, %v1212
        %v1214 = vrot.slane %v1180, %v1213
        %v1216 = vunpack.c.l.s4 1983009808
        %v1217 = vunpack.c.0.s8 %v1216
        %v1218 = vlaneseq
        %v1219 = vshrl.u32 %v1218, 7
        %v1220 = vsub.s32 %v1217, %v1219
        %v1221 = vrot.slane %v1181, %v1220
        %v1222 = vunpack.c.l.b16 %v1200
        %v1223 = vunpack.c.l.b16 %v1207
        %v1224 = vunpack.c.l.b16 %v1214
        %v1225 = vunpack.c.l.b16 %v1221
        %v1226 = vrot.slane %v1222, 3
        %v1227 = vrot.slane %v1223, 2
        %v1228 = vsel %vm249, %v1227, %v1226
        %v1229 = vrot.slane %v1224, 1
        %v1230 = vsel %vm252, %v1229, %v1228
        %v1231 = vsel %vm255, %v1225, %v1230
        %v1232 = vpack.c.b16 %v1231, %v1231
        %v1238 = vunpack.c.l.s4 1983009808
        %v1239 = vunpack.c.0.s8 %v1238
        %v1240 = vlaneseq
        %v1241 = vshrl.u32 %v1240, 7
        %v1242 = vsub.s32 %v1239, %v1241
        %v1243 = vrot.slane %v1182, %v1242
        %v1245 = vunpack.c.l.s4 1983009808
        %v1246 = vunpack.c.0.s8 %v1245
        %v1247 = vlaneseq
        %v1248 = vshrl.u32 %v1247, 7
        %v1249 = vsub.s32 %v1246, %v1248
        %v1250 = vrot.slane %v1183, %v1249
        %v1252 = vunpack.c.l.s4 1983009808
        %v1253 = vunpack.c.0.s8 %v1252
        %v1254 = vlaneseq
        %v1255 = vshrl.u32 %v1254, 7
        %v1256 = vsub.s32 %v1253, %v1255
        %v1257 = vrot.slane %v1184, %v1256
        %v1259 = vunpack.c.l.s4 1983009808
        %v1260 = vunpack.c.0.s8 %v1259
        %v1261 = vlaneseq
        %v1262 = vshrl.u32 %v1261, 7
        %v1263 = vsub.s32 %v1260, %v1262
        %v1264 = vrot.slane %v1185, %v1263
        %v1265 = vunpack.c.l.b16 %v1243
        %v1266 = vunpack.c.l.b16 %v1250
        %v1267 = vunpack.c.l.b16 %v1257
        %v1268 = vunpack.c.l.b16 %v1264
        %v1269 = vrot.slane %v1265, 3
        %v1270 = vrot.slane %v1266, 2
        %v1271 = vsel %vm249, %v1270, %v1269
        %v1272 = vrot.slane %v1267, 1
        %v1273 = vsel %vm252, %v1272, %v1271
        %v1274 = vsel %vm255, %v1268, %v1273
        %v1275 = vpack.c.b16 %v1274, %v1274
        %v1277 = vsel %vm301, %v1232, 0
        %v1280 = vsel %vm301, %v1275, 0
        %1282 = vmatprep.subr.bf16.mxu0 0
        %1283 = vmatpush1.bf16.xpose.msra.mxu0 %v1280
        %1284 = vmatprep.subr.bf16.mxu0 0
        %1285 = vmatpush1.bf16.xpose.msra.mxu0 0
        %1286 = vmatprep.subr.bf16.mxu0 0
        %1287 = vmatpush1.bf16.xpose.msra.mxu0 0
        %1288 = vmatprep.subr.bf16.mxu0 0
        %1289 = vmatpush1.bf16.xpose.msra.mxu0 0
        %1290 = vmatprep.subr.bf16.mxu0 0
        %1291 = vmatpush1.bf16.xpose.msra.mxu0 0
        %1292 = vmatprep.subr.bf16.mxu0 0
        %1293 = vmatpush1.bf16.xpose.msra.mxu0 0
        %1294 = vmatprep.subr.bf16.mxu0 0
        %1295 = vmatpush1.bf16.xpose.msra.mxu0 0
        %1296 = vmatprep.subr.bf16.mxu0 0
        %1297 = vmatpush1.bf16.xpose.msra.mxu0 0
        %1298 = vmatprep.subr.bf16.mxu0 0
        %1299 = vmatpush1.bf16.xpose.msra.mxu0 0
        %1300 = vmatprep.subr.bf16.mxu0 0
        %1301 = vmatpush1.bf16.xpose.msra.mxu0 0
        %1302 = vmatprep.subr.bf16.mxu0 0
        %1303 = vmatpush1.bf16.xpose.msra.mxu0 0
        %1304 = vmatprep.subr.bf16.mxu0 0
        %1305 = vmatpush1.bf16.xpose.msra.mxu0 0
        %1306 = vmatprep.subr.bf16.mxu0 0
        %1307 = vmatpush1.bf16.xpose.msra.mxu0 0
        %1308 = vmatprep.subr.bf16.mxu0 0
        %1309 = vmatpush1.bf16.xpose.msra.mxu0 0
        %1310 = vmatprep.subr.bf16.mxu0 0
        %1311 = vmatpush1.bf16.xpose.msra.mxu0 0
        %1312 = vmatprep.subr.bf16.mxu0 0
        %1313 = vmatpush1.bf16.xpose.msra.mxu0 0
        %1314 = vmatprep.mubr.bf16.mxu0 0
        %1315 = vmatmul.mubr.bf16.gmra.mrb[0].mxu0 %v1277
        %v1316 = vpop.f32.mrb[0].mxu0
        %v1317 = vadd.f32 0.0, %v1316
        %v1318 = vpop.f32.mrb[0].mxu0
        %v1319 = vpop.f32.mrb[0].mxu0
        %v1320 = vpop.f32.mrb[0].mxu0
        %1321 = vdwg.mxu0
        %v1322 = vsel %vm348, %v1317, -inf
        %1323 = vmax.xlane.f32.xlu0 %v1322
        %v1324 = vpop.xlane.xlu0 %1323
        %v1325 = vsub.f32 %v1317, %v1324
        %v1326 = vmul.f32 %v1325, 1.442695
        %v1327 = vpow.pop %v1326
        %v1328 = vsel %vm348, %v1327, 0.0
        %1329 = vadd.xlane.f32.xlu0 %v1328
        %v1330 = vpop.xlane.xlu0 %1329
        %v1331 = vpack.c.bf16 %v1327, %v1327
        %v1337 = vunpack.c.l.s4 1983009808
        %v1338 = vunpack.c.0.s8 %v1337
        %v1339 = vlaneseq
        %v1340 = vshrl.u32 %v1339, 7
        %v1341 = vsub.s32 %v1338, %v1340
        %v1342 = vrot.slane %v1186, %v1341
        %v1344 = vunpack.c.l.s4 1983009808
        %v1345 = vunpack.c.0.s8 %v1344
        %v1346 = vlaneseq
        %v1347 = vshrl.u32 %v1346, 7
        %v1348 = vsub.s32 %v1345, %v1347
        %v1349 = vrot.slane %v1187, %v1348
        %v1351 = vunpack.c.l.s4 1983009808
        %v1352 = vunpack.c.0.s8 %v1351
        %v1353 = vlaneseq
        %v1354 = vshrl.u32 %v1353, 7
        %v1355 = vsub.s32 %v1352, %v1354
        %v1356 = vrot.slane %v1188, %v1355
        %v1358 = vunpack.c.l.s4 1983009808
        %v1359 = vunpack.c.0.s8 %v1358
        %v1360 = vlaneseq
        %v1361 = vshrl.u32 %v1360, 7
        %v1362 = vsub.s32 %v1359, %v1361
        %v1363 = vrot.slane %v1189, %v1362
        %v1364 = vunpack.c.l.b16 %v1342
        %v1365 = vunpack.c.l.b16 %v1349
        %v1366 = vunpack.c.l.b16 %v1356
        %v1367 = vunpack.c.l.b16 %v1363
        %v1368 = vrot.slane %v1364, 3
        %v1369 = vrot.slane %v1365, 2
        %v1370 = vsel %vm249, %v1369, %v1368
        %v1371 = vrot.slane %v1366, 1
        %v1372 = vsel %vm252, %v1371, %v1370
        %v1373 = vsel %vm255, %v1367, %v1372
        %v1374 = vpack.c.b16 %v1373, %v1373
        %v1376 = vsel %vm402, %v1331, 0
        %v1379 = vsel %vm406, %v1374, 0
        %1381 = vmatprep.subr.bf16.mxu0 0
        %1382 = vmatpush1.bf16.msra.mxu0 %v1379
        %1383 = vmatprep.subr.bf16.mxu0 0
        %1384 = vmatpush1.bf16.msra.mxu0 0
        %1385 = vmatprep.subr.bf16.mxu0 0
        %1386 = vmatpush1.bf16.msra.mxu0 0
        %1387 = vmatprep.subr.bf16.mxu0 0
        %1388 = vmatpush1.bf16.msra.mxu0 0
        %1389 = vmatprep.subr.bf16.mxu0 0
        %1390 = vmatpush1.bf16.msra.mxu0 0
        %1391 = vmatprep.subr.bf16.mxu0 0
        %1392 = vmatpush1.bf16.msra.mxu0 0
        %1393 = vmatprep.subr.bf16.mxu0 0
        %1394 = vmatpush1.bf16.msra.mxu0 0
        %1395 = vmatprep.subr.bf16.mxu0 0
        %1396 = vmatpush1.bf16.msra.mxu0 0
        %1397 = vmatprep.subr.bf16.mxu0 0
        %1398 = vmatpush1.bf16.msra.mxu0 0
        %1399 = vmatprep.subr.bf16.mxu0 0
        %1400 = vmatpush1.bf16.msra.mxu0 0
        %1401 = vmatprep.subr.bf16.mxu0 0
        %1402 = vmatpush1.bf16.msra.mxu0 0
        %1403 = vmatprep.subr.bf16.mxu0 0
        %1404 = vmatpush1.bf16.msra.mxu0 0
        %1405 = vmatprep.subr.bf16.mxu0 0
        %1406 = vmatpush1.bf16.msra.mxu0 0
        %1407 = vmatprep.subr.bf16.mxu0 0
        %1408 = vmatpush1.bf16.msra.mxu0 0
        %1409 = vmatprep.subr.bf16.mxu0 0
        %1410 = vmatpush1.bf16.msra.mxu0 0
        %1411 = vmatprep.subr.bf16.mxu0 0
        %1412 = vmatpush1.bf16.msra.mxu0 0
        %1413 = vmatprep.mubr.bf16.mxu0 0
        %1414 = vmatmul.mubr.bf16.gmra.mrb[0].mxu0 %v1376
        %v1415 = vpop.f32.mrb[0].mxu0
        %v1416 = vadd.f32 0.0, %v1415
        %v1417 = vpop.f32.mrb[0].mxu0
        %v1418 = vpop.f32.mrb[0].mxu0
        %v1419 = vpop.f32.mrb[0].mxu0
        %1420 = vdwg.mxu0
        %v1421 = vrcp.pop %v1330
        %v1422 = vmul.f32 %v1416, %v1421
        %v1423 = vpack.c.bf16 %v1422, %v1422
        %v1426 = vunpack.c.l.s4 1966171168
        %v1427 = vunpack.c.0.s8 %v1426
        %v1428 = vlaneseq
        %v1429 = vshrl.u32 %v1428, 7
        %v1430 = vsub.s32 %v1427, %v1429
        %v1431 = vrot.slane %v1423, %v1430
        %v1432 = vcombine.high %v1431, %v1431
        %v1434 = vunpack.c.l.s4 1966171168
        %v1435 = vunpack.c.0.s8 %v1434
        %v1436 = vlaneseq
        %v1437 = vshrl.u32 %v1436, 7
        %v1438 = vsub.s32 %v1435, %v1437
        %v1439 = vrot.slane %v1431, %v1438
        %v1441 = vunpack.c.l.s4 1966171168
        %v1442 = vunpack.c.0.s8 %v1441
        %v1443 = vlaneseq
        %v1444 = vshrl.u32 %v1443, 7
        %v1445 = vsub.s32 %v1442, %v1444
        %v1446 = vrot.slane %v1432, %v1445
        %v1447 = vunpack.i.l.s16 %v1439
        %v1448 = vunpack.i.h.s16 %v1439
        %v1449 = vunpack.i.l.s16 %v1446
        %v1450 = vunpack.i.h.s16 %v1446
        %v1451 = vpack.i.b16 %v1447, %v1447
        %v1452 = vpack.i.b16 %v1448, %v1448
        %v1453 = vpack.i.b16 %v1449, %v1449
        %v1454 = vpack.i.b16 %v1450, %v1450
        %v1456 = vunpack.c.l.s4 857870592
        %v1457 = vunpack.c.0.s8 %v1456
        %v1458 = vlaneseq
        %v1459 = vshrl.u32 %v1458, 7
        %v1460 = vsub.s32 %v1457, %v1459
        %v1461 = vrot.slane %v1451, %v1460
        %v1463 = vunpack.c.l.s4 857870592
        %v1464 = vunpack.c.0.s8 %v1463
        %v1465 = vlaneseq
        %v1466 = vshrl.u32 %v1465, 7
        %v1467 = vsub.s32 %v1464, %v1466
        %v1468 = vrot.slane %v1452, %v1467
        %v1470 = vunpack.c.l.s4 857870592
        %v1471 = vunpack.c.0.s8 %v1470
        %v1472 = vlaneseq
        %v1473 = vshrl.u32 %v1472, 7
        %v1474 = vsub.s32 %v1471, %v1473
        %v1475 = vrot.slane %v1453, %v1474
        %v1477 = vunpack.c.l.s4 857870592
        %v1478 = vunpack.c.0.s8 %v1477
        %v1479 = vlaneseq
        %v1480 = vshrl.u32 %v1479, 7
        %v1481 = vsub.s32 %v1478, %v1480
        %v1482 = vrot.slane %v1454, %v1481
        %vm1487 = vsmask.f32 7942
        %vm1488 = vmand %vm1163, %vm1487
        %v1489 = vld [vmem:[%s196] sm:$0x2]
        %v1490 = vsel %vm1488, %v1461, %v1489
        %1491 = vst [vmem:[%s196] sm:$0x2] %v1490
        %v1492 = vld [vmem:[%s196 + $0x2] sm:$0x2]
        %v1493 = vsel %vm1488, %v1468, %v1492
        %1494 = vst [vmem:[%s196 + $0x2] sm:$0x2] %v1493
        %v1495 = vld [vmem:[%s196 + $0x4] sm:$0x2]
        %v1496 = vsel %vm1488, %v1475, %v1495
        %1497 = vst [vmem:[%s196 + $0x4] sm:$0x2] %v1496
        %v1498 = vld [vmem:[%s196 + $0x6] sm:$0x2]
        %v1499 = vsel %vm1488, %v1482, %v1498
        %1500 = vst [vmem:[%s196 + $0x6] sm:$0x2] %v1499
        %s1501 = sand.u32 %s46, 1
        %s1502 = sand.u32 %s46, 1
        %s1503 = smul.addr %s1502, 8
        %s1504 = scalar_lea.vmem [#allocation3], %s1503
        // Predicated region
        $region66: #{run.22} parent=60 // pred_check
          %p1505 = pneg %p56
        $region67: #{run.22} parent=60 // pred_check_branch
          %1507 = sbr.rel (%p1505) target = $region69
        $region68: #{run.22} parent=60 // pred_region
          %s1508 = smul.addr %s12, 2
          %s1509 = scalar_lea.vmem %s1, %s1508
          // Predicated region
          $region70: #{run.22} parent=68 // pred_check
            _
          $region71: #{run.22} parent=68 // pred_check_branch
            %1511 = sbr.rel (0) target = $region73
          $region72: #{run.22} parent=68 // pred_region
            // Predicated region
            $region74: #{run.22} parent=72 // pred_check
              _
            $region75: #{run.22} parent=72 // pred_check_branch
              %1513 = sbr.rel target = $region77
            $region76: #{run.22} parent=72 // pred_region
              // Predicated region
              $region89: #{run.22} parent=76 // pred_check
                _
              $region90: #{run.22} parent=76 // pred_check_branch
                %1534 = sbr.rel (0) target = $region92
              $region91: #{run.22} parent=76 // pred_region
                loop: start=0, step=1, limit=1
                $region93: #{run.22} parent=91 // loop_pre_header
                  _
                $region94: #{run.22} parent=91 // loop_header
                  %s1536 = sphi 0, %s1540
                  %p1537 = scmp.ge.s32.totalorder %s1536, 1
                  %s1541 = sphi %s1504, %s1504
                  %s1542 = sphi %s1509, %s1509
                $region95: #{run.22} parent=91 // loop_header_branch
                  %1539 = sbr.rel (%p1537) target = $region99
                $region96: #{run.22} parent=91 // loop_body
                  _
                $region97: #{run.22} parent=91 // loop_footer
                  %s1540 = sadd.s32 1, %s1536
                $region98: #{run.22} parent=91 // loop_footer_branch
                  %1535 = sbr.rel target = $region94
                $region99: #{run.22} parent=91 // loop_exit
                  _
                loop: start=0, step=1, limit=1
                $region100: #{run.22} parent=91 // loop_pre_header
                  _
                $region101: #{run.22} parent=91 // loop_header
                  %s1545 = sphi 0, %s1549
                  %p1546 = scmp.ge.s32.totalorder %s1545, 1
                  %s1550 = sphi %s1504, %s1504
                  %s1551 = sphi %s1509, %s1509
                $region102: #{run.22} parent=91 // loop_header_branch
                  %1548 = sbr.rel (%p1546) target = $region106
                $region103: #{run.22} parent=91 // loop_body
                  %v1552 = vld [vmem:[%s1550] sm:$0x3]
                  %1553 = vst [vmem:[%s1551] sm:$0x3] %v1552
                  %v1554 = vld [vmem:[%s1550 + $0x2] sm:$0x3]
                  %1555 = vst [vmem:[%s1551 + $0x4] sm:$0x3] %v1554
                  %v1556 = vld [vmem:[%s1550 + $0x4] sm:$0x3]
                  %1557 = vst [vmem:[%s1551 + $0x8] sm:$0x3] %v1556
                  %v1558 = vld [vmem:[%s1550 + $0x6] sm:$0x3]
                  %1559 = vst [vmem:[%s1551 + $0xc] sm:$0x3] %v1558
                $region104: #{run.22} parent=91 // loop_footer
                  %s1549 = sadd.s32 1, %s1545
                $region105: #{run.22} parent=91 // loop_footer_branch
                  %1544 = sbr.rel target = $region101
                $region106: #{run.22} parent=91 // loop_exit
                  _
              $region92: #{run.22} parent=76 // pred_fallthru
                _
            $region77: #{run.22} parent=72 // pred_fallthru
              _
            // Predicated region
            $region78: #{run.22} parent=72 // pred_check
              _
            $region79: #{run.22} parent=72 // pred_check_branch
              %1515 = sbr.rel (0) target = $region81
            $region80: #{run.22} parent=72 // pred_region
              loop: start=0, step=1, limit=1
              $region82: #{run.22} parent=80 // loop_pre_header
                _
              $region83: #{run.22} parent=80 // loop_header
                %s1518 = sphi 0, %s1522
                %p1519 = scmp.ge.s32.totalorder %s1518, 1
                %s1523 = sphi %s1504, %s1504
                %s1524 = sphi %s1509, %s1509
              $region84: #{run.22} parent=80 // loop_header_branch
                %1521 = sbr.rel (%p1519) target = $region88
              $region85: #{run.22} parent=80 // loop_body
                %v1525 = vld [vmem:[%s1523] sm:$0x3]
                %1526 = vst [vmem:[%s1524] sm:$0x3] %v1525
                %v1527 = vld [vmem:[%s1523 + $0x2] sm:$0x3]
                %1528 = vst [vmem:[%s1524 + $0x4] sm:$0x3] %v1527
                %v1529 = vld [vmem:[%s1523 + $0x4] sm:$0x3]
                %1530 = vst [vmem:[%s1524 + $0x8] sm:$0x3] %v1529
                %v1531 = vld [vmem:[%s1523 + $0x6] sm:$0x3]
                %1532 = vst [vmem:[%s1524 + $0xc] sm:$0x3] %v1531
              $region86: #{run.22} parent=80 // loop_footer
                %s1522 = sadd.s32 1, %s1518
              $region87: #{run.22} parent=80 // loop_footer_branch
                %1517 = sbr.rel target = $region83
              $region88: #{run.22} parent=80 // loop_exit
                _
            $region81: #{run.22} parent=72 // pred_fallthru
              _
          $region73: #{run.22} parent=68 // pred_fallthru
            _
          %1560 = vnop
        $region69: #{run.22} parent=60 // pred_fallthru
          _
      $region61: #{run.22} parent=5 // pred_fallthru
        _
      %p1561 = scmp.le.s32.totalorder 2, %s7
      // Predicated region
      $region107: #{run.22} parent=5 // pred_check
        %p1562 = pneg %p1561
      $region108: #{run.22} parent=5 // pred_check_branch
        %1564 = sbr.rel (%p1562) target = $region110
      $region109: #{run.22} parent=5 // pred_region
        %s1565 = ssub.s32 %s7, 2
        // Predicated region
        $region111: #{run.22} parent=109 // pred_check
          %p1566 = pneg %p62
        $region112: #{run.22} parent=109 // pred_check_branch
          %1568 = sbr.rel (%p1566) target = $region114
        $region113: #{run.22} parent=109 // pred_region
          %s1569 = sand.u32 %s47, 1
          %s1570 = sand.u32 %s47, 1
          %s1571 = smul.addr %s1570, 8
          %s1572 = scalar_lea.vmem [#allocation3], %s1571
        $region114: #{run.22} parent=109 // pred_fallthru
          _
      $region110: #{run.22} parent=5 // pred_fallthru
        _
    $region6: #{run.22} parent=1 // loop_footer
      %s11 = sadd.s32 1, %s7
    $region7: #{run.22} parent=1 // loop_footer_branch
      %6 = sbr.rel target = $region3
    $region8: #{run.22} parent=1 // loop_exit
      _

// kernel: run.27
$region0: #{run.27}
  #allocation0 [shape = 'u32[]', space=smem, size = 0x4, offset = 0x4, fixed_abs, tag = 'smem constant byte address 0x4 - core index']
  #allocation1 [shape = 'u32[144,128]{1,0:T(1,128)}', space=vmem, size = 0x12000, scoped, tag = 'internal scratch']
  #allocation2 [shape = 'f32[64,32]{1,0:T(8,128)}', space=vmem, size = 0x8000, scoped, tag = 'scratch operand']
  %s0 = inlined_call_operand.vmem [shape: bf16[64,32], index: 0, kind: input, shape index: {}]
  %s1 = inlined_call_operand.vmem [shape: bf16[32,32], index: 1, kind: input, shape index: {}]
  %s2 = inlined_call_operand.vmem [shape: f32[1,32], index: 2, kind: input, shape index: {}]
  %s3 = inlined_call_operand.vmem [shape: f32[64,32], index: 3, kind: input, shape index: {}]
  %s4 = inlined_call_operand.vmem [shape: f32[64,32], index: 4, kind: output, shape index: {}]
  %s5 = sld [smem:[#allocation0]]
  $region34: #{run.27} parent=0
    _
  %s7 = ssub.s32 1, %s5
  %s8 = scalar_select 0, %s7, %s5
  // Predicated region
  $region2: #{run.27} parent=0 // pred_check
    _
  $region3: #{run.27} parent=0 // pred_check_branch
    %10 = sbr.rel (0) target = $region5
  $region4: #{run.27} parent=0 // pred_region
    _
  $region5: #{run.27} parent=0 // pred_fallthru
    _
  // Predicated region
  $region6: #{run.27} parent=0 // pred_check
    _
  $region7: #{run.27} parent=0 // pred_check_branch
    %12 = sbr.rel (0) target = $region9
  $region8: #{run.27} parent=0 // pred_region
    _
  $region9: #{run.27} parent=0 // pred_fallthru
    _
  // Predicated region
  $region10: #{run.27} parent=0 // pred_check
    _
  $region11: #{run.27} parent=0 // pred_check_branch
    %14 = sbr.rel (0) target = $region13
  $region12: #{run.27} parent=0 // pred_region
    _
  $region13: #{run.27} parent=0 // pred_fallthru
    _
  // Predicated region
  $region14: #{run.27} parent=0 // pred_check
    _
  $region15: #{run.27} parent=0 // pred_check_branch
    %16 = sbr.rel (0) target = $region17
  $region16: #{run.27} parent=0 // pred_region
    _
  $region17: #{run.27} parent=0 // pred_fallthru
    _
  %p18 = scmp.eq.s32.totalorder 0, 0
  // Predicated region
  $region18: #{run.27} parent=0 // pred_check
    %p19 = pneg %p18
  $region19: #{run.27} parent=0 // pred_check_branch
    %21 = sbr.rel (%p19) target = $region21
  $region20: #{run.27} parent=0 // pred_region
    %vm22 = vcmask 261120
    %23 = vst.msk [vmem:[#allocation2] sm:$0xff] %vm22, 0.0
    %24 = vst.msk [vmem:[#allocation2 + $0x8] sm:$0xff] %vm22, 0.0
    %25 = vst.msk [vmem:[#allocation2 + $0x10] sm:$0xff] %vm22, 0.0
    %26 = vst.msk [vmem:[#allocation2 + $0x18] sm:$0xff] %vm22, 0.0
    %27 = vst.msk [vmem:[#allocation2 + $0x20] sm:$0xff] %vm22, 0.0
    %28 = vst.msk [vmem:[#allocation2 + $0x28] sm:$0xff] %vm22, 0.0
    %29 = vst.msk [vmem:[#allocation2 + $0x30] sm:$0xff] %vm22, 0.0
    %30 = vst.msk [vmem:[#allocation2 + $0x38] sm:$0xff] %vm22, 0.0
  $region21: #{run.27} parent=0 // pred_fallthru
    _
  %v31 = vld [vmem:[%s0] sm:$0xf]
  %v32 = vld [vmem:[%s0 + $0x4] sm:$0xf]
  %v33 = vld [vmem:[%s0 + $0x8] sm:$0xf]
  %v34 = vld [vmem:[%s0 + $0xc] sm:$0xf]
  %v35 = vld [vmem:[%s0 + $0x10] sm:$0xf]
  %v36 = vld [vmem:[%s0 + $0x14] sm:$0xf]
  %v37 = vld [vmem:[%s0 + $0x18] sm:$0xf]
  %v38 = vld [vmem:[%s0 + $0x1c] sm:$0xf]
  %v39 = vld [vmem:[#allocation2] sm:$0xff]
  %v40 = vld [vmem:[#allocation2 + $0x8] sm:$0xff]
  %v41 = vld [vmem:[#allocation2 + $0x10] sm:$0xff]
  %v42 = vld [vmem:[#allocation2 + $0x18] sm:$0xff]
  %v43 = vld [vmem:[#allocation2 + $0x20] sm:$0xff]
  %v44 = vld [vmem:[#allocation2 + $0x28] sm:$0xff]
  %v45 = vld [vmem:[#allocation2 + $0x30] sm:$0xff]
  %v46 = vld [vmem:[#allocation2 + $0x38] sm:$0xff]
  %v47 = vld [vmem:[%s1] sm:$0xf]
  %v48 = vld [vmem:[%s1 + $0x4] sm:$0xf]
  %v49 = vld [vmem:[%s1 + $0x8] sm:$0xf]
  %v50 = vld [vmem:[%s1 + $0xc] sm:$0xf]
  %v59 = vunpack.c.l.b16 %v31
  %v60 = vunpack.c.l.b16 %v32
  %v61 = vunpack.c.l.b16 %v33
  %v62 = vunpack.c.l.b16 %v34
  %v63 = vunpack.c.l.b16 %v35
  %v64 = vunpack.c.l.b16 %v36
  %v65 = vunpack.c.l.b16 %v37
  %v66 = vunpack.c.l.b16 %v38
  %v67 = vpack.c.b16 %v60, %v59
  %v68 = vpack.c.b16 %v62, %v61
  %v69 = vpack.c.b16 %v64, %v63
  %v70 = vpack.c.b16 %v66, %v65
  %v75 = vunpack.c.l.b16 %v47
  %v76 = vunpack.c.l.b16 %v48
  %v77 = vunpack.c.l.b16 %v49
  %v78 = vunpack.c.l.b16 %v50
  %v79 = vpack.c.b16 %v76, %v75
  %v80 = vpack.c.b16 %v78, %v77
  %vm83 = vcmask 261120
  %v85 = vsel %vm83, %v67, 0
  %v88 = vsel %vm83, %v68, 0
  %v91 = vsel %vm83, %v69, 0
  %v94 = vsel %vm83, %v70, 0
  %96 = vmatprep.subr.bf16.mxu0 0
  %97 = vmatpush1.bf16.msra.mxu0 %v79
  %98 = vmatprep.subr.bf16.mxu0 0
  %99 = vmatpush1.bf16.msra.mxu0 %v80
  %100 = vmatprep.subr.bf16.mxu0 0
  %101 = vmatpush1.bf16.msra.mxu0 0
  %102 = vmatprep.subr.bf16.mxu0 0
  %103 = vmatpush1.bf16.msra.mxu0 0
  %104 = vmatprep.subr.bf16.mxu0 0
  %105 = vmatpush1.bf16.msra.mxu0 0
  %106 = vmatprep.subr.bf16.mxu0 0
  %107 = vmatpush1.bf16.msra.mxu0 0
  %108 = vmatprep.subr.bf16.mxu0 0
  %109 = vmatpush1.bf16.msra.mxu0 0
  %110 = vmatprep.subr.bf16.mxu0 0
  %111 = vmatpush1.bf16.msra.mxu0 0
  %112 = vmatprep.subr.bf16.mxu0 0
  %113 = vmatpush1.bf16.msra.mxu0 0
  %114 = vmatprep.subr.bf16.mxu0 0
  %115 = vmatpush1.bf16.msra.mxu0 0
  %116 = vmatprep.subr.bf16.mxu0 0
  %117 = vmatpush1.bf16.msra.mxu0 0
  %118 = vmatprep.subr.bf16.mxu0 0
  %119 = vmatpush1.bf16.msra.mxu0 0
  %120 = vmatprep.subr.bf16.mxu0 0
  %121 = vmatpush1.bf16.msra.mxu0 0
  %122 = vmatprep.subr.bf16.mxu0 0
  %123 = vmatpush1.bf16.msra.mxu0 0
  %124 = vmatprep.subr.bf16.mxu0 0
  %125 = vmatpush1.bf16.msra.mxu0 0
  %126 = vmatprep.subr.bf16.mxu0 0
  %127 = vmatpush1.bf16.msra.mxu0 0
  %128 = vmatprep.mubr.bf16.mxu0 0
  %129 = vmatmul.mubr.bf16.gmra.mrb[0].mxu0 %v85
  %v130 = vpop.f32.mrb[0].mxu0
  %v131 = vadd.f32 0.0, %v130
  %v132 = vpop.f32.mrb[0].mxu0
  %v133 = vpop.f32.mrb[0].mxu0
  %v134 = vadd.f32 0.0, %v133
  %v135 = vpop.f32.mrb[0].mxu0
  %136 = vmatprep.mubr.bf16.mxu0 0
  %137 = vmatmul.mubr.bf16.gmra.mrb[0].mxu0 %v88
  %v138 = vpop.f32.mrb[0].mxu0
  %v139 = vadd.f32 0.0, %v138
  %v140 = vpop.f32.mrb[0].mxu0
  %v141 = vpop.f32.mrb[0].mxu0
  %v142 = vadd.f32 0.0, %v141
  %v143 = vpop.f32.mrb[0].mxu0
  %144 = vmatprep.mubr.bf16.mxu0 0
  %145 = vmatmul.mubr.bf16.gmra.mrb[0].mxu0 %v91
  %v146 = vpop.f32.mrb[0].mxu0
  %v147 = vadd.f32 0.0, %v146
  %v148 = vpop.f32.mrb[0].mxu0
  %v149 = vpop.f32.mrb[0].mxu0
  %v150 = vadd.f32 0.0, %v149
  %v151 = vpop.f32.mrb[0].mxu0
  %152 = vmatprep.mubr.bf16.mxu0 0
  %153 = vmatmul.mubr.bf16.gmra.mrb[0].mxu0 %v94
  %v154 = vpop.f32.mrb[0].mxu0
  %v155 = vadd.f32 0.0, %v154
  %v156 = vpop.f32.mrb[0].mxu0
  %v157 = vpop.f32.mrb[0].mxu0
  %v158 = vadd.f32 0.0, %v157
  %v159 = vpop.f32.mrb[0].mxu0
  %160 = vdwg.mxu0
  %v161 = vadd.f32 %v39, %v131
  %v162 = vadd.f32 %v40, %v134
  %v163 = vadd.f32 %v41, %v139
  %v164 = vadd.f32 %v42, %v142
  %v165 = vadd.f32 %v43, %v147
  %v166 = vadd.f32 %v44, %v150
  %v167 = vadd.f32 %v45, %v155
  %v168 = vadd.f32 %v46, %v158
  %169 = vst.msk [vmem:[#allocation2] sm:$0xff] %vm83, %v161
  %170 = vst.msk [vmem:[#allocation2 + $0x8] sm:$0xff] %vm83, %v162
  %171 = vst.msk [vmem:[#allocation2 + $0x10] sm:$0xff] %vm83, %v163
  %172 = vst.msk [vmem:[#allocation2 + $0x18] sm:$0xff] %vm83, %v164
  %173 = vst.msk [vmem:[#allocation2 + $0x20] sm:$0xff] %vm83, %v165
  %174 = vst.msk [vmem:[#allocation2 + $0x28] sm:$0xff] %vm83, %v166
  %175 = vst.msk [vmem:[#allocation2 + $0x30] sm:$0xff] %vm83, %v167
  %176 = vst.msk [vmem:[#allocation2 + $0x38] sm:$0xff] %vm83, %v168
  // Predicated region
  $region22: #{run.27} parent=0 // pred_check
    %p177 = pneg %p18
  $region23: #{run.27} parent=0 // pred_check_branch
    %179 = sbr.rel (%p177) target = $region25
  $region24: #{run.27} parent=0 // pred_region
    %v180 = vld [vmem:[#allocation2] sm:$0xff]
    %v181 = vld [vmem:[#allocation2 + $0x8] sm:$0xff]
    %v182 = vld [vmem:[#allocation2 + $0x10] sm:$0xff]
    %v183 = vld [vmem:[#allocation2 + $0x18] sm:$0xff]
    %v184 = vld [vmem:[#allocation2 + $0x20] sm:$0xff]
    %v185 = vld [vmem:[#allocation2 + $0x28] sm:$0xff]
    %v186 = vld [vmem:[#allocation2 + $0x30] sm:$0xff]
    %v187 = vld [vmem:[#allocation2 + $0x38] sm:$0xff]
    %v188 = vld [vmem:[%s2] sm:$0x1]
    %v190 = vlaneseq
    %v191 = vshrl.u32 %v190, 7
    %v192 = vsub.s32 0, %v191
    %v193 = vrot.slane %v188, %v192
    %v195 = vadd.f32 %v180, %v193
    %v196 = vadd.f32 %v181, %v193
    %v197 = vadd.f32 %v182, %v193
    %v198 = vadd.f32 %v183, %v193
    %v199 = vadd.f32 %v184, %v193
    %v200 = vadd.f32 %v185, %v193
    %v201 = vadd.f32 %v186, %v193
    %v202 = vadd.f32 %v187, %v193
    %v203 = vld [vmem:[%s3] sm:$0xff]
    %v204 = vld [vmem:[%s3 + $0x8] sm:$0xff]
    %v205 = vld [vmem:[%s3 + $0x10] sm:$0xff]
    %v206 = vld [vmem:[%s3 + $0x18] sm:$0xff]
    %v207 = vld [vmem:[%s3 + $0x20] sm:$0xff]
    %v208 = vld [vmem:[%s3 + $0x28] sm:$0xff]
    %v209 = vld [vmem:[%s3 + $0x30] sm:$0xff]
    %v210 = vld [vmem:[%s3 + $0x38] sm:$0xff]
    %v211 = vadd.f32 %v195, %v203
    %v212 = vadd.f32 %v196, %v204
    %v213 = vadd.f32 %v197, %v205
    %v214 = vadd.f32 %v198, %v206
    %v215 = vadd.f32 %v199, %v207
    %v216 = vadd.f32 %v200, %v208
    %v217 = vadd.f32 %v201, %v209
    %v218 = vadd.f32 %v202, %v210
    %219 = vst.msk [vmem:[%s4] sm:$0xff] %vm83, %v211
    %220 = vst.msk [vmem:[%s4 + $0x8] sm:$0xff] %vm83, %v212
    %221 = vst.msk [vmem:[%s4 + $0x10] sm:$0xff] %vm83, %v213
    %222 = vst.msk [vmem:[%s4 + $0x18] sm:$0xff] %vm83, %v214
    %223 = vst.msk [vmem:[%s4 + $0x20] sm:$0xff] %vm83, %v215
    %224 = vst.msk [vmem:[%s4 + $0x28] sm:$0xff] %vm83, %v216
    %225 = vst.msk [vmem:[%s4 + $0x30] sm:$0xff] %vm83, %v217
    %226 = vst.msk [vmem:[%s4 + $0x38] sm:$0xff] %vm83, %v218
  $region25: #{run.27} parent=0 // pred_fallthru
    _
  // Predicated region
  $region26: #{run.27} parent=0 // pred_check
    _
  $region27: #{run.27} parent=0 // pred_check_branch
    %228 = sbr.rel (0) target = $region29
  $region28: #{run.27} parent=0 // pred_region
    _
  $region29: #{run.27} parent=0 // pred_fallthru
    _
  // Predicated region
  $region30: #{run.27} parent=0 // pred_check
    _
  $region31: #{run.27} parent=0 // pred_check_branch
    %230 = sbr.rel (0) target = $region33
  $region32: #{run.27} parent=0 // pred_region
    _
  $region33: #{run.27} parent=0 // pred_fallthru
    _

// kernel: run.28
$region0: #{run.28}
  #allocation0 [shape = 'u32[]', space=smem, size = 0x4, offset = 0x4, fixed_abs, tag = 'smem constant byte address 0x4 - core index']
  #allocation1 [shape = 'u32[144,128]{1,0:T(1,128)}', space=vmem, size = 0x12000, scoped, tag = 'internal scratch']
  #allocation2 [shape = 'f32[64,128]{1,0:T(8,128)}', space=vmem, size = 0x8000, scoped, tag = 'scratch operand']
  #allocation3 [shape = 'bf16[64,32]{1,0:T(16,128)(2,1)}', space=vmem, size = 0x4000, scoped, tag = 'scratch operand']
  %s0 = inlined_call_operand.vmem [shape: f32[64,32], index: 0, kind: input, shape index: {}]
  %s1 = inlined_call_operand.vmem [shape: f32[1,32], index: 1, kind: input, shape index: {}]
  %s2 = inlined_call_operand.vmem [shape: f32[1,32], index: 2, kind: input, shape index: {}]
  %s3 = inlined_call_operand.vmem [shape: bf16[32,128], index: 3, kind: input, shape index: {}]
  %s4 = inlined_call_operand.vmem [shape: f32[1,128], index: 4, kind: input, shape index: {}]
  %s5 = inlined_call_operand.vmem [shape: bf16[64,128], index: 5, kind: output, shape index: {}]
  %s6 = sld [smem:[#allocation0]]
  $region42: #{run.28} parent=0
    _
  %s8 = ssub.s32 1, %s6
  %s9 = scalar_select 0, %s8, %s6
  // Predicated region
  $region2: #{run.28} parent=0 // pred_check
    _
  $region3: #{run.28} parent=0 // pred_check_branch
    %11 = sbr.rel (0) target = $region5
  $region4: #{run.28} parent=0 // pred_region
    _
  $region5: #{run.28} parent=0 // pred_fallthru
    _
  // Predicated region
  $region6: #{run.28} parent=0 // pred_check
    _
  $region7: #{run.28} parent=0 // pred_check_branch
    %13 = sbr.rel (0) target = $region9
  $region8: #{run.28} parent=0 // pred_region
    _
  $region9: #{run.28} parent=0 // pred_fallthru
    _
  // Predicated region
  $region10: #{run.28} parent=0 // pred_check
    _
  $region11: #{run.28} parent=0 // pred_check_branch
    %15 = sbr.rel (0) target = $region13
  $region12: #{run.28} parent=0 // pred_region
    _
  $region13: #{run.28} parent=0 // pred_fallthru
    _
  // Predicated region
  $region14: #{run.28} parent=0 // pred_check
    _
  $region15: #{run.28} parent=0 // pred_check_branch
    %17 = sbr.rel (0) target = $region17
  $region16: #{run.28} parent=0 // pred_region
    _
  $region17: #{run.28} parent=0 // pred_fallthru
    _
  // Predicated region
  $region18: #{run.28} parent=0 // pred_check
    _
  $region19: #{run.28} parent=0 // pred_check_branch
    %19 = sbr.rel (0) target = $region21
  $region20: #{run.28} parent=0 // pred_region
    _
  $region21: #{run.28} parent=0 // pred_fallthru
    _
  %p21 = scmp.eq.s32.totalorder 0, 0
  // Predicated region
  $region22: #{run.28} parent=0 // pred_check
    %p22 = pneg %p21
  $region23: #{run.28} parent=0 // pred_check_branch
    %24 = sbr.rel (%p22) target = $region25
  $region24: #{run.28} parent=0 // pred_region
    %25 = vst [vmem:[#allocation2] sm:$0xff] 0.0
    %26 = vst [vmem:[#allocation2 + $0x8] sm:$0xff] 0.0
    %27 = vst [vmem:[#allocation2 + $0x10] sm:$0xff] 0.0
    %28 = vst [vmem:[#allocation2 + $0x18] sm:$0xff] 0.0
    %29 = vst [vmem:[#allocation2 + $0x20] sm:$0xff] 0.0
    %30 = vst [vmem:[#allocation2 + $0x28] sm:$0xff] 0.0
    %31 = vst [vmem:[#allocation2 + $0x30] sm:$0xff] 0.0
    %32 = vst [vmem:[#allocation2 + $0x38] sm:$0xff] 0.0
  $region25: #{run.28} parent=0 // pred_fallthru
    _
  %p33 = scmp.eq.s32.totalorder 0, 0
  // Predicated region
  $region26: #{run.28} parent=0 // pred_check
    %p34 = pneg %p33
  $region27: #{run.28} parent=0 // pred_check_branch
    %36 = sbr.rel (%p34) target = $region29
  $region28: #{run.28} parent=0 // pred_region
    %v37 = vld [vmem:[%s0] sm:$0xff]
    %v38 = vld [vmem:[%s0 + $0x8] sm:$0xff]
    %v39 = vld [vmem:[%s0 + $0x10] sm:$0xff]
    %v40 = vld [vmem:[%s0 + $0x18] sm:$0xff]
    %v41 = vld [vmem:[%s0 + $0x20] sm:$0xff]
    %v42 = vld [vmem:[%s0 + $0x28] sm:$0xff]
    %v43 = vld [vmem:[%s0 + $0x30] sm:$0xff]
    %v44 = vld [vmem:[%s0 + $0x38] sm:$0xff]
    %vm45 = vcmask 261120
    %v46 = vsel %vm45, %v37, 0.0
    %47 = vadd.xlane.f32.xlu0 %v46
    %v48 = vpop.xlane.xlu0 %47
    %v49 = vsel %vm45, %v38, 0.0
    %50 = vadd.xlane.f32.xlu0 %v49
    %v51 = vpop.xlane.xlu0 %50
    %v52 = vsel %vm45, %v39, 0.0
    %53 = vadd.xlane.f32.xlu0 %v52
    %v54 = vpop.xlane.xlu0 %53
    %v55 = vsel %vm45, %v40, 0.0
    %56 = vadd.xlane.f32.xlu0 %v55
    %v57 = vpop.xlane.xlu0 %56
    %v58 = vsel %vm45, %v41, 0.0
    %59 = vadd.xlane.f32.xlu0 %v58
    %v60 = vpop.xlane.xlu0 %59
    %v61 = vsel %vm45, %v42, 0.0
    %62 = vadd.xlane.f32.xlu0 %v61
    %v63 = vpop.xlane.xlu0 %62
    %v64 = vsel %vm45, %v43, 0.0
    %65 = vadd.xlane.f32.xlu0 %v64
    %v66 = vpop.xlane.xlu0 %65
    %v67 = vsel %vm45, %v44, 0.0
    %68 = vadd.xlane.f32.xlu0 %v67
    %v69 = vpop.xlane.xlu0 %68
    %v70 = vrcp.pop 32.0
    %v71 = vmul.f32 %v48, %v70
    %v72 = vmul.f32 %v51, %v70
    %v73 = vmul.f32 %v54, %v70
    %v74 = vmul.f32 %v57, %v70
    %v75 = vmul.f32 %v60, %v70
    %v76 = vmul.f32 %v63, %v70
    %v77 = vmul.f32 %v66, %v70
    %v78 = vmul.f32 %v69, %v70
    %v79 = vsub.f32 %v37, %v71
    %v80 = vsub.f32 %v38, %v72
    %v81 = vsub.f32 %v39, %v73
    %v82 = vsub.f32 %v40, %v74
    %v83 = vsub.f32 %v41, %v75
    %v84 = vsub.f32 %v42, %v76
    %v85 = vsub.f32 %v43, %v77
    %v86 = vsub.f32 %v44, %v78
    %v87 = vmul.f32 %v79, %v79
    %v88 = vmul.f32 %v80, %v80
    %v89 = vmul.f32 %v81, %v81
    %v90 = vmul.f32 %v82, %v82
    %v91 = vmul.f32 %v83, %v83
    %v92 = vmul.f32 %v84, %v84
    %v93 = vmul.f32 %v85, %v85
    %v94 = vmul.f32 %v86, %v86
    %v95 = vsel %vm45, %v87, 0.0
    %96 = vadd.xlane.f32.xlu0 %v95
    %v97 = vpop.xlane.xlu0 %96
    %v98 = vsel %vm45, %v88, 0.0
    %99 = vadd.xlane.f32.xlu0 %v98
    %v100 = vpop.xlane.xlu0 %99
    %v101 = vsel %vm45, %v89, 0.0
    %102 = vadd.xlane.f32.xlu0 %v101
    %v103 = vpop.xlane.xlu0 %102
    %v104 = vsel %vm45, %v90, 0.0
    %105 = vadd.xlane.f32.xlu0 %v104
    %v106 = vpop.xlane.xlu0 %105
    %v107 = vsel %vm45, %v91, 0.0
    %108 = vadd.xlane.f32.xlu0 %v107
    %v109 = vpop.xlane.xlu0 %108
    %v110 = vsel %vm45, %v92, 0.0
    %111 = vadd.xlane.f32.xlu0 %v110
    %v112 = vpop.xlane.xlu0 %111
    %v113 = vsel %vm45, %v93, 0.0
    %114 = vadd.xlane.f32.xlu0 %v113
    %v115 = vpop.xlane.xlu0 %114
    %v116 = vsel %vm45, %v94, 0.0
    %117 = vadd.xlane.f32.xlu0 %v116
    %v118 = vpop.xlane.xlu0 %117
    %v119 = vmul.f32 %v97, %v70
    %v120 = vmul.f32 %v100, %v70
    %v121 = vmul.f32 %v103, %v70
    %v122 = vmul.f32 %v106, %v70
    %v123 = vmul.f32 %v109, %v70
    %v124 = vmul.f32 %v112, %v70
    %v125 = vmul.f32 %v115, %v70
    %v126 = vmul.f32 %v118, %v70
    %v127 = vadd.f32 %v119, 1e-05
    %v128 = vadd.f32 %v120, 1e-05
    %v129 = vadd.f32 %v121, 1e-05
    %v130 = vadd.f32 %v122, 1e-05
    %v131 = vadd.f32 %v123, 1e-05
    %v132 = vadd.f32 %v124, 1e-05
    %v133 = vadd.f32 %v125, 1e-05
    %v134 = vadd.f32 %v126, 1e-05
    %v135 = vrsqrt.pop %v127
    %v136 = vrsqrt.pop %v128
    %v137 = vrsqrt.pop %v129
    %v138 = vrsqrt.pop %v130
    %v139 = vrsqrt.pop %v131
    %v140 = vrsqrt.pop %v132
    %v141 = vrsqrt.pop %v133
    %v142 = vrsqrt.pop %v134
    %v143 = vmul.f32 %v79, %v135
    %v144 = vmul.f32 %v80, %v136
    %v145 = vmul.f32 %v81, %v137
    %v146 = vmul.f32 %v82, %v138
    %v147 = vmul.f32 %v83, %v139
    %v148 = vmul.f32 %v84, %v140
    %v149 = vmul.f32 %v85, %v141
    %v150 = vmul.f32 %v86, %v142
    %v151 = vld [vmem:[%s1] sm:$0x1]
    %v153 = vlaneseq
    %v154 = vshrl.u32 %v153, 7
    %v155 = vsub.s32 0, %v154
    %v156 = vrot.slane %v151, %v155
    %v158 = vmul.f32 %v143, %v156
    %v159 = vmul.f32 %v144, %v156
    %v160 = vmul.f32 %v145, %v156
    %v161 = vmul.f32 %v146, %v156
    %v162 = vmul.f32 %v147, %v156
    %v163 = vmul.f32 %v148, %v156
    %v164 = vmul.f32 %v149, %v156
    %v165 = vmul.f32 %v150, %v156
    %v166 = vld [vmem:[%s2] sm:$0x1]
    %v168 = vlaneseq
    %v169 = vshrl.u32 %v168, 7
    %v170 = vsub.s32 0, %v169
    %v171 = vrot.slane %v166, %v170
    %v173 = vadd.f32 %v158, %v171
    %v174 = vadd.f32 %v159, %v171
    %v175 = vadd.f32 %v160, %v171
    %v176 = vadd.f32 %v161, %v171
    %v177 = vadd.f32 %v162, %v171
    %v178 = vadd.f32 %v163, %v171
    %v179 = vadd.f32 %v164, %v171
    %v180 = vadd.f32 %v165, %v171
    %v181 = vpack.c.bf16 %v174, %v173
    %v182 = vpack.c.bf16 %v176, %v175
    %v183 = vpack.c.bf16 %v178, %v177
    %v184 = vpack.c.bf16 %v180, %v179
    %185 = vst.msk [vmem:[#allocation3] sm:$0xff] %vm45, %v181
    %186 = vst.msk [vmem:[#allocation3 + $0x8] sm:$0xff] %vm45, %v182
    %187 = vst.msk [vmem:[#allocation3 + $0x10] sm:$0xff] %vm45, %v183
    %188 = vst.msk [vmem:[#allocation3 + $0x18] sm:$0xff] %vm45, %v184
  $region29: #{run.28} parent=0 // pred_fallthru
    _
  %v189 = vld [vmem:[#allocation3] sm:$0xff]
  %v190 = vld [vmem:[#allocation3 + $0x8] sm:$0xff]
  %v191 = vld [vmem:[#allocation3 + $0x10] sm:$0xff]
  %v192 = vld [vmem:[#allocation3 + $0x18] sm:$0xff]
  %v193 = vld [vmem:[#allocation2] sm:$0xff]
  %v194 = vld [vmem:[#allocation2 + $0x8] sm:$0xff]
  %v195 = vld [vmem:[#allocation2 + $0x10] sm:$0xff]
  %v196 = vld [vmem:[#allocation2 + $0x18] sm:$0xff]
  %v197 = vld [vmem:[#allocation2 + $0x20] sm:$0xff]
  %v198 = vld [vmem:[#allocation2 + $0x28] sm:$0xff]
  %v199 = vld [vmem:[#allocation2 + $0x30] sm:$0xff]
  %v200 = vld [vmem:[#allocation2 + $0x38] sm:$0xff]
  %v201 = vld [vmem:[%s3] sm:$0xf]
  %v202 = vld [vmem:[%s3 + $0x4] sm:$0xf]
  %v203 = vld [vmem:[%s3 + $0x8] sm:$0xf]
  %v204 = vld [vmem:[%s3 + $0xc] sm:$0xf]
  %v209 = vunpack.c.l.b16 %v201
  %v210 = vunpack.c.l.b16 %v202
  %v211 = vunpack.c.l.b16 %v203
  %v212 = vunpack.c.l.b16 %v204
  %v213 = vpack.c.b16 %v210, %v209
  %v214 = vpack.c.b16 %v212, %v211
  %vm217 = vcmask 261120
  %v219 = vsel %vm217, %v189, 0
  %v222 = vsel %vm217, %v190, 0
  %v225 = vsel %vm217, %v191, 0
  %v228 = vsel %vm217, %v192, 0
  %230 = vmatprep.subr.bf16.mxu0 0
  %231 = vmatpush1.bf16.msra.mxu0 %v213
  %232 = vmatprep.subr.bf16.mxu0 0
  %233 = vmatpush1.bf16.msra.mxu0 %v214
  %234 = vmatprep.subr.bf16.mxu0 0
  %235 = vmatpush1.bf16.msra.mxu0 0
  %236 = vmatprep.subr.bf16.mxu0 0
  %237 = vmatpush1.bf16.msra.mxu0 0
  %238 = vmatprep.subr.bf16.mxu0 0
  %239 = vmatpush1.bf16.msra.mxu0 0
  %240 = vmatprep.subr.bf16.mxu0 0
  %241 = vmatpush1.bf16.msra.mxu0 0
  %242 = vmatprep.subr.bf16.mxu0 0
  %243 = vmatpush1.bf16.msra.mxu0 0
  %244 = vmatprep.subr.bf16.mxu0 0
  %245 = vmatpush1.bf16.msra.mxu0 0
  %246 = vmatprep.subr.bf16.mxu0 0
  %247 = vmatpush1.bf16.msra.mxu0 0
  %248 = vmatprep.subr.bf16.mxu0 0
  %249 = vmatpush1.bf16.msra.mxu0 0
  %250 = vmatprep.subr.bf16.mxu0 0
  %251 = vmatpush1.bf16.msra.mxu0 0
  %252 = vmatprep.subr.bf16.mxu0 0
  %253 = vmatpush1.bf16.msra.mxu0 0
  %254 = vmatprep.subr.bf16.mxu0 0
  %255 = vmatpush1.bf16.msra.mxu0 0
  %256 = vmatprep.subr.bf16.mxu0 0
  %257 = vmatpush1.bf16.msra.mxu0 0
  %258 = vmatprep.subr.bf16.mxu0 0
  %259 = vmatpush1.bf16.msra.mxu0 0
  %260 = vmatprep.subr.bf16.mxu0 0
  %261 = vmatpush1.bf16.msra.mxu0 0
  %262 = vmatprep.mubr.bf16.mxu0 0
  %263 = vmatmul.mubr.bf16.gmra.mrb[0].mxu0 %v219
  %v264 = vpop.f32.mrb[0].mxu0
  %v265 = vadd.f32 0.0, %v264
  %v266 = vpop.f32.mrb[0].mxu0
  %v267 = vpop.f32.mrb[0].mxu0
  %v268 = vadd.f32 0.0, %v267
  %v269 = vpop.f32.mrb[0].mxu0
  %270 = vmatprep.mubr.bf16.mxu0 0
  %271 = vmatmul.mubr.bf16.gmra.mrb[0].mxu0 %v222
  %v272 = vpop.f32.mrb[0].mxu0
  %v273 = vadd.f32 0.0, %v272
  %v274 = vpop.f32.mrb[0].mxu0
  %v275 = vpop.f32.mrb[0].mxu0
  %v276 = vadd.f32 0.0, %v275
  %v277 = vpop.f32.mrb[0].mxu0
  %278 = vmatprep.mubr.bf16.mxu0 0
  %279 = vmatmul.mubr.bf16.gmra.mrb[0].mxu0 %v225
  %v280 = vpop.f32.mrb[0].mxu0
  %v281 = vadd.f32 0.0, %v280
  %v282 = vpop.f32.mrb[0].mxu0
  %v283 = vpop.f32.mrb[0].mxu0
  %v284 = vadd.f32 0.0, %v283
  %v285 = vpop.f32.mrb[0].mxu0
  %286 = vmatprep.mubr.bf16.mxu0 0
  %287 = vmatmul.mubr.bf16.gmra.mrb[0].mxu0 %v228
  %v288 = vpop.f32.mrb[0].mxu0
  %v289 = vadd.f32 0.0, %v288
  %v290 = vpop.f32.mrb[0].mxu0
  %v291 = vpop.f32.mrb[0].mxu0
  %v292 = vadd.f32 0.0, %v291
  %v293 = vpop.f32.mrb[0].mxu0
  %294 = vdwg.mxu0
  %v295 = vadd.f32 %v193, %v265
  %v296 = vadd.f32 %v194, %v268
  %v297 = vadd.f32 %v195, %v273
  %v298 = vadd.f32 %v196, %v276
  %v299 = vadd.f32 %v197, %v281
  %v300 = vadd.f32 %v198, %v284
  %v301 = vadd.f32 %v199, %v289
  %v302 = vadd.f32 %v200, %v292
  %303 = vst [vmem:[#allocation2] sm:$0xff] %v295
  %304 = vst [vmem:[#allocation2 + $0x8] sm:$0xff] %v296
  %305 = vst [vmem:[#allocation2 + $0x10] sm:$0xff] %v297
  %306 = vst [vmem:[#allocation2 + $0x18] sm:$0xff] %v298
  %307 = vst [vmem:[#allocation2 + $0x20] sm:$0xff] %v299
  %308 = vst [vmem:[#allocation2 + $0x28] sm:$0xff] %v300
  %309 = vst [vmem:[#allocation2 + $0x30] sm:$0xff] %v301
  %310 = vst [vmem:[#allocation2 + $0x38] sm:$0xff] %v302
  // Predicated region
  $region30: #{run.28} parent=0 // pred_check
    %p311 = pneg %p21
  $region31: #{run.28} parent=0 // pred_check_branch
    %313 = sbr.rel (%p311) target = $region33
  $region32: #{run.28} parent=0 // pred_region
    %v314 = vld [vmem:[#allocation2] sm:$0xff]
    %v315 = vld [vmem:[#allocation2 + $0x8] sm:$0xff]
    %v316 = vld [vmem:[#allocation2 + $0x10] sm:$0xff]
    %v317 = vld [vmem:[#allocation2 + $0x18] sm:$0xff]
    %v318 = vld [vmem:[#allocation2 + $0x20] sm:$0xff]
    %v319 = vld [vmem:[#allocation2 + $0x28] sm:$0xff]
    %v320 = vld [vmem:[#allocation2 + $0x30] sm:$0xff]
    %v321 = vld [vmem:[#allocation2 + $0x38] sm:$0xff]
    %v322 = vld [vmem:[%s4] sm:$0x1]
    %v324 = vlaneseq
    %v325 = vshrl.u32 %v324, 7
    %v326 = vsub.s32 0, %v325
    %v327 = vrot.slane %v322, %v326
    %v329 = vadd.f32 %v314, %v327
    %v330 = vadd.f32 %v315, %v327
    %v331 = vadd.f32 %v316, %v327
    %v332 = vadd.f32 %v317, %v327
    %v333 = vadd.f32 %v318, %v327
    %v334 = vadd.f32 %v319, %v327
    %v335 = vadd.f32 %v320, %v327
    %v336 = vadd.f32 %v321, %v327
    %v337 = vmul.f32 %v329, 1.702
    %v338 = vmul.f32 %v330, 1.702
    %v339 = vmul.f32 %v331, 1.702
    %v340 = vmul.f32 %v332, 1.702
    %v341 = vmul.f32 %v333, 1.702
    %v342 = vmul.f32 %v334, 1.702
    %v343 = vmul.f32 %v335, 1.702
    %v344 = vmul.f32 %v336, 1.702
    %v345 = vxor.u32 %v337, 2147483648
    %v346 = vxor.u32 %v338, 2147483648
    %v347 = vxor.u32 %v339, 2147483648
    %v348 = vxor.u32 %v340, 2147483648
    %v349 = vxor.u32 %v341, 2147483648
    %v350 = vxor.u32 %v342, 2147483648
    %v351 = vxor.u32 %v343, 2147483648
    %v352 = vxor.u32 %v344, 2147483648
    %v353 = vmul.f32 %v345, 1.442695
    %v354 = vpow.pop %v353
    %v355 = vmul.f32 %v346, 1.442695
    %v356 = vpow.pop %v355
    %v357 = vmul.f32 %v347, 1.442695
    %v358 = vpow.pop %v357
    %v359 = vmul.f32 %v348, 1.442695
    %v360 = vpow.pop %v359
    %v361 = vmul.f32 %v349, 1.442695
    %v362 = vpow.pop %v361
    %v363 = vmul.f32 %v350, 1.442695
    %v364 = vpow.pop %v363
    %v365 = vmul.f32 %v351, 1.442695
    %v366 = vpow.pop %v365
    %v367 = vmul.f32 %v352, 1.442695
    %v368 = vpow.pop %v367
    %v369 = vadd.f32 %v354, 1.0
    %v370 = vadd.f32 %v356, 1.0
    %v371 = vadd.f32 %v358, 1.0
    %v372 = vadd.f32 %v360, 1.0
    %v373 = vadd.f32 %v362, 1.0
    %v374 = vadd.f32 %v364, 1.0
    %v375 = vadd.f32 %v366, 1.0
    %v376 = vadd.f32 %v368, 1.0
    %v377 = vrcp.pop %v369
    %v378 = vmul.f32 1.0, %v377
    %v379 = vrcp.pop %v370
    %v380 = vmul.f32 1.0, %v379
    %v381 = vrcp.pop %v371
    %v382 = vmul.f32 1.0, %v381
    %v383 = vrcp.pop %v372
    %v384 = vmul.f32 1.0, %v383
    %v385 = vrcp.pop %v373
    %v386 = vmul.f32 1.0, %v385
    %v387 = vrcp.pop %v374
    %v388 = vmul.f32 1.0, %v387
    %v389 = vrcp.pop %v375
    %v390 = vmul.f32 1.0, %v389
    %v391 = vrcp.pop %v376
    %v392 = vmul.f32 1.0, %v391
    %v393 = vmul.f32 %v329, %v378
    %v394 = vmul.f32 %v330, %v380
    %v395 = vmul.f32 %v331, %v382
    %v396 = vmul.f32 %v332, %v384
    %v397 = vmul.f32 %v333, %v386
    %v398 = vmul.f32 %v334, %v388
    %v399 = vmul.f32 %v335, %v390
    %v400 = vmul.f32 %v336, %v392
    %v401 = vpack.c.bf16 %v394, %v393
    %v402 = vpack.c.bf16 %v396, %v395
    %v403 = vpack.c.bf16 %v398, %v397
    %v404 = vpack.c.bf16 %v400, %v399
    %v409 = vunpack.c.l.b16 %v401
    %v410 = vunpack.c.h.b16 %v401
    %v411 = vunpack.c.l.b16 %v402
    %v412 = vunpack.c.h.b16 %v402
    %v413 = vunpack.c.l.b16 %v403
    %v414 = vunpack.c.h.b16 %v403
    %v415 = vunpack.c.l.b16 %v404
    %v416 = vunpack.c.h.b16 %v404
    %v417 = vpack.c.b16 %v409, %v409
    %v418 = vpack.c.b16 %v410, %v410
    %v419 = vpack.c.b16 %v411, %v411
    %v420 = vpack.c.b16 %v412, %v412
    %v421 = vpack.c.b16 %v413, %v413
    %v422 = vpack.c.b16 %v414, %v414
    %v423 = vpack.c.b16 %v415, %v415
    %v424 = vpack.c.b16 %v416, %v416
    %433 = vst [vmem:[%s5] sm:$0xf] %v417
    %434 = vst [vmem:[%s5 + $0x4] sm:$0xf] %v418
    %435 = vst [vmem:[%s5 + $0x8] sm:$0xf] %v419
    %436 = vst [vmem:[%s5 + $0xc] sm:$0xf] %v420
    %437 = vst [vmem:[%s5 + $0x10] sm:$0xf] %v421
    %438 = vst [vmem:[%s5 + $0x14] sm:$0xf] %v422
    %439 = vst [vmem:[%s5 + $0x18] sm:$0xf] %v423
    %440 = vst [vmem:[%s5 + $0x1c] sm:$0xf] %v424
  $region33: #{run.28} parent=0 // pred_fallthru
    _
  // Predicated region
  $region34: #{run.28} parent=0 // pred_check
    _
  $region35: #{run.28} parent=0 // pred_check_branch
    %442 = sbr.rel (0) target = $region37
  $region36: #{run.28} parent=0 // pred_region
    _
  $region37: #{run.28} parent=0 // pred_fallthru
    _
  // Predicated region
  $region38: #{run.28} parent=0 // pred_check
    _
  $region39: #{run.28} parent=0 // pred_check_branch
    %444 = sbr.rel (0) target = $region41
  $region40: #{run.28} parent=0 // pred_region
    _
  $region41: #{run.28} parent=0 // pred_fallthru
    _

// kernel: run.29
$region0: #{run.29}
  #allocation0 [shape = 'u32[]', space=smem, size = 0x4, offset = 0x4, fixed_abs, tag = 'smem constant byte address 0x4 - core index']
  #allocation1 [shape = 'u32[144,128]{1,0:T(1,128)}', space=vmem, size = 0x12000, scoped, tag = 'internal scratch']
  #allocation2 [shape = 'f32[64,32]{1,0:T(8,128)}', space=vmem, size = 0x8000, scoped, tag = 'scratch operand']
  %s0 = inlined_call_operand.vmem [shape: bf16[64,128], index: 0, kind: input, shape index: {}]
  %s1 = inlined_call_operand.vmem [shape: bf16[128,32], index: 1, kind: input, shape index: {}]
  %s2 = inlined_call_operand.vmem [shape: f32[1,32], index: 2, kind: input, shape index: {}]
  %s3 = inlined_call_operand.vmem [shape: f32[64,32], index: 3, kind: input, shape index: {}]
  %s4 = inlined_call_operand.vmem [shape: f32[64,32], index: 4, kind: output, shape index: {}]
  %s5 = sld [smem:[#allocation0]]
  $region34: #{run.29} parent=0
    _
  %s7 = ssub.s32 1, %s5
  %s8 = scalar_select 0, %s7, %s5
  // Predicated region
  $region2: #{run.29} parent=0 // pred_check
    _
  $region3: #{run.29} parent=0 // pred_check_branch
    %10 = sbr.rel (0) target = $region5
  $region4: #{run.29} parent=0 // pred_region
    _
  $region5: #{run.29} parent=0 // pred_fallthru
    _
  // Predicated region
  $region6: #{run.29} parent=0 // pred_check
    _
  $region7: #{run.29} parent=0 // pred_check_branch
    %12 = sbr.rel (0) target = $region9
  $region8: #{run.29} parent=0 // pred_region
    _
  $region9: #{run.29} parent=0 // pred_fallthru
    _
  // Predicated region
  $region10: #{run.29} parent=0 // pred_check
    _
  $region11: #{run.29} parent=0 // pred_check_branch
    %14 = sbr.rel (0) target = $region13
  $region12: #{run.29} parent=0 // pred_region
    _
  $region13: #{run.29} parent=0 // pred_fallthru
    _
  // Predicated region
  $region14: #{run.29} parent=0 // pred_check
    _
  $region15: #{run.29} parent=0 // pred_check_branch
    %16 = sbr.rel (0) target = $region17
  $region16: #{run.29} parent=0 // pred_region
    _
  $region17: #{run.29} parent=0 // pred_fallthru
    _
  %p18 = scmp.eq.s32.totalorder 0, 0
  // Predicated region
  $region18: #{run.29} parent=0 // pred_check
    %p19 = pneg %p18
  $region19: #{run.29} parent=0 // pred_check_branch
    %21 = sbr.rel (%p19) target = $region21
  $region20: #{run.29} parent=0 // pred_region
    %vm22 = vcmask 261120
    %23 = vst.msk [vmem:[#allocation2] sm:$0xff] %vm22, 0.0
    %24 = vst.msk [vmem:[#allocation2 + $0x8] sm:$0xff] %vm22, 0.0
    %25 = vst.msk [vmem:[#allocation2 + $0x10] sm:$0xff] %vm22, 0.0
    %26 = vst.msk [vmem:[#allocation2 + $0x18] sm:$0xff] %vm22, 0.0
    %27 = vst.msk [vmem:[#allocation2 + $0x20] sm:$0xff] %vm22, 0.0
    %28 = vst.msk [vmem:[#allocation2 + $0x28] sm:$0xff] %vm22, 0.0
    %29 = vst.msk [vmem:[#allocation2 + $0x30] sm:$0xff] %vm22, 0.0
    %30 = vst.msk [vmem:[#allocation2 + $0x38] sm:$0xff] %vm22, 0.0
  $region21: #{run.29} parent=0 // pred_fallthru
    _
  %v31 = vld [vmem:[%s0] sm:$0xf]
  %v32 = vld [vmem:[%s0 + $0x4] sm:$0xf]
  %v33 = vld [vmem:[%s0 + $0x8] sm:$0xf]
  %v34 = vld [vmem:[%s0 + $0xc] sm:$0xf]
  %v35 = vld [vmem:[%s0 + $0x10] sm:$0xf]
  %v36 = vld [vmem:[%s0 + $0x14] sm:$0xf]
  %v37 = vld [vmem:[%s0 + $0x18] sm:$0xf]
  %v38 = vld [vmem:[%s0 + $0x1c] sm:$0xf]
  %v39 = vld [vmem:[#allocation2] sm:$0xff]
  %v40 = vld [vmem:[#allocation2 + $0x8] sm:$0xff]
  %v41 = vld [vmem:[#allocation2 + $0x10] sm:$0xff]
  %v42 = vld [vmem:[#allocation2 + $0x18] sm:$0xff]
  %v43 = vld [vmem:[#allocation2 + $0x20] sm:$0xff]
  %v44 = vld [vmem:[#allocation2 + $0x28] sm:$0xff]
  %v45 = vld [vmem:[#allocation2 + $0x30] sm:$0xff]
  %v46 = vld [vmem:[#allocation2 + $0x38] sm:$0xff]
  %v47 = vld [vmem:[%s1] sm:$0xf]
  %v48 = vld [vmem:[%s1 + $0x4] sm:$0xf]
  %v49 = vld [vmem:[%s1 + $0x8] sm:$0xf]
  %v50 = vld [vmem:[%s1 + $0xc] sm:$0xf]
  %v51 = vld [vmem:[%s1 + $0x10] sm:$0xf]
  %v52 = vld [vmem:[%s1 + $0x14] sm:$0xf]
  %v53 = vld [vmem:[%s1 + $0x18] sm:$0xf]
  %v54 = vld [vmem:[%s1 + $0x1c] sm:$0xf]
  %v55 = vld [vmem:[%s1 + $0x20] sm:$0xf]
  %v56 = vld [vmem:[%s1 + $0x24] sm:$0xf]
  %v57 = vld [vmem:[%s1 + $0x28] sm:$0xf]
  %v58 = vld [vmem:[%s1 + $0x2c] sm:$0xf]
  %v59 = vld [vmem:[%s1 + $0x30] sm:$0xf]
  %v60 = vld [vmem:[%s1 + $0x34] sm:$0xf]
  %v61 = vld [vmem:[%s1 + $0x38] sm:$0xf]
  %v62 = vld [vmem:[%s1 + $0x3c] sm:$0xf]
  %v71 = vunpack.c.l.b16 %v31
  %v72 = vunpack.c.l.b16 %v32
  %v73 = vunpack.c.l.b16 %v33
  %v74 = vunpack.c.l.b16 %v34
  %v75 = vunpack.c.l.b16 %v35
  %v76 = vunpack.c.l.b16 %v36
  %v77 = vunpack.c.l.b16 %v37
  %v78 = vunpack.c.l.b16 %v38
  %v79 = vpack.c.b16 %v72, %v71
  %v80 = vpack.c.b16 %v74, %v73
  %v81 = vpack.c.b16 %v76, %v75
  %v82 = vpack.c.b16 %v78, %v77
  %v103 = vunpack.c.l.b16 %v47
  %v104 = vunpack.c.l.b16 %v48
  %v105 = vunpack.c.l.b16 %v49
  %v106 = vunpack.c.l.b16 %v50
  %v107 = vunpack.c.l.b16 %v51
  %v108 = vunpack.c.l.b16 %v52
  %v109 = vunpack.c.l.b16 %v53
  %v110 = vunpack.c.l.b16 %v54
  %v111 = vunpack.c.l.b16 %v55
  %v112 = vunpack.c.l.b16 %v56
  %v113 = vunpack.c.l.b16 %v57
  %v114 = vunpack.c.l.b16 %v58
  %v115 = vunpack.c.l.b16 %v59
  %v116 = vunpack.c.l.b16 %v60
  %v117 = vunpack.c.l.b16 %v61
  %v118 = vunpack.c.l.b16 %v62
  %v119 = vpack.c.b16 %v104, %v103
  %v120 = vpack.c.b16 %v106, %v105
  %v121 = vpack.c.b16 %v108, %v107
  %v122 = vpack.c.b16 %v110, %v109
  %v123 = vpack.c.b16 %v112, %v111
  %v124 = vpack.c.b16 %v114, %v113
  %v125 = vpack.c.b16 %v116, %v115
  %v126 = vpack.c.b16 %v118, %v117
  %135 = vmatprep.subr.bf16.mxu0 0
  %136 = vmatpush1.bf16.msra.mxu0 %v119
  %137 = vmatprep.subr.bf16.mxu0 0
  %138 = vmatpush1.bf16.msra.mxu0 %v120
  %139 = vmatprep.subr.bf16.mxu0 0
  %140 = vmatpush1.bf16.msra.mxu0 %v121
  %141 = vmatprep.subr.bf16.mxu0 0
  %142 = vmatpush1.bf16.msra.mxu0 %v122
  %143 = vmatprep.subr.bf16.mxu0 0
  %144 = vmatpush1.bf16.msra.mxu0 %v123
  %145 = vmatprep.subr.bf16.mxu0 0
  %146 = vmatpush1.bf16.msra.mxu0 %v124
  %147 = vmatprep.subr.bf16.mxu0 0
  %148 = vmatpush1.bf16.msra.mxu0 %v125
  %149 = vmatprep.subr.bf16.mxu0 0
  %150 = vmatpush1.bf16.msra.mxu0 %v126
  %151 = vmatprep.subr.bf16.mxu0 0
  %152 = vmatpush1.bf16.msra.mxu0 0
  %153 = vmatprep.subr.bf16.mxu0 0
  %154 = vmatpush1.bf16.msra.mxu0 0
  %155 = vmatprep.subr.bf16.mxu0 0
  %156 = vmatpush1.bf16.msra.mxu0 0
  %157 = vmatprep.subr.bf16.mxu0 0
  %158 = vmatpush1.bf16.msra.mxu0 0
  %159 = vmatprep.subr.bf16.mxu0 0
  %160 = vmatpush1.bf16.msra.mxu0 0
  %161 = vmatprep.subr.bf16.mxu0 0
  %162 = vmatpush1.bf16.msra.mxu0 0
  %163 = vmatprep.subr.bf16.mxu0 0
  %164 = vmatpush1.bf16.msra.mxu0 0
  %165 = vmatprep.subr.bf16.mxu0 0
  %166 = vmatpush1.bf16.msra.mxu0 0
  %167 = vmatprep.mubr.bf16.mxu0 0
  %168 = vmatmul.mubr.bf16.gmra.mrb[0].mxu0 %v79
  %v169 = vpop.f32.mrb[0].mxu0
  %v170 = vadd.f32 0.0, %v169
  %v171 = vpop.f32.mrb[0].mxu0
  %v172 = vpop.f32.mrb[0].mxu0
  %v173 = vadd.f32 0.0, %v172
  %v174 = vpop.f32.mrb[0].mxu0
  %175 = vmatprep.mubr.bf16.mxu0 0
  %176 = vmatmul.mubr.bf16.gmra.mrb[0].mxu0 %v80
  %v177 = vpop.f32.mrb[0].mxu0
  %v178 = vadd.f32 0.0, %v177
  %v179 = vpop.f32.mrb[0].mxu0
  %v180 = vpop.f32.mrb[0].mxu0
  %v181 = vadd.f32 0.0, %v180
  %v182 = vpop.f32.mrb[0].mxu0
  %183 = vmatprep.mubr.bf16.mxu0 0
  %184 = vmatmul.mubr.bf16.gmra.mrb[0].mxu0 %v81
  %v185 = vpop.f32.mrb[0].mxu0
  %v186 = vadd.f32 0.0, %v185
  %v187 = vpop.f32.mrb[0].mxu0
  %v188 = vpop.f32.mrb[0].mxu0
  %v189 = vadd.f32 0.0, %v188
  %v190 = vpop.f32.mrb[0].mxu0
  %191 = vmatprep.mubr.bf16.mxu0 0
  %192 = vmatmul.mubr.bf16.gmra.mrb[0].mxu0 %v82
  %v193 = vpop.f32.mrb[0].mxu0
  %v194 = vadd.f32 0.0, %v193
  %v195 = vpop.f32.mrb[0].mxu0
  %v196 = vpop.f32.mrb[0].mxu0
  %v197 = vadd.f32 0.0, %v196
  %v198 = vpop.f32.mrb[0].mxu0
  %199 = vdwg.mxu0
  %v200 = vadd.f32 %v39, %v170
  %v201 = vadd.f32 %v40, %v173
  %v202 = vadd.f32 %v41, %v178
  %v203 = vadd.f32 %v42, %v181
  %v204 = vadd.f32 %v43, %v186
  %v205 = vadd.f32 %v44, %v189
  %v206 = vadd.f32 %v45, %v194
  %v207 = vadd.f32 %v46, %v197
  %vm208 = vcmask 261120
  %209 = vst.msk [vmem:[#allocation2] sm:$0xff] %vm208, %v200
  %210 = vst.msk [vmem:[#allocation2 + $0x8] sm:$0xff] %vm208, %v201
  %211 = vst.msk [vmem:[#allocation2 + $0x10] sm:$0xff] %vm208, %v202
  %212 = vst.msk [vmem:[#allocation2 + $0x18] sm:$0xff] %vm208, %v203
  %213 = vst.msk [vmem:[#allocation2 + $0x20] sm:$0xff] %vm208, %v204
  %214 = vst.msk [vmem:[#allocation2 + $0x28] sm:$0xff] %vm208, %v205
  %215 = vst.msk [vmem:[#allocation2 + $0x30] sm:$0xff] %vm208, %v206
  %216 = vst.msk [vmem:[#allocation2 + $0x38] sm:$0xff] %vm208, %v207
  // Predicated region
  $region22: #{run.29} parent=0 // pred_check
    %p217 = pneg %p18
  $region23: #{run.29} parent=0 // pred_check_branch
    %219 = sbr.rel (%p217) target = $region25
  $region24: #{run.29} parent=0 // pred_region
    %v220 = vld [vmem:[#allocation2] sm:$0xff]
    %v221 = vld [vmem:[#allocation2 + $0x8] sm:$0xff]
    %v222 = vld [vmem:[#allocation2 + $0x10] sm:$0xff]
    %v223 = vld [vmem:[#allocation2 + $0x18] sm:$0xff]
    %v224 = vld [vmem:[#allocation2 + $0x20] sm:$0xff]
    %v225 = vld [vmem:[#allocation2 + $0x28] sm:$0xff]
    %v226 = vld [vmem:[#allocation2 + $0x30] sm:$0xff]
    %v227 = vld [vmem:[#allocation2 + $0x38] sm:$0xff]
    %v228 = vld [vmem:[%s2] sm:$0x1]
    %v230 = vlaneseq
    %v231 = vshrl.u32 %v230, 7
    %v232 = vsub.s32 0, %v231
    %v233 = vrot.slane %v228, %v232
    %v235 = vadd.f32 %v220, %v233
    %v236 = vadd.f32 %v221, %v233
    %v237 = vadd.f32 %v222, %v233
    %v238 = vadd.f32 %v223, %v233
    %v239 = vadd.f32 %v224, %v233
    %v240 = vadd.f32 %v225, %v233
    %v241 = vadd.f32 %v226, %v233
    %v242 = vadd.f32 %v227, %v233
    %v243 = vld [vmem:[%s3] sm:$0xff]
    %v244 = vld [vmem:[%s3 + $0x8] sm:$0xff]
    %v245 = vld [vmem:[%s3 + $0x10] sm:$0xff]
    %v246 = vld [vmem:[%s3 + $0x18] sm:$0xff]
    %v247 = vld [vmem:[%s3 + $0x20] sm:$0xff]
    %v248 = vld [vmem:[%s3 + $0x28] sm:$0xff]
    %v249 = vld [vmem:[%s3 + $0x30] sm:$0xff]
    %v250 = vld [vmem:[%s3 + $0x38] sm:$0xff]
    %v251 = vadd.f32 %v235, %v243
    %v252 = vadd.f32 %v236, %v244
    %v253 = vadd.f32 %v237, %v245
    %v254 = vadd.f32 %v238, %v246
    %v255 = vadd.f32 %v239, %v247
    %v256 = vadd.f32 %v240, %v248
    %v257 = vadd.f32 %v241, %v249
    %v258 = vadd.f32 %v242, %v250
    %259 = vst.msk [vmem:[%s4] sm:$0xff] %vm208, %v251
    %260 = vst.msk [vmem:[%s4 + $0x8] sm:$0xff] %vm208, %v252
    %261 = vst.msk [vmem:[%s4 + $0x10] sm:$0xff] %vm208, %v253
    %262 = vst.msk [vmem:[%s4 + $0x18] sm:$0xff] %vm208, %v254
    %263 = vst.msk [vmem:[%s4 + $0x20] sm:$0xff] %vm208, %v255
    %264 = vst.msk [vmem:[%s4 + $0x28] sm:$0xff] %vm208, %v256
    %265 = vst.msk [vmem:[%s4 + $0x30] sm:$0xff] %vm208, %v257
    %266 = vst.msk [vmem:[%s4 + $0x38] sm:$0xff] %vm208, %v258
  $region25: #{run.29} parent=0 // pred_fallthru
    _
  // Predicated region
  $region26: #{run.29} parent=0 // pred_check
    _
  $region27: #{run.29} parent=0 // pred_check_branch
    %268 = sbr.rel (0) target = $region29
  $region28: #{run.29} parent=0 // pred_region
    _
  $region29: #{run.29} parent=0 // pred_fallthru
    _
  // Predicated region
  $region30: #{run.29} parent=0 // pred_check
    _
  $region31: #{run.29} parent=0 // pred_check_branch
    %270 = sbr.rel (0) target = $region33
  $region32: #{run.29} parent=0 // pred_region
    _
  $region33: #{run.29} parent=0 // pred_fallthru
    _

// kernel: run.39
$region0: #{run.39}
  #allocation0 [shape = 'u32[]', space=smem, size = 0x4, offset = 0x4, fixed_abs, tag = 'smem constant byte address 0x4 - core index']
  #allocation1 [shape = 'u32[144,128]{1,0:T(1,128)}', space=vmem, size = 0x12000, scoped, tag = 'internal scratch']
  #allocation2 [shape = 'f32[64,32]{1,0:T(8,128)}', space=vmem, size = 0x8000, scoped, tag = 'scratch operand']
  %s0 = inlined_call_operand.vmem [shape: bf16[64,128], index: 0, kind: input, shape index: {}]
  %s1 = inlined_call_operand.vmem [shape: bf16[128,32], index: 1, kind: input, shape index: {}]
  %s2 = inlined_call_operand.vmem [shape: f32[1,32], index: 2, kind: input, shape index: {}]
  %s3 = inlined_call_operand.vmem [shape: f32[64,32], index: 3, kind: input, shape index: {}]
  %s4 = inlined_call_operand.hbm [shape: f32[64,32], index: 4, kind: output, shape index: {}]
  %s5 = sld [smem:[#allocation0]]
  $region34: #{run.39} parent=0
    _
  %s7 = ssub.s32 1, %s5
  %s8 = scalar_select 0, %s7, %s5
  $region1: #{run.39} parent=0
    #allocation3 [shape = 'u8[32768]{0}', space=vmem, size = 0x8000, scoped, tag = 'output window, operand 0, single buffered']
    #allocation4 [shape = 's32[1]{0}', space=sflag, size = 0x4, scoped, tag = 'scoped memory for run.39']
    %9 = vsyncpa [#allocation4], 0
    // Predicated region
    $region2: #{run.39} parent=1 // pred_check
      _
    $region3: #{run.39} parent=1 // pred_check_branch
      %11 = sbr.rel (0) target = $region5
    $region4: #{run.39} parent=1 // pred_region
      _
    $region5: #{run.39} parent=1 // pred_fallthru
      _
    // Predicated region
    $region6: #{run.39} parent=1 // pred_check
      _
    $region7: #{run.39} parent=1 // pred_check_branch
      %13 = sbr.rel (0) target = $region9
    $region8: #{run.39} parent=1 // pred_region
      _
    $region9: #{run.39} parent=1 // pred_fallthru
      _
    // Predicated region
    $region10: #{run.39} parent=1 // pred_check
      _
    $region11: #{run.39} parent=1 // pred_check_branch
      %15 = sbr.rel (0) target = $region13
    $region12: #{run.39} parent=1 // pred_region
      _
    $region13: #{run.39} parent=1 // pred_fallthru
      _
    // Predicated region
    $region14: #{run.39} parent=1 // pred_check
      _
    $region15: #{run.39} parent=1 // pred_check_branch
      %17 = sbr.rel (0) target = $region17
    $region16: #{run.39} parent=1 // pred_region
      _
    $region17: #{run.39} parent=1 // pred_fallthru
      _
    %p19 = scmp.eq.s32.totalorder 0, 0
    // Predicated region
    $region18: #{run.39} parent=1 // pred_check
      %p20 = pneg %p19
    $region19: #{run.39} parent=1 // pred_check_branch
      %22 = sbr.rel (%p20) target = $region21
    $region20: #{run.39} parent=1 // pred_region
      %vm23 = vcmask 261120
      %24 = vst.msk [vmem:[#allocation2] sm:$0xff] %vm23, 0.0
      %25 = vst.msk [vmem:[#allocation2 + $0x8] sm:$0xff] %vm23, 0.0
      %26 = vst.msk [vmem:[#allocation2 + $0x10] sm:$0xff] %vm23, 0.0
      %27 = vst.msk [vmem:[#allocation2 + $0x18] sm:$0xff] %vm23, 0.0
      %28 = vst.msk [vmem:[#allocation2 + $0x20] sm:$0xff] %vm23, 0.0
      %29 = vst.msk [vmem:[#allocation2 + $0x28] sm:$0xff] %vm23, 0.0
      %30 = vst.msk [vmem:[#allocation2 + $0x30] sm:$0xff] %vm23, 0.0
      %31 = vst.msk [vmem:[#allocation2 + $0x38] sm:$0xff] %vm23, 0.0
    $region21: #{run.39} parent=1 // pred_fallthru
      _
    %v32 = vld [vmem:[%s0] sm:$0xf]
    %v33 = vld [vmem:[%s0 + $0x4] sm:$0xf]
    %v34 = vld [vmem:[%s0 + $0x8] sm:$0xf]
    %v35 = vld [vmem:[%s0 + $0xc] sm:$0xf]
    %v36 = vld [vmem:[%s0 + $0x10] sm:$0xf]
    %v37 = vld [vmem:[%s0 + $0x14] sm:$0xf]
    %v38 = vld [vmem:[%s0 + $0x18] sm:$0xf]
    %v39 = vld [vmem:[%s0 + $0x1c] sm:$0xf]
    %v40 = vld [vmem:[#allocation2] sm:$0xff]
    %v41 = vld [vmem:[#allocation2 + $0x8] sm:$0xff]
    %v42 = vld [vmem:[#allocation2 + $0x10] sm:$0xff]
    %v43 = vld [vmem:[#allocation2 + $0x18] sm:$0xff]
    %v44 = vld [vmem:[#allocation2 + $0x20] sm:$0xff]
    %v45 = vld [vmem:[#allocation2 + $0x28] sm:$0xff]
    %v46 = vld [vmem:[#allocation2 + $0x30] sm:$0xff]
    %v47 = vld [vmem:[#allocation2 + $0x38] sm:$0xff]
    %v48 = vld [vmem:[%s1] sm:$0xf]
    %v49 = vld [vmem:[%s1 + $0x4] sm:$0xf]
    %v50 = vld [vmem:[%s1 + $0x8] sm:$0xf]
    %v51 = vld [vmem:[%s1 + $0xc] sm:$0xf]
    %v52 = vld [vmem:[%s1 + $0x10] sm:$0xf]
    %v53 = vld [vmem:[%s1 + $0x14] sm:$0xf]
    %v54 = vld [vmem:[%s1 + $0x18] sm:$0xf]
    %v55 = vld [vmem:[%s1 + $0x1c] sm:$0xf]
    %v56 = vld [vmem:[%s1 + $0x20] sm:$0xf]
    %v57 = vld [vmem:[%s1 + $0x24] sm:$0xf]
    %v58 = vld [vmem:[%s1 + $0x28] sm:$0xf]
    %v59 = vld [vmem:[%s1 + $0x2c] sm:$0xf]
    %v60 = vld [vmem:[%s1 + $0x30] sm:$0xf]
    %v61 = vld [vmem:[%s1 + $0x34] sm:$0xf]
    %v62 = vld [vmem:[%s1 + $0x38] sm:$0xf]
    %v63 = vld [vmem:[%s1 + $0x3c] sm:$0xf]
    %v72 = vunpack.c.l.b16 %v32
    %v73 = vunpack.c.l.b16 %v33
    %v74 = vunpack.c.l.b16 %v34
    %v75 = vunpack.c.l.b16 %v35
    %v76 = vunpack.c.l.b16 %v36
    %v77 = vunpack.c.l.b16 %v37
    %v78 = vunpack.c.l.b16 %v38
    %v79 = vunpack.c.l.b16 %v39
    %v80 = vpack.c.b16 %v73, %v72
    %v81 = vpack.c.b16 %v75, %v74
    %v82 = vpack.c.b16 %v77, %v76
    %v83 = vpack.c.b16 %v79, %v78
    %v104 = vunpack.c.l.b16 %v48
    %v105 = vunpack.c.l.b16 %v49
    %v106 = vunpack.c.l.b16 %v50
    %v107 = vunpack.c.l.b16 %v51
    %v108 = vunpack.c.l.b16 %v52
    %v109 = vunpack.c.l.b16 %v53
    %v110 = vunpack.c.l.b16 %v54
    %v111 = vunpack.c.l.b16 %v55
    %v112 = vunpack.c.l.b16 %v56
    %v113 = vunpack.c.l.b16 %v57
    %v114 = vunpack.c.l.b16 %v58
    %v115 = vunpack.c.l.b16 %v59
    %v116 = vunpack.c.l.b16 %v60
    %v117 = vunpack.c.l.b16 %v61
    %v118 = vunpack.c.l.b16 %v62
    %v119 = vunpack.c.l.b16 %v63
    %v120 = vpack.c.b16 %v105, %v104
    %v121 = vpack.c.b16 %v107, %v106
    %v122 = vpack.c.b16 %v109, %v108
    %v123 = vpack.c.b16 %v111, %v110
    %v124 = vpack.c.b16 %v113, %v112
    %v125 = vpack.c.b16 %v115, %v114
    %v126 = vpack.c.b16 %v117, %v116
    %v127 = vpack.c.b16 %v119, %v118
    %136 = vmatprep.subr.bf16.mxu0 0
    %137 = vmatpush1.bf16.msra.mxu0 %v120
    %138 = vmatprep.subr.bf16.mxu0 0
    %139 = vmatpush1.bf16.msra.mxu0 %v121
    %140 = vmatprep.subr.bf16.mxu0 0
    %141 = vmatpush1.bf16.msra.mxu0 %v122
    %142 = vmatprep.subr.bf16.mxu0 0
    %143 = vmatpush1.bf16.msra.mxu0 %v123
    %144 = vmatprep.subr.bf16.mxu0 0
    %145 = vmatpush1.bf16.msra.mxu0 %v124
    %146 = vmatprep.subr.bf16.mxu0 0
    %147 = vmatpush1.bf16.msra.mxu0 %v125
    %148 = vmatprep.subr.bf16.mxu0 0
    %149 = vmatpush1.bf16.msra.mxu0 %v126
    %150 = vmatprep.subr.bf16.mxu0 0
    %151 = vmatpush1.bf16.msra.mxu0 %v127
    %152 = vmatprep.subr.bf16.mxu0 0
    %153 = vmatpush1.bf16.msra.mxu0 0
    %154 = vmatprep.subr.bf16.mxu0 0
    %155 = vmatpush1.bf16.msra.mxu0 0
    %156 = vmatprep.subr.bf16.mxu0 0
    %157 = vmatpush1.bf16.msra.mxu0 0
    %158 = vmatprep.subr.bf16.mxu0 0
    %159 = vmatpush1.bf16.msra.mxu0 0
    %160 = vmatprep.subr.bf16.mxu0 0
    %161 = vmatpush1.bf16.msra.mxu0 0
    %162 = vmatprep.subr.bf16.mxu0 0
    %163 = vmatpush1.bf16.msra.mxu0 0
    %164 = vmatprep.subr.bf16.mxu0 0
    %165 = vmatpush1.bf16.msra.mxu0 0
    %166 = vmatprep.subr.bf16.mxu0 0
    %167 = vmatpush1.bf16.msra.mxu0 0
    %168 = vmatprep.mubr.bf16.mxu0 0
    %169 = vmatmul.mubr.bf16.gmra.mrb[0].mxu0 %v80
    %v170 = vpop.f32.mrb[0].mxu0
    %v171 = vadd.f32 0.0, %v170
    %v172 = vpop.f32.mrb[0].mxu0
    %v173 = vpop.f32.mrb[0].mxu0
    %v174 = vadd.f32 0.0, %v173
    %v175 = vpop.f32.mrb[0].mxu0
    %176 = vmatprep.mubr.bf16.mxu0 0
    %177 = vmatmul.mubr.bf16.gmra.mrb[0].mxu0 %v81
    %v178 = vpop.f32.mrb[0].mxu0
    %v179 = vadd.f32 0.0, %v178
    %v180 = vpop.f32.mrb[0].mxu0
    %v181 = vpop.f32.mrb[0].mxu0
    %v182 = vadd.f32 0.0, %v181
    %v183 = vpop.f32.mrb[0].mxu0
    %184 = vmatprep.mubr.bf16.mxu0 0
    %185 = vmatmul.mubr.bf16.gmra.mrb[0].mxu0 %v82
    %v186 = vpop.f32.mrb[0].mxu0
    %v187 = vadd.f32 0.0, %v186
    %v188 = vpop.f32.mrb[0].mxu0
    %v189 = vpop.f32.mrb[0].mxu0
    %v190 = vadd.f32 0.0, %v189
    %v191 = vpop.f32.mrb[0].mxu0
    %192 = vmatprep.mubr.bf16.mxu0 0
    %193 = vmatmul.mubr.bf16.gmra.mrb[0].mxu0 %v83
    %v194 = vpop.f32.mrb[0].mxu0
    %v195 = vadd.f32 0.0, %v194
    %v196 = vpop.f32.mrb[0].mxu0
    %v197 = vpop.f32.mrb[0].mxu0
    %v198 = vadd.f32 0.0, %v197
    %v199 = vpop.f32.mrb[0].mxu0
    %200 = vdwg.mxu0
    %v201 = vadd.f32 %v40, %v171
    %v202 = vadd.f32 %v41, %v174
    %v203 = vadd.f32 %v42, %v179
    %v204 = vadd.f32 %v43, %v182
    %v205 = vadd.f32 %v44, %v187
    %v206 = vadd.f32 %v45, %v190
    %v207 = vadd.f32 %v46, %v195
    %v208 = vadd.f32 %v47, %v198
    %vm209 = vcmask 261120
    %210 = vst.msk [vmem:[#allocation2] sm:$0xff] %vm209, %v201
    %211 = vst.msk [vmem:[#allocation2 + $0x8] sm:$0xff] %vm209, %v202
    %212 = vst.msk [vmem:[#allocation2 + $0x10] sm:$0xff] %vm209, %v203
    %213 = vst.msk [vmem:[#allocation2 + $0x18] sm:$0xff] %vm209, %v204
    %214 = vst.msk [vmem:[#allocation2 + $0x20] sm:$0xff] %vm209, %v205
    %215 = vst.msk [vmem:[#allocation2 + $0x28] sm:$0xff] %vm209, %v206
    %216 = vst.msk [vmem:[#allocation2 + $0x30] sm:$0xff] %vm209, %v207
    %217 = vst.msk [vmem:[#allocation2 + $0x38] sm:$0xff] %vm209, %v208
    // Predicated region
    $region22: #{run.39} parent=1 // pred_check
      %p218 = pneg %p19
    $region23: #{run.39} parent=1 // pred_check_branch
      %220 = sbr.rel (%p218) target = $region25
    $region24: #{run.39} parent=1 // pred_region
      %v221 = vld [vmem:[#allocation2] sm:$0xff]
      %v222 = vld [vmem:[#allocation2 + $0x8] sm:$0xff]
      %v223 = vld [vmem:[#allocation2 + $0x10] sm:$0xff]
      %v224 = vld [vmem:[#allocation2 + $0x18] sm:$0xff]
      %v225 = vld [vmem:[#allocation2 + $0x20] sm:$0xff]
      %v226 = vld [vmem:[#allocation2 + $0x28] sm:$0xff]
      %v227 = vld [vmem:[#allocation2 + $0x30] sm:$0xff]
      %v228 = vld [vmem:[#allocation2 + $0x38] sm:$0xff]
      %v229 = vld [vmem:[%s2] sm:$0x1]
      %v231 = vlaneseq
      %v232 = vshrl.u32 %v231, 7
      %v233 = vsub.s32 0, %v232
      %v234 = vrot.slane %v229, %v233
      %v236 = vadd.f32 %v221, %v234
      %v237 = vadd.f32 %v222, %v234
      %v238 = vadd.f32 %v223, %v234
      %v239 = vadd.f32 %v224, %v234
      %v240 = vadd.f32 %v225, %v234
      %v241 = vadd.f32 %v226, %v234
      %v242 = vadd.f32 %v227, %v234
      %v243 = vadd.f32 %v228, %v234
      %v244 = vld [vmem:[%s3] sm:$0xff]
      %v245 = vld [vmem:[%s3 + $0x8] sm:$0xff]
      %v246 = vld [vmem:[%s3 + $0x10] sm:$0xff]
      %v247 = vld [vmem:[%s3 + $0x18] sm:$0xff]
      %v248 = vld [vmem:[%s3 + $0x20] sm:$0xff]
      %v249 = vld [vmem:[%s3 + $0x28] sm:$0xff]
      %v250 = vld [vmem:[%s3 + $0x30] sm:$0xff]
      %v251 = vld [vmem:[%s3 + $0x38] sm:$0xff]
      %v252 = vadd.f32 %v236, %v244
      %v253 = vadd.f32 %v237, %v245
      %v254 = vadd.f32 %v238, %v246
      %v255 = vadd.f32 %v239, %v247
      %v256 = vadd.f32 %v240, %v248
      %v257 = vadd.f32 %v241, %v249
      %v258 = vadd.f32 %v242, %v250
      %v259 = vadd.f32 %v243, %v251
      %260 = vst.msk [vmem:[#allocation3] sm:$0xff] %vm209, %v252
      %261 = vst.msk [vmem:[#allocation3 + $0x8] sm:$0xff] %vm209, %v253
      %262 = vst.msk [vmem:[#allocation3 + $0x10] sm:$0xff] %vm209, %v254
      %263 = vst.msk [vmem:[#allocation3 + $0x18] sm:$0xff] %vm209, %v255
      %264 = vst.msk [vmem:[#allocation3 + $0x20] sm:$0xff] %vm209, %v256
      %265 = vst.msk [vmem:[#allocation3 + $0x28] sm:$0xff] %vm209, %v257
      %266 = vst.msk [vmem:[#allocation3 + $0x30] sm:$0xff] %vm209, %v258
      %267 = vst.msk [vmem:[#allocation3 + $0x38] sm:$0xff] %vm209, %v259
    $region25: #{run.39} parent=1 // pred_fallthru
      _
    // Predicated region
    $region26: #{run.39} parent=1 // pred_check
      _
    $region27: #{run.39} parent=1 // pred_check_branch
      %269 = sbr.rel (0) target = $region29
    $region28: #{run.39} parent=1 // pred_region
      %s271 = ssub.s32 1024, 1024
      %272 = vsyncadd [#allocation4], %s271
      %s273 = sshll.u32 [#allocation3], 4
      %s274 = int_to_ptr.vmem [resolvable:$true] %s273
      %279 = dma.vmem_to_hbm [thread:$0]  %s274, 1024, %s4, [#allocation4], 128, 128, 8
    $region29: #{run.39} parent=1 // pred_fallthru
      _
    // Predicated region
    $region30: #{run.39} parent=1 // pred_check
      _
    $region31: #{run.39} parent=1 // pred_check_branch
      %281 = sbr.rel (0) target = $region33
    $region32: #{run.39} parent=1 // pred_region
      %282 = dma.done [#allocation4], 1024
    $region33: #{run.39} parent=1 // pred_fallthru
      _
    %283 = vsyncpa [#allocation4], 1

// kernel: run.26
$region0: #{run.26}
  #allocation0 [shape = 'u32[]', space=smem, size = 0x4, offset = 0x4, fixed_abs, tag = 'smem constant byte address 0x4 - core index']
  #allocation1 [shape = 'u32[144,128]{1,0:T(1,128)}', space=vmem, size = 0x12000, scoped, tag = 'internal scratch']
  %s0 = inlined_call_operand.vmem [shape: bf16[8,8,3,4,8], index: 0, kind: input, shape index: {}]
  %s1 = inlined_call_operand.vmem [shape: bf16[1,8,3,4,8], index: 1, kind: input, shape index: {}]
  %s2 = inlined_call_operand.vmem [shape: bf16[8,8,4,8], index: 2, kind: output, shape index: {}]
  %s3 = sld [smem:[#allocation0]]
  $region119: #{run.26} parent=0
    _
  %s5 = ssub.s32 1, %s3
  %s6 = scalar_select 0, %s5, %s3
  $region1: #{run.26} parent=0
    #allocation2 [shape = 'u8[49152]{0}', space=vmem, size = 0xc000, scoped, tag = 'input window, operand 0']
    #allocation3 [shape = 'u8[16384]{0}', space=vmem, size = 0x4000, scoped, tag = 'output window, operand 0']
    loop: start=0, step=1, limit=10
    $region2: #{run.26} parent=1 // loop_pre_header
      _
    $region3: #{run.26} parent=1 // loop_header
      %s8 = sphi 0, %s12
      %p9 = scmp.ge.s32.totalorder %s8, 10
      %s18 = sphi 0, %s20
      %s21 = sphi 0, %s18
      %s22 = sphi 0, %s21
      %s38 = sphi 0, %s22
      %s44 = sphi 0, %s46
      %s47 = sphi 0, %s44
      %s48 = sphi 0, %s47
      %s64 = sphi 0, %s48
      %s70 = sphi 0, %s72
      %s73 = sphi 0, %s70
      %s74 = sphi 0, %s73
      %s90 = sphi 0, %s74
    $region4: #{run.26} parent=1 // loop_header_branch
      %11 = sbr.rel (%p9) target = $region8
    $region5: #{run.26} parent=1 // loop_body
      %s13 = ssub.s32 %s8, 1
      %s14 = ssub.s32 %s8, 2
      %s15 = sadd.s32 %s8, 1
      %s16 = ssub.s32 %s8, %s15
      %p17 = scmp.eq.s32.totalorder %s16, 0
      %s19 = sadd.s32 %s18, 1
      %s20 = scalar_select %p17, %s18, %s19
      %p23 = pneg %p17
      %p24 = scmp.eq.s32.totalorder %s8, 7
      %p25 = por %p23, %p24
      %p26 = scmp.ne.s32.totalorder %s18, %s21
      %p27 = scmp.eq.s32.totalorder %s8, 0
      %p28 = por %p26, %p27
      %p29 = scmp.ne.s32.totalorder %s18, %s21
      %p30 = scmp.eq.s32.totalorder %s13, 7
      %p31 = por %p29, %p30
      %p32 = scmp.ne.s32.totalorder %s21, %s22
      %p33 = scmp.eq.s32.totalorder %s13, 0
      %p34 = por %p32, %p33
      %p35 = scmp.ne.s32.totalorder %s21, %s22
      %p36 = scmp.eq.s32.totalorder %s14, 7
      %p37 = por %p35, %p36
      %p39 = scmp.ne.s32.totalorder %s22, %s38
      %p40 = scmp.eq.s32.totalorder %s14, 0
      %p41 = por %p39, %p40
      %s42 = ssub.s32 %s8, %s15
      %p43 = scmp.eq.s32.totalorder %s42, 0
      %s45 = sadd.s32 %s44, 1
      %s46 = scalar_select %p43, %s44, %s45
      %p49 = pneg %p43
      %p50 = scmp.eq.s32.totalorder %s8, 7
      %p51 = por %p49, %p50
      %p52 = scmp.ne.s32.totalorder %s44, %s47
      %p53 = scmp.eq.s32.totalorder %s8, 0
      %p54 = por %p52, %p53
      %p55 = scmp.ne.s32.totalorder %s44, %s47
      %p56 = scmp.eq.s32.totalorder %s13, 7
      %p57 = por %p55, %p56
      %p58 = scmp.ne.s32.totalorder %s47, %s48
      %p59 = scmp.eq.s32.totalorder %s13, 0
      %p60 = por %p58, %p59
      %p61 = scmp.ne.s32.totalorder %s47, %s48
      %p62 = scmp.eq.s32.totalorder %s14, 7
      %p63 = por %p61, %p62
      %p65 = scmp.ne.s32.totalorder %s48, %s64
      %p66 = scmp.eq.s32.totalorder %s14, 0
      %p67 = por %p65, %p66
      %s68 = ssub.s32 %s8, %s15
      %p69 = scmp.eq.s32.totalorder %s68, 0
      %s71 = sadd.s32 %s70, 1
      %s72 = scalar_select %p69, %s70, %s71
      %p75 = pneg %p69
      %p76 = scmp.eq.s32.totalorder %s8, 7
      %p77 = por %p75, %p76
      %p78 = scmp.ne.s32.totalorder %s70, %s73
      %p79 = scmp.eq.s32.totalorder %s8, 0
      %p80 = por %p78, %p79
      %p81 = scmp.ne.s32.totalorder %s70, %s73
      %p82 = scmp.eq.s32.totalorder %s13, 7
      %p83 = por %p81, %p82
      %p84 = scmp.ne.s32.totalorder %s73, %s74
      %p85 = scmp.eq.s32.totalorder %s13, 0
      %p86 = por %p84, %p85
      %p87 = scmp.ne.s32.totalorder %s73, %s74
      %p88 = scmp.eq.s32.totalorder %s14, 7
      %p89 = por %p87, %p88
      %p91 = scmp.ne.s32.totalorder %s74, %s90
      %p92 = scmp.eq.s32.totalorder %s14, 0
      %p93 = por %p91, %p92
      %p94 = scmp.le.s32.totalorder 1, %s8
      %p95 = scmp.lt.s32.totalorder %s8, 9
      %p96 = pnand %p94, %p95
      %p97 = pneg %p96
      // Predicated region
      $region9: #{run.26} parent=5 // pred_check
        _
      $region10: #{run.26} parent=5 // pred_check_branch
        %99 = sbr.rel (%p96) target = $region12
      $region11: #{run.26} parent=5 // pred_region
        %s100 = ssub.s32 %s8, 1
      $region12: #{run.26} parent=5 // pred_fallthru
        _
      %p101 = scmp.lt.s32.totalorder %s8, 8
      // Predicated region
      $region13: #{run.26} parent=5 // pred_check
        %p102 = pneg %p101
      $region14: #{run.26} parent=5 // pred_check_branch
        %104 = sbr.rel (%p102) target = $region16
      $region15: #{run.26} parent=5 // pred_region
        // Predicated region
        $region17: #{run.26} parent=15 // pred_check
          %p105 = pneg %p28
        $region18: #{run.26} parent=15 // pred_check_branch
          %107 = sbr.rel (%p105) target = $region20
        $region19: #{run.26} parent=15 // pred_region
          %s108 = sand.u32 %s18, 1
          %s109 = sand.u32 %s18, 1
          %s110 = smul.addr %s109, 48
          %s111 = scalar_lea.vmem [#allocation2], %s110
          %s112 = smul.addr %s8, 3
          %s113 = smul.addr %s112, 2
          %s114 = scalar_lea.vmem %s0, %s113
          // Predicated region
          $region21: #{run.26} parent=19 // pred_check
            _
          $region22: #{run.26} parent=19 // pred_check_branch
            %116 = sbr.rel (0) target = $region24
          $region23: #{run.26} parent=19 // pred_region
            // Predicated region
            $region25: #{run.26} parent=23 // pred_check
              _
            $region26: #{run.26} parent=23 // pred_check_branch
              %118 = sbr.rel target = $region28
            $region27: #{run.26} parent=23 // pred_region
              // Predicated region
              $region40: #{run.26} parent=27 // pred_check
                _
              $region41: #{run.26} parent=27 // pred_check_branch
                %179 = sbr.rel (0) target = $region43
              $region42: #{run.26} parent=27 // pred_region
                loop: start=0, step=1, limit=1
                $region44: #{run.26} parent=42 // loop_pre_header
                  _
                $region45: #{run.26} parent=42 // loop_header
                  %s181 = sphi 0, %s185
                  %p182 = scmp.ge.s32.totalorder %s181, 1
                  %s186 = sphi %s114, %s114
                  %s187 = sphi %s111, %s111
                $region46: #{run.26} parent=42 // loop_header_branch
                  %184 = sbr.rel (%p182) target = $region50
                $region47: #{run.26} parent=42 // loop_body
                  _
                $region48: #{run.26} parent=42 // loop_footer
                  %s185 = sadd.s32 1, %s181
                $region49: #{run.26} parent=42 // loop_footer_branch
                  %180 = sbr.rel target = $region45
                $region50: #{run.26} parent=42 // loop_exit
                  _
                loop: start=0, step=1, limit=1
                $region51: #{run.26} parent=42 // loop_pre_header
                  _
                $region52: #{run.26} parent=42 // loop_header
                  %s190 = sphi 0, %s194
                  %p191 = scmp.ge.s32.totalorder %s190, 1
                  %s195 = sphi %s114, %s114
                  %s196 = sphi %s111, %s111
                $region53: #{run.26} parent=42 // loop_header_branch
                  %193 = sbr.rel (%p191) target = $region57
                $region54: #{run.26} parent=42 // loop_body
                  %v197 = vld [vmem:[%s195] sm:$0x3]
                  %198 = vst [vmem:[%s196] sm:$0x3] %v197
                  %v199 = vld [vmem:[%s195 + $0x2] sm:$0x3]
                  %200 = vst [vmem:[%s196 + $0x2] sm:$0x3] %v199
                  %v201 = vld [vmem:[%s195 + $0x4] sm:$0x3]
                  %202 = vst [vmem:[%s196 + $0x4] sm:$0x3] %v201
                  %v203 = vld [vmem:[%s195 + $0x30] sm:$0x3]
                  %204 = vst [vmem:[%s196 + $0x6] sm:$0x3] %v203
                  %v205 = vld [vmem:[%s195 + $0x32] sm:$0x3]
                  %206 = vst [vmem:[%s196 + $0x8] sm:$0x3] %v205
                  %v207 = vld [vmem:[%s195 + $0x34] sm:$0x3]
                  %208 = vst [vmem:[%s196 + $0xa] sm:$0x3] %v207
                  %v209 = vld [vmem:[%s195 + $0x60] sm:$0x3]
                  %210 = vst [vmem:[%s196 + $0xc] sm:$0x3] %v209
                  %v211 = vld [vmem:[%s195 + $0x62] sm:$0x3]
                  %212 = vst [vmem:[%s196 + $0xe] sm:$0x3] %v211
                  %v213 = vld [vmem:[%s195 + $0x64] sm:$0x3]
                  %214 = vst [vmem:[%s196 + $0x10] sm:$0x3] %v213
                  %v215 = vld [vmem:[%s195 + $0x90] sm:$0x3]
                  %216 = vst [vmem:[%s196 + $0x12] sm:$0x3] %v215
                  %v217 = vld [vmem:[%s195 + $0x92] sm:$0x3]
                  %218 = vst [vmem:[%s196 + $0x14] sm:$0x3] %v217
                  %v219 = vld [vmem:[%s195 + $0x94] sm:$0x3]
                  %220 = vst [vmem:[%s196 + $0x16] sm:$0x3] %v219
                  %v221 = vld [vmem:[%s195 + $0xc0] sm:$0x3]
                  %222 = vst [vmem:[%s196 + $0x18] sm:$0x3] %v221
                  %v223 = vld [vmem:[%s195 + $0xc2] sm:$0x3]
                  %224 = vst [vmem:[%s196 + $0x1a] sm:$0x3] %v223
                  %v225 = vld [vmem:[%s195 + $0xc4] sm:$0x3]
                  %226 = vst [vmem:[%s196 + $0x1c] sm:$0x3] %v225
                  %v227 = vld [vmem:[%s195 + $0xf0] sm:$0x3]
                  %228 = vst [vmem:[%s196 + $0x1e] sm:$0x3] %v227
                  %v229 = vld [vmem:[%s195 + $0xf2] sm:$0x3]
                  %230 = vst [vmem:[%s196 + $0x20] sm:$0x3] %v229
                  %v231 = vld [vmem:[%s195 + $0xf4] sm:$0x3]
                  %232 = vst [vmem:[%s196 + $0x22] sm:$0x3] %v231
                  %v233 = vld [vmem:[%s195 + $0x120] sm:$0x3]
                  %234 = vst [vmem:[%s196 + $0x24] sm:$0x3] %v233
                  %v235 = vld [vmem:[%s195 + $0x122] sm:$0x3]
                  %236 = vst [vmem:[%s196 + $0x26] sm:$0x3] %v235
                  %v237 = vld [vmem:[%s195 + $0x124] sm:$0x3]
                  %238 = vst [vmem:[%s196 + $0x28] sm:$0x3] %v237
                  %v239 = vld [vmem:[%s195 + $0x150] sm:$0x3]
                  %240 = vst [vmem:[%s196 + $0x2a] sm:$0x3] %v239
                  %v241 = vld [vmem:[%s195 + $0x152] sm:$0x3]
                  %242 = vst [vmem:[%s196 + $0x2c] sm:$0x3] %v241
                  %v243 = vld [vmem:[%s195 + $0x154] sm:$0x3]
                  %244 = vst [vmem:[%s196 + $0x2e] sm:$0x3] %v243
                $region55: #{run.26} parent=42 // loop_footer
                  %s194 = sadd.s32 1, %s190
                $region56: #{run.26} parent=42 // loop_footer_branch
                  %189 = sbr.rel target = $region52
                $region57: #{run.26} parent=42 // loop_exit
                  _
              $region43: #{run.26} parent=27 // pred_fallthru
                _
            $region28: #{run.26} parent=23 // pred_fallthru
              _
            // Predicated region
            $region29: #{run.26} parent=23 // pred_check
              _
            $region30: #{run.26} parent=23 // pred_check_branch
              %120 = sbr.rel (0) target = $region32
            $region31: #{run.26} parent=23 // pred_region
              loop: start=0, step=1, limit=1
              $region33: #{run.26} parent=31 // loop_pre_header
                _
              $region34: #{run.26} parent=31 // loop_header
                %s123 = sphi 0, %s127
                %p124 = scmp.ge.s32.totalorder %s123, 1
                %s128 = sphi %s114, %s114
                %s129 = sphi %s111, %s111
              $region35: #{run.26} parent=31 // loop_header_branch
                %126 = sbr.rel (%p124) target = $region39
              $region36: #{run.26} parent=31 // loop_body
                %v130 = vld [vmem:[%s128] sm:$0x3]
                %131 = vst [vmem:[%s129] sm:$0x3] %v130
                %v132 = vld [vmem:[%s128 + $0x2] sm:$0x3]
                %133 = vst [vmem:[%s129 + $0x2] sm:$0x3] %v132
                %v134 = vld [vmem:[%s128 + $0x4] sm:$0x3]
                %135 = vst [vmem:[%s129 + $0x4] sm:$0x3] %v134
                %v136 = vld [vmem:[%s128 + $0x30] sm:$0x3]
                %137 = vst [vmem:[%s129 + $0x6] sm:$0x3] %v136
                %v138 = vld [vmem:[%s128 + $0x32] sm:$0x3]
                %139 = vst [vmem:[%s129 + $0x8] sm:$0x3] %v138
                %v140 = vld [vmem:[%s128 + $0x34] sm:$0x3]
                %141 = vst [vmem:[%s129 + $0xa] sm:$0x3] %v140
                %v142 = vld [vmem:[%s128 + $0x60] sm:$0x3]
                %143 = vst [vmem:[%s129 + $0xc] sm:$0x3] %v142
                %v144 = vld [vmem:[%s128 + $0x62] sm:$0x3]
                %145 = vst [vmem:[%s129 + $0xe] sm:$0x3] %v144
                %v146 = vld [vmem:[%s128 + $0x64] sm:$0x3]
                %147 = vst [vmem:[%s129 + $0x10] sm:$0x3] %v146
                %v148 = vld [vmem:[%s128 + $0x90] sm:$0x3]
                %149 = vst [vmem:[%s129 + $0x12] sm:$0x3] %v148
                %v150 = vld [vmem:[%s128 + $0x92] sm:$0x3]
                %151 = vst [vmem:[%s129 + $0x14] sm:$0x3] %v150
                %v152 = vld [vmem:[%s128 + $0x94] sm:$0x3]
                %153 = vst [vmem:[%s129 + $0x16] sm:$0x3] %v152
                %v154 = vld [vmem:[%s128 + $0xc0] sm:$0x3]
                %155 = vst [vmem:[%s129 + $0x18] sm:$0x3] %v154
                %v156 = vld [vmem:[%s128 + $0xc2] sm:$0x3]
                %157 = vst [vmem:[%s129 + $0x1a] sm:$0x3] %v156
                %v158 = vld [vmem:[%s128 + $0xc4] sm:$0x3]
                %159 = vst [vmem:[%s129 + $0x1c] sm:$0x3] %v158
                %v160 = vld [vmem:[%s128 + $0xf0] sm:$0x3]
                %161 = vst [vmem:[%s129 + $0x1e] sm:$0x3] %v160
                %v162 = vld [vmem:[%s128 + $0xf2] sm:$0x3]
                %163 = vst [vmem:[%s129 + $0x20] sm:$0x3] %v162
                %v164 = vld [vmem:[%s128 + $0xf4] sm:$0x3]
                %165 = vst [vmem:[%s129 + $0x22] sm:$0x3] %v164
                %v166 = vld [vmem:[%s128 + $0x120] sm:$0x3]
                %167 = vst [vmem:[%s129 + $0x24] sm:$0x3] %v166
                %v168 = vld [vmem:[%s128 + $0x122] sm:$0x3]
                %169 = vst [vmem:[%s129 + $0x26] sm:$0x3] %v168
                %v170 = vld [vmem:[%s128 + $0x124] sm:$0x3]
                %171 = vst [vmem:[%s129 + $0x28] sm:$0x3] %v170
                %v172 = vld [vmem:[%s128 + $0x150] sm:$0x3]
                %173 = vst [vmem:[%s129 + $0x2a] sm:$0x3] %v172
                %v174 = vld [vmem:[%s128 + $0x152] sm:$0x3]
                %175 = vst [vmem:[%s129 + $0x2c] sm:$0x3] %v174
                %v176 = vld [vmem:[%s128 + $0x154] sm:$0x3]
                %177 = vst [vmem:[%s129 + $0x2e] sm:$0x3] %v176
              $region37: #{run.26} parent=31 // loop_footer
                %s127 = sadd.s32 1, %s123
              $region38: #{run.26} parent=31 // loop_footer_branch
                %122 = sbr.rel target = $region34
              $region39: #{run.26} parent=31 // loop_exit
                _
            $region32: #{run.26} parent=23 // pred_fallthru
              _
          $region24: #{run.26} parent=19 // pred_fallthru
            _
          %245 = vnop
        $region20: #{run.26} parent=15 // pred_fallthru
          _
        // Predicated region
        $region58: #{run.26} parent=15 // pred_check
          %p246 = pneg %p54
        $region59: #{run.26} parent=15 // pred_check_branch
          %248 = sbr.rel (%p246) target = $region61
        $region60: #{run.26} parent=15 // pred_region
          %p249 = scmp.lt.s32.totalorder %s8, 7
          %s250 = scalar_select %p249, %s8, 7
          %s251 = smul.addr %s250, 3
          %s252 = smul.addr %s251, 2
          %s253 = scalar_lea.vmem %s1, %s252
        $region61: #{run.26} parent=15 // pred_fallthru
          _
      $region16: #{run.26} parent=5 // pred_fallthru
        _
      %p254 = scmp.le.s32.totalorder 1, %s8
      %p255 = scmp.lt.s32.totalorder %s8, 9
      %p256 = pnand %p254, %p255
      %p257 = pneg %p256
      // Predicated region
      $region62: #{run.26} parent=5 // pred_check
        _
      $region63: #{run.26} parent=5 // pred_check_branch
        %259 = sbr.rel (%p256) target = $region65
      $region64: #{run.26} parent=5 // pred_region
        %s260 = ssub.s32 %s8, 1
        %s261 = sand.u32 %s21, 1
        %s262 = sand.u32 %s21, 1
        %s263 = smul.addr %s262, 48
        %s264 = scalar_lea.vmem [#allocation2], %s263
        // Predicated region
        $region66: #{run.26} parent=64 // pred_check
          %p265 = pneg %p34
        $region67: #{run.26} parent=64 // pred_check_branch
          %267 = sbr.rel (%p265) target = $region69
        $region68: #{run.26} parent=64 // pred_region
          _
        $region69: #{run.26} parent=64 // pred_fallthru
          _
        %s268 = sand.u32 %s21, 1
        %s269 = sand.u32 %s21, 1
        %s270 = smul.addr %s269, 48
        %s271 = scalar_lea.vmem [#allocation2], %s270
        %p272 = pneg %p34
        %p273 = pneg %p31
        %p274 = scmp.lt.s32.totalorder %s13, 7
        %s275 = scalar_select %p274, %s13, 7
        %s276 = smul.addr %s275, 3
        %s277 = smul.addr %s276, 2
        %s278 = scalar_lea.vmem %s1, %s277
        %p279 = pneg %p60
        %p280 = pneg %p57
        %p281 = pneg %p86
        %p282 = pneg %p83
        %s283 = sand.u32 %s73, 1
        %s284 = sand.u32 %s73, 1
        %s285 = smul.addr %s284, 16
        %s286 = scalar_lea.vmem [#allocation3], %s285
        %p287 = scmp.lt.s32.totalorder %s13, 7
        %s288 = scalar_select %p287, %s13, 7
        %s289 = smul.addr %s288, 3
        %s290 = smul.addr %s289, 2
        %s291 = scalar_lea.vmem %s1, %s290
        %v293 = vld [vmem:[%s264] sm:$0x1]
        %v294 = vld [vmem:[%s264 + $0x6] sm:$0x1]
        %v295 = vld [vmem:[%s264 + $0xc] sm:$0x1]
        %v296 = vld [vmem:[%s264 + $0x12] sm:$0x1]
        %v297 = vld [vmem:[%s264 + $0x18] sm:$0x1]
        %v298 = vld [vmem:[%s264 + $0x1e] sm:$0x1]
        %v299 = vld [vmem:[%s264 + $0x24] sm:$0x1]
        %v300 = vld [vmem:[%s264 + $0x2a] sm:$0x1]
        %s301 = scalar_lea.vmem %s264, 2 [#allocation2]
        %v302 = vld [vmem:[%s301] sm:$0x1]
        %v303 = vld [vmem:[%s301 + $0x6] sm:$0x1]
        %v304 = vld [vmem:[%s301 + $0xc] sm:$0x1]
        %v305 = vld [vmem:[%s301 + $0x12] sm:$0x1]
        %v306 = vld [vmem:[%s301 + $0x18] sm:$0x1]
        %v307 = vld [vmem:[%s301 + $0x1e] sm:$0x1]
        %v308 = vld [vmem:[%s301 + $0x24] sm:$0x1]
        %v309 = vld [vmem:[%s301 + $0x2a] sm:$0x1]
        %s310 = scalar_lea.vmem %s264, 4 [#allocation2]
        %v311 = vld [vmem:[%s310] sm:$0x1]
        %v312 = vld [vmem:[%s310 + $0x6] sm:$0x1]
        %v313 = vld [vmem:[%s310 + $0xc] sm:$0x1]
        %v314 = vld [vmem:[%s310 + $0x12] sm:$0x1]
        %v315 = vld [vmem:[%s310 + $0x18] sm:$0x1]
        %v316 = vld [vmem:[%s310 + $0x1e] sm:$0x1]
        %v317 = vld [vmem:[%s310 + $0x24] sm:$0x1]
        %v318 = vld [vmem:[%s310 + $0x2a] sm:$0x1]
        %v328 = vunpack.c.l.s4 1983009808
        %v329 = vunpack.c.0.s8 %v328
        %v330 = vlaneseq
        %v331 = vshrl.u32 %v330, 7
        %v332 = vsub.s32 %v329, %v331
        %v333 = vrot.slane %v293, %v332
        %v335 = vunpack.c.l.s4 1983009808
        %v336 = vunpack.c.0.s8 %v335
        %v337 = vlaneseq
        %v338 = vshrl.u32 %v337, 7
        %v339 = vsub.s32 %v336, %v338
        %v340 = vrot.slane %v294, %v339
        %v342 = vunpack.c.l.s4 1983009808
        %v343 = vunpack.c.0.s8 %v342
        %v344 = vlaneseq
        %v345 = vshrl.u32 %v344, 7
        %v346 = vsub.s32 %v343, %v345
        %v347 = vrot.slane %v295, %v346
        %v349 = vunpack.c.l.s4 1983009808
        %v350 = vunpack.c.0.s8 %v349
        %v351 = vlaneseq
        %v352 = vshrl.u32 %v351, 7
        %v353 = vsub.s32 %v350, %v352
        %v354 = vrot.slane %v296, %v353
        %v356 = vunpack.c.l.s4 1983009808
        %v357 = vunpack.c.0.s8 %v356
        %v358 = vlaneseq
        %v359 = vshrl.u32 %v358, 7
        %v360 = vsub.s32 %v357, %v359
        %v361 = vrot.slane %v297, %v360
        %v363 = vunpack.c.l.s4 1983009808
        %v364 = vunpack.c.0.s8 %v363
        %v365 = vlaneseq
        %v366 = vshrl.u32 %v365, 7
        %v367 = vsub.s32 %v364, %v366
        %v368 = vrot.slane %v298, %v367
        %v370 = vunpack.c.l.s4 1983009808
        %v371 = vunpack.c.0.s8 %v370
        %v372 = vlaneseq
        %v373 = vshrl.u32 %v372, 7
        %v374 = vsub.s32 %v371, %v373
        %v375 = vrot.slane %v299, %v374
        %v377 = vunpack.c.l.s4 1983009808
        %v378 = vunpack.c.0.s8 %v377
        %v379 = vlaneseq
        %v380 = vshrl.u32 %v379, 7
        %v381 = vsub.s32 %v378, %v380
        %v382 = vrot.slane %v300, %v381
        %v383 = vunpack.c.l.b16 %v333
        %v384 = vunpack.c.l.b16 %v340
        %v385 = vunpack.c.l.b16 %v347
        %v386 = vunpack.c.l.b16 %v354
        %v387 = vunpack.c.l.b16 %v361
        %v388 = vunpack.c.l.b16 %v368
        %v389 = vunpack.c.l.b16 %v375
        %v390 = vunpack.c.l.b16 %v382
        %v391 = vrot.slane %v384, 7
        %vm392 = vcmask 1041409
        %v393 = vsel %vm392, %v391, %v383
        %v394 = vrot.slane %v385, 6
        %vm395 = vcmask 1042434
        %v396 = vsel %vm395, %v394, %v393
        %v397 = vrot.slane %v386, 5
        %vm398 = vcmask 1043459
        %v399 = vsel %vm398, %v397, %v396
        %v400 = vrot.slane %v387, 4
        %vm401 = vcmask 1044484
        %v402 = vsel %vm401, %v400, %v399
        %v403 = vrot.slane %v388, 3
        %vm404 = vcmask 1045509
        %v405 = vsel %vm404, %v403, %v402
        %v406 = vrot.slane %v389, 2
        %vm407 = vcmask 1046534
        %v408 = vsel %vm407, %v406, %v405
        %v409 = vrot.slane %v390, 1
        %vm410 = vcmask 1047559
        %v411 = vsel %vm410, %v409, %v408
        %v412 = vpack.c.b16 %v411, %v411
        %v422 = vunpack.c.l.s4 1983009808
        %v423 = vunpack.c.0.s8 %v422
        %v424 = vlaneseq
        %v425 = vshrl.u32 %v424, 7
        %v426 = vsub.s32 %v423, %v425
        %v427 = vrot.slane %v302, %v426
        %v429 = vunpack.c.l.s4 1983009808
        %v430 = vunpack.c.0.s8 %v429
        %v431 = vlaneseq
        %v432 = vshrl.u32 %v431, 7
        %v433 = vsub.s32 %v430, %v432
        %v434 = vrot.slane %v303, %v433
        %v436 = vunpack.c.l.s4 1983009808
        %v437 = vunpack.c.0.s8 %v436
        %v438 = vlaneseq
        %v439 = vshrl.u32 %v438, 7
        %v440 = vsub.s32 %v437, %v439
        %v441 = vrot.slane %v304, %v440
        %v443 = vunpack.c.l.s4 1983009808
        %v444 = vunpack.c.0.s8 %v443
        %v445 = vlaneseq
        %v446 = vshrl.u32 %v445, 7
        %v447 = vsub.s32 %v444, %v446
        %v448 = vrot.slane %v305, %v447
        %v450 = vunpack.c.l.s4 1983009808
        %v451 = vunpack.c.0.s8 %v450
        %v452 = vlaneseq
        %v453 = vshrl.u32 %v452, 7
        %v454 = vsub.s32 %v451, %v453
        %v455 = vrot.slane %v306, %v454
        %v457 = vunpack.c.l.s4 1983009808
        %v458 = vunpack.c.0.s8 %v457
        %v459 = vlaneseq
        %v460 = vshrl.u32 %v459, 7
        %v461 = vsub.s32 %v458, %v460
        %v462 = vrot.slane %v307, %v461
        %v464 = vunpack.c.l.s4 1983009808
        %v465 = vunpack.c.0.s8 %v464
        %v466 = vlaneseq
        %v467 = vshrl.u32 %v466, 7
        %v468 = vsub.s32 %v465, %v467
        %v469 = vrot.slane %v308, %v468
        %v471 = vunpack.c.l.s4 1983009808
        %v472 = vunpack.c.0.s8 %v471
        %v473 = vlaneseq
        %v474 = vshrl.u32 %v473, 7
        %v475 = vsub.s32 %v472, %v474
        %v476 = vrot.slane %v309, %v475
        %v477 = vunpack.c.l.b16 %v427
        %v478 = vunpack.c.l.b16 %v434
        %v479 = vunpack.c.l.b16 %v441
        %v480 = vunpack.c.l.b16 %v448
        %v481 = vunpack.c.l.b16 %v455
        %v482 = vunpack.c.l.b16 %v462
        %v483 = vunpack.c.l.b16 %v469
        %v484 = vunpack.c.l.b16 %v476
        %v485 = vrot.slane %v478, 7
        %v486 = vsel %vm392, %v485, %v477
        %v487 = vrot.slane %v479, 6
        %v488 = vsel %vm395, %v487, %v486
        %v489 = vrot.slane %v480, 5
        %v490 = vsel %vm398, %v489, %v488
        %v491 = vrot.slane %v481, 4
        %v492 = vsel %vm401, %v491, %v490
        %v493 = vrot.slane %v482, 3
        %v494 = vsel %vm404, %v493, %v492
        %v495 = vrot.slane %v483, 2
        %v496 = vsel %vm407, %v495, %v494
        %v497 = vrot.slane %v484, 1
        %v498 = vsel %vm410, %v497, %v496
        %v499 = vpack.c.b16 %v498, %v498
        %vm500 = vcmask 64512
        %v502 = vsel %vm500, %v412, 0
        %v505 = vsel %vm500, %v499, 0
        %507 = vmatprep.subr.bf16.mxu0 0
        %508 = vmatpush1.bf16.xpose.msra.mxu0 %v505
        %509 = vmatprep.subr.bf16.mxu0 0
        %510 = vmatpush1.bf16.xpose.msra.mxu0 0
        %511 = vmatprep.subr.bf16.mxu0 0
        %512 = vmatpush1.bf16.xpose.msra.mxu0 0
        %513 = vmatprep.subr.bf16.mxu0 0
        %514 = vmatpush1.bf16.xpose.msra.mxu0 0
        %515 = vmatprep.subr.bf16.mxu0 0
        %516 = vmatpush1.bf16.xpose.msra.mxu0 0
        %517 = vmatprep.subr.bf16.mxu0 0
        %518 = vmatpush1.bf16.xpose.msra.mxu0 0
        %519 = vmatprep.subr.bf16.mxu0 0
        %520 = vmatpush1.bf16.xpose.msra.mxu0 0
        %521 = vmatprep.subr.bf16.mxu0 0
        %522 = vmatpush1.bf16.xpose.msra.mxu0 0
        %523 = vmatprep.subr.bf16.mxu0 0
        %524 = vmatpush1.bf16.xpose.msra.mxu0 0
        %525 = vmatprep.subr.bf16.mxu0 0
        %526 = vmatpush1.bf16.xpose.msra.mxu0 0
        %527 = vmatprep.subr.bf16.mxu0 0
        %528 = vmatpush1.bf16.xpose.msra.mxu0 0
        %529 = vmatprep.subr.bf16.mxu0 0
        %530 = vmatpush1.bf16.xpose.msra.mxu0 0
        %531 = vmatprep.subr.bf16.mxu0 0
        %532 = vmatpush1.bf16.xpose.msra.mxu0 0
        %533 = vmatprep.subr.bf16.mxu0 0
        %534 = vmatpush1.bf16.xpose.msra.mxu0 0
        %535 = vmatprep.subr.bf16.mxu0 0
        %536 = vmatpush1.bf16.xpose.msra.mxu0 0
        %537 = vmatprep.subr.bf16.mxu0 0
        %538 = vmatpush1.bf16.xpose.msra.mxu0 0
        %539 = vmatprep.mubr.bf16.mxu0 0
        %540 = vmatmul.mubr.bf16.gmra.mrb[0].mxu0 %v502
        %v541 = vpop.f32.mrb[0].mxu0
        %v542 = vadd.f32 0.0, %v541
        %v543 = vpop.f32.mrb[0].mxu0
        %v544 = vpop.f32.mrb[0].mxu0
        %v545 = vpop.f32.mrb[0].mxu0
        %546 = vdwg.mxu0
        %s547 = scalar_lea.vmem %s291, 2
        %v548 = vld [vmem:[%s547] sm:$0x1]
        %v549 = vunpack.c.l.bf16 %v548
        %s550 = scalar_lea.vmem %s291, 4
        %v551 = vld [vmem:[%s550] sm:$0x1]
        %v552 = vunpack.c.l.bf16 %v551
        %v553 = vunpack.c.l.bf16 %v293
        %v554 = vunpack.c.l.bf16 %v294
        %v555 = vunpack.c.l.bf16 %v295
        %v556 = vunpack.c.l.bf16 %v296
        %v557 = vunpack.c.l.bf16 %v297
        %v558 = vunpack.c.l.bf16 %v298
        %v559 = vunpack.c.l.bf16 %v299
        %v560 = vunpack.c.l.bf16 %v300
        %v561 = vlaneseq
        %v562 = vshrl.u32 %v561, 7
        %v563 = vsub.s32 0, %v562
        %v564 = vrot.slane %v549, %v563
        %v566 = vcombine.high %v564, %v564
        %v567 = vrot.slane %v564, 1
        %v568 = vrot.slane %v564, 2
        %v569 = vrot.slane %v564, 3
        %v570 = vrot.slane %v566, 1
        %v571 = vrot.slane %v566, 2
        %v572 = vrot.slane %v566, 3
        %v581 = vmul.f32 %v553, %v564
        %v582 = vmul.f32 %v554, %v567
        %v583 = vmul.f32 %v555, %v568
        %v584 = vmul.f32 %v556, %v569
        %v585 = vmul.f32 %v557, %v566
        %v586 = vmul.f32 %v558, %v570
        %v587 = vmul.f32 %v559, %v571
        %v588 = vmul.f32 %v560, %v572
        %v597 = vlaneseq
        %v598 = vshrl.u32 %v597, 7
        %v599 = vsub.s32 0, %v598
        %v600 = vrot.slane %v581, %v599
        %v601 = vlaneseq
        %v602 = vshrl.u32 %v601, 7
        %v603 = vsub.s32 0, %v602
        %v604 = vrot.slane %v582, %v603
        %v605 = vlaneseq
        %v606 = vshrl.u32 %v605, 7
        %v607 = vsub.s32 0, %v606
        %v608 = vrot.slane %v583, %v607
        %v609 = vlaneseq
        %v610 = vshrl.u32 %v609, 7
        %v611 = vsub.s32 0, %v610
        %v612 = vrot.slane %v584, %v611
        %v613 = vlaneseq
        %v614 = vshrl.u32 %v613, 7
        %v615 = vsub.s32 0, %v614
        %v616 = vrot.slane %v585, %v615
        %v617 = vlaneseq
        %v618 = vshrl.u32 %v617, 7
        %v619 = vsub.s32 0, %v618
        %v620 = vrot.slane %v586, %v619
        %v621 = vlaneseq
        %v622 = vshrl.u32 %v621, 7
        %v623 = vsub.s32 0, %v622
        %v624 = vrot.slane %v587, %v623
        %v625 = vlaneseq
        %v626 = vshrl.u32 %v625, 7
        %v627 = vsub.s32 0, %v626
        %v628 = vrot.slane %v588, %v627
        %v629 = vsel %vm392, %v604, %v600
        %v630 = vsel %vm395, %v608, %v629
        %v631 = vsel %vm398, %v612, %v630
        %v632 = vsel %vm401, %v616, %v631
        %v633 = vsel %vm404, %v620, %v632
        %v634 = vsel %vm407, %v624, %v633
        %v635 = vsel %vm410, %v628, %v634
        %v637 = vsel %vm500, %v635, 0.0
        %638 = vadd.xlane.f32.xlu0 %v637
        %v639 = vpop.xlane.xlu0 %638
        %v640 = vsel %vm500, %v542, -inf
        %641 = vmax.xlane.f32.xlu0 %v640
        %v642 = vpop.xlane.xlu0 %641
        %v643 = vmax.f32 %v642, %v639
        %v644 = vsub.f32 %v542, %v643
        %v645 = vmul.f32 %v644, 1.442695
        %v646 = vpow.pop %v645
        %v647 = vsub.f32 %v639, %v643
        %v648 = vmul.f32 %v647, 1.442695
        %v649 = vpow.pop %v648
        %v650 = vsel %vm500, %v646, 0.0
        %651 = vadd.xlane.f32.xlu0 %v650
        %v652 = vpop.xlane.xlu0 %651
        %v653 = vadd.f32 %v649, 0.0
        %v654 = vadd.f32 %v652, %v653
        %v655 = vpack.c.bf16 %v646, %v646
        %v656 = vlaneseq
        %v657 = vshrl.u32 %v656, 7
        %v658 = vsub.s32 0, %v657
        %v659 = vrot.slane %v552, %v658
        %v660 = vmul.f32 %v649, %v659
        %v670 = vunpack.c.l.s4 1983009808
        %v671 = vunpack.c.0.s8 %v670
        %v672 = vlaneseq
        %v673 = vshrl.u32 %v672, 7
        %v674 = vsub.s32 %v671, %v673
        %v675 = vrot.slane %v311, %v674
        %v677 = vunpack.c.l.s4 1983009808
        %v678 = vunpack.c.0.s8 %v677
        %v679 = vlaneseq
        %v680 = vshrl.u32 %v679, 7
        %v681 = vsub.s32 %v678, %v680
        %v682 = vrot.slane %v312, %v681
        %v684 = vunpack.c.l.s4 1983009808
        %v685 = vunpack.c.0.s8 %v684
        %v686 = vlaneseq
        %v687 = vshrl.u32 %v686, 7
        %v688 = vsub.s32 %v685, %v687
        %v689 = vrot.slane %v313, %v688
        %v691 = vunpack.c.l.s4 1983009808
        %v692 = vunpack.c.0.s8 %v691
        %v693 = vlaneseq
        %v694 = vshrl.u32 %v693, 7
        %v695 = vsub.s32 %v692, %v694
        %v696 = vrot.slane %v314, %v695
        %v698 = vunpack.c.l.s4 1983009808
        %v699 = vunpack.c.0.s8 %v698
        %v700 = vlaneseq
        %v701 = vshrl.u32 %v700, 7
        %v702 = vsub.s32 %v699, %v701
        %v703 = vrot.slane %v315, %v702
        %v705 = vunpack.c.l.s4 1983009808
        %v706 = vunpack.c.0.s8 %v705
        %v707 = vlaneseq
        %v708 = vshrl.u32 %v707, 7
        %v709 = vsub.s32 %v706, %v708
        %v710 = vrot.slane %v316, %v709
        %v712 = vunpack.c.l.s4 1983009808
        %v713 = vunpack.c.0.s8 %v712
        %v714 = vlaneseq
        %v715 = vshrl.u32 %v714, 7
        %v716 = vsub.s32 %v713, %v715
        %v717 = vrot.slane %v317, %v716
        %v719 = vunpack.c.l.s4 1983009808
        %v720 = vunpack.c.0.s8 %v719
        %v721 = vlaneseq
        %v722 = vshrl.u32 %v721, 7
        %v723 = vsub.s32 %v720, %v722
        %v724 = vrot.slane %v318, %v723
        %v725 = vunpack.c.l.b16 %v675
        %v726 = vunpack.c.l.b16 %v682
        %v727 = vunpack.c.l.b16 %v689
        %v728 = vunpack.c.l.b16 %v696
        %v729 = vunpack.c.l.b16 %v703
        %v730 = vunpack.c.l.b16 %v710
        %v731 = vunpack.c.l.b16 %v717
        %v732 = vunpack.c.l.b16 %v724
        %v733 = vrot.slane %v726, 7
        %v734 = vsel %vm392, %v733, %v725
        %v735 = vrot.slane %v727, 6
        %v736 = vsel %vm395, %v735, %v734
        %v737 = vrot.slane %v728, 5
        %v738 = vsel %vm398, %v737, %v736
        %v739 = vrot.slane %v729, 4
        %v740 = vsel %vm401, %v739, %v738
        %v741 = vrot.slane %v730, 3
        %v742 = vsel %vm404, %v741, %v740
        %v743 = vrot.slane %v731, 2
        %v744 = vsel %vm407, %v743, %v742
        %v745 = vrot.slane %v732, 1
        %v746 = vsel %vm410, %v745, %v744
        %v747 = vpack.c.b16 %v746, %v746
        %v749 = vsel %vm500, %v655, 0
        %vm751 = vcmask 1043456
        %v753 = vsel %vm751, %v747, 0
        %755 = vmatprep.subr.bf16.mxu0 0
        %756 = vmatpush1.bf16.msra.mxu0 %v753
        %757 = vmatprep.subr.bf16.mxu0 0
        %758 = vmatpush1.bf16.msra.mxu0 0
        %759 = vmatprep.subr.bf16.mxu0 0
        %760 = vmatpush1.bf16.msra.mxu0 0
        %761 = vmatprep.subr.bf16.mxu0 0
        %762 = vmatpush1.bf16.msra.mxu0 0
        %763 = vmatprep.subr.bf16.mxu0 0
        %764 = vmatpush1.bf16.msra.mxu0 0
        %765 = vmatprep.subr.bf16.mxu0 0
        %766 = vmatpush1.bf16.msra.mxu0 0
        %767 = vmatprep.subr.bf16.mxu0 0
        %768 = vmatpush1.bf16.msra.mxu0 0
        %769 = vmatprep.subr.bf16.mxu0 0
        %770 = vmatpush1.bf16.msra.mxu0 0
        %771 = vmatprep.subr.bf16.mxu0 0
        %772 = vmatpush1.bf16.msra.mxu0 0
        %773 = vmatprep.subr.bf16.mxu0 0
        %774 = vmatpush1.bf16.msra.mxu0 0
        %775 = vmatprep.subr.bf16.mxu0 0
        %776 = vmatpush1.bf16.msra.mxu0 0
        %777 = vmatprep.subr.bf16.mxu0 0
        %778 = vmatpush1.bf16.msra.mxu0 0
        %779 = vmatprep.subr.bf16.mxu0 0
        %780 = vmatpush1.bf16.msra.mxu0 0
        %781 = vmatprep.subr.bf16.mxu0 0
        %782 = vmatpush1.bf16.msra.mxu0 0
        %783 = vmatprep.subr.bf16.mxu0 0
        %784 = vmatpush1.bf16.msra.mxu0 0
        %785 = vmatprep.subr.bf16.mxu0 0
        %786 = vmatpush1.bf16.msra.mxu0 0
        %787 = vmatprep.mubr.bf16.mxu0 0
        %788 = vmatmul.mubr.bf16.gmra.mrb[0].mxu0 %v749
        %v789 = vpop.f32.mrb[0].mxu0
        %v790 = vadd.f32 %v660, %v789
        %v791 = vpop.f32.mrb[0].mxu0
        %v792 = vpop.f32.mrb[0].mxu0
        %v793 = vpop.f32.mrb[0].mxu0
        %794 = vdwg.mxu0
        %v795 = vrcp.pop %v654
        %v796 = vmul.f32 %v790, %v795
        %v797 = vpack.c.bf16 %v796, %v796
        %v800 = vunpack.c.l.s4 1966171168
        %v801 = vunpack.c.0.s8 %v800
        %v802 = vlaneseq
        %v803 = vshrl.u32 %v802, 7
        %v804 = vsub.s32 %v801, %v803
        %v805 = vrot.slane %v797, %v804
        %v806 = vcombine.high %v805, %v805
        %v808 = vunpack.c.l.s4 1966171168
        %v809 = vunpack.c.0.s8 %v808
        %v810 = vlaneseq
        %v811 = vshrl.u32 %v810, 7
        %v812 = vsub.s32 %v809, %v811
        %v813 = vrot.slane %v805, %v812
        %v815 = vunpack.c.l.s4 1966171168
        %v816 = vunpack.c.0.s8 %v815
        %v817 = vlaneseq
        %v818 = vshrl.u32 %v817, 7
        %v819 = vsub.s32 %v816, %v818
        %v820 = vrot.slane %v806, %v819
        %v821 = vcombine.high %v813, %v813
        %v822 = vcombine.high %v820, %v820
        %v823 = vunpack.i.l.s16 %v813
        %v824 = vunpack.i.h.s16 %v813
        %v825 = vunpack.i.l.s16 %v820
        %v826 = vunpack.i.h.s16 %v820
        %v827 = vunpack.i.l.s16 %v821
        %v828 = vunpack.i.h.s16 %v821
        %v829 = vunpack.i.l.s16 %v822
        %v830 = vunpack.i.h.s16 %v822
        %v831 = vpack.i.b16 %v823, %v823
        %v832 = vpack.i.b16 %v824, %v824
        %v833 = vpack.i.b16 %v825, %v825
        %v834 = vpack.i.b16 %v826, %v826
        %v835 = vpack.i.b16 %v827, %v827
        %v836 = vpack.i.b16 %v828, %v828
        %v837 = vpack.i.b16 %v829, %v829
        %v838 = vpack.i.b16 %v830, %v830
        %v840 = vunpack.c.l.s4 857870592
        %v841 = vunpack.c.0.s8 %v840
        %v842 = vlaneseq
        %v843 = vshrl.u32 %v842, 7
        %v844 = vsub.s32 %v841, %v843
        %v845 = vrot.slane %v831, %v844
        %v847 = vunpack.c.l.s4 857870592
        %v848 = vunpack.c.0.s8 %v847
        %v849 = vlaneseq
        %v850 = vshrl.u32 %v849, 7
        %v851 = vsub.s32 %v848, %v850
        %v852 = vrot.slane %v832, %v851
        %v854 = vunpack.c.l.s4 857870592
        %v855 = vunpack.c.0.s8 %v854
        %v856 = vlaneseq
        %v857 = vshrl.u32 %v856, 7
        %v858 = vsub.s32 %v855, %v857
        %v859 = vrot.slane %v833, %v858
        %v861 = vunpack.c.l.s4 857870592
        %v862 = vunpack.c.0.s8 %v861
        %v863 = vlaneseq
        %v864 = vshrl.u32 %v863, 7
        %v865 = vsub.s32 %v862, %v864
        %v866 = vrot.slane %v834, %v865
        %v868 = vunpack.c.l.s4 857870592
        %v869 = vunpack.c.0.s8 %v868
        %v870 = vlaneseq
        %v871 = vshrl.u32 %v870, 7
        %v872 = vsub.s32 %v869, %v871
        %v873 = vrot.slane %v835, %v872
        %v875 = vunpack.c.l.s4 857870592
        %v876 = vunpack.c.0.s8 %v875
        %v877 = vlaneseq
        %v878 = vshrl.u32 %v877, 7
        %v879 = vsub.s32 %v876, %v878
        %v880 = vrot.slane %v836, %v879
        %v882 = vunpack.c.l.s4 857870592
        %v883 = vunpack.c.0.s8 %v882
        %v884 = vlaneseq
        %v885 = vshrl.u32 %v884, 7
        %v886 = vsub.s32 %v883, %v885
        %v887 = vrot.slane %v837, %v886
        %v889 = vunpack.c.l.s4 857870592
        %v890 = vunpack.c.0.s8 %v889
        %v891 = vlaneseq
        %v892 = vshrl.u32 %v891, 7
        %v893 = vsub.s32 %v890, %v892
        %v894 = vrot.slane %v838, %v893
        %vm903 = vcmask 57344
        %vm904 = vsmask.f32 256
        %vm905 = vmand %vm903, %vm904
        %v906 = vld [vmem:[%s286] sm:$0x1]
        %v907 = vsel %vm905, %v845, %v906
        %908 = vst [vmem:[%s286] sm:$0x1] %v907
        %v909 = vld [vmem:[%s286 + $0x2] sm:$0x1]
        %v910 = vsel %vm905, %v852, %v909
        %911 = vst [vmem:[%s286 + $0x2] sm:$0x1] %v910
        %v912 = vld [vmem:[%s286 + $0x4] sm:$0x1]
        %v913 = vsel %vm905, %v859, %v912
        %914 = vst [vmem:[%s286 + $0x4] sm:$0x1] %v913
        %v915 = vld [vmem:[%s286 + $0x6] sm:$0x1]
        %v916 = vsel %vm905, %v866, %v915
        %917 = vst [vmem:[%s286 + $0x6] sm:$0x1] %v916
        %v918 = vld [vmem:[%s286 + $0x8] sm:$0x1]
        %v919 = vsel %vm905, %v873, %v918
        %920 = vst [vmem:[%s286 + $0x8] sm:$0x1] %v919
        %v921 = vld [vmem:[%s286 + $0xa] sm:$0x1]
        %v922 = vsel %vm905, %v880, %v921
        %923 = vst [vmem:[%s286 + $0xa] sm:$0x1] %v922
        %v924 = vld [vmem:[%s286 + $0xc] sm:$0x1]
        %v925 = vsel %vm905, %v887, %v924
        %926 = vst [vmem:[%s286 + $0xc] sm:$0x1] %v925
        %v927 = vld [vmem:[%s286 + $0xe] sm:$0x1]
        %v928 = vsel %vm905, %v894, %v927
        %929 = vst [vmem:[%s286 + $0xe] sm:$0x1] %v928
        %v930 = vld [vmem:[%s264] sm:$0x1]
        %v931 = vld [vmem:[%s264 + $0x6] sm:$0x1]
        %v932 = vld [vmem:[%s264 + $0xc] sm:$0x1]
        %v933 = vld [vmem:[%s264 + $0x12] sm:$0x1]
        %v934 = vld [vmem:[%s264 + $0x18] sm:$0x1]
        %v935 = vld [vmem:[%s264 + $0x1e] sm:$0x1]
        %v936 = vld [vmem:[%s264 + $0x24] sm:$0x1]
        %v937 = vld [vmem:[%s264 + $0x2a] sm:$0x1]
        %v938 = vld [vmem:[%s301] sm:$0x1]
        %v939 = vld [vmem:[%s301 + $0x6] sm:$0x1]
        %v940 = vld [vmem:[%s301 + $0xc] sm:$0x1]
        %v941 = vld [vmem:[%s301 + $0x12] sm:$0x1]
        %v942 = vld [vmem:[%s301 + $0x18] sm:$0x1]
        %v943 = vld [vmem:[%s301 + $0x1e] sm:$0x1]
        %v944 = vld [vmem:[%s301 + $0x24] sm:$0x1]
        %v945 = vld [vmem:[%s301 + $0x2a] sm:$0x1]
        %v946 = vld [vmem:[%s310] sm:$0x1]
        %v947 = vld [vmem:[%s310 + $0x6] sm:$0x1]
        %v948 = vld [vmem:[%s310 + $0xc] sm:$0x1]
        %v949 = vld [vmem:[%s310 + $0x12] sm:$0x1]
        %v950 = vld [vmem:[%s310 + $0x18] sm:$0x1]
        %v951 = vld [vmem:[%s310 + $0x1e] sm:$0x1]
        %v952 = vld [vmem:[%s310 + $0x24] sm:$0x1]
        %v953 = vld [vmem:[%s310 + $0x2a] sm:$0x1]
        %v963 = vunpack.c.l.s4 1983009808
        %v964 = vunpack.c.0.s8 %v963
        %v965 = vlaneseq
        %v966 = vshrl.u32 %v965, 7
        %v967 = vsub.s32 %v964, %v966
        %v968 = vrot.slane %v930, %v967
        %v970 = vunpack.c.l.s4 1983009808
        %v971 = vunpack.c.0.s8 %v970
        %v972 = vlaneseq
        %v973 = vshrl.u32 %v972, 7
        %v974 = vsub.s32 %v971, %v973
        %v975 = vrot.slane %v931, %v974
        %v977 = vunpack.c.l.s4 1983009808
        %v978 = vunpack.c.0.s8 %v977
        %v979 = vlaneseq
        %v980 = vshrl.u32 %v979, 7
        %v981 = vsub.s32 %v978, %v980
        %v982 = vrot.slane %v932, %v981
        %v984 = vunpack.c.l.s4 1983009808
        %v985 = vunpack.c.0.s8 %v984
        %v986 = vlaneseq
        %v987 = vshrl.u32 %v986, 7
        %v988 = vsub.s32 %v985, %v987
        %v989 = vrot.slane %v933, %v988
        %v991 = vunpack.c.l.s4 1983009808
        %v992 = vunpack.c.0.s8 %v991
        %v993 = vlaneseq
        %v994 = vshrl.u32 %v993, 7
        %v995 = vsub.s32 %v992, %v994
        %v996 = vrot.slane %v934, %v995
        %v998 = vunpack.c.l.s4 1983009808
        %v999 = vunpack.c.0.s8 %v998
        %v1000 = vlaneseq
        %v1001 = vshrl.u32 %v1000, 7
        %v1002 = vsub.s32 %v999, %v1001
        %v1003 = vrot.slane %v935, %v1002
        %v1005 = vunpack.c.l.s4 1983009808
        %v1006 = vunpack.c.0.s8 %v1005
        %v1007 = vlaneseq
        %v1008 = vshrl.u32 %v1007, 7
        %v1009 = vsub.s32 %v1006, %v1008
        %v1010 = vrot.slane %v936, %v1009
        %v1012 = vunpack.c.l.s4 1983009808
        %v1013 = vunpack.c.0.s8 %v1012
        %v1014 = vlaneseq
        %v1015 = vshrl.u32 %v1014, 7
        %v1016 = vsub.s32 %v1013, %v1015
        %v1017 = vrot.slane %v937, %v1016
        %v1018 = vunpack.c.l.b16 %v968
        %v1019 = vunpack.c.l.b16 %v975
        %v1020 = vunpack.c.l.b16 %v982
        %v1021 = vunpack.c.l.b16 %v989
        %v1022 = vunpack.c.l.b16 %v996
        %v1023 = vunpack.c.l.b16 %v1003
        %v1024 = vunpack.c.l.b16 %v1010
        %v1025 = vunpack.c.l.b16 %v1017
        %v1026 = vrot.slane %v1018, 1
        %v1027 = vsel %vm392, %v1019, %v1026
        %v1028 = vrot.slane %v1020, 7
        %v1029 = vsel %vm395, %v1028, %v1027
        %v1030 = vrot.slane %v1021, 6
        %v1031 = vsel %vm398, %v1030, %v1029
        %v1032 = vrot.slane %v1022, 5
        %v1033 = vsel %vm401, %v1032, %v1031
        %v1034 = vrot.slane %v1023, 4
        %v1035 = vsel %vm404, %v1034, %v1033
        %v1036 = vrot.slane %v1024, 3
        %v1037 = vsel %vm407, %v1036, %v1035
        %v1038 = vrot.slane %v1025, 2
        %v1039 = vsel %vm410, %v1038, %v1037
        %v1040 = vpack.c.b16 %v1039, %v1039
        %v1050 = vunpack.c.l.s4 1983009808
        %v1051 = vunpack.c.0.s8 %v1050
        %v1052 = vlaneseq
        %v1053 = vshrl.u32 %v1052, 7
        %v1054 = vsub.s32 %v1051, %v1053
        %v1055 = vrot.slane %v938, %v1054
        %v1057 = vunpack.c.l.s4 1983009808
        %v1058 = vunpack.c.0.s8 %v1057
        %v1059 = vlaneseq
        %v1060 = vshrl.u32 %v1059, 7
        %v1061 = vsub.s32 %v1058, %v1060
        %v1062 = vrot.slane %v939, %v1061
        %v1064 = vunpack.c.l.s4 1983009808
        %v1065 = vunpack.c.0.s8 %v1064
        %v1066 = vlaneseq
        %v1067 = vshrl.u32 %v1066, 7
        %v1068 = vsub.s32 %v1065, %v1067
        %v1069 = vrot.slane %v940, %v1068
        %v1071 = vunpack.c.l.s4 1983009808
        %v1072 = vunpack.c.0.s8 %v1071
        %v1073 = vlaneseq
        %v1074 = vshrl.u32 %v1073, 7
        %v1075 = vsub.s32 %v1072, %v1074
        %v1076 = vrot.slane %v941, %v1075
        %v1078 = vunpack.c.l.s4 1983009808
        %v1079 = vunpack.c.0.s8 %v1078
        %v1080 = vlaneseq
        %v1081 = vshrl.u32 %v1080, 7
        %v1082 = vsub.s32 %v1079, %v1081
        %v1083 = vrot.slane %v942, %v1082
        %v1085 = vunpack.c.l.s4 1983009808
        %v1086 = vunpack.c.0.s8 %v1085
        %v1087 = vlaneseq
        %v1088 = vshrl.u32 %v1087, 7
        %v1089 = vsub.s32 %v1086, %v1088
        %v1090 = vrot.slane %v943, %v1089
        %v1092 = vunpack.c.l.s4 1983009808
        %v1093 = vunpack.c.0.s8 %v1092
        %v1094 = vlaneseq
        %v1095 = vshrl.u32 %v1094, 7
        %v1096 = vsub.s32 %v1093, %v1095
        %v1097 = vrot.slane %v944, %v1096
        %v1099 = vunpack.c.l.s4 1983009808
        %v1100 = vunpack.c.0.s8 %v1099
        %v1101 = vlaneseq
        %v1102 = vshrl.u32 %v1101, 7
        %v1103 = vsub.s32 %v1100, %v1102
        %v1104 = vrot.slane %v945, %v1103
        %v1105 = vunpack.c.l.b16 %v1055
        %v1106 = vunpack.c.l.b16 %v1062
        %v1107 = vunpack.c.l.b16 %v1069
        %v1108 = vunpack.c.l.b16 %v1076
        %v1109 = vunpack.c.l.b16 %v1083
        %v1110 = vunpack.c.l.b16 %v1090
        %v1111 = vunpack.c.l.b16 %v1097
        %v1112 = vunpack.c.l.b16 %v1104
        %v1113 = vrot.slane %v1105, 1
        %v1114 = vsel %vm392, %v1106, %v1113
        %v1115 = vrot.slane %v1107, 7
        %v1116 = vsel %vm395, %v1115, %v1114
        %v1117 = vrot.slane %v1108, 6
        %v1118 = vsel %vm398, %v1117, %v1116
        %v1119 = vrot.slane %v1109, 5
        %v1120 = vsel %vm401, %v1119, %v1118
        %v1121 = vrot.slane %v1110, 4
        %v1122 = vsel %vm404, %v1121, %v1120
        %v1123 = vrot.slane %v1111, 3
        %v1124 = vsel %vm407, %v1123, %v1122
        %v1125 = vrot.slane %v1112, 2
        %v1126 = vsel %vm410, %v1125, %v1124
        %v1127 = vpack.c.b16 %v1126, %v1126
        %v1129 = vsel %vm500, %v1040, 0
        %v1132 = vsel %vm500, %v1127, 0
        %1134 = vmatprep.subr.bf16.mxu0 0
        %1135 = vmatpush1.bf16.xpose.msra.mxu0 %v1132
        %1136 = vmatprep.subr.bf16.mxu0 0
        %1137 = vmatpush1.bf16.xpose.msra.mxu0 0
        %1138 = vmatprep.subr.bf16.mxu0 0
        %1139 = vmatpush1.bf16.xpose.msra.mxu0 0
        %1140 = vmatprep.subr.bf16.mxu0 0
        %1141 = vmatpush1.bf16.xpose.msra.mxu0 0
        %1142 = vmatprep.subr.bf16.mxu0 0
        %1143 = vmatpush1.bf16.xpose.msra.mxu0 0
        %1144 = vmatprep.subr.bf16.mxu0 0
        %1145 = vmatpush1.bf16.xpose.msra.mxu0 0
        %1146 = vmatprep.subr.bf16.mxu0 0
        %1147 = vmatpush1.bf16.xpose.msra.mxu0 0
        %1148 = vmatprep.subr.bf16.mxu0 0
        %1149 = vmatpush1.bf16.xpose.msra.mxu0 0
        %1150 = vmatprep.subr.bf16.mxu0 0
        %1151 = vmatpush1.bf16.xpose.msra.mxu0 0
        %1152 = vmatprep.subr.bf16.mxu0 0
        %1153 = vmatpush1.bf16.xpose.msra.mxu0 0
        %1154 = vmatprep.subr.bf16.mxu0 0
        %1155 = vmatpush1.bf16.xpose.msra.mxu0 0
        %1156 = vmatprep.subr.bf16.mxu0 0
        %1157 = vmatpush1.bf16.xpose.msra.mxu0 0
        %1158 = vmatprep.subr.bf16.mxu0 0
        %1159 = vmatpush1.bf16.xpose.msra.mxu0 0
        %1160 = vmatprep.subr.bf16.mxu0 0
        %1161 = vmatpush1.bf16.xpose.msra.mxu0 0
        %1162 = vmatprep.subr.bf16.mxu0 0
        %1163 = vmatpush1.bf16.xpose.msra.mxu0 0
        %1164 = vmatprep.subr.bf16.mxu0 0
        %1165 = vmatpush1.bf16.xpose.msra.mxu0 0
        %1166 = vmatprep.mubr.bf16.mxu0 0
        %1167 = vmatmul.mubr.bf16.gmra.mrb[0].mxu0 %v1129
        %v1168 = vpop.f32.mrb[0].mxu0
        %v1169 = vadd.f32 0.0, %v1168
        %v1170 = vpop.f32.mrb[0].mxu0
        %v1171 = vpop.f32.mrb[0].mxu0
        %v1172 = vpop.f32.mrb[0].mxu0
        %1173 = vdwg.mxu0
        %v1174 = vld [vmem:[%s547] sm:$0x1]
        %v1175 = vunpack.c.l.bf16 %v1174
        %v1176 = vld [vmem:[%s550] sm:$0x1]
        %v1177 = vunpack.c.l.bf16 %v1176
        %v1178 = vunpack.c.l.bf16 %v930
        %v1179 = vunpack.c.l.bf16 %v931
        %v1180 = vunpack.c.l.bf16 %v932
        %v1181 = vunpack.c.l.bf16 %v933
        %v1182 = vunpack.c.l.bf16 %v934
        %v1183 = vunpack.c.l.bf16 %v935
        %v1184 = vunpack.c.l.bf16 %v936
        %v1185 = vunpack.c.l.bf16 %v937
        %v1186 = vlaneseq
        %v1187 = vshrl.u32 %v1186, 7
        %v1188 = vsub.s32 1, %v1187
        %v1189 = vrot.slane %v1175, %v1188
        %v1191 = vcombine.high %v1189, %v1189
        %v1192 = vrot.slane %v1189, 7
        %v1193 = vrot.slane %v1189, 1
        %v1194 = vrot.slane %v1189, 2
        %v1195 = vrot.slane %v1191, 7
        %v1196 = vrot.slane %v1191, 1
        %v1197 = vrot.slane %v1191, 2
        %v1206 = vmul.f32 %v1178, %v1192
        %v1207 = vmul.f32 %v1179, %v1189
        %v1208 = vmul.f32 %v1180, %v1193
        %v1209 = vmul.f32 %v1181, %v1194
        %v1210 = vmul.f32 %v1182, %v1195
        %v1211 = vmul.f32 %v1183, %v1191
        %v1212 = vmul.f32 %v1184, %v1196
        %v1213 = vmul.f32 %v1185, %v1197
        %v1222 = vlaneseq
        %v1223 = vshrl.u32 %v1222, 7
        %v1224 = vsub.s32 1, %v1223
        %v1225 = vrot.slane %v1206, %v1224
        %v1226 = vlaneseq
        %v1227 = vshrl.u32 %v1226, 7
        %v1228 = vsub.s32 1, %v1227
        %v1229 = vrot.slane %v1207, %v1228
        %v1230 = vlaneseq
        %v1231 = vshrl.u32 %v1230, 7
        %v1232 = vsub.s32 1, %v1231
        %v1233 = vrot.slane %v1208, %v1232
        %v1234 = vlaneseq
        %v1235 = vshrl.u32 %v1234, 7
        %v1236 = vsub.s32 1, %v1235
        %v1237 = vrot.slane %v1209, %v1236
        %v1238 = vlaneseq
        %v1239 = vshrl.u32 %v1238, 7
        %v1240 = vsub.s32 1, %v1239
        %v1241 = vrot.slane %v1210, %v1240
        %v1242 = vlaneseq
        %v1243 = vshrl.u32 %v1242, 7
        %v1244 = vsub.s32 1, %v1243
        %v1245 = vrot.slane %v1211, %v1244
        %v1246 = vlaneseq
        %v1247 = vshrl.u32 %v1246, 7
        %v1248 = vsub.s32 1, %v1247
        %v1249 = vrot.slane %v1212, %v1248
        %v1250 = vlaneseq
        %v1251 = vshrl.u32 %v1250, 7
        %v1252 = vsub.s32 1, %v1251
        %v1253 = vrot.slane %v1213, %v1252
        %v1254 = vsel %vm395, %v1229, %v1225
        %v1255 = vsel %vm398, %v1233, %v1254
        %v1256 = vsel %vm401, %v1237, %v1255
        %v1257 = vsel %vm404, %v1241, %v1256
        %v1258 = vsel %vm407, %v1245, %v1257
        %v1259 = vsel %vm410, %v1249, %v1258
        %vm1262 = vcmask 64513
        %v1263 = vsel %vm1262, %v1259, 0.0
        %1264 = vadd.xlane.f32.xlu0 %v1263
        %v1265 = vpop.xlane.xlu0 %1264
        %vm1266 = vcmask 57344
        %v1267 = vsel %vm1266, %v1253, 0.0
        %1268 = vadd.xlane.f32.xlu0 %v1267
        %v1269 = vpop.xlane.xlu0 %1268
        %v1270 = vsel %vm500, %v1169, -inf
        %1271 = vmax.xlane.f32.xlu0 %v1270
        %v1272 = vpop.xlane.xlu0 %1271
        %vm1275 = vcmask 1046528
        %v1276 = vrot.slane %v1265, 1
        %v1277 = vrot.slane %v1269, 1
        %v1278 = vsel %vm1275, %v1276, %v1277
        %v1280 = vmax.f32 %v1272, %v1278
        %1282 = vset.pattern.permute.xlu0 0
        %1283 = vperm.xlu0 %1282, %v1280
        %v1284 = vpop.permute.xlu0 %1283
        %v1286 = vsub.f32 %v1169, %v1284
        %v1287 = vmul.f32 %v1286, 1.442695
        %v1288 = vpow.pop %v1287
        %v1289 = vrot.slane %v1280, 7
        %v1291 = vsub.f32 %v1265, %v1289
        %v1292 = vsub.f32 %v1269, %v1289
        %v1293 = vmul.f32 %v1291, 1.442695
        %v1294 = vpow.pop %v1293
        %v1295 = vmul.f32 %v1292, 1.442695
        %v1296 = vpow.pop %v1295
        %v1297 = vsel %vm500, %v1288, 0.0
        %1298 = vadd.xlane.f32.xlu0 %v1297
        %v1299 = vpop.xlane.xlu0 %1298
        %v1300 = vadd.f32 %v1294, 0.0
        %v1301 = vadd.f32 %v1296, 0.0
        %v1304 = vrot.slane %v1300, 1
        %v1305 = vrot.slane %v1301, 1
        %v1306 = vsel %vm1275, %v1304, %v1305
        %v1308 = vadd.f32 %v1299, %v1306
        %v1309 = vpack.c.bf16 %v1288, %v1288
        %1311 = vset.pattern.permute.xlu0 0
        %1312 = vperm.xlu0 %1311, %v1294
        %v1313 = vpop.permute.xlu0 %1312
        %1316 = vset.pattern.permute.xlu0 0
        %1317 = vperm.xlu0 %1316, %v1296
        %v1318 = vpop.permute.xlu0 %1317
        %v1320 = vlaneseq
        %v1321 = vshrl.u32 %v1320, 7
        %v1322 = vsub.s32 1, %v1321
        %v1323 = vrot.slane %v1177, %v1322
        %v1324 = vmul.f32 %v1313, %v1323
        %v1325 = vmul.f32 %v1318, %v1323
        %v1335 = vunpack.c.l.s4 1983009808
        %v1336 = vunpack.c.0.s8 %v1335
        %v1337 = vlaneseq
        %v1338 = vshrl.u32 %v1337, 7
        %v1339 = vsub.s32 %v1336, %v1338
        %v1340 = vrot.slane %v946, %v1339
        %v1342 = vunpack.c.l.s4 1983009808
        %v1343 = vunpack.c.0.s8 %v1342
        %v1344 = vlaneseq
        %v1345 = vshrl.u32 %v1344, 7
        %v1346 = vsub.s32 %v1343, %v1345
        %v1347 = vrot.slane %v947, %v1346
        %v1349 = vunpack.c.l.s4 1983009808
        %v1350 = vunpack.c.0.s8 %v1349
        %v1351 = vlaneseq
        %v1352 = vshrl.u32 %v1351, 7
        %v1353 = vsub.s32 %v1350, %v1352
        %v1354 = vrot.slane %v948, %v1353
        %v1356 = vunpack.c.l.s4 1983009808
        %v1357 = vunpack.c.0.s8 %v1356
        %v1358 = vlaneseq
        %v1359 = vshrl.u32 %v1358, 7
        %v1360 = vsub.s32 %v1357, %v1359
        %v1361 = vrot.slane %v949, %v1360
        %v1363 = vunpack.c.l.s4 1983009808
        %v1364 = vunpack.c.0.s8 %v1363
        %v1365 = vlaneseq
        %v1366 = vshrl.u32 %v1365, 7
        %v1367 = vsub.s32 %v1364, %v1366
        %v1368 = vrot.slane %v950, %v1367
        %v1370 = vunpack.c.l.s4 1983009808
        %v1371 = vunpack.c.0.s8 %v1370
        %v1372 = vlaneseq
        %v1373 = vshrl.u32 %v1372, 7
        %v1374 = vsub.s32 %v1371, %v1373
        %v1375 = vrot.slane %v951, %v1374
        %v1377 = vunpack.c.l.s4 1983009808
        %v1378 = vunpack.c.0.s8 %v1377
        %v1379 = vlaneseq
        %v1380 = vshrl.u32 %v1379, 7
        %v1381 = vsub.s32 %v1378, %v1380
        %v1382 = vrot.slane %v952, %v1381
        %v1384 = vunpack.c.l.s4 1983009808
        %v1385 = vunpack.c.0.s8 %v1384
        %v1386 = vlaneseq
        %v1387 = vshrl.u32 %v1386, 7
        %v1388 = vsub.s32 %v1385, %v1387
        %v1389 = vrot.slane %v953, %v1388
        %v1390 = vunpack.c.l.b16 %v1340
        %v1391 = vunpack.c.l.b16 %v1347
        %v1392 = vunpack.c.l.b16 %v1354
        %v1393 = vunpack.c.l.b16 %v1361
        %v1394 = vunpack.c.l.b16 %v1368
        %v1395 = vunpack.c.l.b16 %v1375
        %v1396 = vunpack.c.l.b16 %v1382
        %v1397 = vunpack.c.l.b16 %v1389
        %v1398 = vrot.slane %v1390, 1
        %v1399 = vsel %vm392, %v1391, %v1398
        %v1400 = vrot.slane %v1392, 7
        %v1401 = vsel %vm395, %v1400, %v1399
        %v1402 = vrot.slane %v1393, 6
        %v1403 = vsel %vm398, %v1402, %v1401
        %v1404 = vrot.slane %v1394, 5
        %v1405 = vsel %vm401, %v1404, %v1403
        %v1406 = vrot.slane %v1395, 4
        %v1407 = vsel %vm404, %v1406, %v1405
        %v1408 = vrot.slane %v1396, 3
        %v1409 = vsel %vm407, %v1408, %v1407
        %v1410 = vrot.slane %v1397, 2
        %v1411 = vsel %vm410, %v1410, %v1409
        %v1412 = vpack.c.b16 %v1411, %v1411
        %v1415 = vrot.slane %v1324, 1
        %v1416 = vrot.slane %v1325, 1
        %v1417 = vsel %vm1275, %v1415, %v1416
        %v1420 = vsel %vm500, %v1309, 0
        %v1423 = vsel %vm751, %v1412, 0
        %1425 = vmatprep.subr.bf16.mxu0 0
        %1426 = vmatpush1.bf16.msra.mxu0 %v1423
        %1427 = vmatprep.subr.bf16.mxu0 0
        %1428 = vmatpush1.bf16.msra.mxu0 0
        %1429 = vmatprep.subr.bf16.mxu0 0
        %1430 = vmatpush1.bf16.msra.mxu0 0
        %1431 = vmatprep.subr.bf16.mxu0 0
        %1432 = vmatpush1.bf16.msra.mxu0 0
        %1433 = vmatprep.subr.bf16.mxu0 0
        %1434 = vmatpush1.bf16.msra.mxu0 0
        %1435 = vmatprep.subr.bf16.mxu0 0
        %1436 = vmatpush1.bf16.msra.mxu0 0
        %1437 = vmatprep.subr.bf16.mxu0 0
        %1438 = vmatpush1.bf16.msra.mxu0 0
        %1439 = vmatprep.subr.bf16.mxu0 0
        %1440 = vmatpush1.bf16.msra.mxu0 0
        %1441 = vmatprep.subr.bf16.mxu0 0
        %1442 = vmatpush1.bf16.msra.mxu0 0
        %1443 = vmatprep.subr.bf16.mxu0 0
        %1444 = vmatpush1.bf16.msra.mxu0 0
        %1445 = vmatprep.subr.bf16.mxu0 0
        %1446 = vmatpush1.bf16.msra.mxu0 0
        %1447 = vmatprep.subr.bf16.mxu0 0
        %1448 = vmatpush1.bf16.msra.mxu0 0
        %1449 = vmatprep.subr.bf16.mxu0 0
        %1450 = vmatpush1.bf16.msra.mxu0 0
        %1451 = vmatprep.subr.bf16.mxu0 0
        %1452 = vmatpush1.bf16.msra.mxu0 0
        %1453 = vmatprep.subr.bf16.mxu0 0
        %1454 = vmatpush1.bf16.msra.mxu0 0
        %1455 = vmatprep.subr.bf16.mxu0 0
        %1456 = vmatpush1.bf16.msra.mxu0 0
        %1457 = vmatprep.mubr.bf16.mxu0 0
        %1458 = vmatmul.mubr.bf16.gmra.mrb[0].mxu0 %v1420
        %v1459 = vpop.f32.mrb[0].mxu0
        %v1460 = vadd.f32 %v1417, %v1459
        %v1461 = vpop.f32.mrb[0].mxu0
        %v1462 = vpop.f32.mrb[0].mxu0
        %v1463 = vpop.f32.mrb[0].mxu0
        %1464 = vdwg.mxu0
        %v1465 = vrcp.pop %v1308
        %1467 = vset.pattern.permute.xlu0 0
        %1468 = vperm.xlu0 %1467, %v1465
        %v1469 = vpop.permute.xlu0 %1468
        %v1471 = vmul.f32 %v1460, %v1469
        %v1472 = vpack.c.bf16 %v1471, %v1471
        %v1475 = vunpack.c.l.s4 1966171168
        %v1476 = vunpack.c.0.s8 %v1475
        %v1477 = vlaneseq
        %v1478 = vshrl.u32 %v1477, 7
        %v1479 = vsub.s32 %v1476, %v1478
        %v1480 = vrot.slane %v1472, %v1479
        %v1481 = vcombine.high %v1480, %v1480
        %v1483 = vunpack.c.l.s4 1966171168
        %v1484 = vunpack.c.0.s8 %v1483
        %v1485 = vlaneseq
        %v1486 = vshrl.u32 %v1485, 7
        %v1487 = vsub.s32 %v1484, %v1486
        %v1488 = vrot.slane %v1480, %v1487
        %v1490 = vunpack.c.l.s4 1966171168
        %v1491 = vunpack.c.0.s8 %v1490
        %v1492 = vlaneseq
        %v1493 = vshrl.u32 %v1492, 7
        %v1494 = vsub.s32 %v1491, %v1493
        %v1495 = vrot.slane %v1481, %v1494
        %v1496 = vcombine.high %v1488, %v1488
        %v1497 = vcombine.high %v1495, %v1495
        %v1498 = vunpack.i.l.s16 %v1488
        %v1499 = vunpack.i.h.s16 %v1488
        %v1500 = vunpack.i.l.s16 %v1495
        %v1501 = vunpack.i.h.s16 %v1495
        %v1502 = vunpack.i.l.s16 %v1496
        %v1503 = vunpack.i.h.s16 %v1496
        %v1504 = vunpack.i.l.s16 %v1497
        %v1505 = vunpack.i.h.s16 %v1497
        %v1506 = vpack.i.b16 %v1498, %v1498
        %v1507 = vpack.i.b16 %v1499, %v1499
        %v1508 = vpack.i.b16 %v1500, %v1500
        %v1509 = vpack.i.b16 %v1501, %v1501
        %v1510 = vpack.i.b16 %v1502, %v1502
        %v1511 = vpack.i.b16 %v1503, %v1503
        %v1512 = vpack.i.b16 %v1504, %v1504
        %v1513 = vpack.i.b16 %v1505, %v1505
        %v1515 = vunpack.c.l.s4 857870592
        %v1516 = vunpack.c.0.s8 %v1515
        %v1517 = vlaneseq
        %v1518 = vshrl.u32 %v1517, 7
        %v1519 = vsub.s32 %v1516, %v1518
        %v1520 = vrot.slane %v1506, %v1519
        %v1522 = vunpack.c.l.s4 857870592
        %v1523 = vunpack.c.0.s8 %v1522
        %v1524 = vlaneseq
        %v1525 = vshrl.u32 %v1524, 7
        %v1526 = vsub.s32 %v1523, %v1525
        %v1527 = vrot.slane %v1507, %v1526
        %v1529 = vunpack.c.l.s4 857870592
        %v1530 = vunpack.c.0.s8 %v1529
        %v1531 = vlaneseq
        %v1532 = vshrl.u32 %v1531, 7
        %v1533 = vsub.s32 %v1530, %v1532
        %v1534 = vrot.slane %v1508, %v1533
        %v1536 = vunpack.c.l.s4 857870592
        %v1537 = vunpack.c.0.s8 %v1536
        %v1538 = vlaneseq
        %v1539 = vshrl.u32 %v1538, 7
        %v1540 = vsub.s32 %v1537, %v1539
        %v1541 = vrot.slane %v1509, %v1540
        %v1543 = vunpack.c.l.s4 857870592
        %v1544 = vunpack.c.0.s8 %v1543
        %v1545 = vlaneseq
        %v1546 = vshrl.u32 %v1545, 7
        %v1547 = vsub.s32 %v1544, %v1546
        %v1548 = vrot.slane %v1510, %v1547
        %v1550 = vunpack.c.l.s4 857870592
        %v1551 = vunpack.c.0.s8 %v1550
        %v1552 = vlaneseq
        %v1553 = vshrl.u32 %v1552, 7
        %v1554 = vsub.s32 %v1551, %v1553
        %v1555 = vrot.slane %v1511, %v1554
        %v1557 = vunpack.c.l.s4 857870592
        %v1558 = vunpack.c.0.s8 %v1557
        %v1559 = vlaneseq
        %v1560 = vshrl.u32 %v1559, 7
        %v1561 = vsub.s32 %v1558, %v1560
        %v1562 = vrot.slane %v1512, %v1561
        %v1564 = vunpack.c.l.s4 857870592
        %v1565 = vunpack.c.0.s8 %v1564
        %v1566 = vlaneseq
        %v1567 = vshrl.u32 %v1566, 7
        %v1568 = vsub.s32 %v1565, %v1567
        %v1569 = vrot.slane %v1513, %v1568
        %vm1578 = vsmask.f32 7938
        %vm1579 = vmand %vm903, %vm1578
        %v1580 = vld [vmem:[%s286] sm:$0x1]
        %v1581 = vsel %vm1579, %v1520, %v1580
        %1582 = vst [vmem:[%s286] sm:$0x1] %v1581
        %v1583 = vld [vmem:[%s286 + $0x2] sm:$0x1]
        %v1584 = vsel %vm1579, %v1527, %v1583
        %1585 = vst [vmem:[%s286 + $0x2] sm:$0x1] %v1584
        %v1586 = vld [vmem:[%s286 + $0x4] sm:$0x1]
        %v1587 = vsel %vm1579, %v1534, %v1586
        %1588 = vst [vmem:[%s286 + $0x4] sm:$0x1] %v1587
        %v1589 = vld [vmem:[%s286 + $0x6] sm:$0x1]
        %v1590 = vsel %vm1579, %v1541, %v1589
        %1591 = vst [vmem:[%s286 + $0x6] sm:$0x1] %v1590
        %v1592 = vld [vmem:[%s286 + $0x8] sm:$0x1]
        %v1593 = vsel %vm1579, %v1548, %v1592
        %1594 = vst [vmem:[%s286 + $0x8] sm:$0x1] %v1593
        %v1595 = vld [vmem:[%s286 + $0xa] sm:$0x1]
        %v1596 = vsel %vm1579, %v1555, %v1595
        %1597 = vst [vmem:[%s286 + $0xa] sm:$0x1] %v1596
        %v1598 = vld [vmem:[%s286 + $0xc] sm:$0x1]
        %v1599 = vsel %vm1579, %v1562, %v1598
        %1600 = vst [vmem:[%s286 + $0xc] sm:$0x1] %v1599
        %v1601 = vld [vmem:[%s286 + $0xe] sm:$0x1]
        %v1602 = vsel %vm1579, %v1569, %v1601
        %1603 = vst [vmem:[%s286 + $0xe] sm:$0x1] %v1602
        %v1604 = vld [vmem:[%s264] sm:$0x2]
        %v1605 = vld [vmem:[%s264 + $0x6] sm:$0x2]
        %v1606 = vld [vmem:[%s264 + $0xc] sm:$0x2]
        %v1607 = vld [vmem:[%s264 + $0x12] sm:$0x2]
        %v1608 = vld [vmem:[%s264 + $0x18] sm:$0x2]
        %v1609 = vld [vmem:[%s264 + $0x1e] sm:$0x2]
        %v1610 = vld [vmem:[%s264 + $0x24] sm:$0x2]
        %v1611 = vld [vmem:[%s264 + $0x2a] sm:$0x2]
        %v1612 = vld [vmem:[%s301] sm:$0x2]
        %v1613 = vld [vmem:[%s301 + $0x6] sm:$0x2]
        %v1614 = vld [vmem:[%s301 + $0xc] sm:$0x2]
        %v1615 = vld [vmem:[%s301 + $0x12] sm:$0x2]
        %v1616 = vld [vmem:[%s301 + $0x18] sm:$0x2]
        %v1617 = vld [vmem:[%s301 + $0x1e] sm:$0x2]
        %v1618 = vld [vmem:[%s301 + $0x24] sm:$0x2]
        %v1619 = vld [vmem:[%s301 + $0x2a] sm:$0x2]
        %v1620 = vld [vmem:[%s310] sm:$0x2]
        %v1621 = vld [vmem:[%s310 + $0x6] sm:$0x2]
        %v1622 = vld [vmem:[%s310 + $0xc] sm:$0x2]
        %v1623 = vld [vmem:[%s310 + $0x12] sm:$0x2]
        %v1624 = vld [vmem:[%s310 + $0x18] sm:$0x2]
        %v1625 = vld [vmem:[%s310 + $0x1e] sm:$0x2]
        %v1626 = vld [vmem:[%s310 + $0x24] sm:$0x2]
        %v1627 = vld [vmem:[%s310 + $0x2a] sm:$0x2]
        %v1637 = vunpack.c.l.s4 1983009808
        %v1638 = vunpack.c.0.s8 %v1637
        %v1639 = vlaneseq
        %v1640 = vshrl.u32 %v1639, 7
        %v1641 = vsub.s32 %v1638, %v1640
        %v1642 = vrot.slane %v1604, %v1641
        %v1644 = vunpack.c.l.s4 1983009808
        %v1645 = vunpack.c.0.s8 %v1644
        %v1646 = vlaneseq
        %v1647 = vshrl.u32 %v1646, 7
        %v1648 = vsub.s32 %v1645, %v1647
        %v1649 = vrot.slane %v1605, %v1648
        %v1651 = vunpack.c.l.s4 1983009808
        %v1652 = vunpack.c.0.s8 %v1651
        %v1653 = vlaneseq
        %v1654 = vshrl.u32 %v1653, 7
        %v1655 = vsub.s32 %v1652, %v1654
        %v1656 = vrot.slane %v1606, %v1655
        %v1658 = vunpack.c.l.s4 1983009808
        %v1659 = vunpack.c.0.s8 %v1658
        %v1660 = vlaneseq
        %v1661 = vshrl.u32 %v1660, 7
        %v1662 = vsub.s32 %v1659, %v1661
        %v1663 = vrot.slane %v1607, %v1662
        %v1665 = vunpack.c.l.s4 1983009808
        %v1666 = vunpack.c.0.s8 %v1665
        %v1667 = vlaneseq
        %v1668 = vshrl.u32 %v1667, 7
        %v1669 = vsub.s32 %v1666, %v1668
        %v1670 = vrot.slane %v1608, %v1669
        %v1672 = vunpack.c.l.s4 1983009808
        %v1673 = vunpack.c.0.s8 %v1672
        %v1674 = vlaneseq
        %v1675 = vshrl.u32 %v1674, 7
        %v1676 = vsub.s32 %v1673, %v1675
        %v1677 = vrot.slane %v1609, %v1676
        %v1679 = vunpack.c.l.s4 1983009808
        %v1680 = vunpack.c.0.s8 %v1679
        %v1681 = vlaneseq
        %v1682 = vshrl.u32 %v1681, 7
        %v1683 = vsub.s32 %v1680, %v1682
        %v1684 = vrot.slane %v1610, %v1683
        %v1686 = vunpack.c.l.s4 1983009808
        %v1687 = vunpack.c.0.s8 %v1686
        %v1688 = vlaneseq
        %v1689 = vshrl.u32 %v1688, 7
        %v1690 = vsub.s32 %v1687, %v1689
        %v1691 = vrot.slane %v1611, %v1690
        %v1692 = vunpack.c.l.b16 %v1642
        %v1693 = vunpack.c.l.b16 %v1649
        %v1694 = vunpack.c.l.b16 %v1656
        %v1695 = vunpack.c.l.b16 %v1663
        %v1696 = vunpack.c.l.b16 %v1670
        %v1697 = vunpack.c.l.b16 %v1677
        %v1698 = vunpack.c.l.b16 %v1684
        %v1699 = vunpack.c.l.b16 %v1691
        %v1700 = vrot.slane %v1692, 2
        %v1701 = vrot.slane %v1693, 1
        %v1702 = vsel %vm392, %v1701, %v1700
        %v1703 = vsel %vm395, %v1694, %v1702
        %v1704 = vrot.slane %v1695, 7
        %v1705 = vsel %vm398, %v1704, %v1703
        %v1706 = vrot.slane %v1696, 6
        %v1707 = vsel %vm401, %v1706, %v1705
        %v1708 = vrot.slane %v1697, 5
        %v1709 = vsel %vm404, %v1708, %v1707
        %v1710 = vrot.slane %v1698, 4
        %v1711 = vsel %vm407, %v1710, %v1709
        %v1712 = vrot.slane %v1699, 3
        %v1713 = vsel %vm410, %v1712, %v1711
        %v1714 = vpack.c.b16 %v1713, %v1713
        %v1724 = vunpack.c.l.s4 1983009808
        %v1725 = vunpack.c.0.s8 %v1724
        %v1726 = vlaneseq
        %v1727 = vshrl.u32 %v1726, 7
        %v1728 = vsub.s32 %v1725, %v1727
        %v1729 = vrot.slane %v1612, %v1728
        %v1731 = vunpack.c.l.s4 1983009808
        %v1732 = vunpack.c.0.s8 %v1731
        %v1733 = vlaneseq
        %v1734 = vshrl.u32 %v1733, 7
        %v1735 = vsub.s32 %v1732, %v1734
        %v1736 = vrot.slane %v1613, %v1735
        %v1738 = vunpack.c.l.s4 1983009808
        %v1739 = vunpack.c.0.s8 %v1738
        %v1740 = vlaneseq
        %v1741 = vshrl.u32 %v1740, 7
        %v1742 = vsub.s32 %v1739, %v1741
        %v1743 = vrot.slane %v1614, %v1742
        %v1745 = vunpack.c.l.s4 1983009808
        %v1746 = vunpack.c.0.s8 %v1745
        %v1747 = vlaneseq
        %v1748 = vshrl.u32 %v1747, 7
        %v1749 = vsub.s32 %v1746, %v1748
        %v1750 = vrot.slane %v1615, %v1749
        %v1752 = vunpack.c.l.s4 1983009808
        %v1753 = vunpack.c.0.s8 %v1752
        %v1754 = vlaneseq
        %v1755 = vshrl.u32 %v1754, 7
        %v1756 = vsub.s32 %v1753, %v1755
        %v1757 = vrot.slane %v1616, %v1756
        %v1759 = vunpack.c.l.s4 1983009808
        %v1760 = vunpack.c.0.s8 %v1759
        %v1761 = vlaneseq
        %v1762 = vshrl.u32 %v1761, 7
        %v1763 = vsub.s32 %v1760, %v1762
        %v1764 = vrot.slane %v1617, %v1763
        %v1766 = vunpack.c.l.s4 1983009808
        %v1767 = vunpack.c.0.s8 %v1766
        %v1768 = vlaneseq
        %v1769 = vshrl.u32 %v1768, 7
        %v1770 = vsub.s32 %v1767, %v1769
        %v1771 = vrot.slane %v1618, %v1770
        %v1773 = vunpack.c.l.s4 1983009808
        %v1774 = vunpack.c.0.s8 %v1773
        %v1775 = vlaneseq
        %v1776 = vshrl.u32 %v1775, 7
        %v1777 = vsub.s32 %v1774, %v1776
        %v1778 = vrot.slane %v1619, %v1777
        %v1779 = vunpack.c.l.b16 %v1729
        %v1780 = vunpack.c.l.b16 %v1736
        %v1781 = vunpack.c.l.b16 %v1743
        %v1782 = vunpack.c.l.b16 %v1750
        %v1783 = vunpack.c.l.b16 %v1757
        %v1784 = vunpack.c.l.b16 %v1764
        %v1785 = vunpack.c.l.b16 %v1771
        %v1786 = vunpack.c.l.b16 %v1778
        %v1787 = vrot.slane %v1779, 2
        %v1788 = vrot.slane %v1780, 1
        %v1789 = vsel %vm392, %v1788, %v1787
        %v1790 = vsel %vm395, %v1781, %v1789
        %v1791 = vrot.slane %v1782, 7
        %v1792 = vsel %vm398, %v1791, %v1790
        %v1793 = vrot.slane %v1783, 6
        %v1794 = vsel %vm401, %v1793, %v1792
        %v1795 = vrot.slane %v1784, 5
        %v1796 = vsel %vm404, %v1795, %v1794
        %v1797 = vrot.slane %v1785, 4
        %v1798 = vsel %vm407, %v1797, %v1796
        %v1799 = vrot.slane %v1786, 3
        %v1800 = vsel %vm410, %v1799, %v1798
        %v1801 = vpack.c.b16 %v1800, %v1800
        %v1803 = vsel %vm500, %v1714, 0
        %v1806 = vsel %vm500, %v1801, 0
        %1808 = vmatprep.subr.bf16.mxu0 0
        %1809 = vmatpush1.bf16.xpose.msra.mxu0 %v1806
        %1810 = vmatprep.subr.bf16.mxu0 0
        %1811 = vmatpush1.bf16.xpose.msra.mxu0 0
        %1812 = vmatprep.subr.bf16.mxu0 0
        %1813 = vmatpush1.bf16.xpose.msra.mxu0 0
        %1814 = vmatprep.subr.bf16.mxu0 0
        %1815 = vmatpush1.bf16.xpose.msra.mxu0 0
        %1816 = vmatprep.subr.bf16.mxu0 0
        %1817 = vmatpush1.bf16.xpose.msra.mxu0 0
        %1818 = vmatprep.subr.bf16.mxu0 0
        %1819 = vmatpush1.bf16.xpose.msra.mxu0 0
        %1820 = vmatprep.subr.bf16.mxu0 0
        %1821 = vmatpush1.bf16.xpose.msra.mxu0 0
        %1822 = vmatprep.subr.bf16.mxu0 0
        %1823 = vmatpush1.bf16.xpose.msra.mxu0 0
        %1824 = vmatprep.subr.bf16.mxu0 0
        %1825 = vmatpush1.bf16.xpose.msra.mxu0 0
        %1826 = vmatprep.subr.bf16.mxu0 0
        %1827 = vmatpush1.bf16.xpose.msra.mxu0 0
        %1828 = vmatprep.subr.bf16.mxu0 0
        %1829 = vmatpush1.bf16.xpose.msra.mxu0 0
        %1830 = vmatprep.subr.bf16.mxu0 0
        %1831 = vmatpush1.bf16.xpose.msra.mxu0 0
        %1832 = vmatprep.subr.bf16.mxu0 0
        %1833 = vmatpush1.bf16.xpose.msra.mxu0 0
        %1834 = vmatprep.subr.bf16.mxu0 0
        %1835 = vmatpush1.bf16.xpose.msra.mxu0 0
        %1836 = vmatprep.subr.bf16.mxu0 0
        %1837 = vmatpush1.bf16.xpose.msra.mxu0 0
        %1838 = vmatprep.subr.bf16.mxu0 0
        %1839 = vmatpush1.bf16.xpose.msra.mxu0 0
        %1840 = vmatprep.mubr.bf16.mxu0 0
        %1841 = vmatmul.mubr.bf16.gmra.mrb[0].mxu0 %v1803
        %v1842 = vpop.f32.mrb[0].mxu0
        %v1843 = vadd.f32 0.0, %v1842
        %v1844 = vpop.f32.mrb[0].mxu0
        %v1845 = vpop.f32.mrb[0].mxu0
        %v1846 = vpop.f32.mrb[0].mxu0
        %1847 = vdwg.mxu0
        %v1848 = vld [vmem:[%s547] sm:$0x2]
        %v1849 = vunpack.c.l.bf16 %v1848
        %v1850 = vld [vmem:[%s550] sm:$0x2]
        %v1851 = vunpack.c.l.bf16 %v1850
        %v1852 = vunpack.c.l.bf16 %v1604
        %v1853 = vunpack.c.l.bf16 %v1605
        %v1854 = vunpack.c.l.bf16 %v1606
        %v1855 = vunpack.c.l.bf16 %v1607
        %v1856 = vunpack.c.l.bf16 %v1608
        %v1857 = vunpack.c.l.bf16 %v1609
        %v1858 = vunpack.c.l.bf16 %v1610
        %v1859 = vunpack.c.l.bf16 %v1611
        %v1860 = vlaneseq
        %v1861 = vshrl.u32 %v1860, 7
        %v1862 = vsub.s32 2, %v1861
        %v1863 = vrot.slane %v1849, %v1862
        %v1865 = vcombine.high %v1863, %v1863
        %v1866 = vrot.slane %v1863, 6
        %v1867 = vrot.slane %v1863, 7
        %v1868 = vrot.slane %v1863, 1
        %v1869 = vrot.slane %v1865, 6
        %v1870 = vrot.slane %v1865, 7
        %v1871 = vrot.slane %v1865, 1
        %v1880 = vmul.f32 %v1852, %v1866
        %v1881 = vmul.f32 %v1853, %v1867
        %v1882 = vmul.f32 %v1854, %v1863
        %v1883 = vmul.f32 %v1855, %v1868
        %v1884 = vmul.f32 %v1856, %v1869
        %v1885 = vmul.f32 %v1857, %v1870
        %v1886 = vmul.f32 %v1858, %v1865
        %v1887 = vmul.f32 %v1859, %v1871
        %v1896 = vlaneseq
        %v1897 = vshrl.u32 %v1896, 7
        %v1898 = vsub.s32 2, %v1897
        %v1899 = vrot.slane %v1880, %v1898
        %v1900 = vlaneseq
        %v1901 = vshrl.u32 %v1900, 7
        %v1902 = vsub.s32 2, %v1901
        %v1903 = vrot.slane %v1881, %v1902
        %v1904 = vlaneseq
        %v1905 = vshrl.u32 %v1904, 7
        %v1906 = vsub.s32 2, %v1905
        %v1907 = vrot.slane %v1882, %v1906
        %v1908 = vlaneseq
        %v1909 = vshrl.u32 %v1908, 7
        %v1910 = vsub.s32 2, %v1909
        %v1911 = vrot.slane %v1883, %v1910
        %v1912 = vlaneseq
        %v1913 = vshrl.u32 %v1912, 7
        %v1914 = vsub.s32 2, %v1913
        %v1915 = vrot.slane %v1884, %v1914
        %v1916 = vlaneseq
        %v1917 = vshrl.u32 %v1916, 7
        %v1918 = vsub.s32 2, %v1917
        %v1919 = vrot.slane %v1885, %v1918
        %v1920 = vlaneseq
        %v1921 = vshrl.u32 %v1920, 7
        %v1922 = vsub.s32 2, %v1921
        %v1923 = vrot.slane %v1886, %v1922
        %v1924 = vlaneseq
        %v1925 = vshrl.u32 %v1924, 7
        %v1926 = vsub.s32 2, %v1925
        %v1927 = vrot.slane %v1887, %v1926
        %v1928 = vsel %vm398, %v1903, %v1899
        %v1929 = vsel %vm401, %v1907, %v1928
        %v1930 = vsel %vm404, %v1911, %v1929
        %v1931 = vsel %vm407, %v1915, %v1930
        %v1932 = vsel %vm410, %v1919, %v1931
        %v1933 = vsel %vm392, %v1927, %v1923
        %vm1936 = vcmask 64514
        %v1937 = vsel %vm1936, %v1932, 0.0
        %1938 = vadd.xlane.f32.xlu0 %v1937
        %v1939 = vpop.xlane.xlu0 %1938
        %vm1940 = vcmask 58368
        %v1941 = vsel %vm1940, %v1933, 0.0
        %1942 = vadd.xlane.f32.xlu0 %v1941
        %v1943 = vpop.xlane.xlu0 %1942
        %v1944 = vsel %vm500, %v1843, -inf
        %1945 = vmax.xlane.f32.xlu0 %v1944
        %v1946 = vpop.xlane.xlu0 %1945
        %vm1949 = vcmask 1045504
        %v1950 = vrot.slane %v1939, 2
        %v1951 = vrot.slane %v1943, 2
        %v1952 = vsel %vm1949, %v1950, %v1951
        %v1954 = vmax.f32 %v1946, %v1952
        %1956 = vset.pattern.permute.xlu0 0
        %1957 = vperm.xlu0 %1956, %v1954
        %v1958 = vpop.permute.xlu0 %1957
        %v1960 = vsub.f32 %v1843, %v1958
        %v1961 = vmul.f32 %v1960, 1.442695
        %v1962 = vpow.pop %v1961
        %v1963 = vrot.slane %v1954, 6
        %v1965 = vsub.f32 %v1939, %v1963
        %v1966 = vsub.f32 %v1943, %v1963
        %v1967 = vmul.f32 %v1965, 1.442695
        %v1968 = vpow.pop %v1967
        %v1969 = vmul.f32 %v1966, 1.442695
        %v1970 = vpow.pop %v1969
        %v1971 = vsel %vm500, %v1962, 0.0
        %1972 = vadd.xlane.f32.xlu0 %v1971
        %v1973 = vpop.xlane.xlu0 %1972
        %v1974 = vadd.f32 %v1968, 0.0
        %v1975 = vadd.f32 %v1970, 0.0
        %v1978 = vrot.slane %v1974, 2
        %v1979 = vrot.slane %v1975, 2
        %v1980 = vsel %vm1949, %v1978, %v1979
        %v1982 = vadd.f32 %v1973, %v1980
        %v1983 = vpack.c.bf16 %v1962, %v1962
        %1985 = vset.pattern.permute.xlu0 0
        %1986 = vperm.xlu0 %1985, %v1968
        %v1987 = vpop.permute.xlu0 %1986
        %1990 = vset.pattern.permute.xlu0 0
        %1991 = vperm.xlu0 %1990, %v1970
        %v1992 = vpop.permute.xlu0 %1991
        %v1994 = vlaneseq
        %v1995 = vshrl.u32 %v1994, 7
        %v1996 = vsub.s32 2, %v1995
        %v1997 = vrot.slane %v1851, %v1996
        %v1998 = vmul.f32 %v1987, %v1997
        %v1999 = vmul.f32 %v1992, %v1997
        %v2009 = vunpack.c.l.s4 1983009808
        %v2010 = vunpack.c.0.s8 %v2009
        %v2011 = vlaneseq
        %v2012 = vshrl.u32 %v2011, 7
        %v2013 = vsub.s32 %v2010, %v2012
        %v2014 = vrot.slane %v1620, %v2013
        %v2016 = vunpack.c.l.s4 1983009808
        %v2017 = vunpack.c.0.s8 %v2016
        %v2018 = vlaneseq
        %v2019 = vshrl.u32 %v2018, 7
        %v2020 = vsub.s32 %v2017, %v2019
        %v2021 = vrot.slane %v1621, %v2020
        %v2023 = vunpack.c.l.s4 1983009808
        %v2024 = vunpack.c.0.s8 %v2023
        %v2025 = vlaneseq
        %v2026 = vshrl.u32 %v2025, 7
        %v2027 = vsub.s32 %v2024, %v2026
        %v2028 = vrot.slane %v1622, %v2027
        %v2030 = vunpack.c.l.s4 1983009808
        %v2031 = vunpack.c.0.s8 %v2030
        %v2032 = vlaneseq
        %v2033 = vshrl.u32 %v2032, 7
        %v2034 = vsub.s32 %v2031, %v2033
        %v2035 = vrot.slane %v1623, %v2034
        %v2037 = vunpack.c.l.s4 1983009808
        %v2038 = vunpack.c.0.s8 %v2037
        %v2039 = vlaneseq
        %v2040 = vshrl.u32 %v2039, 7
        %v2041 = vsub.s32 %v2038, %v2040
        %v2042 = vrot.slane %v1624, %v2041
        %v2044 = vunpack.c.l.s4 1983009808
        %v2045 = vunpack.c.0.s8 %v2044
        %v2046 = vlaneseq
        %v2047 = vshrl.u32 %v2046, 7
        %v2048 = vsub.s32 %v2045, %v2047
        %v2049 = vrot.slane %v1625, %v2048
        %v2051 = vunpack.c.l.s4 1983009808
        %v2052 = vunpack.c.0.s8 %v2051
        %v2053 = vlaneseq
        %v2054 = vshrl.u32 %v2053, 7
        %v2055 = vsub.s32 %v2052, %v2054
        %v2056 = vrot.slane %v1626, %v2055
        %v2058 = vunpack.c.l.s4 1983009808
        %v2059 = vunpack.c.0.s8 %v2058
        %v2060 = vlaneseq
        %v2061 = vshrl.u32 %v2060, 7
        %v2062 = vsub.s32 %v2059, %v2061
        %v2063 = vrot.slane %v1627, %v2062
        %v2064 = vunpack.c.l.b16 %v2014
        %v2065 = vunpack.c.l.b16 %v2021
        %v2066 = vunpack.c.l.b16 %v2028
        %v2067 = vunpack.c.l.b16 %v2035
        %v2068 = vunpack.c.l.b16 %v2042
        %v2069 = vunpack.c.l.b16 %v2049
        %v2070 = vunpack.c.l.b16 %v2056
        %v2071 = vunpack.c.l.b16 %v2063
        %v2072 = vrot.slane %v2064, 2
        %v2073 = vrot.slane %v2065, 1
        %v2074 = vsel %vm392, %v2073, %v2072
        %v2075 = vsel %vm395, %v2066, %v2074
        %v2076 = vrot.slane %v2067, 7
        %v2077 = vsel %vm398, %v2076, %v2075
        %v2078 = vrot.slane %v2068, 6
        %v2079 = vsel %vm401, %v2078, %v2077
        %v2080 = vrot.slane %v2069, 5
        %v2081 = vsel %vm404, %v2080, %v2079
        %v2082 = vrot.slane %v2070, 4
        %v2083 = vsel %vm407, %v2082, %v2081
        %v2084 = vrot.slane %v2071, 3
        %v2085 = vsel %vm410, %v2084, %v2083
        %v2086 = vpack.c.b16 %v2085, %v2085
        %v2089 = vrot.slane %v1998, 2
        %v2090 = vrot.slane %v1999, 2
        %v2091 = vsel %vm1949, %v2089, %v2090
        %v2094 = vsel %vm500, %v1983, 0
        %v2097 = vsel %vm751, %v2086, 0
        %2099 = vmatprep.subr.bf16.mxu0 0
        %2100 = vmatpush1.bf16.msra.mxu0 %v2097
        %2101 = vmatprep.subr.bf16.mxu0 0
        %2102 = vmatpush1.bf16.msra.mxu0 0
        %2103 = vmatprep.subr.bf16.mxu0 0
        %2104 = vmatpush1.bf16.msra.mxu0 0
        %2105 = vmatprep.subr.bf16.mxu0 0
        %2106 = vmatpush1.bf16.msra.mxu0 0
        %2107 = vmatprep.subr.bf16.mxu0 0
        %2108 = vmatpush1.bf16.msra.mxu0 0
        %2109 = vmatprep.subr.bf16.mxu0 0
        %2110 = vmatpush1.bf16.msra.mxu0 0
        %2111 = vmatprep.subr.bf16.mxu0 0
        %2112 = vmatpush1.bf16.msra.mxu0 0
        %2113 = vmatprep.subr.bf16.mxu0 0
        %2114 = vmatpush1.bf16.msra.mxu0 0
        %2115 = vmatprep.subr.bf16.mxu0 0
        %2116 = vmatpush1.bf16.msra.mxu0 0
        %2117 = vmatprep.subr.bf16.mxu0 0
        %2118 = vmatpush1.bf16.msra.mxu0 0
        %2119 = vmatprep.subr.bf16.mxu0 0
        %2120 = vmatpush1.bf16.msra.mxu0 0
        %2121 = vmatprep.subr.bf16.mxu0 0
        %2122 = vmatpush1.bf16.msra.mxu0 0
        %2123 = vmatprep.subr.bf16.mxu0 0
        %2124 = vmatpush1.bf16.msra.mxu0 0
        %2125 = vmatprep.subr.bf16.mxu0 0
        %2126 = vmatpush1.bf16.msra.mxu0 0
        %2127 = vmatprep.subr.bf16.mxu0 0
        %2128 = vmatpush1.bf16.msra.mxu0 0
        %2129 = vmatprep.subr.bf16.mxu0 0
        %2130 = vmatpush1.bf16.msra.mxu0 0
        %2131 = vmatprep.mubr.bf16.mxu0 0
        %2132 = vmatmul.mubr.bf16.gmra.mrb[0].mxu0 %v2094
        %v2133 = vpop.f32.mrb[0].mxu0
        %v2134 = vadd.f32 %v2091, %v2133
        %v2135 = vpop.f32.mrb[0].mxu0
        %v2136 = vpop.f32.mrb[0].mxu0
        %v2137 = vpop.f32.mrb[0].mxu0
        %2138 = vdwg.mxu0
        %v2139 = vrcp.pop %v1982
        %2141 = vset.pattern.permute.xlu0 0
        %2142 = vperm.xlu0 %2141, %v2139
        %v2143 = vpop.permute.xlu0 %2142
        %v2145 = vmul.f32 %v2134, %v2143
        %v2146 = vpack.c.bf16 %v2145, %v2145
        %v2149 = vunpack.c.l.s4 1966171168
        %v2150 = vunpack.c.0.s8 %v2149
        %v2151 = vlaneseq
        %v2152 = vshrl.u32 %v2151, 7
        %v2153 = vsub.s32 %v2150, %v2152
        %v2154 = vrot.slane %v2146, %v2153
        %v2155 = vcombine.high %v2154, %v2154
        %v2157 = vunpack.c.l.s4 1966171168
        %v2158 = vunpack.c.0.s8 %v2157
        %v2159 = vlaneseq
        %v2160 = vshrl.u32 %v2159, 7
        %v2161 = vsub.s32 %v2158, %v2160
        %v2162 = vrot.slane %v2154, %v2161
        %v2164 = vunpack.c.l.s4 1966171168
        %v2165 = vunpack.c.0.s8 %v2164
        %v2166 = vlaneseq
        %v2167 = vshrl.u32 %v2166, 7
        %v2168 = vsub.s32 %v2165, %v2167
        %v2169 = vrot.slane %v2155, %v2168
        %v2170 = vcombine.high %v2162, %v2162
        %v2171 = vcombine.high %v2169, %v2169
        %v2172 = vunpack.i.l.s16 %v2162
        %v2173 = vunpack.i.h.s16 %v2162
        %v2174 = vunpack.i.l.s16 %v2169
        %v2175 = vunpack.i.h.s16 %v2169
        %v2176 = vunpack.i.l.s16 %v2170
        %v2177 = vunpack.i.h.s16 %v2170
        %v2178 = vunpack.i.l.s16 %v2171
        %v2179 = vunpack.i.h.s16 %v2171
        %v2180 = vpack.i.b16 %v2172, %v2172
        %v2181 = vpack.i.b16 %v2173, %v2173
        %v2182 = vpack.i.b16 %v2174, %v2174
        %v2183 = vpack.i.b16 %v2175, %v2175
        %v2184 = vpack.i.b16 %v2176, %v2176
        %v2185 = vpack.i.b16 %v2177, %v2177
        %v2186 = vpack.i.b16 %v2178, %v2178
        %v2187 = vpack.i.b16 %v2179, %v2179
        %v2189 = vunpack.c.l.s4 857870592
        %v2190 = vunpack.c.0.s8 %v2189
        %v2191 = vlaneseq
        %v2192 = vshrl.u32 %v2191, 7
        %v2193 = vsub.s32 %v2190, %v2192
        %v2194 = vrot.slane %v2180, %v2193
        %v2196 = vunpack.c.l.s4 857870592
        %v2197 = vunpack.c.0.s8 %v2196
        %v2198 = vlaneseq
        %v2199 = vshrl.u32 %v2198, 7
        %v2200 = vsub.s32 %v2197, %v2199
        %v2201 = vrot.slane %v2181, %v2200
        %v2203 = vunpack.c.l.s4 857870592
        %v2204 = vunpack.c.0.s8 %v2203
        %v2205 = vlaneseq
        %v2206 = vshrl.u32 %v2205, 7
        %v2207 = vsub.s32 %v2204, %v2206
        %v2208 = vrot.slane %v2182, %v2207
        %v2210 = vunpack.c.l.s4 857870592
        %v2211 = vunpack.c.0.s8 %v2210
        %v2212 = vlaneseq
        %v2213 = vshrl.u32 %v2212, 7
        %v2214 = vsub.s32 %v2211, %v2213
        %v2215 = vrot.slane %v2183, %v2214
        %v2217 = vunpack.c.l.s4 857870592
        %v2218 = vunpack.c.0.s8 %v2217
        %v2219 = vlaneseq
        %v2220 = vshrl.u32 %v2219, 7
        %v2221 = vsub.s32 %v2218, %v2220
        %v2222 = vrot.slane %v2184, %v2221
        %v2224 = vunpack.c.l.s4 857870592
        %v2225 = vunpack.c.0.s8 %v2224
        %v2226 = vlaneseq
        %v2227 = vshrl.u32 %v2226, 7
        %v2228 = vsub.s32 %v2225, %v2227
        %v2229 = vrot.slane %v2185, %v2228
        %v2231 = vunpack.c.l.s4 857870592
        %v2232 = vunpack.c.0.s8 %v2231
        %v2233 = vlaneseq
        %v2234 = vshrl.u32 %v2233, 7
        %v2235 = vsub.s32 %v2232, %v2234
        %v2236 = vrot.slane %v2186, %v2235
        %v2238 = vunpack.c.l.s4 857870592
        %v2239 = vunpack.c.0.s8 %v2238
        %v2240 = vlaneseq
        %v2241 = vshrl.u32 %v2240, 7
        %v2242 = vsub.s32 %v2239, %v2241
        %v2243 = vrot.slane %v2187, %v2242
        %vm2252 = vcmask 58369
        %vm2253 = vsmask.f32 1280
        %vm2254 = vmand %vm2252, %vm2253
        %v2255 = vld [vmem:[%s286] sm:$0x2]
        %v2256 = vsel %vm2254, %v2194, %v2255
        %2257 = vst [vmem:[%s286] sm:$0x2] %v2256
        %v2258 = vld [vmem:[%s286 + $0x2] sm:$0x2]
        %v2259 = vsel %vm2254, %v2201, %v2258
        %2260 = vst [vmem:[%s286 + $0x2] sm:$0x2] %v2259
        %v2261 = vld [vmem:[%s286 + $0x4] sm:$0x2]
        %v2262 = vsel %vm2254, %v2208, %v2261
        %2263 = vst [vmem:[%s286 + $0x4] sm:$0x2] %v2262
        %v2264 = vld [vmem:[%s286 + $0x6] sm:$0x2]
        %v2265 = vsel %vm2254, %v2215, %v2264
        %2266 = vst [vmem:[%s286 + $0x6] sm:$0x2] %v2265
        %v2267 = vld [vmem:[%s286 + $0x8] sm:$0x2]
        %v2268 = vsel %vm2254, %v2222, %v2267
        %2269 = vst [vmem:[%s286 + $0x8] sm:$0x2] %v2268
        %v2270 = vld [vmem:[%s286 + $0xa] sm:$0x2]
        %v2271 = vsel %vm2254, %v2229, %v2270
        %2272 = vst [vmem:[%s286 + $0xa] sm:$0x2] %v2271
        %v2273 = vld [vmem:[%s286 + $0xc] sm:$0x2]
        %v2274 = vsel %vm2254, %v2236, %v2273
        %2275 = vst [vmem:[%s286 + $0xc] sm:$0x2] %v2274
        %v2276 = vld [vmem:[%s286 + $0xe] sm:$0x2]
        %v2277 = vsel %vm2254, %v2243, %v2276
        %2278 = vst [vmem:[%s286 + $0xe] sm:$0x2] %v2277
        %v2279 = vld [vmem:[%s264] sm:$0x2]
        %v2280 = vld [vmem:[%s264 + $0x6] sm:$0x2]
        %v2281 = vld [vmem:[%s264 + $0xc] sm:$0x2]
        %v2282 = vld [vmem:[%s264 + $0x12] sm:$0x2]
        %v2283 = vld [vmem:[%s264 + $0x18] sm:$0x2]
        %v2284 = vld [vmem:[%s264 + $0x1e] sm:$0x2]
        %v2285 = vld [vmem:[%s264 + $0x24] sm:$0x2]
        %v2286 = vld [vmem:[%s264 + $0x2a] sm:$0x2]
        %v2287 = vld [vmem:[%s301] sm:$0x2]
        %v2288 = vld [vmem:[%s301 + $0x6] sm:$0x2]
        %v2289 = vld [vmem:[%s301 + $0xc] sm:$0x2]
        %v2290 = vld [vmem:[%s301 + $0x12] sm:$0x2]
        %v2291 = vld [vmem:[%s301 + $0x18] sm:$0x2]
        %v2292 = vld [vmem:[%s301 + $0x1e] sm:$0x2]
        %v2293 = vld [vmem:[%s301 + $0x24] sm:$0x2]
        %v2294 = vld [vmem:[%s301 + $0x2a] sm:$0x2]
        %v2295 = vld [vmem:[%s310] sm:$0x2]
        %v2296 = vld [vmem:[%s310 + $0x6] sm:$0x2]
        %v2297 = vld [vmem:[%s310 + $0xc] sm:$0x2]
        %v2298 = vld [vmem:[%s310 + $0x12] sm:$0x2]
        %v2299 = vld [vmem:[%s310 + $0x18] sm:$0x2]
        %v2300 = vld [vmem:[%s310 + $0x1e] sm:$0x2]
        %v2301 = vld [vmem:[%s310 + $0x24] sm:$0x2]
        %v2302 = vld [vmem:[%s310 + $0x2a] sm:$0x2]
        %v2312 = vunpack.c.l.s4 1983009808
        %v2313 = vunpack.c.0.s8 %v2312
        %v2314 = vlaneseq
        %v2315 = vshrl.u32 %v2314, 7
        %v2316 = vsub.s32 %v2313, %v2315
        %v2317 = vrot.slane %v2279, %v2316
        %v2319 = vunpack.c.l.s4 1983009808
        %v2320 = vunpack.c.0.s8 %v2319
        %v2321 = vlaneseq
        %v2322 = vshrl.u32 %v2321, 7
        %v2323 = vsub.s32 %v2320, %v2322
        %v2324 = vrot.slane %v2280, %v2323
        %v2326 = vunpack.c.l.s4 1983009808
        %v2327 = vunpack.c.0.s8 %v2326
        %v2328 = vlaneseq
        %v2329 = vshrl.u32 %v2328, 7
        %v2330 = vsub.s32 %v2327, %v2329
        %v2331 = vrot.slane %v2281, %v2330
        %v2333 = vunpack.c.l.s4 1983009808
        %v2334 = vunpack.c.0.s8 %v2333
        %v2335 = vlaneseq
        %v2336 = vshrl.u32 %v2335, 7
        %v2337 = vsub.s32 %v2334, %v2336
        %v2338 = vrot.slane %v2282, %v2337
        %v2340 = vunpack.c.l.s4 1983009808
        %v2341 = vunpack.c.0.s8 %v2340
        %v2342 = vlaneseq
        %v2343 = vshrl.u32 %v2342, 7
        %v2344 = vsub.s32 %v2341, %v2343
        %v2345 = vrot.slane %v2283, %v2344
        %v2347 = vunpack.c.l.s4 1983009808
        %v2348 = vunpack.c.0.s8 %v2347
        %v2349 = vlaneseq
        %v2350 = vshrl.u32 %v2349, 7
        %v2351 = vsub.s32 %v2348, %v2350
        %v2352 = vrot.slane %v2284, %v2351
        %v2354 = vunpack.c.l.s4 1983009808
        %v2355 = vunpack.c.0.s8 %v2354
        %v2356 = vlaneseq
        %v2357 = vshrl.u32 %v2356, 7
        %v2358 = vsub.s32 %v2355, %v2357
        %v2359 = vrot.slane %v2285, %v2358
        %v2361 = vunpack.c.l.s4 1983009808
        %v2362 = vunpack.c.0.s8 %v2361
        %v2363 = vlaneseq
        %v2364 = vshrl.u32 %v2363, 7
        %v2365 = vsub.s32 %v2362, %v2364
        %v2366 = vrot.slane %v2286, %v2365
        %v2367 = vunpack.c.l.b16 %v2317
        %v2368 = vunpack.c.l.b16 %v2324
        %v2369 = vunpack.c.l.b16 %v2331
        %v2370 = vunpack.c.l.b16 %v2338
        %v2371 = vunpack.c.l.b16 %v2345
        %v2372 = vunpack.c.l.b16 %v2352
        %v2373 = vunpack.c.l.b16 %v2359
        %v2374 = vunpack.c.l.b16 %v2366
        %v2375 = vrot.slane %v2367, 3
        %v2376 = vrot.slane %v2368, 2
        %v2377 = vsel %vm392, %v2376, %v2375
        %v2378 = vrot.slane %v2369, 1
        %v2379 = vsel %vm395, %v2378, %v2377
        %v2380 = vsel %vm398, %v2370, %v2379
        %v2381 = vrot.slane %v2371, 7
        %v2382 = vsel %vm401, %v2381, %v2380
        %v2383 = vrot.slane %v2372, 6
        %v2384 = vsel %vm404, %v2383, %v2382
        %v2385 = vrot.slane %v2373, 5
        %v2386 = vsel %vm407, %v2385, %v2384
        %v2387 = vrot.slane %v2374, 4
        %v2388 = vsel %vm410, %v2387, %v2386
        %v2389 = vpack.c.b16 %v2388, %v2388
        %v2399 = vunpack.c.l.s4 1983009808
        %v2400 = vunpack.c.0.s8 %v2399
        %v2401 = vlaneseq
        %v2402 = vshrl.u32 %v2401, 7
        %v2403 = vsub.s32 %v2400, %v2402
        %v2404 = vrot.slane %v2287, %v2403
        %v2406 = vunpack.c.l.s4 1983009808
        %v2407 = vunpack.c.0.s8 %v2406
        %v2408 = vlaneseq
        %v2409 = vshrl.u32 %v2408, 7
        %v2410 = vsub.s32 %v2407, %v2409
        %v2411 = vrot.slane %v2288, %v2410
        %v2413 = vunpack.c.l.s4 1983009808
        %v2414 = vunpack.c.0.s8 %v2413
        %v2415 = vlaneseq
        %v2416 = vshrl.u32 %v2415, 7
        %v2417 = vsub.s32 %v2414, %v2416
        %v2418 = vrot.slane %v2289, %v2417
        %v2420 = vunpack.c.l.s4 1983009808
        %v2421 = vunpack.c.0.s8 %v2420
        %v2422 = vlaneseq
        %v2423 = vshrl.u32 %v2422, 7
        %v2424 = vsub.s32 %v2421, %v2423
        %v2425 = vrot.slane %v2290, %v2424
        %v2427 = vunpack.c.l.s4 1983009808
        %v2428 = vunpack.c.0.s8 %v2427
        %v2429 = vlaneseq
        %v2430 = vshrl.u32 %v2429, 7
        %v2431 = vsub.s32 %v2428, %v2430
        %v2432 = vrot.slane %v2291, %v2431
        %v2434 = vunpack.c.l.s4 1983009808
        %v2435 = vunpack.c.0.s8 %v2434
        %v2436 = vlaneseq
        %v2437 = vshrl.u32 %v2436, 7
        %v2438 = vsub.s32 %v2435, %v2437
        %v2439 = vrot.slane %v2292, %v2438
        %v2441 = vunpack.c.l.s4 1983009808
        %v2442 = vunpack.c.0.s8 %v2441
        %v2443 = vlaneseq
        %v2444 = vshrl.u32 %v2443, 7
        %v2445 = vsub.s32 %v2442, %v2444
        %v2446 = vrot.slane %v2293, %v2445
        %v2448 = vunpack.c.l.s4 1983009808
        %v2449 = vunpack.c.0.s8 %v2448
        %v2450 = vlaneseq
        %v2451 = vshrl.u32 %v2450, 7
        %v2452 = vsub.s32 %v2449, %v2451
        %v2453 = vrot.slane %v2294, %v2452
        %v2454 = vunpack.c.l.b16 %v2404
        %v2455 = vunpack.c.l.b16 %v2411
        %v2456 = vunpack.c.l.b16 %v2418
        %v2457 = vunpack.c.l.b16 %v2425
        %v2458 = vunpack.c.l.b16 %v2432
        %v2459 = vunpack.c.l.b16 %v2439
        %v2460 = vunpack.c.l.b16 %v2446
        %v2461 = vunpack.c.l.b16 %v2453
        %v2462 = vrot.slane %v2454, 3
        %v2463 = vrot.slane %v2455, 2
        %v2464 = vsel %vm392, %v2463, %v2462
        %v2465 = vrot.slane %v2456, 1
        %v2466 = vsel %vm395, %v2465, %v2464
        %v2467 = vsel %vm398, %v2457, %v2466
        %v2468 = vrot.slane %v2458, 7
        %v2469 = vsel %vm401, %v2468, %v2467
        %v2470 = vrot.slane %v2459, 6
        %v2471 = vsel %vm404, %v2470, %v2469
        %v2472 = vrot.slane %v2460, 5
        %v2473 = vsel %vm407, %v2472, %v2471
        %v2474 = vrot.slane %v2461, 4
        %v2475 = vsel %vm410, %v2474, %v2473
        %v2476 = vpack.c.b16 %v2475, %v2475
        %v2478 = vsel %vm500, %v2389, 0
        %v2481 = vsel %vm500, %v2476, 0
        %2483 = vmatprep.subr.bf16.mxu0 0
        %2484 = vmatpush1.bf16.xpose.msra.mxu0 %v2481
        %2485 = vmatprep.subr.bf16.mxu0 0
        %2486 = vmatpush1.bf16.xpose.msra.mxu0 0
        %2487 = vmatprep.subr.bf16.mxu0 0
        %2488 = vmatpush1.bf16.xpose.msra.mxu0 0
        %2489 = vmatprep.subr.bf16.mxu0 0
        %2490 = vmatpush1.bf16.xpose.msra.mxu0 0
        %2491 = vmatprep.subr.bf16.mxu0 0
        %2492 = vmatpush1.bf16.xpose.msra.mxu0 0
        %2493 = vmatprep.subr.bf16.mxu0 0
        %2494 = vmatpush1.bf16.xpose.msra.mxu0 0
        %2495 = vmatprep.subr.bf16.mxu0 0
        %2496 = vmatpush1.bf16.xpose.msra.mxu0 0
        %2497 = vmatprep.subr.bf16.mxu0 0
        %2498 = vmatpush1.bf16.xpose.msra.mxu0 0
        %2499 = vmatprep.subr.bf16.mxu0 0
        %2500 = vmatpush1.bf16.xpose.msra.mxu0 0
        %2501 = vmatprep.subr.bf16.mxu0 0
        %2502 = vmatpush1.bf16.xpose.msra.mxu0 0
        %2503 = vmatprep.subr.bf16.mxu0 0
        %2504 = vmatpush1.bf16.xpose.msra.mxu0 0
        %2505 = vmatprep.subr.bf16.mxu0 0
        %2506 = vmatpush1.bf16.xpose.msra.mxu0 0
        %2507 = vmatprep.subr.bf16.mxu0 0
        %2508 = vmatpush1.bf16.xpose.msra.mxu0 0
        %2509 = vmatprep.subr.bf16.mxu0 0
        %2510 = vmatpush1.bf16.xpose.msra.mxu0 0
        %2511 = vmatprep.subr.bf16.mxu0 0
        %2512 = vmatpush1.bf16.xpose.msra.mxu0 0
        %2513 = vmatprep.subr.bf16.mxu0 0
        %2514 = vmatpush1.bf16.xpose.msra.mxu0 0
        %2515 = vmatprep.mubr.bf16.mxu0 0
        %2516 = vmatmul.mubr.bf16.gmra.mrb[0].mxu0 %v2478
        %v2517 = vpop.f32.mrb[0].mxu0
        %v2518 = vadd.f32 0.0, %v2517
        %v2519 = vpop.f32.mrb[0].mxu0
        %v2520 = vpop.f32.mrb[0].mxu0
        %v2521 = vpop.f32.mrb[0].mxu0
        %2522 = vdwg.mxu0
        %v2523 = vld [vmem:[%s547] sm:$0x2]
        %v2524 = vunpack.c.l.bf16 %v2523
        %v2525 = vld [vmem:[%s550] sm:$0x2]
        %v2526 = vunpack.c.l.bf16 %v2525
        %v2527 = vunpack.c.l.bf16 %v2279
        %v2528 = vunpack.c.l.bf16 %v2280
        %v2529 = vunpack.c.l.bf16 %v2281
        %v2530 = vunpack.c.l.bf16 %v2282
        %v2531 = vunpack.c.l.bf16 %v2283
        %v2532 = vunpack.c.l.bf16 %v2284
        %v2533 = vunpack.c.l.bf16 %v2285
        %v2534 = vunpack.c.l.bf16 %v2286
        %v2535 = vlaneseq
        %v2536 = vshrl.u32 %v2535, 7
        %v2537 = vsub.s32 3, %v2536
        %v2538 = vrot.slane %v2524, %v2537
        %v2540 = vcombine.high %v2538, %v2538
        %v2541 = vrot.slane %v2538, 5
        %v2542 = vrot.slane %v2538, 6
        %v2543 = vrot.slane %v2538, 7
        %v2544 = vrot.slane %v2540, 5
        %v2545 = vrot.slane %v2540, 6
        %v2546 = vrot.slane %v2540, 7
        %v2555 = vmul.f32 %v2527, %v2541
        %v2556 = vmul.f32 %v2528, %v2542
        %v2557 = vmul.f32 %v2529, %v2543
        %v2558 = vmul.f32 %v2530, %v2538
        %v2559 = vmul.f32 %v2531, %v2544
        %v2560 = vmul.f32 %v2532, %v2545
        %v2561 = vmul.f32 %v2533, %v2546
        %v2562 = vmul.f32 %v2534, %v2540
        %v2571 = vlaneseq
        %v2572 = vshrl.u32 %v2571, 7
        %v2573 = vsub.s32 3, %v2572
        %v2574 = vrot.slane %v2555, %v2573
        %v2575 = vlaneseq
        %v2576 = vshrl.u32 %v2575, 7
        %v2577 = vsub.s32 3, %v2576
        %v2578 = vrot.slane %v2556, %v2577
        %v2579 = vlaneseq
        %v2580 = vshrl.u32 %v2579, 7
        %v2581 = vsub.s32 3, %v2580
        %v2582 = vrot.slane %v2557, %v2581
        %v2583 = vlaneseq
        %v2584 = vshrl.u32 %v2583, 7
        %v2585 = vsub.s32 3, %v2584
        %v2586 = vrot.slane %v2558, %v2585
        %v2587 = vlaneseq
        %v2588 = vshrl.u32 %v2587, 7
        %v2589 = vsub.s32 3, %v2588
        %v2590 = vrot.slane %v2559, %v2589
        %v2591 = vlaneseq
        %v2592 = vshrl.u32 %v2591, 7
        %v2593 = vsub.s32 3, %v2592
        %v2594 = vrot.slane %v2560, %v2593
        %v2595 = vlaneseq
        %v2596 = vshrl.u32 %v2595, 7
        %v2597 = vsub.s32 3, %v2596
        %v2598 = vrot.slane %v2561, %v2597
        %v2599 = vlaneseq
        %v2600 = vshrl.u32 %v2599, 7
        %v2601 = vsub.s32 3, %v2600
        %v2602 = vrot.slane %v2562, %v2601
        %v2603 = vsel %vm401, %v2578, %v2574
        %v2604 = vsel %vm404, %v2582, %v2603
        %v2605 = vsel %vm407, %v2586, %v2604
        %v2606 = vsel %vm410, %v2590, %v2605
        %v2607 = vsel %vm392, %v2598, %v2594
        %v2608 = vsel %vm395, %v2602, %v2607
        %vm2611 = vcmask 64515
        %v2612 = vsel %vm2611, %v2606, 0.0
        %2613 = vadd.xlane.f32.xlu0 %v2612
        %v2614 = vpop.xlane.xlu0 %2613
        %vm2615 = vcmask 59392
        %v2616 = vsel %vm2615, %v2608, 0.0
        %2617 = vadd.xlane.f32.xlu0 %v2616
        %v2618 = vpop.xlane.xlu0 %2617
        %v2619 = vsel %vm500, %v2518, -inf
        %2620 = vmax.xlane.f32.xlu0 %v2619
        %v2621 = vpop.xlane.xlu0 %2620
        %vm2624 = vcmask 1044480
        %v2625 = vrot.slane %v2614, 3
        %v2626 = vrot.slane %v2618, 3
        %v2627 = vsel %vm2624, %v2625, %v2626
        %v2629 = vmax.f32 %v2621, %v2627
        %2631 = vset.pattern.permute.xlu0 0
        %2632 = vperm.xlu0 %2631, %v2629
        %v2633 = vpop.permute.xlu0 %2632
        %v2635 = vsub.f32 %v2518, %v2633
        %v2636 = vmul.f32 %v2635, 1.442695
        %v2637 = vpow.pop %v2636
        %v2638 = vrot.slane %v2629, 5
        %v2640 = vsub.f32 %v2614, %v2638
        %v2641 = vsub.f32 %v2618, %v2638
        %v2642 = vmul.f32 %v2640, 1.442695
        %v2643 = vpow.pop %v2642
        %v2644 = vmul.f32 %v2641, 1.442695
        %v2645 = vpow.pop %v2644
        %v2646 = vsel %vm500, %v2637, 0.0
        %2647 = vadd.xlane.f32.xlu0 %v2646
        %v2648 = vpop.xlane.xlu0 %2647
        %v2649 = vadd.f32 %v2643, 0.0
        %v2650 = vadd.f32 %v2645, 0.0
        %v2653 = vrot.slane %v2649, 3
        %v2654 = vrot.slane %v2650, 3
        %v2655 = vsel %vm2624, %v2653, %v2654
        %v2657 = vadd.f32 %v2648, %v2655
        %v2658 = vpack.c.bf16 %v2637, %v2637
        %2660 = vset.pattern.permute.xlu0 0
        %2661 = vperm.xlu0 %2660, %v2643
        %v2662 = vpop.permute.xlu0 %2661
        %2665 = vset.pattern.permute.xlu0 0
        %2666 = vperm.xlu0 %2665, %v2645
        %v2667 = vpop.permute.xlu0 %2666
        %v2669 = vlaneseq
        %v2670 = vshrl.u32 %v2669, 7
        %v2671 = vsub.s32 3, %v2670
        %v2672 = vrot.slane %v2526, %v2671
        %v2673 = vmul.f32 %v2662, %v2672
        %v2674 = vmul.f32 %v2667, %v2672
        %v2684 = vunpack.c.l.s4 1983009808
        %v2685 = vunpack.c.0.s8 %v2684
        %v2686 = vlaneseq
        %v2687 = vshrl.u32 %v2686, 7
        %v2688 = vsub.s32 %v2685, %v2687
        %v2689 = vrot.slane %v2295, %v2688
        %v2691 = vunpack.c.l.s4 1983009808
        %v2692 = vunpack.c.0.s8 %v2691
        %v2693 = vlaneseq
        %v2694 = vshrl.u32 %v2693, 7
        %v2695 = vsub.s32 %v2692, %v2694
        %v2696 = vrot.slane %v2296, %v2695
        %v2698 = vunpack.c.l.s4 1983009808
        %v2699 = vunpack.c.0.s8 %v2698
        %v2700 = vlaneseq
        %v2701 = vshrl.u32 %v2700, 7
        %v2702 = vsub.s32 %v2699, %v2701
        %v2703 = vrot.slane %v2297, %v2702
        %v2705 = vunpack.c.l.s4 1983009808
        %v2706 = vunpack.c.0.s8 %v2705
        %v2707 = vlaneseq
        %v2708 = vshrl.u32 %v2707, 7
        %v2709 = vsub.s32 %v2706, %v2708
        %v2710 = vrot.slane %v2298, %v2709
        %v2712 = vunpack.c.l.s4 1983009808
        %v2713 = vunpack.c.0.s8 %v2712
        %v2714 = vlaneseq
        %v2715 = vshrl.u32 %v2714, 7
        %v2716 = vsub.s32 %v2713, %v2715
        %v2717 = vrot.slane %v2299, %v2716
        %v2719 = vunpack.c.l.s4 1983009808
        %v2720 = vunpack.c.0.s8 %v2719
        %v2721 = vlaneseq
        %v2722 = vshrl.u32 %v2721, 7
        %v2723 = vsub.s32 %v2720, %v2722
        %v2724 = vrot.slane %v2300, %v2723
        %v2726 = vunpack.c.l.s4 1983009808
        %v2727 = vunpack.c.0.s8 %v2726
        %v2728 = vlaneseq
        %v2729 = vshrl.u32 %v2728, 7
        %v2730 = vsub.s32 %v2727, %v2729
        %v2731 = vrot.slane %v2301, %v2730
        %v2733 = vunpack.c.l.s4 1983009808
        %v2734 = vunpack.c.0.s8 %v2733
        %v2735 = vlaneseq
        %v2736 = vshrl.u32 %v2735, 7
        %v2737 = vsub.s32 %v2734, %v2736
        %v2738 = vrot.slane %v2302, %v2737
        %v2739 = vunpack.c.l.b16 %v2689
        %v2740 = vunpack.c.l.b16 %v2696
        %v2741 = vunpack.c.l.b16 %v2703
        %v2742 = vunpack.c.l.b16 %v2710
        %v2743 = vunpack.c.l.b16 %v2717
        %v2744 = vunpack.c.l.b16 %v2724
        %v2745 = vunpack.c.l.b16 %v2731
        %v2746 = vunpack.c.l.b16 %v2738
        %v2747 = vrot.slane %v2739, 3
        %v2748 = vrot.slane %v2740, 2
        %v2749 = vsel %vm392, %v2748, %v2747
        %v2750 = vrot.slane %v2741, 1
        %v2751 = vsel %vm395, %v2750, %v2749
        %v2752 = vsel %vm398, %v2742, %v2751
        %v2753 = vrot.slane %v2743, 7
        %v2754 = vsel %vm401, %v2753, %v2752
        %v2755 = vrot.slane %v2744, 6
        %v2756 = vsel %vm404, %v2755, %v2754
        %v2757 = vrot.slane %v2745, 5
        %v2758 = vsel %vm407, %v2757, %v2756
        %v2759 = vrot.slane %v2746, 4
        %v2760 = vsel %vm410, %v2759, %v2758
        %v2761 = vpack.c.b16 %v2760, %v2760
        %v2764 = vrot.slane %v2673, 3
        %v2765 = vrot.slane %v2674, 3
        %v2766 = vsel %vm2624, %v2764, %v2765
        %v2769 = vsel %vm500, %v2658, 0
        %v2772 = vsel %vm751, %v2761, 0
        %2774 = vmatprep.subr.bf16.mxu0 0
        %2775 = vmatpush1.bf16.msra.mxu0 %v2772
        %2776 = vmatprep.subr.bf16.mxu0 0
        %2777 = vmatpush1.bf16.msra.mxu0 0
        %2778 = vmatprep.subr.bf16.mxu0 0
        %2779 = vmatpush1.bf16.msra.mxu0 0
        %2780 = vmatprep.subr.bf16.mxu0 0
        %2781 = vmatpush1.bf16.msra.mxu0 0
        %2782 = vmatprep.subr.bf16.mxu0 0
        %2783 = vmatpush1.bf16.msra.mxu0 0
        %2784 = vmatprep.subr.bf16.mxu0 0
        %2785 = vmatpush1.bf16.msra.mxu0 0
        %2786 = vmatprep.subr.bf16.mxu0 0
        %2787 = vmatpush1.bf16.msra.mxu0 0
        %2788 = vmatprep.subr.bf16.mxu0 0
        %2789 = vmatpush1.bf16.msra.mxu0 0
        %2790 = vmatprep.subr.bf16.mxu0 0
        %2791 = vmatpush1.bf16.msra.mxu0 0
        %2792 = vmatprep.subr.bf16.mxu0 0
        %2793 = vmatpush1.bf16.msra.mxu0 0
        %2794 = vmatprep.subr.bf16.mxu0 0
        %2795 = vmatpush1.bf16.msra.mxu0 0
        %2796 = vmatprep.subr.bf16.mxu0 0
        %2797 = vmatpush1.bf16.msra.mxu0 0
        %2798 = vmatprep.subr.bf16.mxu0 0
        %2799 = vmatpush1.bf16.msra.mxu0 0
        %2800 = vmatprep.subr.bf16.mxu0 0
        %2801 = vmatpush1.bf16.msra.mxu0 0
        %2802 = vmatprep.subr.bf16.mxu0 0
        %2803 = vmatpush1.bf16.msra.mxu0 0
        %2804 = vmatprep.subr.bf16.mxu0 0
        %2805 = vmatpush1.bf16.msra.mxu0 0
        %2806 = vmatprep.mubr.bf16.mxu0 0
        %2807 = vmatmul.mubr.bf16.gmra.mrb[0].mxu0 %v2769
        %v2808 = vpop.f32.mrb[0].mxu0
        %v2809 = vadd.f32 %v2766, %v2808
        %v2810 = vpop.f32.mrb[0].mxu0
        %v2811 = vpop.f32.mrb[0].mxu0
        %v2812 = vpop.f32.mrb[0].mxu0
        %2813 = vdwg.mxu0
        %v2814 = vrcp.pop %v2657
        %2816 = vset.pattern.permute.xlu0 0
        %2817 = vperm.xlu0 %2816, %v2814
        %v2818 = vpop.permute.xlu0 %2817
        %v2820 = vmul.f32 %v2809, %v2818
        %v2821 = vpack.c.bf16 %v2820, %v2820
        %v2824 = vunpack.c.l.s4 1966171168
        %v2825 = vunpack.c.0.s8 %v2824
        %v2826 = vlaneseq
        %v2827 = vshrl.u32 %v2826, 7
        %v2828 = vsub.s32 %v2825, %v2827
        %v2829 = vrot.slane %v2821, %v2828
        %v2830 = vcombine.high %v2829, %v2829
        %v2832 = vunpack.c.l.s4 1966171168
        %v2833 = vunpack.c.0.s8 %v2832
        %v2834 = vlaneseq
        %v2835 = vshrl.u32 %v2834, 7
        %v2836 = vsub.s32 %v2833, %v2835
        %v2837 = vrot.slane %v2829, %v2836
        %v2839 = vunpack.c.l.s4 1966171168
        %v2840 = vunpack.c.0.s8 %v2839
        %v2841 = vlaneseq
        %v2842 = vshrl.u32 %v2841, 7
        %v2843 = vsub.s32 %v2840, %v2842
        %v2844 = vrot.slane %v2830, %v2843
        %v2845 = vcombine.high %v2837, %v2837
        %v2846 = vcombine.high %v2844, %v2844
        %v2847 = vunpack.i.l.s16 %v2837
        %v2848 = vunpack.i.h.s16 %v2837
        %v2849 = vunpack.i.l.s16 %v2844
        %v2850 = vunpack.i.h.s16 %v2844
        %v2851 = vunpack.i.l.s16 %v2845
        %v2852 = vunpack.i.h.s16 %v2845
        %v2853 = vunpack.i.l.s16 %v2846
        %v2854 = vunpack.i.h.s16 %v2846
        %v2855 = vpack.i.b16 %v2847, %v2847
        %v2856 = vpack.i.b16 %v2848, %v2848
        %v2857 = vpack.i.b16 %v2849, %v2849
        %v2858 = vpack.i.b16 %v2850, %v2850
        %v2859 = vpack.i.b16 %v2851, %v2851
        %v2860 = vpack.i.b16 %v2852, %v2852
        %v2861 = vpack.i.b16 %v2853, %v2853
        %v2862 = vpack.i.b16 %v2854, %v2854
        %v2864 = vunpack.c.l.s4 857870592
        %v2865 = vunpack.c.0.s8 %v2864
        %v2866 = vlaneseq
        %v2867 = vshrl.u32 %v2866, 7
        %v2868 = vsub.s32 %v2865, %v2867
        %v2869 = vrot.slane %v2855, %v2868
        %v2871 = vunpack.c.l.s4 857870592
        %v2872 = vunpack.c.0.s8 %v2871
        %v2873 = vlaneseq
        %v2874 = vshrl.u32 %v2873, 7
        %v2875 = vsub.s32 %v2872, %v2874
        %v2876 = vrot.slane %v2856, %v2875
        %v2878 = vunpack.c.l.s4 857870592
        %v2879 = vunpack.c.0.s8 %v2878
        %v2880 = vlaneseq
        %v2881 = vshrl.u32 %v2880, 7
        %v2882 = vsub.s32 %v2879, %v2881
        %v2883 = vrot.slane %v2857, %v2882
        %v2885 = vunpack.c.l.s4 857870592
        %v2886 = vunpack.c.0.s8 %v2885
        %v2887 = vlaneseq
        %v2888 = vshrl.u32 %v2887, 7
        %v2889 = vsub.s32 %v2886, %v2888
        %v2890 = vrot.slane %v2858, %v2889
        %v2892 = vunpack.c.l.s4 857870592
        %v2893 = vunpack.c.0.s8 %v2892
        %v2894 = vlaneseq
        %v2895 = vshrl.u32 %v2894, 7
        %v2896 = vsub.s32 %v2893, %v2895
        %v2897 = vrot.slane %v2859, %v2896
        %v2899 = vunpack.c.l.s4 857870592
        %v2900 = vunpack.c.0.s8 %v2899
        %v2901 = vlaneseq
        %v2902 = vshrl.u32 %v2901, 7
        %v2903 = vsub.s32 %v2900, %v2902
        %v2904 = vrot.slane %v2860, %v2903
        %v2906 = vunpack.c.l.s4 857870592
        %v2907 = vunpack.c.0.s8 %v2906
        %v2908 = vlaneseq
        %v2909 = vshrl.u32 %v2908, 7
        %v2910 = vsub.s32 %v2907, %v2909
        %v2911 = vrot.slane %v2861, %v2910
        %v2913 = vunpack.c.l.s4 857870592
        %v2914 = vunpack.c.0.s8 %v2913
        %v2915 = vlaneseq
        %v2916 = vshrl.u32 %v2915, 7
        %v2917 = vsub.s32 %v2914, %v2916
        %v2918 = vrot.slane %v2862, %v2917
        %vm2927 = vsmask.f32 7942
        %vm2928 = vmand %vm2252, %vm2927
        %v2929 = vld [vmem:[%s286] sm:$0x2]
        %v2930 = vsel %vm2928, %v2869, %v2929
        %2931 = vst [vmem:[%s286] sm:$0x2] %v2930
        %v2932 = vld [vmem:[%s286 + $0x2] sm:$0x2]
        %v2933 = vsel %vm2928, %v2876, %v2932
        %2934 = vst [vmem:[%s286 + $0x2] sm:$0x2] %v2933
        %v2935 = vld [vmem:[%s286 + $0x4] sm:$0x2]
        %v2936 = vsel %vm2928, %v2883, %v2935
        %2937 = vst [vmem:[%s286 + $0x4] sm:$0x2] %v2936
        %v2938 = vld [vmem:[%s286 + $0x6] sm:$0x2]
        %v2939 = vsel %vm2928, %v2890, %v2938
        %2940 = vst [vmem:[%s286 + $0x6] sm:$0x2] %v2939
        %v2941 = vld [vmem:[%s286 + $0x8] sm:$0x2]
        %v2942 = vsel %vm2928, %v2897, %v2941
        %2943 = vst [vmem:[%s286 + $0x8] sm:$0x2] %v2942
        %v2944 = vld [vmem:[%s286 + $0xa] sm:$0x2]
        %v2945 = vsel %vm2928, %v2904, %v2944
        %2946 = vst [vmem:[%s286 + $0xa] sm:$0x2] %v2945
        %v2947 = vld [vmem:[%s286 + $0xc] sm:$0x2]
        %v2948 = vsel %vm2928, %v2911, %v2947
        %2949 = vst [vmem:[%s286 + $0xc] sm:$0x2] %v2948
        %v2950 = vld [vmem:[%s286 + $0xe] sm:$0x2]
        %v2951 = vsel %vm2928, %v2918, %v2950
        %2952 = vst [vmem:[%s286 + $0xe] sm:$0x2] %v2951
        %s2953 = sand.u32 %s73, 1
        %s2954 = sand.u32 %s73, 1
        %s2955 = smul.addr %s2954, 16
        %s2956 = scalar_lea.vmem [#allocation3], %s2955
        // Predicated region
        $region70: #{run.26} parent=64 // pred_check
          %p2957 = pneg %p83
        $region71: #{run.26} parent=64 // pred_check_branch
          %2959 = sbr.rel (%p2957) target = $region73
        $region72: #{run.26} parent=64 // pred_region
          %s2960 = smul.addr %s13, 2
          %s2961 = scalar_lea.vmem %s2, %s2960
          // Predicated region
          $region74: #{run.26} parent=72 // pred_check
            _
          $region75: #{run.26} parent=72 // pred_check_branch
            %2963 = sbr.rel (0) target = $region77
          $region76: #{run.26} parent=72 // pred_region
            // Predicated region
            $region78: #{run.26} parent=76 // pred_check
              _
            $region79: #{run.26} parent=76 // pred_check_branch
              %2965 = sbr.rel target = $region81
            $region80: #{run.26} parent=76 // pred_region
              // Predicated region
              $region93: #{run.26} parent=80 // pred_check
                _
              $region94: #{run.26} parent=80 // pred_check_branch
                %2994 = sbr.rel (0) target = $region96
              $region95: #{run.26} parent=80 // pred_region
                loop: start=0, step=1, limit=1
                $region97: #{run.26} parent=95 // loop_pre_header
                  _
                $region98: #{run.26} parent=95 // loop_header
                  %s2996 = sphi 0, %s3000
                  %p2997 = scmp.ge.s32.totalorder %s2996, 1
                  %s3001 = sphi %s2956, %s2956
                  %s3002 = sphi %s2961, %s2961
                $region99: #{run.26} parent=95 // loop_header_branch
                  %2999 = sbr.rel (%p2997) target = $region103
                $region100: #{run.26} parent=95 // loop_body
                  _
                $region101: #{run.26} parent=95 // loop_footer
                  %s3000 = sadd.s32 1, %s2996
                $region102: #{run.26} parent=95 // loop_footer_branch
                  %2995 = sbr.rel target = $region98
                $region103: #{run.26} parent=95 // loop_exit
                  _
                loop: start=0, step=1, limit=1
                $region104: #{run.26} parent=95 // loop_pre_header
                  _
                $region105: #{run.26} parent=95 // loop_header
                  %s3005 = sphi 0, %s3009
                  %p3006 = scmp.ge.s32.totalorder %s3005, 1
                  %s3010 = sphi %s2956, %s2956
                  %s3011 = sphi %s2961, %s2961
                $region106: #{run.26} parent=95 // loop_header_branch
                  %3008 = sbr.rel (%p3006) target = $region110
                $region107: #{run.26} parent=95 // loop_body
                  %v3012 = vld [vmem:[%s3010] sm:$0x3]
                  %3013 = vst [vmem:[%s3011] sm:$0x3] %v3012
                  %v3014 = vld [vmem:[%s3010 + $0x2] sm:$0x3]
                  %3015 = vst [vmem:[%s3011 + $0x10] sm:$0x3] %v3014
                  %v3016 = vld [vmem:[%s3010 + $0x4] sm:$0x3]
                  %3017 = vst [vmem:[%s3011 + $0x20] sm:$0x3] %v3016
                  %v3018 = vld [vmem:[%s3010 + $0x6] sm:$0x3]
                  %3019 = vst [vmem:[%s3011 + $0x30] sm:$0x3] %v3018
                  %v3020 = vld [vmem:[%s3010 + $0x8] sm:$0x3]
                  %3021 = vst [vmem:[%s3011 + $0x40] sm:$0x3] %v3020
                  %v3022 = vld [vmem:[%s3010 + $0xa] sm:$0x3]
                  %3023 = vst [vmem:[%s3011 + $0x50] sm:$0x3] %v3022
                  %v3024 = vld [vmem:[%s3010 + $0xc] sm:$0x3]
                  %3025 = vst [vmem:[%s3011 + $0x60] sm:$0x3] %v3024
                  %v3026 = vld [vmem:[%s3010 + $0xe] sm:$0x3]
                  %3027 = vst [vmem:[%s3011 + $0x70] sm:$0x3] %v3026
                $region108: #{run.26} parent=95 // loop_footer
                  %s3009 = sadd.s32 1, %s3005
                $region109: #{run.26} parent=95 // loop_footer_branch
                  %3004 = sbr.rel target = $region105
                $region110: #{run.26} parent=95 // loop_exit
                  _
              $region96: #{run.26} parent=80 // pred_fallthru
                _
            $region81: #{run.26} parent=76 // pred_fallthru
              _
            // Predicated region
            $region82: #{run.26} parent=76 // pred_check
              _
            $region83: #{run.26} parent=76 // pred_check_branch
              %2967 = sbr.rel (0) target = $region85
            $region84: #{run.26} parent=76 // pred_region
              loop: start=0, step=1, limit=1
              $region86: #{run.26} parent=84 // loop_pre_header
                _
              $region87: #{run.26} parent=84 // loop_header
                %s2970 = sphi 0, %s2974
                %p2971 = scmp.ge.s32.totalorder %s2970, 1
                %s2975 = sphi %s2956, %s2956
                %s2976 = sphi %s2961, %s2961
              $region88: #{run.26} parent=84 // loop_header_branch
                %2973 = sbr.rel (%p2971) target = $region92
              $region89: #{run.26} parent=84 // loop_body
                %v2977 = vld [vmem:[%s2975] sm:$0x3]
                %2978 = vst [vmem:[%s2976] sm:$0x3] %v2977
                %v2979 = vld [vmem:[%s2975 + $0x2] sm:$0x3]
                %2980 = vst [vmem:[%s2976 + $0x10] sm:$0x3] %v2979
                %v2981 = vld [vmem:[%s2975 + $0x4] sm:$0x3]
                %2982 = vst [vmem:[%s2976 + $0x20] sm:$0x3] %v2981
                %v2983 = vld [vmem:[%s2975 + $0x6] sm:$0x3]
                %2984 = vst [vmem:[%s2976 + $0x30] sm:$0x3] %v2983
                %v2985 = vld [vmem:[%s2975 + $0x8] sm:$0x3]
                %2986 = vst [vmem:[%s2976 + $0x40] sm:$0x3] %v2985
                %v2987 = vld [vmem:[%s2975 + $0xa] sm:$0x3]
                %2988 = vst [vmem:[%s2976 + $0x50] sm:$0x3] %v2987
                %v2989 = vld [vmem:[%s2975 + $0xc] sm:$0x3]
                %2990 = vst [vmem:[%s2976 + $0x60] sm:$0x3] %v2989
                %v2991 = vld [vmem:[%s2975 + $0xe] sm:$0x3]
                %2992 = vst [vmem:[%s2976 + $0x70] sm:$0x3] %v2991
              $region90: #{run.26} parent=84 // loop_footer
                %s2974 = sadd.s32 1, %s2970
              $region91: #{run.26} parent=84 // loop_footer_branch
                %2969 = sbr.rel target = $region87
              $region92: #{run.26} parent=84 // loop_exit
                _
            $region85: #{run.26} parent=76 // pred_fallthru
              _
          $region77: #{run.26} parent=72 // pred_fallthru
            _
          %3028 = vnop
        $region73: #{run.26} parent=64 // pred_fallthru
          _
      $region65: #{run.26} parent=5 // pred_fallthru
        _
      %p3029 = scmp.le.s32.totalorder 2, %s8
      // Predicated region
      $region111: #{run.26} parent=5 // pred_check
        %p3030 = pneg %p3029
      $region112: #{run.26} parent=5 // pred_check_branch
        %3032 = sbr.rel (%p3030) target = $region114
      $region113: #{run.26} parent=5 // pred_region
        %s3033 = ssub.s32 %s8, 2
        // Predicated region
        $region115: #{run.26} parent=113 // pred_check
          %p3034 = pneg %p89
        $region116: #{run.26} parent=113 // pred_check_branch
          %3036 = sbr.rel (%p3034) target = $region118
        $region117: #{run.26} parent=113 // pred_region
          %s3037 = sand.u32 %s74, 1
          %s3038 = sand.u32 %s74, 1
          %s3039 = smul.addr %s3038, 16
          %s3040 = scalar_lea.vmem [#allocation3], %s3039
        $region118: #{run.26} parent=113 // pred_fallthru
          _
      $region114: #{run.26} parent=5 // pred_fallthru
        _
    $region6: #{run.26} parent=1 // loop_footer
      %s12 = sadd.s32 1, %s8
    $region7: #{run.26} parent=1 // loop_footer_branch
      %7 = sbr.rel target = $region3
    $region8: #{run.26} parent=1 // loop_exit
      _

</llo_original>
